<compile_context>
chip_gen: v5e
topology: v5e:2x2
jax: 0.10.0
libtpu: 0.0.40
codegen_flags: <defaults>
</compile_context>

<pallas_src>
import numpy as np
import jax
import jax.numpy as jnp
from jax.experimental import pallas as pl
from jax.experimental.pallas import tpu as pltpu

# Original module uses img_size = 128; architecture is identical, demo runs at
# a small spatial size.
IMG_SIZE = 16
H = W = IMG_SIZE
HP, WP = H + 2, W + 2            # zero-padded spatial extent (pad=1 convs)
NP = HP * WP                     # flattened padded spatial size (324)
L0 = WP + 1                      # lane offset of padded pixel (0, 0)
NE = 384                         # extended lane width (mult of 128, >= NP + 2*(WP+1))
assert NE >= NP + 2 * (WP + 1)
PH, PW = H // 2, W // 2          # pooled spatial
NPOOL = PH * PW                  # 64
NOUT = H * W                     # 256
E1 = 16 * PH * PW                # 1024 at IMG_SIZE=16
E2 = 1024


# ----------------------------------------------------------------------------
# In-kernel helpers
# ----------------------------------------------------------------------------
def _shift(x, s):
    """shifted[:, l] = x[:, l + s] (lane shift via XLU roll; wrap never reaches
    lanes that contribute to valid outputs by construction of NE)."""
    if s == 0:
        return x
    return pltpu.roll(x, shift=(-s) % NE, axis=1)


def _conv3x3(x_ext, w_ref):
    """3x3 pad=1 conv in extended channel-major layout.
    w_ref[k] is (Cout, Cin) for tap k = dy*3 + dx."""
    acc = None
    for k in range(9):
        dy, dx = divmod(k, 3)
        s = (dy - 1) * WP + (dx - 1)
        t = jnp.dot(w_ref[k], _shift(x_ext, s), preferred_element_type=jnp.float32)
        acc = t if acc is None else acc + t
    return acc


# ----------------------------------------------------------------------------
# Fused encoder conv kernel: conv1 + ReLU + conv2 + ReLU + maxpool + NCHW flatten
# ----------------------------------------------------------------------------
def _encoder_kernel(x_ref, w1_ref, b1_ref, w2_ref, b2_ref, mask_ref, spool_ref,
                    o_ref):
    mask = mask_ref[...]                                   # (1, NE) interior mask
    x = x_ref[0]                                           # (3, NE)
    y1 = jnp.maximum(_conv3x3(x, w1_ref) + b1_ref[...], 0.0) * mask    # (8, NE)
    y2 = jnp.maximum(_conv3x3(y1, w2_ref) + b2_ref[...], 0.0)          # (16, NE)
    # 2x2 max pool via shifted maxes + selection matmul (compaction on the MXU).
    mh = jnp.maximum(y2, _shift(y2, 1))
    mv = jnp.maximum(mh, _shift(mh, WP))
    o_ref[0] = jnp.dot(mv, spool_ref[...], preferred_element_type=jnp.float32)


def encoder_convs(x_ext, w1, b1, w2, b2, mask, s_pool):
    B = x_ext.shape[0]
    return pl.pallas_call(
        _encoder_kernel,
        out_shape=jax.ShapeDtypeStruct((B, 16, NPOOL), jnp.float32),
        grid_spec=pltpu.PrefetchScalarGridSpec(
            num_scalar_prefetch=0,
            grid=(B,),
            in_specs=[
                pl.BlockSpec((1, 3, NE), lambda b: (b, 0, 0)),
                pl.BlockSpec((9, 8, 3), lambda b: (0, 0, 0)),
                pl.BlockSpec((8, 1), lambda b: (0, 0)),
                pl.BlockSpec((9, 16, 8), lambda b: (0, 0, 0)),
                pl.BlockSpec((16, 1), lambda b: (0, 0)),
                pl.BlockSpec((1, NE), lambda b: (0, 0)),
                pl.BlockSpec((NE, NPOOL), lambda b: (0, 0)),
            ],
            out_specs=pl.BlockSpec((1, 16, NPOOL), lambda b: (b, 0, 0)),
        ),
        compiler_params=pltpu.CompilerParams(dimension_semantics=("parallel",)),
    )(x_ext, w1, b1, w2, b2, mask, s_pool)


# ----------------------------------------------------------------------------
# Fused decoder conv kernel: deconv1(k=2,s=2) + ReLU + deconv2(k=3,p=1) + Tanh
# ----------------------------------------------------------------------------
def _decoder_kernel(z_ref, wt1_ref, ssc_ref, bd1_ref, mask_ref,
                    w2d_ref, bd2_ref, sout_ref, o_ref):
    z = z_ref[0]                                           # (16, NPOOL)
    # ConvTranspose2d(16->8, k=2, s=2): 4 phase matmuls + scatter matmuls
    # (pixel shuffle folded into the 0/1 scatter matrices).
    d = None
    for p in range(4):
        phase = jnp.dot(wt1_ref[p], z, preferred_element_type=jnp.float32)   # (8, 64)
        t = jnp.dot(phase, ssc_ref[p], preferred_element_type=jnp.float32)   # (8, NE)
        d = t if d is None else d + t
    d = jnp.maximum(d + bd1_ref[...], 0.0) * mask_ref[...]                   # (8, NE)
    # ConvTranspose2d(8->3, k=3, s=1, p=1) == conv with flipped/swapped kernel.
    acc = _conv3x3(d, w2d_ref)                                               # (3, NE)
    out = jnp.dot(acc, sout_ref[...], preferred_element_type=jnp.float32)    # (3, 256)
    o_ref[0] = jnp.tanh(out + bd2_ref[...])


def decoder_convs(z, wt1, s_scatter, bd1, mask, w2d, bd2, s_out):
    B = z.shape[0]
    return pl.pallas_call(
        _decoder_kernel,
        out_shape=jax.ShapeDtypeStruct((B, 3, NOUT), jnp.float32),
        grid_spec=pltpu.PrefetchScalarGridSpec(
            num_scalar_prefetch=0,
            grid=(B,),
            in_specs=[
                pl.BlockSpec((1, 16, NPOOL), lambda b: (b, 0, 0)),
                pl.BlockSpec((4, 8, 16), lambda b: (0, 0, 0)),
                pl.BlockSpec((4, NPOOL, NE), lambda b: (0, 0, 0)),
                pl.BlockSpec((8, 1), lambda b: (0, 0)),
                pl.BlockSpec((1, NE), lambda b: (0, 0)),
                pl.BlockSpec((9, 3, 8), lambda b: (0, 0, 0)),
                pl.BlockSpec((3, 1), lambda b: (0, 0)),
                pl.BlockSpec((NE, NOUT), lambda b: (0, 0)),
            ],
            out_specs=pl.BlockSpec((1, 3, NOUT), lambda b: (b, 0, 0)),
        ),
        compiler_params=pltpu.CompilerParams(dimension_semantics=("parallel",)),
    )(z, wt1, s_scatter, bd1, mask, w2d, bd2, s_out)


# ----------------------------------------------------------------------------
# FC layers: N-tiled matmul, bf16 weights, f32 accumulation + fused epilogue
# ----------------------------------------------------------------------------
def _make_fc_kernel(act):
    def kernel(x_ref, w_ref, b_ref, o_ref):
        y = jnp.dot(x_ref[...].astype(jnp.bfloat16), w_ref[...],
                    preferred_element_type=jnp.float32)
        y = y + b_ref[...]
        if act == "relu":
            y = jnp.maximum(y, 0.0)
        o_ref[...] = y.astype(o_ref.dtype)
    return kernel


def fc_layer(x, w_bf16, b, act=None, tn=256):
    M, K = x.shape
    Kw, N = w_bf16.shape
    assert K == Kw and N % tn == 0
    # TODO(synk): at the real img_size=128 (E1=65536) also tile K with an
    # "arbitrary" reduction axis + VMEM accumulator so double-buffered weight
    # blocks stay well inside v7x's 64 MiB VMEM.
    return pl.pallas_call(
        _make_fc_kernel(act),
        out_shape=jax.ShapeDtypeStruct((M, N), jnp.float32),
        grid_spec=pltpu.PrefetchScalarGridSpec(
            num_scalar_prefetch=0,
            grid=(N // tn,),
            in_specs=[
                pl.BlockSpec((M, K), lambda j: (0, 0)),
                pl.BlockSpec((K, tn), lambda j: (0, j)),
                pl.BlockSpec((1, tn), lambda j: (0, j)),
            ],
            out_specs=pl.BlockSpec((M, tn), lambda j: (0, j)),
        ),
        compiler_params=pltpu.CompilerParams(dimension_semantics=("parallel",)),
    )(x, w_bf16, b)


# ----------------------------------------------------------------------------
# One-time parameter / constant preparation (plain JAX + numpy, outside jit)
# ----------------------------------------------------------------------------
def _build_constants():
    mask = np.zeros((1, NE), np.float32)
    s_pool = np.zeros((NE, NPOOL), np.float32)
    s_out = np.zeros((NE, NOUT), np.float32)
    s_scatter = np.zeros((4, NPOOL, NE), np.float32)
    for y in range(H):
        for x in range(W):
            l = L0 + (y + 1) * WP + (x + 1)
            mask[0, l] = 1.0
            s_out[l, y * W + x] = 1.0
    for py in range(PH):
        for px in range(PW):
            j = py * PW + px
            s_pool[L0 + (2 * py + 1) * WP + (2 * px + 1), j] = 1.0
            for dy in range(2):
                for dx in range(2):
                    l = L0 + (2 * py + dy + 1) * WP + (2 * px + dx + 1)
                    s_scatter[dy * 2 + dx, j, l] = 1.0
    return mask, s_pool, s_scatter, s_out


def _init(key, shape, fan_in):
    bound = 1.0 / (fan_in ** 0.5)
    return jax.random.uniform(key, shape, jnp.float32, -bound, bound)


def init_params(key):
    ks = jax.random.split(key, 12)
    p = {}
    # PyTorch shapes: Conv2d (Cout,Cin,kH,kW); ConvTranspose2d (Cin,Cout,kH,kW);
    # Linear (out,in).
    p["conv1_w"] = _init(ks[0], (8, 3, 3, 3), 3 * 9)
    p["conv1_b"] = _init(ks[1], (8,), 3 * 9)
    p["conv2_w"] = _init(ks[2], (16, 8, 3, 3), 8 * 9)
    p["conv2_b"] = _init(ks[3], (16,), 8 * 9)
    p["enc_fc_w"] = _init(ks[4], (E2, E1), E1)
    p["enc_fc_b"] = _init(ks[5], (E2,), E1)
    p["dec_fc_w"] = _init(ks[6], (E1, E2), E2)
    p["dec_fc_b"] = _init(ks[7], (E1,), E2)
    p["deconv1_w"] = _init(ks[8], (16, 8, 2, 2), 16 * 4)
    p["deconv1_b"] = _init(ks[9], (8,), 16 * 4)
    p["deconv2_w"] = _init(ks[10], (8, 3, 3, 3), 8 * 9)
    p["deconv2_b"] = _init(ks[11], (3,), 8 * 9)
    return p


def prepare_params(p):
    """Re-layout weights once for the kernels (not inside the jitted forward)."""
    mask, s_pool, s_scatter, s_out = _build_constants()
    q = {}
    # conv taps: q[k, co, ci] = W[co, ci, dy, dx], k = dy*3 + dx
    q["w1"] = p["conv1_w"].transpose(2, 3, 0, 1).reshape(9, 8, 3)
    q["b1"] = p["conv1_b"].reshape(8, 1)
    q["w2"] = p["conv2_w"].transpose(2, 3, 0, 1).reshape(9, 16, 8)
    q["b2"] = p["conv2_b"].reshape(16, 1)
    # FC weights: (in, out) layout, bf16 storage (f32 accumulation in-kernel).
    q["enc_fc_w"] = p["enc_fc_w"].T.astype(jnp.bfloat16)
    q["enc_fc_b"] = p["enc_fc_b"].reshape(1, E2)
    q["dec_fc_w"] = p["dec_fc_w"].T.astype(jnp.bfloat16)
    q["dec_fc_b"] = p["dec_fc_b"].reshape(1, E1)
    # deconv1 phases: q[p, co, ci] = Wt[ci, co, dy, dx], p = dy*2 + dx
    q["wt1"] = p["deconv1_w"].transpose(2, 3, 1, 0).reshape(4, 8, 16)
    q["bd1"] = p["deconv1_b"].reshape(8, 1)
    # deconv2 as conv: q[k, co, ci] = Wt[ci, co, 2-dy, 2-dx]
    q["w2d"] = jnp.flip(p["deconv2_w"], axis=(2, 3)).transpose(2, 3, 1, 0).reshape(9, 3, 8)
    q["bd2"] = p["deconv2_b"].reshape(3, 1)
    q["mask"] = jnp.asarray(mask)
    q["s_pool"] = jnp.asarray(s_pool)
    q["s_scatter"] = jnp.asarray(s_scatter)
    q["s_out"] = jnp.asarray(s_out)
    return q


# ----------------------------------------------------------------------------
# Forward pass
# ----------------------------------------------------------------------------
def autoencoder_forward(q, x_nchw):
    B = x_nchw.shape[0]
    # Glue: zero-pad spatially and embed each channel plane into the extended
    # flattened lane layout (lane = L0 + yp*WP + xp), zeros elsewhere.
    xp = jnp.pad(x_nchw, ((0, 0), (0, 0), (1, 1), (1, 1))).reshape(B, 3, NP)
    x_ext = jnp.pad(xp, ((0, 0), (0, 0), (L0, NE - NP - L0)))

    # ----- encoder -----
    pooled = encoder_convs(x_ext, q["w1"], q["b1"], q["w2"], q["b2"],
                           q["mask"], q["s_pool"])                  # (B, 16, 64)
    flat = pooled.reshape(B, E1)                                    # NCHW flatten
    code = fc_layer(flat, q["enc_fc_w"], q["enc_fc_b"], act=None)   # (B, E2)

    # ----- decoder -----
    z = fc_layer(code, q["dec_fc_w"], q["dec_fc_b"], act="relu")    # (B, E1)
    z = z.reshape(B, 16, NPOOL)                                     # View + ReLU done
    out = decoder_convs(z, q["wt1"], q["s_scatter"], q["bd1"], q["mask"],
                        q["w2d"], q["bd2"], q["s_out"])             # (B, 3, 256)
    return out.reshape(B, 3, H, W)


if __name__ == "__main__":
    key = jax.random.PRNGKey(0)
    pkey, xkey = jax.random.split(key)
    params = init_params(pkey)
    prepared = prepare_params(params)
    x = jax.random.normal(xkey, (2, 3, IMG_SIZE, IMG_SIZE), jnp.float32)

    fwd = jax.jit(autoencoder_forward)
    out = fwd(prepared, x)
    jax.block_until_ready(out)

    assert out.shape == (2, 3, IMG_SIZE, IMG_SIZE), out.shape
    assert out.dtype == jnp.float32
    print("KERNEL_OK")
</pallas_src>

<mosaic_0001>
module attributes {stable_mosaic.version = 11 : i64} {
  func.func @_decoder_kernel(%arg0: i32, %arg1: memref<1x16x64xf32, #tpu.memory_space<vmem>>, %arg2: memref<4x8x16xf32, #tpu.memory_space<vmem>>, %arg3: memref<4x64x384xf32, #tpu.memory_space<vmem>>, %arg4: memref<8x1xf32, #tpu.memory_space<vmem>>, %arg5: memref<1x384xf32, #tpu.memory_space<vmem>>, %arg6: memref<9x3x8xf32, #tpu.memory_space<vmem>>, %arg7: memref<3x1xf32, #tpu.memory_space<vmem>>, %arg8: memref<384x256xf32, #tpu.memory_space<vmem>>, %arg9: memref<1x3x256xf32, #tpu.memory_space<vmem>>) attributes {dimension_semantics = [#tpu.dimension_semantics<parallel>], iteration_bounds = array<i64: 2>, scalar_prefetch = 0 : i64, scratch_operands = 0 : i64, tpu.core_type = #tpu.core_type<tc>, window_params = [{transform_indices = @transform_0, window_bounds = array<i64: 1, 16, 64>}, {pipeline_mode = #tpu.pipeline_mode<synchronous>, transform_indices = @transform_1, window_bounds = array<i64: 4, 8, 16>}, {pipeline_mode = #tpu.pipeline_mode<synchronous>, transform_indices = @transform_2, window_bounds = array<i64: 4, 64, 384>}, {pipeline_mode = #tpu.pipeline_mode<synchronous>, transform_indices = @transform_3, window_bounds = array<i64: 8, 1>}, {pipeline_mode = #tpu.pipeline_mode<synchronous>, transform_indices = @transform_4, window_bounds = array<i64: 1, 384>}, {pipeline_mode = #tpu.pipeline_mode<synchronous>, transform_indices = @transform_5, window_bounds = array<i64: 9, 3, 8>}, {pipeline_mode = #tpu.pipeline_mode<synchronous>, transform_indices = @transform_6, window_bounds = array<i64: 3, 1>}, {pipeline_mode = #tpu.pipeline_mode<synchronous>, transform_indices = @transform_7, window_bounds = array<i64: 384, 256>}, {transform_indices = @transform_8, window_bounds = array<i64: 1, 3, 256>}]} {
    %c0 = arith.constant 0 : index
    %c0_0 = arith.constant 0 : index
    %c0_1 = arith.constant 0 : index
    %0 = vector.load %arg1[%c0, %c0_0, %c0_1] : memref<1x16x64xf32, #tpu.memory_space<vmem>>, vector<1x16x64xf32>
    %1 = vector.shape_cast %0 : vector<1x16x64xf32> to vector<16x64xf32>
    %c0_2 = arith.constant 0 : index
    %c0_3 = arith.constant 0 : index
    %c0_4 = arith.constant 0 : index
    %2 = vector.load %arg2[%c0_2, %c0_3, %c0_4] : memref<4x8x16xf32, #tpu.memory_space<vmem>>, vector<1x8x16xf32>
    %3 = vector.shape_cast %2 : vector<1x8x16xf32> to vector<8x16xf32>
    %cst = arith.constant dense<0.000000e+00> : vector<8x64xf32>
    %4 = tpu.matmul %3, %1, %cst {dimension_numbers = #tpu.dot_dimension_numbers<[1], [0], [0], [1], [0, 0, 1, 1], [], []>} : vector<8x16xf32>, vector<16x64xf32>, vector<8x64xf32> -> vector<8x64xf32>
    %c0_5 = arith.constant 0 : index
    %c0_6 = arith.constant 0 : index
    %c0_7 = arith.constant 0 : index
    %5 = vector.load %arg3[%c0_5, %c0_6, %c0_7] : memref<4x64x384xf32, #tpu.memory_space<vmem>>, vector<1x64x384xf32>
    %6 = vector.shape_cast %5 : vector<1x64x384xf32> to vector<64x384xf32>
    %cst_8 = arith.constant dense<0.000000e+00> : vector<8x384xf32>
    %7 = tpu.matmul %4, %6, %cst_8 {dimension_numbers = #tpu.dot_dimension_numbers<[1], [0], [0], [1], [0, 0, 1, 1], [], []>} : vector<8x64xf32>, vector<64x384xf32>, vector<8x384xf32> -> vector<8x384xf32>
    %c1 = arith.constant 1 : index
    %c0_9 = arith.constant 0 : index
    %c0_10 = arith.constant 0 : index
    %8 = vector.load %arg2[%c1, %c0_9, %c0_10] : memref<4x8x16xf32, #tpu.memory_space<vmem>>, vector<1x8x16xf32>
    %9 = vector.shape_cast %8 : vector<1x8x16xf32> to vector<8x16xf32>
    %cst_11 = arith.constant dense<0.000000e+00> : vector<8x64xf32>
    %10 = tpu.matmul %9, %1, %cst_11 {dimension_numbers = #tpu.dot_dimension_numbers<[1], [0], [0], [1], [0, 0, 1, 1], [], []>} : vector<8x16xf32>, vector<16x64xf32>, vector<8x64xf32> -> vector<8x64xf32>
    %c1_12 = arith.constant 1 : index
    %c0_13 = arith.constant 0 : index
    %c0_14 = arith.constant 0 : index
    %11 = vector.load %arg3[%c1_12, %c0_13, %c0_14] : memref<4x64x384xf32, #tpu.memory_space<vmem>>, vector<1x64x384xf32>
    %12 = vector.shape_cast %11 : vector<1x64x384xf32> to vector<64x384xf32>
    %cst_15 = arith.constant dense<0.000000e+00> : vector<8x384xf32>
    %13 = tpu.matmul %10, %12, %cst_15 {dimension_numbers = #tpu.dot_dimension_numbers<[1], [0], [0], [1], [0, 0, 1, 1], [], []>} : vector<8x64xf32>, vector<64x384xf32>, vector<8x384xf32> -> vector<8x384xf32>
    %14 = arith.addf %7, %13 : vector<8x384xf32>
    %c2 = arith.constant 2 : index
    %c0_16 = arith.constant 0 : index
    %c0_17 = arith.constant 0 : index
    %15 = vector.load %arg2[%c2, %c0_16, %c0_17] : memref<4x8x16xf32, #tpu.memory_space<vmem>>, vector<1x8x16xf32>
    %16 = vector.shape_cast %15 : vector<1x8x16xf32> to vector<8x16xf32>
    %cst_18 = arith.constant dense<0.000000e+00> : vector<8x64xf32>
    %17 = tpu.matmul %16, %1, %cst_18 {dimension_numbers = #tpu.dot_dimension_numbers<[1], [0], [0], [1], [0, 0, 1, 1], [], []>} : vector<8x16xf32>, vector<16x64xf32>, vector<8x64xf32> -> vector<8x64xf32>
    %c2_19 = arith.constant 2 : index
    %c0_20 = arith.constant 0 : index
    %c0_21 = arith.constant 0 : index
    %18 = vector.load %arg3[%c2_19, %c0_20, %c0_21] : memref<4x64x384xf32, #tpu.memory_space<vmem>>, vector<1x64x384xf32>
    %19 = vector.shape_cast %18 : vector<1x64x384xf32> to vector<64x384xf32>
    %cst_22 = arith.constant dense<0.000000e+00> : vector<8x384xf32>
    %20 = tpu.matmul %17, %19, %cst_22 {dimension_numbers = #tpu.dot_dimension_numbers<[1], [0], [0], [1], [0, 0, 1, 1], [], []>} : vector<8x64xf32>, vector<64x384xf32>, vector<8x384xf32> -> vector<8x384xf32>
    %21 = arith.addf %14, %20 : vector<8x384xf32>
    %c3 = arith.constant 3 : index
    %c0_23 = arith.constant 0 : index
    %c0_24 = arith.constant 0 : index
    %22 = vector.load %arg2[%c3, %c0_23, %c0_24] : memref<4x8x16xf32, #tpu.memory_space<vmem>>, vector<1x8x16xf32>
    %23 = vector.shape_cast %22 : vector<1x8x16xf32> to vector<8x16xf32>
    %cst_25 = arith.constant dense<0.000000e+00> : vector<8x64xf32>
    %24 = tpu.matmul %23, %1, %cst_25 {dimension_numbers = #tpu.dot_dimension_numbers<[1], [0], [0], [1], [0, 0, 1, 1], [], []>} : vector<8x16xf32>, vector<16x64xf32>, vector<8x64xf32> -> vector<8x64xf32>
    %c3_26 = arith.constant 3 : index
    %c0_27 = arith.constant 0 : index
    %c0_28 = arith.constant 0 : index
    %25 = vector.load %arg3[%c3_26, %c0_27, %c0_28] : memref<4x64x384xf32, #tpu.memory_space<vmem>>, vector<1x64x384xf32>
    %26 = vector.shape_cast %25 : vector<1x64x384xf32> to vector<64x384xf32>
    %cst_29 = arith.constant dense<0.000000e+00> : vector<8x384xf32>
    %27 = tpu.matmul %24, %26, %cst_29 {dimension_numbers = #tpu.dot_dimension_numbers<[1], [0], [0], [1], [0, 0, 1, 1], [], []>} : vector<8x64xf32>, vector<64x384xf32>, vector<8x384xf32> -> vector<8x384xf32>
    %28 = arith.addf %21, %27 : vector<8x384xf32>
    %c0_30 = arith.constant 0 : index
    %c0_31 = arith.constant 0 : index
    %29 = vector.load %arg4[%c0_30, %c0_31] : memref<8x1xf32, #tpu.memory_space<vmem>>, vector<8x1xf32>
    %30 = vector.broadcast %29 : vector<8x1xf32> to vector<8x384xf32>
    %31 = arith.addf %28, %30 : vector<8x384xf32>
    %cst_32 = arith.constant 0.000000e+00 : f32
    %32 = vector.broadcast %cst_32 : f32 to vector<8x384xf32>
    %33 = arith.maximumf %31, %32 : vector<8x384xf32>
    %c0_33 = arith.constant 0 : index
    %c0_34 = arith.constant 0 : index
    %34 = vector.load %arg5[%c0_33, %c0_34] : memref<1x384xf32, #tpu.memory_space<vmem>>, vector<1x384xf32>
    %35 = vector.broadcast %34 : vector<1x384xf32> to vector<8x384xf32>
    %36 = arith.mulf %33, %35 : vector<8x384xf32>
    %c0_35 = arith.constant 0 : index
    %c0_36 = arith.constant 0 : index
    %c0_37 = arith.constant 0 : index
    %37 = vector.load %arg6[%c0_35, %c0_36, %c0_37] : memref<9x3x8xf32, #tpu.memory_space<vmem>>, vector<1x3x8xf32>
    %38 = vector.shape_cast %37 : vector<1x3x8xf32> to vector<3x8xf32>
    %c19_i32 = arith.constant 19 : i32
    %39 = tpu.dynamic_rotate %36 by %c19_i32 dim 1 : vector<8x384xf32>, i32 -> vector<8x384xf32>
    %cst_38 = arith.constant dense<0.000000e+00> : vector<3x384xf32>
    %40 = tpu.matmul %38, %39, %cst_38 {dimension_numbers = #tpu.dot_dimension_numbers<[1], [0], [0], [1], [0, 0, 1, 1], [], []>} : vector<3x8xf32>, vector<8x384xf32>, vector<3x384xf32> -> vector<3x384xf32>
    %c1_39 = arith.constant 1 : index
    %c0_40 = arith.constant 0 : index
    %c0_41 = arith.constant 0 : index
    %41 = vector.load %arg6[%c1_39, %c0_40, %c0_41] : memref<9x3x8xf32, #tpu.memory_space<vmem>>, vector<1x3x8xf32>
    %42 = vector.shape_cast %41 : vector<1x3x8xf32> to vector<3x8xf32>
    %c18_i32 = arith.constant 18 : i32
    %43 = tpu.dynamic_rotate %36 by %c18_i32 dim 1 : vector<8x384xf32>, i32 -> vector<8x384xf32>
    %cst_42 = arith.constant dense<0.000000e+00> : vector<3x384xf32>
    %44 = tpu.matmul %42, %43, %cst_42 {dimension_numbers = #tpu.dot_dimension_numbers<[1], [0], [0], [1], [0, 0, 1, 1], [], []>} : vector<3x8xf32>, vector<8x384xf32>, vector<3x384xf32> -> vector<3x384xf32>
    %45 = arith.addf %40, %44 : vector<3x384xf32>
    %c2_43 = arith.constant 2 : index
    %c0_44 = arith.constant 0 : index
    %c0_45 = arith.constant 0 : index
    %46 = vector.load %arg6[%c2_43, %c0_44, %c0_45] : memref<9x3x8xf32, #tpu.memory_space<vmem>>, vector<1x3x8xf32>
    %47 = vector.shape_cast %46 : vector<1x3x8xf32> to vector<3x8xf32>
    %c17_i32 = arith.constant 17 : i32
    %48 = tpu.dynamic_rotate %36 by %c17_i32 dim 1 : vector<8x384xf32>, i32 -> vector<8x384xf32>
    %cst_46 = arith.constant dense<0.000000e+00> : vector<3x384xf32>
    %49 = tpu.matmul %47, %48, %cst_46 {dimension_numbers = #tpu.dot_dimension_numbers<[1], [0], [0], [1], [0, 0, 1, 1], [], []>} : vector<3x8xf32>, vector<8x384xf32>, vector<3x384xf32> -> vector<3x384xf32>
    %50 = arith.addf %45, %49 : vector<3x384xf32>
    %c3_47 = arith.constant 3 : index
    %c0_48 = arith.constant 0 : index
    %c0_49 = arith.constant 0 : index
    %51 = vector.load %arg6[%c3_47, %c0_48, %c0_49] : memref<9x3x8xf32, #tpu.memory_space<vmem>>, vector<1x3x8xf32>
    %52 = vector.shape_cast %51 : vector<1x3x8xf32> to vector<3x8xf32>
    %c1_i32 = arith.constant 1 : i32
    %53 = tpu.dynamic_rotate %36 by %c1_i32 dim 1 : vector<8x384xf32>, i32 -> vector<8x384xf32>
    %cst_50 = arith.constant dense<0.000000e+00> : vector<3x384xf32>
    %54 = tpu.matmul %52, %53, %cst_50 {dimension_numbers = #tpu.dot_dimension_numbers<[1], [0], [0], [1], [0, 0, 1, 1], [], []>} : vector<3x8xf32>, vector<8x384xf32>, vector<3x384xf32> -> vector<3x384xf32>
    %55 = arith.addf %50, %54 : vector<3x384xf32>
    %c4 = arith.constant 4 : index
    %c0_51 = arith.constant 0 : index
    %c0_52 = arith.constant 0 : index
    %56 = vector.load %arg6[%c4, %c0_51, %c0_52] : memref<9x3x8xf32, #tpu.memory_space<vmem>>, vector<1x3x8xf32>
    %57 = vector.shape_cast %56 : vector<1x3x8xf32> to vector<3x8xf32>
    %cst_53 = arith.constant dense<0.000000e+00> : vector<3x384xf32>
    %58 = tpu.matmul %57, %36, %cst_53 {dimension_numbers = #tpu.dot_dimension_numbers<[1], [0], [0], [1], [0, 0, 1, 1], [], []>} : vector<3x8xf32>, vector<8x384xf32>, vector<3x384xf32> -> vector<3x384xf32>
    %59 = arith.addf %55, %58 : vector<3x384xf32>
    %c5 = arith.constant 5 : index
    %c0_54 = arith.constant 0 : index
    %c0_55 = arith.constant 0 : index
    %60 = vector.load %arg6[%c5, %c0_54, %c0_55] : memref<9x3x8xf32, #tpu.memory_space<vmem>>, vector<1x3x8xf32>
    %61 = vector.shape_cast %60 : vector<1x3x8xf32> to vector<3x8xf32>
    %c383_i32 = arith.constant 383 : i32
    %62 = tpu.dynamic_rotate %36 by %c383_i32 dim 1 : vector<8x384xf32>, i32 -> vector<8x384xf32>
    %cst_56 = arith.constant dense<0.000000e+00> : vector<3x384xf32>
    %63 = tpu.matmul %61, %62, %cst_56 {dimension_numbers = #tpu.dot_dimension_numbers<[1], [0], [0], [1], [0, 0, 1, 1], [], []>} : vector<3x8xf32>, vector<8x384xf32>, vector<3x384xf32> -> vector<3x384xf32>
    %64 = arith.addf %59, %63 : vector<3x384xf32>
    %c6 = arith.constant 6 : index
    %c0_57 = arith.constant 0 : index
    %c0_58 = arith.constant 0 : index
    %65 = vector.load %arg6[%c6, %c0_57, %c0_58] : memref<9x3x8xf32, #tpu.memory_space<vmem>>, vector<1x3x8xf32>
    %66 = vector.shape_cast %65 : vector<1x3x8xf32> to vector<3x8xf32>
    %c367_i32 = arith.constant 367 : i32
    %67 = tpu.dynamic_rotate %36 by %c367_i32 dim 1 : vector<8x384xf32>, i32 -> vector<8x384xf32>
    %cst_59 = arith.constant dense<0.000000e+00> : vector<3x384xf32>
    %68 = tpu.matmul %66, %67, %cst_59 {dimension_numbers = #tpu.dot_dimension_numbers<[1], [0], [0], [1], [0, 0, 1, 1], [], []>} : vector<3x8xf32>, vector<8x384xf32>, vector<3x384xf32> -> vector<3x384xf32>
    %69 = arith.addf %64, %68 : vector<3x384xf32>
    %c7 = arith.constant 7 : index
    %c0_60 = arith.constant 0 : index
    %c0_61 = arith.constant 0 : index
    %70 = vector.load %arg6[%c7, %c0_60, %c0_61] : memref<9x3x8xf32, #tpu.memory_space<vmem>>, vector<1x3x8xf32>
    %71 = vector.shape_cast %70 : vector<1x3x8xf32> to vector<3x8xf32>
    %c366_i32 = arith.constant 366 : i32
    %72 = tpu.dynamic_rotate %36 by %c366_i32 dim 1 : vector<8x384xf32>, i32 -> vector<8x384xf32>
    %cst_62 = arith.constant dense<0.000000e+00> : vector<3x384xf32>
    %73 = tpu.matmul %71, %72, %cst_62 {dimension_numbers = #tpu.dot_dimension_numbers<[1], [0], [0], [1], [0, 0, 1, 1], [], []>} : vector<3x8xf32>, vector<8x384xf32>, vector<3x384xf32> -> vector<3x384xf32>
    %74 = arith.addf %69, %73 : vector<3x384xf32>
    %c8 = arith.constant 8 : index
    %c0_63 = arith.constant 0 : index
    %c0_64 = arith.constant 0 : index
    %75 = vector.load %arg6[%c8, %c0_63, %c0_64] : memref<9x3x8xf32, #tpu.memory_space<vmem>>, vector<1x3x8xf32>
    %76 = vector.shape_cast %75 : vector<1x3x8xf32> to vector<3x8xf32>
    %c365_i32 = arith.constant 365 : i32
    %77 = tpu.dynamic_rotate %36 by %c365_i32 dim 1 : vector<8x384xf32>, i32 -> vector<8x384xf32>
    %cst_65 = arith.constant dense<0.000000e+00> : vector<3x384xf32>
    %78 = tpu.matmul %76, %77, %cst_65 {dimension_numbers = #tpu.dot_dimension_numbers<[1], [0], [0], [1], [0, 0, 1, 1], [], []>} : vector<3x8xf32>, vector<8x384xf32>, vector<3x384xf32> -> vector<3x384xf32>
    %79 = arith.addf %74, %78 : vector<3x384xf32>
    %c0_66 = arith.constant 0 : index
    %c0_67 = arith.constant 0 : index
    %80 = vector.load %arg8[%c0_66, %c0_67] : memref<384x256xf32, #tpu.memory_space<vmem>>, vector<384x256xf32>
    %cst_68 = arith.constant dense<0.000000e+00> : vector<3x256xf32>
    %81 = tpu.matmul %79, %80, %cst_68 {dimension_numbers = #tpu.dot_dimension_numbers<[1], [0], [0], [1], [0, 0, 1, 1], [], []>} : vector<3x384xf32>, vector<384x256xf32>, vector<3x256xf32> -> vector<3x256xf32>
    %c0_69 = arith.constant 0 : index
    %c0_70 = arith.constant 0 : index
    %82 = vector.load %arg7[%c0_69, %c0_70] : memref<3x1xf32, #tpu.memory_space<vmem>>, vector<3x1xf32>
    %83 = vector.broadcast %82 : vector<3x1xf32> to vector<3x256xf32>
    %84 = arith.addf %81, %83 : vector<3x256xf32>
    %85 = math.tanh %84 : vector<3x256xf32>
    %c0_71 = arith.constant 0 : index
    %c0_72 = arith.constant 0 : index
    %c0_73 = arith.constant 0 : index
    %86 = vector.load %arg9[%c0_71, %c0_72, %c0_73] : memref<1x3x256xf32, #tpu.memory_space<vmem>>, vector<1x3x256xf32>
    %87 = vector.shape_cast %86 : vector<1x3x256xf32> to vector<3x256xf32>
    %88 = vector.shape_cast %85 : vector<3x256xf32> to vector<1x3x256xf32>
    tpu.vector_store %arg9[%c0_71, %c0_72, %c0_73], %88 {strides = array<i32>} : memref<1x3x256xf32, #tpu.memory_space<vmem>>, vector<1x3x256xf32>,
    return
  }
  func.func @transform_0(%arg0: i32) -> (i32, i32, i32) {
    %c0_i32 = arith.constant 0 : i32
    %c0_i32_0 = arith.constant 0 : i32
    %c0_i32_1 = arith.constant 0 : i32
    return %arg0, %c0_i32, %c0_i32_0 : i32, i32, i32
  }
  func.func @transform_1(%arg0: i32) -> (i32, i32, i32) {
    %c0_i32 = arith.constant 0 : i32
    %c0_i32_0 = arith.constant 0 : i32
    %c0_i32_1 = arith.constant 0 : i32
    %c0_i32_2 = arith.constant 0 : i32
    return %c0_i32, %c0_i32_0, %c0_i32_1 : i32, i32, i32
  }
  func.func @transform_2(%arg0: i32) -> (i32, i32, i32) {
    %c0_i32 = arith.constant 0 : i32
    %c0_i32_0 = arith.constant 0 : i32
    %c0_i32_1 = arith.constant 0 : i32
    %c0_i32_2 = arith.constant 0 : i32
    return %c0_i32, %c0_i32_0, %c0_i32_1 : i32, i32, i32
  }
  func.func @transform_3(%arg0: i32) -> (i32, i32) {
    %c0_i32 = arith.constant 0 : i32
    %c0_i32_0 = arith.constant 0 : i32
    %c0_i32_1 = arith.constant 0 : i32
    return %c0_i32, %c0_i32_0 : i32, i32
  }
  func.func @transform_4(%arg0: i32) -> (i32, i32) {
    %c0_i32 = arith.constant 0 : i32
    %c0_i32_0 = arith.constant 0 : i32
    %c0_i32_1 = arith.constant 0 : i32
    return %c0_i32, %c0_i32_0 : i32, i32
  }
  func.func @transform_5(%arg0: i32) -> (i32, i32, i32) {
    %c0_i32 = arith.constant 0 : i32
    %c0_i32_0 = arith.constant 0 : i32
    %c0_i32_1 = arith.constant 0 : i32
    %c0_i32_2 = arith.constant 0 : i32
    return %c0_i32, %c0_i32_0, %c0_i32_1 : i32, i32, i32
  }
  func.func @transform_6(%arg0: i32) -> (i32, i32) {
    %c0_i32 = arith.constant 0 : i32
    %c0_i32_0 = arith.constant 0 : i32
    %c0_i32_1 = arith.constant 0 : i32
    return %c0_i32, %c0_i32_0 : i32, i32
  }
  func.func @transform_7(%arg0: i32) -> (i32, i32) {
    %c0_i32 = arith.constant 0 : i32
    %c0_i32_0 = arith.constant 0 : i32
    %c0_i32_1 = arith.constant 0 : i32
    return %c0_i32, %c0_i32_0 : i32, i32
  }
  func.func @transform_8(%arg0: i32) -> (i32, i32, i32) {
    %c0_i32 = arith.constant 0 : i32
    %c0_i32_0 = arith.constant 0 : i32
    %c0_i32_1 = arith.constant 0 : i32
    return %arg0, %c0_i32, %c0_i32_0 : i32, i32, i32
  }
}

module attributes {stable_mosaic.version = 11 : i64} {
  func.func @kernel(%arg0: i32, %arg1: memref<2x1024xf32, #tpu.memory_space<vmem>>, %arg2: memref<1024x256xbf16, #tpu.memory_space<vmem>>, %arg3: memref<1x256xf32, #tpu.memory_space<vmem>>, %arg4: memref<2x256xf32, #tpu.memory_space<vmem>>) attributes {dimension_semantics = [#tpu.dimension_semantics<parallel>], iteration_bounds = array<i64: 4>, scalar_prefetch = 0 : i64, scratch_operands = 0 : i64, tpu.core_type = #tpu.core_type<tc>, window_params = [{pipeline_mode = #tpu.pipeline_mode<synchronous>, transform_indices = @transform_0, window_bounds = array<i64: 2, 1024>}, {transform_indices = @transform_1, window_bounds = array<i64: 1024, 256>}, {transform_indices = @transform_2, window_bounds = array<i64: 1, 256>}, {transform_indices = @transform_3, window_bounds = array<i64: 2, 256>}]} {
    %c0 = arith.constant 0 : index
    %c0_0 = arith.constant 0 : index
    %0 = vector.load %arg1[%c0, %c0_0] : memref<2x1024xf32, #tpu.memory_space<vmem>>, vector<2x1024xf32>
    %1 = arith.truncf %0 : vector<2x1024xf32> to vector<2x1024xbf16>
    %c0_1 = arith.constant 0 : index
    %c0_2 = arith.constant 0 : index
    %2 = vector.load %arg2[%c0_1, %c0_2] : memref<1024x256xbf16, #tpu.memory_space<vmem>>, vector<1024x256xbf16>
    %cst = arith.constant dense<0.000000e+00> : vector<2x256xf32>
    %3 = tpu.matmul %1, %2, %cst {dimension_numbers = #tpu.dot_dimension_numbers<[1], [0], [0], [1], [0, 0, 1, 1], [], []>} : vector<2x1024xbf16>, vector<1024x256xbf16>, vector<2x256xf32> -> vector<2x256xf32>
    %c0_3 = arith.constant 0 : index
    %c0_4 = arith.constant 0 : index
    %4 = vector.load %arg3[%c0_3, %c0_4] : memref<1x256xf32, #tpu.memory_space<vmem>>, vector<1x256xf32>
    %5 = vector.broadcast %4 : vector<1x256xf32> to vector<2x256xf32>
    %6 = arith.addf %3, %5 : vector<2x256xf32>
    %c0_5 = arith.constant 0 : index
    %c0_6 = arith.constant 0 : index
    %7 = vector.load %arg4[%c0_5, %c0_6] : memref<2x256xf32, #tpu.memory_space<vmem>>, vector<2x256xf32>
    tpu.vector_store %arg4[%c0_5, %c0_6], %6 {strides = array<i32>} : memref<2x256xf32, #tpu.memory_space<vmem>>, vector<2x256xf32>,
    return
  }
  func.func @transform_0(%arg0: i32) -> (i32, i32) {
    %c0_i32 = arith.constant 0 : i32
    %c0_i32_0 = arith.constant 0 : i32
    %c0_i32_1 = arith.constant 0 : i32
    return %c0_i32, %c0_i32_0 : i32, i32
  }
  func.func @transform_1(%arg0: i32) -> (i32, i32) {
    %c0_i32 = arith.constant 0 : i32
    %c0_i32_0 = arith.constant 0 : i32
    return %c0_i32, %arg0 : i32, i32
  }
  func.func @transform_2(%arg0: i32) -> (i32, i32) {
    %c0_i32 = arith.constant 0 : i32
    %c0_i32_0 = arith.constant 0 : i32
    return %c0_i32, %arg0 : i32, i32
  }
  func.func @transform_3(%arg0: i32) -> (i32, i32) {
    %c0_i32 = arith.constant 0 : i32
    %c0_i32_0 = arith.constant 0 : i32
    return %c0_i32, %arg0 : i32, i32
  }
}

module attributes {stable_mosaic.version = 11 : i64} {
  func.func @kernel(%arg0: i32, %arg1: memref<2x1024xf32, #tpu.memory_space<vmem>>, %arg2: memref<1024x256xbf16, #tpu.memory_space<vmem>>, %arg3: memref<1x256xf32, #tpu.memory_space<vmem>>, %arg4: memref<2x256xf32, #tpu.memory_space<vmem>>) attributes {dimension_semantics = [#tpu.dimension_semantics<parallel>], iteration_bounds = array<i64: 4>, scalar_prefetch = 0 : i64, scratch_operands = 0 : i64, tpu.core_type = #tpu.core_type<tc>, window_params = [{pipeline_mode = #tpu.pipeline_mode<synchronous>, transform_indices = @transform_0, window_bounds = array<i64: 2, 1024>}, {transform_indices = @transform_1, window_bounds = array<i64: 1024, 256>}, {transform_indices = @transform_2, window_bounds = array<i64: 1, 256>}, {transform_indices = @transform_3, window_bounds = array<i64: 2, 256>}]} {
    %c0 = arith.constant 0 : index
    %c0_0 = arith.constant 0 : index
    %0 = vector.load %arg1[%c0, %c0_0] : memref<2x1024xf32, #tpu.memory_space<vmem>>, vector<2x1024xf32>
    %1 = arith.truncf %0 : vector<2x1024xf32> to vector<2x1024xbf16>
    %c0_1 = arith.constant 0 : index
    %c0_2 = arith.constant 0 : index
    %2 = vector.load %arg2[%c0_1, %c0_2] : memref<1024x256xbf16, #tpu.memory_space<vmem>>, vector<1024x256xbf16>
    %cst = arith.constant dense<0.000000e+00> : vector<2x256xf32>
    %3 = tpu.matmul %1, %2, %cst {dimension_numbers = #tpu.dot_dimension_numbers<[1], [0], [0], [1], [0, 0, 1, 1], [], []>} : vector<2x1024xbf16>, vector<1024x256xbf16>, vector<2x256xf32> -> vector<2x256xf32>
    %c0_3 = arith.constant 0 : index
    %c0_4 = arith.constant 0 : index
    %4 = vector.load %arg3[%c0_3, %c0_4] : memref<1x256xf32, #tpu.memory_space<vmem>>, vector<1x256xf32>
    %5 = vector.broadcast %4 : vector<1x256xf32> to vector<2x256xf32>
    %6 = arith.addf %3, %5 : vector<2x256xf32>
    %cst_5 = arith.constant 0.000000e+00 : f32
    %7 = vector.broadcast %cst_5 : f32 to vector<2x256xf32>
    %8 = arith.maximumf %6, %7 : vector<2x256xf32>
    %c0_6 = arith.constant 0 : index
    %c0_7 = arith.constant 0 : index
    %9 = vector.load %arg4[%c0_6, %c0_7] : memref<2x256xf32, #tpu.memory_space<vmem>>, vector<2x256xf32>
    tpu.vector_store %arg4[%c0_6, %c0_7], %8 {strides = array<i32>} : memref<2x256xf32, #tpu.memory_space<vmem>>, vector<2x256xf32>,
    return
  }
  func.func @transform_0(%arg0: i32) -> (i32, i32) {
    %c0_i32 = arith.constant 0 : i32
    %c0_i32_0 = arith.constant 0 : i32
    %c0_i32_1 = arith.constant 0 : i32
    return %c0_i32, %c0_i32_0 : i32, i32
  }
  func.func @transform_1(%arg0: i32) -> (i32, i32) {
    %c0_i32 = arith.constant 0 : i32
    %c0_i32_0 = arith.constant 0 : i32
    return %c0_i32, %arg0 : i32, i32
  }
  func.func @transform_2(%arg0: i32) -> (i32, i32) {
    %c0_i32 = arith.constant 0 : i32
    %c0_i32_0 = arith.constant 0 : i32
    return %c0_i32, %arg0 : i32, i32
  }
  func.func @transform_3(%arg0: i32) -> (i32, i32) {
    %c0_i32 = arith.constant 0 : i32
    %c0_i32_0 = arith.constant 0 : i32
    return %c0_i32, %arg0 : i32, i32
  }
}

module attributes {stable_mosaic.version = 11 : i64} {
  func.func @_encoder_kernel(%arg0: i32, %arg1: memref<1x3x384xf32, #tpu.memory_space<vmem>>, %arg2: memref<9x8x3xf32, #tpu.memory_space<vmem>>, %arg3: memref<8x1xf32, #tpu.memory_space<vmem>>, %arg4: memref<9x16x8xf32, #tpu.memory_space<vmem>>, %arg5: memref<16x1xf32, #tpu.memory_space<vmem>>, %arg6: memref<1x384xf32, #tpu.memory_space<vmem>>, %arg7: memref<384x64xf32, #tpu.memory_space<vmem>>, %arg8: memref<1x16x64xf32, #tpu.memory_space<vmem>>) attributes {dimension_semantics = [#tpu.dimension_semantics<parallel>], iteration_bounds = array<i64: 2>, scalar_prefetch = 0 : i64, scratch_operands = 0 : i64, tpu.core_type = #tpu.core_type<tc>, window_params = [{transform_indices = @transform_0, window_bounds = array<i64: 1, 3, 384>}, {pipeline_mode = #tpu.pipeline_mode<synchronous>, transform_indices = @transform_1, window_bounds = array<i64: 9, 8, 3>}, {pipeline_mode = #tpu.pipeline_mode<synchronous>, transform_indices = @transform_2, window_bounds = array<i64: 8, 1>}, {pipeline_mode = #tpu.pipeline_mode<synchronous>, transform_indices = @transform_3, window_bounds = array<i64: 9, 16, 8>}, {pipeline_mode = #tpu.pipeline_mode<synchronous>, transform_indices = @transform_4, window_bounds = array<i64: 16, 1>}, {pipeline_mode = #tpu.pipeline_mode<synchronous>, transform_indices = @transform_5, window_bounds = array<i64: 1, 384>}, {pipeline_mode = #tpu.pipeline_mode<synchronous>, transform_indices = @transform_6, window_bounds = array<i64: 384, 64>}, {transform_indices = @transform_7, window_bounds = array<i64: 1, 16, 64>}]} {
    %c0 = arith.constant 0 : index
    %c0_0 = arith.constant 0 : index
    %0 = vector.load %arg6[%c0, %c0_0] : memref<1x384xf32, #tpu.memory_space<vmem>>, vector<1x384xf32>
    %c0_1 = arith.constant 0 : index
    %c0_2 = arith.constant 0 : index
    %c0_3 = arith.constant 0 : index
    %1 = vector.load %arg1[%c0_1, %c0_2, %c0_3] : memref<1x3x384xf32, #tpu.memory_space<vmem>>, vector<1x3x384xf32>
    %2 = vector.shape_cast %1 : vector<1x3x384xf32> to vector<3x384xf32>
    %c0_4 = arith.constant 0 : index
    %c0_5 = arith.constant 0 : index
    %c0_6 = arith.constant 0 : index
    %3 = vector.load %arg2[%c0_4, %c0_5, %c0_6] : memref<9x8x3xf32, #tpu.memory_space<vmem>>, vector<1x8x3xf32>
    %4 = vector.shape_cast %3 : vector<1x8x3xf32> to vector<8x3xf32>
    %c19_i32 = arith.constant 19 : i32
    %5 = tpu.dynamic_rotate %2 by %c19_i32 dim 1 : vector<3x384xf32>, i32 -> vector<3x384xf32>
    %cst = arith.constant dense<0.000000e+00> : vector<8x384xf32>
    %6 = tpu.matmul %4, %5, %cst {dimension_numbers = #tpu.dot_dimension_numbers<[1], [0], [0], [1], [0, 0, 1, 1], [], []>} : vector<8x3xf32>, vector<3x384xf32>, vector<8x384xf32> -> vector<8x384xf32>
    %c1 = arith.constant 1 : index
    %c0_7 = arith.constant 0 : index
    %c0_8 = arith.constant 0 : index
    %7 = vector.load %arg2[%c1, %c0_7, %c0_8] : memref<9x8x3xf32, #tpu.memory_space<vmem>>, vector<1x8x3xf32>
    %8 = vector.shape_cast %7 : vector<1x8x3xf32> to vector<8x3xf32>
    %c18_i32 = arith.constant 18 : i32
    %9 = tpu.dynamic_rotate %2 by %c18_i32 dim 1 : vector<3x384xf32>, i32 -> vector<3x384xf32>
    %cst_9 = arith.constant dense<0.000000e+00> : vector<8x384xf32>
    %10 = tpu.matmul %8, %9, %cst_9 {dimension_numbers = #tpu.dot_dimension_numbers<[1], [0], [0], [1], [0, 0, 1, 1], [], []>} : vector<8x3xf32>, vector<3x384xf32>, vector<8x384xf32> -> vector<8x384xf32>
    %11 = arith.addf %6, %10 : vector<8x384xf32>
    %c2 = arith.constant 2 : index
    %c0_10 = arith.constant 0 : index
    %c0_11 = arith.constant 0 : index
    %12 = vector.load %arg2[%c2, %c0_10, %c0_11] : memref<9x8x3xf32, #tpu.memory_space<vmem>>, vector<1x8x3xf32>
    %13 = vector.shape_cast %12 : vector<1x8x3xf32> to vector<8x3xf32>
    %c17_i32 = arith.constant 17 : i32
    %14 = tpu.dynamic_rotate %2 by %c17_i32 dim 1 : vector<3x384xf32>, i32 -> vector<3x384xf32>
    %cst_12 = arith.constant dense<0.000000e+00> : vector<8x384xf32>
    %15 = tpu.matmul %13, %14, %cst_12 {dimension_numbers = #tpu.dot_dimension_numbers<[1], [0], [0], [1], [0, 0, 1, 1], [], []>} : vector<8x3xf32>, vector<3x384xf32>, vector<8x384xf32> -> vector<8x384xf32>
    %16 = arith.addf %11, %15 : vector<8x384xf32>
    %c3 = arith.constant 3 : index
    %c0_13 = arith.constant 0 : index
    %c0_14 = arith.constant 0 : index
    %17 = vector.load %arg2[%c3, %c0_13, %c0_14] : memref<9x8x3xf32, #tpu.memory_space<vmem>>, vector<1x8x3xf32>
    %18 = vector.shape_cast %17 : vector<1x8x3xf32> to vector<8x3xf32>
    %c1_i32 = arith.constant 1 : i32
    %19 = tpu.dynamic_rotate %2 by %c1_i32 dim 1 : vector<3x384xf32>, i32 -> vector<3x384xf32>
    %cst_15 = arith.constant dense<0.000000e+00> : vector<8x384xf32>
    %20 = tpu.matmul %18, %19, %cst_15 {dimension_numbers = #tpu.dot_dimension_numbers<[1], [0], [0], [1], [0, 0, 1, 1], [], []>} : vector<8x3xf32>, vector<3x384xf32>, vector<8x384xf32> -> vector<8x384xf32>
    %21 = arith.addf %16, %20 : vector<8x384xf32>
    %c4 = arith.constant 4 : index
    %c0_16 = arith.constant 0 : index
    %c0_17 = arith.constant 0 : index
    %22 = vector.load %arg2[%c4, %c0_16, %c0_17] : memref<9x8x3xf32, #tpu.memory_space<vmem>>, vector<1x8x3xf32>
    %23 = vector.shape_cast %22 : vector<1x8x3xf32> to vector<8x3xf32>
    %cst_18 = arith.constant dense<0.000000e+00> : vector<8x384xf32>
    %24 = tpu.matmul %23, %2, %cst_18 {dimension_numbers = #tpu.dot_dimension_numbers<[1], [0], [0], [1], [0, 0, 1, 1], [], []>} : vector<8x3xf32>, vector<3x384xf32>, vector<8x384xf32> -> vector<8x384xf32>
    %25 = arith.addf %21, %24 : vector<8x384xf32>
    %c5 = arith.constant 5 : index
    %c0_19 = arith.constant 0 : index
    %c0_20 = arith.constant 0 : index
    %26 = vector.load %arg2[%c5, %c0_19, %c0_20] : memref<9x8x3xf32, #tpu.memory_space<vmem>>, vector<1x8x3xf32>
    %27 = vector.shape_cast %26 : vector<1x8x3xf32> to vector<8x3xf32>
    %c383_i32 = arith.constant 383 : i32
    %28 = tpu.dynamic_rotate %2 by %c383_i32 dim 1 : vector<3x384xf32>, i32 -> vector<3x384xf32>
    %cst_21 = arith.constant dense<0.000000e+00> : vector<8x384xf32>
    %29 = tpu.matmul %27, %28, %cst_21 {dimension_numbers = #tpu.dot_dimension_numbers<[1], [0], [0], [1], [0, 0, 1, 1], [], []>} : vector<8x3xf32>, vector<3x384xf32>, vector<8x384xf32> -> vector<8x384xf32>
    %30 = arith.addf %25, %29 : vector<8x384xf32>
    %c6 = arith.constant 6 : index
    %c0_22 = arith.constant 0 : index
    %c0_23 = arith.constant 0 : index
    %31 = vector.load %arg2[%c6, %c0_22, %c0_23] : memref<9x8x3xf32, #tpu.memory_space<vmem>>, vector<1x8x3xf32>
    %32 = vector.shape_cast %31 : vector<1x8x3xf32> to vector<8x3xf32>
    %c367_i32 = arith.constant 367 : i32
    %33 = tpu.dynamic_rotate %2 by %c367_i32 dim 1 : vector<3x384xf32>, i32 -> vector<3x384xf32>
    %cst_24 = arith.constant dense<0.000000e+00> : vector<8x384xf32>
    %34 = tpu.matmul %32, %33, %cst_24 {dimension_numbers = #tpu.dot_dimension_numbers<[1], [0], [0], [1], [0, 0, 1, 1], [], []>} : vector<8x3xf32>, vector<3x384xf32>, vector<8x384xf32> -> vector<8x384xf32>
    %35 = arith.addf %30, %34 : vector<8x384xf32>
    %c7 = arith.constant 7 : index
    %c0_25 = arith.constant 0 : index
    %c0_26 = arith.constant 0 : index
    %36 = vector.load %arg2[%c7, %c0_25, %c0_26] : memref<9x8x3xf32, #tpu.memory_space<vmem>>, vector<1x8x3xf32>
    %37 = vector.shape_cast %36 : vector<1x8x3xf32> to vector<8x3xf32>
    %c366_i32 = arith.constant 366 : i32
    %38 = tpu.dynamic_rotate %2 by %c366_i32 dim 1 : vector<3x384xf32>, i32 -> vector<3x384xf32>
    %cst_27 = arith.constant dense<0.000000e+00> : vector<8x384xf32>
    %39 = tpu.matmul %37, %38, %cst_27 {dimension_numbers = #tpu.dot_dimension_numbers<[1], [0], [0], [1], [0, 0, 1, 1], [], []>} : vector<8x3xf32>, vector<3x384xf32>, vector<8x384xf32> -> vector<8x384xf32>
    %40 = arith.addf %35, %39 : vector<8x384xf32>
    %c8 = arith.constant 8 : index
    %c0_28 = arith.constant 0 : index
    %c0_29 = arith.constant 0 : index
    %41 = vector.load %arg2[%c8, %c0_28, %c0_29] : memref<9x8x3xf32, #tpu.memory_space<vmem>>, vector<1x8x3xf32>
    %42 = vector.shape_cast %41 : vector<1x8x3xf32> to vector<8x3xf32>
    %c365_i32 = arith.constant 365 : i32
    %43 = tpu.dynamic_rotate %2 by %c365_i32 dim 1 : vector<3x384xf32>, i32 -> vector<3x384xf32>
    %cst_30 = arith.constant dense<0.000000e+00> : vector<8x384xf32>
    %44 = tpu.matmul %42, %43, %cst_30 {dimension_numbers = #tpu.dot_dimension_numbers<[1], [0], [0], [1], [0, 0, 1, 1], [], []>} : vector<8x3xf32>, vector<3x384xf32>, vector<8x384xf32> -> vector<8x384xf32>
    %45 = arith.addf %40, %44 : vector<8x384xf32>
    %c0_31 = arith.constant 0 : index
    %c0_32 = arith.constant 0 : index
    %46 = vector.load %arg3[%c0_31, %c0_32] : memref<8x1xf32, #tpu.memory_space<vmem>>, vector<8x1xf32>
    %47 = vector.broadcast %46 : vector<8x1xf32> to vector<8x384xf32>
    %48 = arith.addf %45, %47 : vector<8x384xf32>
    %cst_33 = arith.constant 0.000000e+00 : f32
    %49 = vector.broadcast %cst_33 : f32 to vector<8x384xf32>
    %50 = arith.maximumf %48, %49 : vector<8x384xf32>
    %51 = vector.broadcast %0 : vector<1x384xf32> to vector<8x384xf32>
    %52 = arith.mulf %50, %51 : vector<8x384xf32>
    %c0_34 = arith.constant 0 : index
    %c0_35 = arith.constant 0 : index
    %c0_36 = arith.constant 0 : index
    %53 = vector.load %arg4[%c0_34, %c0_35, %c0_36] : memref<9x16x8xf32, #tpu.memory_space<vmem>>, vector<1x16x8xf32>
    %54 = vector.shape_cast %53 : vector<1x16x8xf32> to vector<16x8xf32>
    %c19_i32_37 = arith.constant 19 : i32
    %55 = tpu.dynamic_rotate %52 by %c19_i32_37 dim 1 : vector<8x384xf32>, i32 -> vector<8x384xf32>
    %cst_38 = arith.constant dense<0.000000e+00> : vector<16x384xf32>
    %56 = tpu.matmul %54, %55, %cst_38 {dimension_numbers = #tpu.dot_dimension_numbers<[1], [0], [0], [1], [0, 0, 1, 1], [], []>} : vector<16x8xf32>, vector<8x384xf32>, vector<16x384xf32> -> vector<16x384xf32>
    %c1_39 = arith.constant 1 : index
    %c0_40 = arith.constant 0 : index
    %c0_41 = arith.constant 0 : index
    %57 = vector.load %arg4[%c1_39, %c0_40, %c0_41] : memref<9x16x8xf32, #tpu.memory_space<vmem>>, vector<1x16x8xf32>
    %58 = vector.shape_cast %57 : vector<1x16x8xf32> to vector<16x8xf32>
    %c18_i32_42 = arith.constant 18 : i32
    %59 = tpu.dynamic_rotate %52 by %c18_i32_42 dim 1 : vector<8x384xf32>, i32 -> vector<8x384xf32>
    %cst_43 = arith.constant dense<0.000000e+00> : vector<16x384xf32>
    %60 = tpu.matmul %58, %59, %cst_43 {dimension_numbers = #tpu.dot_dimension_numbers<[1], [0], [0], [1], [0, 0, 1, 1], [], []>} : vector<16x8xf32>, vector<8x384xf32>, vector<16x384xf32> -> vector<16x384xf32>
    %61 = arith.addf %56, %60 : vector<16x384xf32>
    %c2_44 = arith.constant 2 : index
    %c0_45 = arith.constant 0 : index
    %c0_46 = arith.constant 0 : index
    %62 = vector.load %arg4[%c2_44, %c0_45, %c0_46] : memref<9x16x8xf32, #tpu.memory_space<vmem>>, vector<1x16x8xf32>
    %63 = vector.shape_cast %62 : vector<1x16x8xf32> to vector<16x8xf32>
    %c17_i32_47 = arith.constant 17 : i32
    %64 = tpu.dynamic_rotate %52 by %c17_i32_47 dim 1 : vector<8x384xf32>, i32 -> vector<8x384xf32>
    %cst_48 = arith.constant dense<0.000000e+00> : vector<16x384xf32>
    %65 = tpu.matmul %63, %64, %cst_48 {dimension_numbers = #tpu.dot_dimension_numbers<[1], [0], [0], [1], [0, 0, 1, 1], [], []>} : vector<16x8xf32>, vector<8x384xf32>, vector<16x384xf32> -> vector<16x384xf32>
    %66 = arith.addf %61, %65 : vector<16x384xf32>
    %c3_49 = arith.constant 3 : index
    %c0_50 = arith.constant 0 : index
    %c0_51 = arith.constant 0 : index
    %67 = vector.load %arg4[%c3_49, %c0_50, %c0_51] : memref<9x16x8xf32, #tpu.memory_space<vmem>>, vector<1x16x8xf32>
    %68 = vector.shape_cast %67 : vector<1x16x8xf32> to vector<16x8xf32>
    %c1_i32_52 = arith.constant 1 : i32
    %69 = tpu.dynamic_rotate %52 by %c1_i32_52 dim 1 : vector<8x384xf32>, i32 -> vector<8x384xf32>
    %cst_53 = arith.constant dense<0.000000e+00> : vector<16x384xf32>
    %70 = tpu.matmul %68, %69, %cst_53 {dimension_numbers = #tpu.dot_dimension_numbers<[1], [0], [0], [1], [0, 0, 1, 1], [], []>} : vector<16x8xf32>, vector<8x384xf32>, vector<16x384xf32> -> vector<16x384xf32>
    %71 = arith.addf %66, %70 : vector<16x384xf32>
    %c4_54 = arith.constant 4 : index
    %c0_55 = arith.constant 0 : index
    %c0_56 = arith.constant 0 : index
    %72 = vector.load %arg4[%c4_54, %c0_55, %c0_56] : memref<9x16x8xf32, #tpu.memory_space<vmem>>, vector<1x16x8xf32>
    %73 = vector.shape_cast %72 : vector<1x16x8xf32> to vector<16x8xf32>
    %cst_57 = arith.constant dense<0.000000e+00> : vector<16x384xf32>
    %74 = tpu.matmul %73, %52, %cst_57 {dimension_numbers = #tpu.dot_dimension_numbers<[1], [0], [0], [1], [0, 0, 1, 1], [], []>} : vector<16x8xf32>, vector<8x384xf32>, vector<16x384xf32> -> vector<16x384xf32>
    %75 = arith.addf %71, %74 : vector<16x384xf32>
    %c5_58 = arith.constant 5 : index
    %c0_59 = arith.constant 0 : index
    %c0_60 = arith.constant 0 : index
    %76 = vector.load %arg4[%c5_58, %c0_59, %c0_60] : memref<9x16x8xf32, #tpu.memory_space<vmem>>, vector<1x16x8xf32>
    %77 = vector.shape_cast %76 : vector<1x16x8xf32> to vector<16x8xf32>
    %c383_i32_61 = arith.constant 383 : i32
    %78 = tpu.dynamic_rotate %52 by %c383_i32_61 dim 1 : vector<8x384xf32>, i32 -> vector<8x384xf32>
    %cst_62 = arith.constant dense<0.000000e+00> : vector<16x384xf32>
    %79 = tpu.matmul %77, %78, %cst_62 {dimension_numbers = #tpu.dot_dimension_numbers<[1], [0], [0], [1], [0, 0, 1, 1], [], []>} : vector<16x8xf32>, vector<8x384xf32>, vector<16x384xf32> -> vector<16x384xf32>
    %80 = arith.addf %75, %79 : vector<16x384xf32>
    %c6_63 = arith.constant 6 : index
    %c0_64 = arith.constant 0 : index
    %c0_65 = arith.constant 0 : index
    %81 = vector.load %arg4[%c6_63, %c0_64, %c0_65] : memref<9x16x8xf32, #tpu.memory_space<vmem>>, vector<1x16x8xf32>
    %82 = vector.shape_cast %81 : vector<1x16x8xf32> to vector<16x8xf32>
    %c367_i32_66 = arith.constant 367 : i32
    %83 = tpu.dynamic_rotate %52 by %c367_i32_66 dim 1 : vector<8x384xf32>, i32 -> vector<8x384xf32>
    %cst_67 = arith.constant dense<0.000000e+00> : vector<16x384xf32>
    %84 = tpu.matmul %82, %83, %cst_67 {dimension_numbers = #tpu.dot_dimension_numbers<[1], [0], [0], [1], [0, 0, 1, 1], [], []>} : vector<16x8xf32>, vector<8x384xf32>, vector<16x384xf32> -> vector<16x384xf32>
    %85 = arith.addf %80, %84 : vector<16x384xf32>
    %c7_68 = arith.constant 7 : index
    %c0_69 = arith.constant 0 : index
    %c0_70 = arith.constant 0 : index
    %86 = vector.load %arg4[%c7_68, %c0_69, %c0_70] : memref<9x16x8xf32, #tpu.memory_space<vmem>>, vector<1x16x8xf32>
    %87 = vector.shape_cast %86 : vector<1x16x8xf32> to vector<16x8xf32>
    %c366_i32_71 = arith.constant 366 : i32
    %88 = tpu.dynamic_rotate %52 by %c366_i32_71 dim 1 : vector<8x384xf32>, i32 -> vector<8x384xf32>
    %cst_72 = arith.constant dense<0.000000e+00> : vector<16x384xf32>
    %89 = tpu.matmul %87, %88, %cst_72 {dimension_numbers = #tpu.dot_dimension_numbers<[1], [0], [0], [1], [0, 0, 1, 1], [], []>} : vector<16x8xf32>, vector<8x384xf32>, vector<16x384xf32> -> vector<16x384xf32>
    %90 = arith.addf %85, %89 : vector<16x384xf32>
    %c8_73 = arith.constant 8 : index
    %c0_74 = arith.constant 0 : index
    %c0_75 = arith.constant 0 : index
    %91 = vector.load %arg4[%c8_73, %c0_74, %c0_75] : memref<9x16x8xf32, #tpu.memory_space<vmem>>, vector<1x16x8xf32>
    %92 = vector.shape_cast %91 : vector<1x16x8xf32> to vector<16x8xf32>
    %c365_i32_76 = arith.constant 365 : i32
    %93 = tpu.dynamic_rotate %52 by %c365_i32_76 dim 1 : vector<8x384xf32>, i32 -> vector<8x384xf32>
    %cst_77 = arith.constant dense<0.000000e+00> : vector<16x384xf32>
    %94 = tpu.matmul %92, %93, %cst_77 {dimension_numbers = #tpu.dot_dimension_numbers<[1], [0], [0], [1], [0, 0, 1, 1], [], []>} : vector<16x8xf32>, vector<8x384xf32>, vector<16x384xf32> -> vector<16x384xf32>
    %95 = arith.addf %90, %94 : vector<16x384xf32>
    %c0_78 = arith.constant 0 : index
    %c0_79 = arith.constant 0 : index
    %96 = vector.load %arg5[%c0_78, %c0_79] : memref<16x1xf32, #tpu.memory_space<vmem>>, vector<16x1xf32>
    %97 = vector.broadcast %96 : vector<16x1xf32> to vector<16x384xf32>
    %98 = arith.addf %95, %97 : vector<16x384xf32>
    %cst_80 = arith.constant 0.000000e+00 : f32
    %99 = vector.broadcast %cst_80 : f32 to vector<16x384xf32>
    %100 = arith.maximumf %98, %99 : vector<16x384xf32>
    %c383_i32_81 = arith.constant 383 : i32
    %101 = tpu.dynamic_rotate %100 by %c383_i32_81 dim 1 : vector<16x384xf32>, i32 -> vector<16x384xf32>
    %102 = arith.maximumf %100, %101 : vector<16x384xf32>
    %c366_i32_82 = arith.constant 366 : i32
    %103 = tpu.dynamic_rotate %102 by %c366_i32_82 dim 1 : vector<16x384xf32>, i32 -> vector<16x384xf32>
    %104 = arith.maximumf %102, %103 : vector<16x384xf32>
    %c0_83 = arith.constant 0 : index
    %c0_84 = arith.constant 0 : index
    %105 = vector.load %arg7[%c0_83, %c0_84] : memref<384x64xf32, #tpu.memory_space<vmem>>, vector<384x64xf32>
    %cst_85 = arith.constant dense<0.000000e+00> : vector<16x64xf32>
    %106 = tpu.matmul %104, %105, %cst_85 {dimension_numbers = #tpu.dot_dimension_numbers<[1], [0], [0], [1], [0, 0, 1, 1], [], []>} : vector<16x384xf32>, vector<384x64xf32>, vector<16x64xf32> -> vector<16x64xf32>
    %c0_86 = arith.constant 0 : index
    %c0_87 = arith.constant 0 : index
    %c0_88 = arith.constant 0 : index
    %107 = vector.load %arg8[%c0_86, %c0_87, %c0_88] : memref<1x16x64xf32, #tpu.memory_space<vmem>>, vector<1x16x64xf32>
    %108 = vector.shape_cast %107 : vector<1x16x64xf32> to vector<16x64xf32>
    %109 = vector.shape_cast %106 : vector<16x64xf32> to vector<1x16x64xf32>
    tpu.vector_store %arg8[%c0_86, %c0_87, %c0_88], %109 {strides = array<i32>} : memref<1x16x64xf32, #tpu.memory_space<vmem>>, vector<1x16x64xf32>,
    return
  }
  func.func @transform_0(%arg0: i32) -> (i32, i32, i32) {
    %c0_i32 = arith.constant 0 : i32
    %c0_i32_0 = arith.constant 0 : i32
    %c0_i32_1 = arith.constant 0 : i32
    return %arg0, %c0_i32, %c0_i32_0 : i32, i32, i32
  }
  func.func @transform_1(%arg0: i32) -> (i32, i32, i32) {
    %c0_i32 = arith.constant 0 : i32
    %c0_i32_0 = arith.constant 0 : i32
    %c0_i32_1 = arith.constant 0 : i32
    %c0_i32_2 = arith.constant 0 : i32
    return %c0_i32, %c0_i32_0, %c0_i32_1 : i32, i32, i32
  }
  func.func @transform_2(%arg0: i32) -> (i32, i32) {
    %c0_i32 = arith.constant 0 : i32
    %c0_i32_0 = arith.constant 0 : i32
    %c0_i32_1 = arith.constant 0 : i32
    return %c0_i32, %c0_i32_0 : i32, i32
  }
  func.func @transform_3(%arg0: i32) -> (i32, i32, i32) {
    %c0_i32 = arith.constant 0 : i32
    %c0_i32_0 = arith.constant 0 : i32
    %c0_i32_1 = arith.constant 0 : i32
    %c0_i32_2 = arith.constant 0 : i32
    return %c0_i32, %c0_i32_0, %c0_i32_1 : i32, i32, i32
  }
  func.func @transform_4(%arg0: i32) -> (i32, i32) {
    %c0_i32 = arith.constant 0 : i32
    %c0_i32_0 = arith.constant 0 : i32
    %c0_i32_1 = arith.constant 0 : i32
    return %c0_i32, %c0_i32_0 : i32, i32
  }
  func.func @transform_5(%arg0: i32) -> (i32, i32) {
    %c0_i32 = arith.constant 0 : i32
    %c0_i32_0 = arith.constant 0 : i32
    %c0_i32_1 = arith.constant 0 : i32
    return %c0_i32, %c0_i32_0 : i32, i32
  }
  func.func @transform_6(%arg0: i32) -> (i32, i32) {
    %c0_i32 = arith.constant 0 : i32
    %c0_i32_0 = arith.constant 0 : i32
    %c0_i32_1 = arith.constant 0 : i32
    return %c0_i32, %c0_i32_0 : i32, i32
  }
  func.func @transform_7(%arg0: i32) -> (i32, i32, i32) {
    %c0_i32 = arith.constant 0 : i32
    %c0_i32_0 = arith.constant 0 : i32
    %c0_i32_1 = arith.constant 0 : i32
    return %arg0, %c0_i32, %c0_i32_0 : i32, i32, i32
  }
}

</mosaic_0001>

<llo_original>
// kernel: autoencoder_forward.6
$region0: #{autoencoder_forward.6}
  #allocation0 [shape = 'u32[]', space=smem, size = 0x4, offset = 0x4, fixed_abs, tag = 'smem constant byte address 0x4 - core index']
  #allocation1 [shape = 'u32[72,128]{1,0:T(1,128)}', space=vmem, size = 0x9000, scoped, tag = 'internal scratch']
  %s0 = inlined_call_operand.vmem [shape: f32[2,1024], index: 0, kind: input, shape index: {}]
  %s1 = inlined_call_operand.hbm [shape: bf16[1024,1024], index: 1, kind: input, shape index: {}]
  %s2 = inlined_call_operand.hbm [shape: f32[1,1024], index: 2, kind: input, shape index: {}]
  %s3 = inlined_call_operand.vmem [shape: f32[2,1024], index: 3, kind: output, shape index: {}]
  %s4 = sld [smem:[#allocation0]]
  $region53: #{autoencoder_forward.6} parent=0
    _
  %s6 = ssub.s32 1, %s4
  %s7 = scalar_select 0, %s6, %s4
  $region1: #{autoencoder_forward.6} parent=0
    #allocation2 [shape = 'u8[1048576]{0}', space=vmem, size = 0x100000, scoped, tag = 'input window, operand 1']
    #allocation3 [shape = 's32[2]{0}', space=sflag, size = 0x8, scoped, tag = 'scoped memory for autoencoder_forward.6']
    #allocation4 [shape = 'u8[2048]{0}', space=vmem, size = 0x800, scoped, tag = 'input window, operand 2']
    #allocation5 [shape = 's32[2]{0}', space=sflag, size = 0x8, scoped, tag = 'scoped memory for autoencoder_forward.6']
    %8 = vsyncpa [#allocation3], 0
    %s9 = scalar_lea.sflag [#allocation3], 1
    %10 = vsyncpa %s9, 0
    %11 = vsyncpa [#allocation5], 0
    %s12 = scalar_lea.sflag [#allocation5], 1
    %13 = vsyncpa %s12, 0
    loop: start=0, step=1, limit=6
    $region2: #{autoencoder_forward.6} parent=1 // loop_pre_header
      _
    $region3: #{autoencoder_forward.6} parent=1 // loop_header
      %s15 = sphi 0, %s19
      %p16 = scmp.ge.s32.totalorder %s15, 6
      %s23 = sphi 0, %s23
      %s25 = sphi 0, %s23
      %s26 = sphi 0, %s25
      %s40 = sphi 0, %s26
      %s46 = sphi 0, %s48
      %s49 = sphi 0, %s46
      %s50 = sphi 0, %s49
      %s66 = sphi 0, %s50
      %s72 = sphi 0, %s74
      %s75 = sphi 0, %s72
      %s76 = sphi 0, %s75
      %s92 = sphi 0, %s76
      %s98 = sphi 0, %s100
      %s101 = sphi 0, %s98
      %s102 = sphi 0, %s101
      %s118 = sphi 0, %s102
    $region4: #{autoencoder_forward.6} parent=1 // loop_header_branch
      %18 = sbr.rel (%p16) target = $region8
    $region5: #{autoencoder_forward.6} parent=1 // loop_body
      %s20 = ssub.s32 %s15, 1
      %s21 = ssub.s32 %s15, 2
      %s22 = sadd.s32 %s15, 1
      %s24 = sadd.s32 %s23, 1
      %p27 = scmp.eq.s32.totalorder %s15, 3
      %p28 = scmp.ne.s32.totalorder %s23, %s25
      %p29 = scmp.eq.s32.totalorder %s15, 0
      %p30 = por %p28, %p29
      %p31 = scmp.ne.s32.totalorder %s23, %s25
      %p32 = scmp.eq.s32.totalorder %s20, 3
      %p33 = por %p31, %p32
      %p34 = scmp.ne.s32.totalorder %s25, %s26
      %p35 = scmp.eq.s32.totalorder %s20, 0
      %p36 = por %p34, %p35
      %p37 = scmp.ne.s32.totalorder %s25, %s26
      %p38 = scmp.eq.s32.totalorder %s21, 3
      %p39 = por %p37, %p38
      %p41 = scmp.ne.s32.totalorder %s26, %s40
      %p42 = scmp.eq.s32.totalorder %s21, 0
      %p43 = por %p41, %p42
      %s44 = ssub.s32 %s15, %s22
      %p45 = scmp.eq.s32.totalorder %s44, 0
      %s47 = sadd.s32 %s46, 1
      %s48 = scalar_select %p45, %s46, %s47
      %p51 = pneg %p45
      %p52 = scmp.eq.s32.totalorder %s15, 3
      %p53 = por %p51, %p52
      %p54 = scmp.ne.s32.totalorder %s46, %s49
      %p55 = scmp.eq.s32.totalorder %s15, 0
      %p56 = por %p54, %p55
      %p57 = scmp.ne.s32.totalorder %s46, %s49
      %p58 = scmp.eq.s32.totalorder %s20, 3
      %p59 = por %p57, %p58
      %p60 = scmp.ne.s32.totalorder %s49, %s50
      %p61 = scmp.eq.s32.totalorder %s20, 0
      %p62 = por %p60, %p61
      %p63 = scmp.ne.s32.totalorder %s49, %s50
      %p64 = scmp.eq.s32.totalorder %s21, 3
      %p65 = por %p63, %p64
      %p67 = scmp.ne.s32.totalorder %s50, %s66
      %p68 = scmp.eq.s32.totalorder %s21, 0
      %p69 = por %p67, %p68
      %s70 = ssub.s32 %s15, %s22
      %p71 = scmp.eq.s32.totalorder %s70, 0
      %s73 = sadd.s32 %s72, 1
      %s74 = scalar_select %p71, %s72, %s73
      %p77 = pneg %p71
      %p78 = scmp.eq.s32.totalorder %s15, 3
      %p79 = por %p77, %p78
      %p80 = scmp.ne.s32.totalorder %s72, %s75
      %p81 = scmp.eq.s32.totalorder %s15, 0
      %p82 = por %p80, %p81
      %p83 = scmp.ne.s32.totalorder %s72, %s75
      %p84 = scmp.eq.s32.totalorder %s20, 3
      %p85 = por %p83, %p84
      %p86 = scmp.ne.s32.totalorder %s75, %s76
      %p87 = scmp.eq.s32.totalorder %s20, 0
      %p88 = por %p86, %p87
      %p89 = scmp.ne.s32.totalorder %s75, %s76
      %p90 = scmp.eq.s32.totalorder %s21, 3
      %p91 = por %p89, %p90
      %p93 = scmp.ne.s32.totalorder %s76, %s92
      %p94 = scmp.eq.s32.totalorder %s21, 0
      %p95 = por %p93, %p94
      %s96 = ssub.s32 %s15, %s22
      %p97 = scmp.eq.s32.totalorder %s96, 0
      %s99 = sadd.s32 %s98, 1
      %s100 = scalar_select %p97, %s98, %s99
      %p103 = pneg %p97
      %p104 = scmp.eq.s32.totalorder %s15, 3
      %p105 = por %p103, %p104
      %p106 = scmp.ne.s32.totalorder %s98, %s101
      %p107 = scmp.eq.s32.totalorder %s15, 0
      %p108 = por %p106, %p107
      %p109 = scmp.ne.s32.totalorder %s98, %s101
      %p110 = scmp.eq.s32.totalorder %s20, 3
      %p111 = por %p109, %p110
      %p112 = scmp.ne.s32.totalorder %s101, %s102
      %p113 = scmp.eq.s32.totalorder %s20, 0
      %p114 = por %p112, %p113
      %p115 = scmp.ne.s32.totalorder %s101, %s102
      %p116 = scmp.eq.s32.totalorder %s21, 3
      %p117 = por %p115, %p116
      %p119 = scmp.ne.s32.totalorder %s102, %s118
      %p120 = scmp.eq.s32.totalorder %s21, 0
      %p121 = por %p119, %p120
      %p122 = scmp.le.s32.totalorder 1, %s15
      %p123 = scmp.lt.s32.totalorder %s15, 5
      %p124 = pnand %p122, %p123
      %p125 = pneg %p124
      // Predicated region
      $region9: #{autoencoder_forward.6} parent=5 // pred_check
        _
      $region10: #{autoencoder_forward.6} parent=5 // pred_check_branch
        %127 = sbr.rel (%p124) target = $region12
      $region11: #{autoencoder_forward.6} parent=5 // pred_region
        %s128 = ssub.s32 %s15, 1
        // Predicated region
        $region13: #{autoencoder_forward.6} parent=11 // pred_check
          %p129 = pneg %p36
        $region14: #{autoencoder_forward.6} parent=11 // pred_check_branch
          %131 = sbr.rel (%p129) target = $region16
        $region15: #{autoencoder_forward.6} parent=11 // pred_region
          _
        $region16: #{autoencoder_forward.6} parent=11 // pred_fallthru
          _
      $region12: #{autoencoder_forward.6} parent=5 // pred_fallthru
        _
      %p132 = scmp.lt.s32.totalorder %s15, 4
      // Predicated region
      $region17: #{autoencoder_forward.6} parent=5 // pred_check
        %p133 = pneg %p132
      $region18: #{autoencoder_forward.6} parent=5 // pred_check_branch
        %135 = sbr.rel (%p133) target = $region20
      $region19: #{autoencoder_forward.6} parent=5 // pred_region
        // Predicated region
        $region21: #{autoencoder_forward.6} parent=19 // pred_check
          %p136 = pneg %p56
        $region22: #{autoencoder_forward.6} parent=19 // pred_check_branch
          %138 = sbr.rel (%p136) target = $region24
        $region23: #{autoencoder_forward.6} parent=19 // pred_region
          %s139 = sand.u32 %s46, 1
          %s140 = scalar_lea.sflag [#allocation3], %s139
          %s141 = sand.u32 %s46, 1
          %s142 = smul.addr %s141, 1024
          %s143 = scalar_lea.vmem [#allocation2], %s142
          %s144 = smul.u32 2, %s15
          %146 = vsyncadd %s140, 0
          %s147 = smul.addr %s144, 4
          %s148 = scalar_lea.hbm %s1, %s147
          %s149 = sshll.u32 %s148, 4
          %s150 = int_to_ptr.hbm [resolvable:$true] %s149
          %s151 = sshll.u32 %s143, 4
          %s152 = int_to_ptr.vmem [resolvable:$true] %s151
          %157 = dma.hbm_to_vmem [thread:$0]  %s150, 16384, %s152, %s140, 512, 128, 8
        $region24: #{autoencoder_forward.6} parent=19 // pred_fallthru
          _
        // Predicated region
        $region25: #{autoencoder_forward.6} parent=19 // pred_check
          %p158 = pneg %p82
        $region26: #{autoencoder_forward.6} parent=19 // pred_check_branch
          %160 = sbr.rel (%p158) target = $region28
        $region27: #{autoencoder_forward.6} parent=19 // pred_region
          %s161 = sand.u32 %s72, 1
          %s162 = scalar_lea.sflag [#allocation5], %s161
          %s163 = sand.u32 %s72, 1
          %s164 = smul.addr %s163, 2
          %s165 = scalar_lea.vmem [#allocation4], %s164
          %s166 = smul.u32 2, %s15
          %168 = vsyncadd %s162, 0
          %s169 = scalar_lea.hbm %s2, %s166
          %s171 = sshll.u32 %s169, 4
          %s172 = int_to_ptr.hbm [resolvable:$true] %s171
          %s173 = sshll.u32 %s165, 4
          %s174 = int_to_ptr.vmem [resolvable:$true] %s173
          %176 = dma.hbm_to_vmem [thread:$0]  %s172, 32, %s174, %s162
        $region28: #{autoencoder_forward.6} parent=19 // pred_fallthru
          _
      $region20: #{autoencoder_forward.6} parent=5 // pred_fallthru
        _
      %p177 = scmp.le.s32.totalorder 1, %s15
      %p178 = scmp.lt.s32.totalorder %s15, 5
      %p179 = pnand %p177, %p178
      %p180 = pneg %p179
      // Predicated region
      $region29: #{autoencoder_forward.6} parent=5 // pred_check
        _
      $region30: #{autoencoder_forward.6} parent=5 // pred_check_branch
        %182 = sbr.rel (%p179) target = $region32
      $region31: #{autoencoder_forward.6} parent=5 // pred_region
        %s183 = ssub.s32 %s15, 1
        %s184 = sand.u32 %s49, 1
        %s185 = scalar_lea.sflag [#allocation3], %s184
        %s186 = sand.u32 %s49, 1
        %s187 = smul.addr %s186, 1024
        %s188 = scalar_lea.vmem [#allocation2], %s187
        // Predicated region
        $region33: #{autoencoder_forward.6} parent=31 // pred_check
          %p189 = pneg %p62
        $region34: #{autoencoder_forward.6} parent=31 // pred_check_branch
          %191 = sbr.rel (%p189) target = $region36
        $region35: #{autoencoder_forward.6} parent=31 // pred_region
          %193 = dma.done %s185, 16384
        $region36: #{autoencoder_forward.6} parent=31 // pred_fallthru
          _
        %s194 = sand.u32 %s75, 1
        %s195 = scalar_lea.sflag [#allocation5], %s194
        %s196 = sand.u32 %s75, 1
        %s197 = smul.addr %s196, 2
        %s198 = scalar_lea.vmem [#allocation4], %s197
        // Predicated region
        $region37: #{autoencoder_forward.6} parent=31 // pred_check
          %p199 = pneg %p88
        $region38: #{autoencoder_forward.6} parent=31 // pred_check_branch
          %201 = sbr.rel (%p199) target = $region40
        $region39: #{autoencoder_forward.6} parent=31 // pred_region
          %203 = dma.done %s195, 32
        $region40: #{autoencoder_forward.6} parent=31 // pred_fallthru
          _
        %p204 = pneg %p36
        %p205 = pneg %p33
        %s206 = sand.u32 %s49, 1
        %s207 = scalar_lea.sflag [#allocation3], %s206
        %s208 = sand.u32 %s49, 1
        %s209 = smul.addr %s208, 1024
        %s210 = scalar_lea.vmem [#allocation2], %s209
        %p211 = pneg %p62
        %p212 = pneg %p59
        %s213 = sand.u32 %s75, 1
        %s214 = scalar_lea.sflag [#allocation5], %s213
        %s215 = sand.u32 %s75, 1
        %s216 = smul.addr %s215, 2
        %s217 = scalar_lea.vmem [#allocation4], %s216
        %p218 = pneg %p88
        %p219 = pneg %p85
        %p220 = pneg %p114
        %p221 = pneg %p111
        %s222 = smul.u32 2, %s20
        %p223 = scmp.lt.s32.totalorder %s222, 7
        %s224 = scalar_select %p223, %s222, 7
        %s225 = smul.addr %s224, 2
        %s226 = scalar_lea.vmem %s3, %s225
        %s227 = smul.u32 2, %s20
        %s228 = smul.u32 2, %s20
        %s229 = smul.u32 2, %s20
        %p230 = scmp.lt.s32.totalorder %s229, 7
        %s231 = scalar_select %p230, %s229, 7
        %s232 = smul.addr %s231, 2
        %s233 = scalar_lea.vmem %s3, %s232
        %s234 = smul.u32 2, %s20
        %v235 = vld [vmem:[%s0] sm:$0xff]
        %v236 = vld [vmem:[%s0 + $0x8] sm:$0xff]
        %239 = vst [vmem:[#allocation1] ss:$4 sm:$0xff] %v235
        %s240 = scalar_lea.vmem [#allocation1], 32
        %241 = vst [vmem:[%s240] ss:$4 sm:$0xff] %v236
        %v242 = vld.sshfl [vmem:[#allocation1] sm:$0xff pattern:$0x73625140]
        %v243 = vld.sshfl [vmem:[#allocation1 + $0x8] sm:$0xff pattern:$0x73625140]
        %v244 = vld.sshfl [vmem:[#allocation1 + $0x10] sm:$0xff pattern:$0x73625140]
        %v245 = vld.sshfl [vmem:[#allocation1 + $0x18] sm:$0xff pattern:$0x73625140]
        %v246 = vld.sshfl [vmem:[#allocation1 + $0x20] sm:$0xff pattern:$0x73625140]
        %v247 = vld.sshfl [vmem:[#allocation1 + $0x28] sm:$0xff pattern:$0x73625140]
        %v248 = vld.sshfl [vmem:[#allocation1 + $0x30] sm:$0xff pattern:$0x73625140]
        %v249 = vld.sshfl [vmem:[#allocation1 + $0x38] sm:$0xff pattern:$0x73625140]
        %v258 = vpack.c.bf16 %v242, %v242
        %v259 = vpack.c.bf16 %v243, %v243
        %v260 = vpack.c.bf16 %v244, %v244
        %v261 = vpack.c.bf16 %v245, %v245
        %v262 = vpack.c.bf16 %v246, %v246
        %v263 = vpack.c.bf16 %v247, %v247
        %v264 = vpack.c.bf16 %v248, %v248
        %v265 = vpack.c.bf16 %v249, %v249
        %v266 = vld [vmem:[%s188] sm:$0xff]
        %v267 = vld [vmem:[%s188 + $0x8] sm:$0xff]
        %v268 = vld [vmem:[%s188 + $0x10] sm:$0xff]
        %v269 = vld [vmem:[%s188 + $0x18] sm:$0xff]
        %v270 = vld [vmem:[%s188 + $0x20] sm:$0xff]
        %v271 = vld [vmem:[%s188 + $0x28] sm:$0xff]
        %v272 = vld [vmem:[%s188 + $0x30] sm:$0xff]
        %v273 = vld [vmem:[%s188 + $0x38] sm:$0xff]
        %v274 = vld [vmem:[%s188 + $0x40] sm:$0xff]
        %v275 = vld [vmem:[%s188 + $0x48] sm:$0xff]
        %v276 = vld [vmem:[%s188 + $0x50] sm:$0xff]
        %v277 = vld [vmem:[%s188 + $0x58] sm:$0xff]
        %v278 = vld [vmem:[%s188 + $0x60] sm:$0xff]
        %v279 = vld [vmem:[%s188 + $0x68] sm:$0xff]
        %v280 = vld [vmem:[%s188 + $0x70] sm:$0xff]
        %v281 = vld [vmem:[%s188 + $0x78] sm:$0xff]
        %v282 = vld [vmem:[%s188 + $0x80] sm:$0xff]
        %v283 = vld [vmem:[%s188 + $0x88] sm:$0xff]
        %v284 = vld [vmem:[%s188 + $0x90] sm:$0xff]
        %v285 = vld [vmem:[%s188 + $0x98] sm:$0xff]
        %v286 = vld [vmem:[%s188 + $0xa0] sm:$0xff]
        %v287 = vld [vmem:[%s188 + $0xa8] sm:$0xff]
        %v288 = vld [vmem:[%s188 + $0xb0] sm:$0xff]
        %v289 = vld [vmem:[%s188 + $0xb8] sm:$0xff]
        %v290 = vld [vmem:[%s188 + $0xc0] sm:$0xff]
        %v291 = vld [vmem:[%s188 + $0xc8] sm:$0xff]
        %v292 = vld [vmem:[%s188 + $0xd0] sm:$0xff]
        %v293 = vld [vmem:[%s188 + $0xd8] sm:$0xff]
        %v294 = vld [vmem:[%s188 + $0xe0] sm:$0xff]
        %v295 = vld [vmem:[%s188 + $0xe8] sm:$0xff]
        %v296 = vld [vmem:[%s188 + $0xf0] sm:$0xff]
        %v297 = vld [vmem:[%s188 + $0xf8] sm:$0xff]
        %v298 = vld [vmem:[%s188 + $0x100] sm:$0xff]
        %v299 = vld [vmem:[%s188 + $0x108] sm:$0xff]
        %v300 = vld [vmem:[%s188 + $0x110] sm:$0xff]
        %v301 = vld [vmem:[%s188 + $0x118] sm:$0xff]
        %v302 = vld [vmem:[%s188 + $0x120] sm:$0xff]
        %v303 = vld [vmem:[%s188 + $0x128] sm:$0xff]
        %v304 = vld [vmem:[%s188 + $0x130] sm:$0xff]
        %v305 = vld [vmem:[%s188 + $0x138] sm:$0xff]
        %v306 = vld [vmem:[%s188 + $0x140] sm:$0xff]
        %v307 = vld [vmem:[%s188 + $0x148] sm:$0xff]
        %v308 = vld [vmem:[%s188 + $0x150] sm:$0xff]
        %v309 = vld [vmem:[%s188 + $0x158] sm:$0xff]
        %v310 = vld [vmem:[%s188 + $0x160] sm:$0xff]
        %v311 = vld [vmem:[%s188 + $0x168] sm:$0xff]
        %v312 = vld [vmem:[%s188 + $0x170] sm:$0xff]
        %v313 = vld [vmem:[%s188 + $0x178] sm:$0xff]
        %v314 = vld [vmem:[%s188 + $0x180] sm:$0xff]
        %v315 = vld [vmem:[%s188 + $0x188] sm:$0xff]
        %v316 = vld [vmem:[%s188 + $0x190] sm:$0xff]
        %v317 = vld [vmem:[%s188 + $0x198] sm:$0xff]
        %v318 = vld [vmem:[%s188 + $0x1a0] sm:$0xff]
        %v319 = vld [vmem:[%s188 + $0x1a8] sm:$0xff]
        %v320 = vld [vmem:[%s188 + $0x1b0] sm:$0xff]
        %v321 = vld [vmem:[%s188 + $0x1b8] sm:$0xff]
        %v322 = vld [vmem:[%s188 + $0x1c0] sm:$0xff]
        %v323 = vld [vmem:[%s188 + $0x1c8] sm:$0xff]
        %v324 = vld [vmem:[%s188 + $0x1d0] sm:$0xff]
        %v325 = vld [vmem:[%s188 + $0x1d8] sm:$0xff]
        %v326 = vld [vmem:[%s188 + $0x1e0] sm:$0xff]
        %v327 = vld [vmem:[%s188 + $0x1e8] sm:$0xff]
        %v328 = vld [vmem:[%s188 + $0x1f0] sm:$0xff]
        %v329 = vld [vmem:[%s188 + $0x1f8] sm:$0xff]
        %v330 = vld [vmem:[%s188 + $0x200] sm:$0xff]
        %v331 = vld [vmem:[%s188 + $0x208] sm:$0xff]
        %v332 = vld [vmem:[%s188 + $0x210] sm:$0xff]
        %v333 = vld [vmem:[%s188 + $0x218] sm:$0xff]
        %v334 = vld [vmem:[%s188 + $0x220] sm:$0xff]
        %v335 = vld [vmem:[%s188 + $0x228] sm:$0xff]
        %v336 = vld [vmem:[%s188 + $0x230] sm:$0xff]
        %v337 = vld [vmem:[%s188 + $0x238] sm:$0xff]
        %v338 = vld [vmem:[%s188 + $0x240] sm:$0xff]
        %v339 = vld [vmem:[%s188 + $0x248] sm:$0xff]
        %v340 = vld [vmem:[%s188 + $0x250] sm:$0xff]
        %v341 = vld [vmem:[%s188 + $0x258] sm:$0xff]
        %v342 = vld [vmem:[%s188 + $0x260] sm:$0xff]
        %v343 = vld [vmem:[%s188 + $0x268] sm:$0xff]
        %v344 = vld [vmem:[%s188 + $0x270] sm:$0xff]
        %v345 = vld [vmem:[%s188 + $0x278] sm:$0xff]
        %v346 = vld [vmem:[%s188 + $0x280] sm:$0xff]
        %v347 = vld [vmem:[%s188 + $0x288] sm:$0xff]
        %v348 = vld [vmem:[%s188 + $0x290] sm:$0xff]
        %v349 = vld [vmem:[%s188 + $0x298] sm:$0xff]
        %v350 = vld [vmem:[%s188 + $0x2a0] sm:$0xff]
        %v351 = vld [vmem:[%s188 + $0x2a8] sm:$0xff]
        %v352 = vld [vmem:[%s188 + $0x2b0] sm:$0xff]
        %v353 = vld [vmem:[%s188 + $0x2b8] sm:$0xff]
        %v354 = vld [vmem:[%s188 + $0x2c0] sm:$0xff]
        %v355 = vld [vmem:[%s188 + $0x2c8] sm:$0xff]
        %v356 = vld [vmem:[%s188 + $0x2d0] sm:$0xff]
        %v357 = vld [vmem:[%s188 + $0x2d8] sm:$0xff]
        %v358 = vld [vmem:[%s188 + $0x2e0] sm:$0xff]
        %v359 = vld [vmem:[%s188 + $0x2e8] sm:$0xff]
        %v360 = vld [vmem:[%s188 + $0x2f0] sm:$0xff]
        %v361 = vld [vmem:[%s188 + $0x2f8] sm:$0xff]
        %v362 = vld [vmem:[%s188 + $0x300] sm:$0xff]
        %v363 = vld [vmem:[%s188 + $0x308] sm:$0xff]
        %v364 = vld [vmem:[%s188 + $0x310] sm:$0xff]
        %v365 = vld [vmem:[%s188 + $0x318] sm:$0xff]
        %v366 = vld [vmem:[%s188 + $0x320] sm:$0xff]
        %v367 = vld [vmem:[%s188 + $0x328] sm:$0xff]
        %v368 = vld [vmem:[%s188 + $0x330] sm:$0xff]
        %v369 = vld [vmem:[%s188 + $0x338] sm:$0xff]
        %v370 = vld [vmem:[%s188 + $0x340] sm:$0xff]
        %v371 = vld [vmem:[%s188 + $0x348] sm:$0xff]
        %v372 = vld [vmem:[%s188 + $0x350] sm:$0xff]
        %v373 = vld [vmem:[%s188 + $0x358] sm:$0xff]
        %v374 = vld [vmem:[%s188 + $0x360] sm:$0xff]
        %v375 = vld [vmem:[%s188 + $0x368] sm:$0xff]
        %v376 = vld [vmem:[%s188 + $0x370] sm:$0xff]
        %v377 = vld [vmem:[%s188 + $0x378] sm:$0xff]
        %v378 = vld [vmem:[%s188 + $0x380] sm:$0xff]
        %v379 = vld [vmem:[%s188 + $0x388] sm:$0xff]
        %v380 = vld [vmem:[%s188 + $0x390] sm:$0xff]
        %v381 = vld [vmem:[%s188 + $0x398] sm:$0xff]
        %v382 = vld [vmem:[%s188 + $0x3a0] sm:$0xff]
        %v383 = vld [vmem:[%s188 + $0x3a8] sm:$0xff]
        %v384 = vld [vmem:[%s188 + $0x3b0] sm:$0xff]
        %v385 = vld [vmem:[%s188 + $0x3b8] sm:$0xff]
        %v386 = vld [vmem:[%s188 + $0x3c0] sm:$0xff]
        %v387 = vld [vmem:[%s188 + $0x3c8] sm:$0xff]
        %v388 = vld [vmem:[%s188 + $0x3d0] sm:$0xff]
        %v389 = vld [vmem:[%s188 + $0x3d8] sm:$0xff]
        %v390 = vld [vmem:[%s188 + $0x3e0] sm:$0xff]
        %v391 = vld [vmem:[%s188 + $0x3e8] sm:$0xff]
        %v392 = vld [vmem:[%s188 + $0x3f0] sm:$0xff]
        %v393 = vld [vmem:[%s188 + $0x3f8] sm:$0xff]
        %v394 = vld [vmem:[%s198] sm:$0x3]
        %v396 = vperm.slane %v394, 0
        %v397 = vperm.slane %v394, 1
        %v528 = vunpack.c.l.b16 %v266
        %v529 = vunpack.c.h.b16 %v266
        %v530 = vunpack.c.l.b16 %v267
        %v531 = vunpack.c.h.b16 %v267
        %v532 = vunpack.c.l.b16 %v268
        %v533 = vunpack.c.h.b16 %v268
        %v534 = vunpack.c.l.b16 %v269
        %v535 = vunpack.c.h.b16 %v269
        %v536 = vunpack.c.l.b16 %v270
        %v537 = vunpack.c.h.b16 %v270
        %v538 = vunpack.c.l.b16 %v271
        %v539 = vunpack.c.h.b16 %v271
        %v540 = vunpack.c.l.b16 %v272
        %v541 = vunpack.c.h.b16 %v272
        %v542 = vunpack.c.l.b16 %v273
        %v543 = vunpack.c.h.b16 %v273
        %v544 = vunpack.c.l.b16 %v274
        %v545 = vunpack.c.h.b16 %v274
        %v546 = vunpack.c.l.b16 %v275
        %v547 = vunpack.c.h.b16 %v275
        %v548 = vunpack.c.l.b16 %v276
        %v549 = vunpack.c.h.b16 %v276
        %v550 = vunpack.c.l.b16 %v277
        %v551 = vunpack.c.h.b16 %v277
        %v552 = vunpack.c.l.b16 %v278
        %v553 = vunpack.c.h.b16 %v278
        %v554 = vunpack.c.l.b16 %v279
        %v555 = vunpack.c.h.b16 %v279
        %v556 = vunpack.c.l.b16 %v280
        %v557 = vunpack.c.h.b16 %v280
        %v558 = vunpack.c.l.b16 %v281
        %v559 = vunpack.c.h.b16 %v281
        %v560 = vunpack.c.l.b16 %v282
        %v561 = vunpack.c.h.b16 %v282
        %v562 = vunpack.c.l.b16 %v283
        %v563 = vunpack.c.h.b16 %v283
        %v564 = vunpack.c.l.b16 %v284
        %v565 = vunpack.c.h.b16 %v284
        %v566 = vunpack.c.l.b16 %v285
        %v567 = vunpack.c.h.b16 %v285
        %v568 = vunpack.c.l.b16 %v286
        %v569 = vunpack.c.h.b16 %v286
        %v570 = vunpack.c.l.b16 %v287
        %v571 = vunpack.c.h.b16 %v287
        %v572 = vunpack.c.l.b16 %v288
        %v573 = vunpack.c.h.b16 %v288
        %v574 = vunpack.c.l.b16 %v289
        %v575 = vunpack.c.h.b16 %v289
        %v576 = vunpack.c.l.b16 %v290
        %v577 = vunpack.c.h.b16 %v290
        %v578 = vunpack.c.l.b16 %v291
        %v579 = vunpack.c.h.b16 %v291
        %v580 = vunpack.c.l.b16 %v292
        %v581 = vunpack.c.h.b16 %v292
        %v582 = vunpack.c.l.b16 %v293
        %v583 = vunpack.c.h.b16 %v293
        %v584 = vunpack.c.l.b16 %v294
        %v585 = vunpack.c.h.b16 %v294
        %v586 = vunpack.c.l.b16 %v295
        %v587 = vunpack.c.h.b16 %v295
        %v588 = vunpack.c.l.b16 %v296
        %v589 = vunpack.c.h.b16 %v296
        %v590 = vunpack.c.l.b16 %v297
        %v591 = vunpack.c.h.b16 %v297
        %v592 = vunpack.c.l.b16 %v298
        %v593 = vunpack.c.h.b16 %v298
        %v594 = vunpack.c.l.b16 %v299
        %v595 = vunpack.c.h.b16 %v299
        %v596 = vunpack.c.l.b16 %v300
        %v597 = vunpack.c.h.b16 %v300
        %v598 = vunpack.c.l.b16 %v301
        %v599 = vunpack.c.h.b16 %v301
        %v600 = vunpack.c.l.b16 %v302
        %v601 = vunpack.c.h.b16 %v302
        %v602 = vunpack.c.l.b16 %v303
        %v603 = vunpack.c.h.b16 %v303
        %v604 = vunpack.c.l.b16 %v304
        %v605 = vunpack.c.h.b16 %v304
        %v606 = vunpack.c.l.b16 %v305
        %v607 = vunpack.c.h.b16 %v305
        %v608 = vunpack.c.l.b16 %v306
        %v609 = vunpack.c.h.b16 %v306
        %v610 = vunpack.c.l.b16 %v307
        %v611 = vunpack.c.h.b16 %v307
        %v612 = vunpack.c.l.b16 %v308
        %v613 = vunpack.c.h.b16 %v308
        %v614 = vunpack.c.l.b16 %v309
        %v615 = vunpack.c.h.b16 %v309
        %v616 = vunpack.c.l.b16 %v310
        %v617 = vunpack.c.h.b16 %v310
        %v618 = vunpack.c.l.b16 %v311
        %v619 = vunpack.c.h.b16 %v311
        %v620 = vunpack.c.l.b16 %v312
        %v621 = vunpack.c.h.b16 %v312
        %v622 = vunpack.c.l.b16 %v313
        %v623 = vunpack.c.h.b16 %v313
        %v624 = vunpack.c.l.b16 %v314
        %v625 = vunpack.c.h.b16 %v314
        %v626 = vunpack.c.l.b16 %v315
        %v627 = vunpack.c.h.b16 %v315
        %v628 = vunpack.c.l.b16 %v316
        %v629 = vunpack.c.h.b16 %v316
        %v630 = vunpack.c.l.b16 %v317
        %v631 = vunpack.c.h.b16 %v317
        %v632 = vunpack.c.l.b16 %v318
        %v633 = vunpack.c.h.b16 %v318
        %v634 = vunpack.c.l.b16 %v319
        %v635 = vunpack.c.h.b16 %v319
        %v636 = vunpack.c.l.b16 %v320
        %v637 = vunpack.c.h.b16 %v320
        %v638 = vunpack.c.l.b16 %v321
        %v639 = vunpack.c.h.b16 %v321
        %v640 = vunpack.c.l.b16 %v322
        %v641 = vunpack.c.h.b16 %v322
        %v642 = vunpack.c.l.b16 %v323
        %v643 = vunpack.c.h.b16 %v323
        %v644 = vunpack.c.l.b16 %v324
        %v645 = vunpack.c.h.b16 %v324
        %v646 = vunpack.c.l.b16 %v325
        %v647 = vunpack.c.h.b16 %v325
        %v648 = vunpack.c.l.b16 %v326
        %v649 = vunpack.c.h.b16 %v326
        %v650 = vunpack.c.l.b16 %v327
        %v651 = vunpack.c.h.b16 %v327
        %v652 = vunpack.c.l.b16 %v328
        %v653 = vunpack.c.h.b16 %v328
        %v654 = vunpack.c.l.b16 %v329
        %v655 = vunpack.c.h.b16 %v329
        %v656 = vunpack.c.l.b16 %v330
        %v657 = vunpack.c.h.b16 %v330
        %v658 = vunpack.c.l.b16 %v331
        %v659 = vunpack.c.h.b16 %v331
        %v660 = vunpack.c.l.b16 %v332
        %v661 = vunpack.c.h.b16 %v332
        %v662 = vunpack.c.l.b16 %v333
        %v663 = vunpack.c.h.b16 %v333
        %v664 = vunpack.c.l.b16 %v334
        %v665 = vunpack.c.h.b16 %v334
        %v666 = vunpack.c.l.b16 %v335
        %v667 = vunpack.c.h.b16 %v335
        %v668 = vunpack.c.l.b16 %v336
        %v669 = vunpack.c.h.b16 %v336
        %v670 = vunpack.c.l.b16 %v337
        %v671 = vunpack.c.h.b16 %v337
        %v672 = vunpack.c.l.b16 %v338
        %v673 = vunpack.c.h.b16 %v338
        %v674 = vunpack.c.l.b16 %v339
        %v675 = vunpack.c.h.b16 %v339
        %v676 = vunpack.c.l.b16 %v340
        %v677 = vunpack.c.h.b16 %v340
        %v678 = vunpack.c.l.b16 %v341
        %v679 = vunpack.c.h.b16 %v341
        %v680 = vunpack.c.l.b16 %v342
        %v681 = vunpack.c.h.b16 %v342
        %v682 = vunpack.c.l.b16 %v343
        %v683 = vunpack.c.h.b16 %v343
        %v684 = vunpack.c.l.b16 %v344
        %v685 = vunpack.c.h.b16 %v344
        %v686 = vunpack.c.l.b16 %v345
        %v687 = vunpack.c.h.b16 %v345
        %v688 = vunpack.c.l.b16 %v346
        %v689 = vunpack.c.h.b16 %v346
        %v690 = vunpack.c.l.b16 %v347
        %v691 = vunpack.c.h.b16 %v347
        %v692 = vunpack.c.l.b16 %v348
        %v693 = vunpack.c.h.b16 %v348
        %v694 = vunpack.c.l.b16 %v349
        %v695 = vunpack.c.h.b16 %v349
        %v696 = vunpack.c.l.b16 %v350
        %v697 = vunpack.c.h.b16 %v350
        %v698 = vunpack.c.l.b16 %v351
        %v699 = vunpack.c.h.b16 %v351
        %v700 = vunpack.c.l.b16 %v352
        %v701 = vunpack.c.h.b16 %v352
        %v702 = vunpack.c.l.b16 %v353
        %v703 = vunpack.c.h.b16 %v353
        %v704 = vunpack.c.l.b16 %v354
        %v705 = vunpack.c.h.b16 %v354
        %v706 = vunpack.c.l.b16 %v355
        %v707 = vunpack.c.h.b16 %v355
        %v708 = vunpack.c.l.b16 %v356
        %v709 = vunpack.c.h.b16 %v356
        %v710 = vunpack.c.l.b16 %v357
        %v711 = vunpack.c.h.b16 %v357
        %v712 = vunpack.c.l.b16 %v358
        %v713 = vunpack.c.h.b16 %v358
        %v714 = vunpack.c.l.b16 %v359
        %v715 = vunpack.c.h.b16 %v359
        %v716 = vunpack.c.l.b16 %v360
        %v717 = vunpack.c.h.b16 %v360
        %v718 = vunpack.c.l.b16 %v361
        %v719 = vunpack.c.h.b16 %v361
        %v720 = vunpack.c.l.b16 %v362
        %v721 = vunpack.c.h.b16 %v362
        %v722 = vunpack.c.l.b16 %v363
        %v723 = vunpack.c.h.b16 %v363
        %v724 = vunpack.c.l.b16 %v364
        %v725 = vunpack.c.h.b16 %v364
        %v726 = vunpack.c.l.b16 %v365
        %v727 = vunpack.c.h.b16 %v365
        %v728 = vunpack.c.l.b16 %v366
        %v729 = vunpack.c.h.b16 %v366
        %v730 = vunpack.c.l.b16 %v367
        %v731 = vunpack.c.h.b16 %v367
        %v732 = vunpack.c.l.b16 %v368
        %v733 = vunpack.c.h.b16 %v368
        %v734 = vunpack.c.l.b16 %v369
        %v735 = vunpack.c.h.b16 %v369
        %v736 = vunpack.c.l.b16 %v370
        %v737 = vunpack.c.h.b16 %v370
        %v738 = vunpack.c.l.b16 %v371
        %v739 = vunpack.c.h.b16 %v371
        %v740 = vunpack.c.l.b16 %v372
        %v741 = vunpack.c.h.b16 %v372
        %v742 = vunpack.c.l.b16 %v373
        %v743 = vunpack.c.h.b16 %v373
        %v744 = vunpack.c.l.b16 %v374
        %v745 = vunpack.c.h.b16 %v374
        %v746 = vunpack.c.l.b16 %v375
        %v747 = vunpack.c.h.b16 %v375
        %v748 = vunpack.c.l.b16 %v376
        %v749 = vunpack.c.h.b16 %v376
        %v750 = vunpack.c.l.b16 %v377
        %v751 = vunpack.c.h.b16 %v377
        %v752 = vunpack.c.l.b16 %v378
        %v753 = vunpack.c.h.b16 %v378
        %v754 = vunpack.c.l.b16 %v379
        %v755 = vunpack.c.h.b16 %v379
        %v756 = vunpack.c.l.b16 %v380
        %v757 = vunpack.c.h.b16 %v380
        %v758 = vunpack.c.l.b16 %v381
        %v759 = vunpack.c.h.b16 %v381
        %v760 = vunpack.c.l.b16 %v382
        %v761 = vunpack.c.h.b16 %v382
        %v762 = vunpack.c.l.b16 %v383
        %v763 = vunpack.c.h.b16 %v383
        %v764 = vunpack.c.l.b16 %v384
        %v765 = vunpack.c.h.b16 %v384
        %v766 = vunpack.c.l.b16 %v385
        %v767 = vunpack.c.h.b16 %v385
        %v768 = vunpack.c.l.b16 %v386
        %v769 = vunpack.c.h.b16 %v386
        %v770 = vunpack.c.l.b16 %v387
        %v771 = vunpack.c.h.b16 %v387
        %v772 = vunpack.c.l.b16 %v388
        %v773 = vunpack.c.h.b16 %v388
        %v774 = vunpack.c.l.b16 %v389
        %v775 = vunpack.c.h.b16 %v389
        %v776 = vunpack.c.l.b16 %v390
        %v777 = vunpack.c.h.b16 %v390
        %v778 = vunpack.c.l.b16 %v391
        %v779 = vunpack.c.h.b16 %v391
        %v780 = vunpack.c.l.b16 %v392
        %v781 = vunpack.c.h.b16 %v392
        %v782 = vunpack.c.l.b16 %v393
        %v783 = vunpack.c.h.b16 %v393
        %v784 = vpack.c.b16 %v530, %v528
        %v785 = vpack.c.b16 %v531, %v529
        %v786 = vpack.c.b16 %v534, %v532
        %v787 = vpack.c.b16 %v535, %v533
        %v788 = vpack.c.b16 %v538, %v536
        %v789 = vpack.c.b16 %v539, %v537
        %v790 = vpack.c.b16 %v542, %v540
        %v791 = vpack.c.b16 %v543, %v541
        %v792 = vpack.c.b16 %v546, %v544
        %v793 = vpack.c.b16 %v547, %v545
        %v794 = vpack.c.b16 %v550, %v548
        %v795 = vpack.c.b16 %v551, %v549
        %v796 = vpack.c.b16 %v554, %v552
        %v797 = vpack.c.b16 %v555, %v553
        %v798 = vpack.c.b16 %v558, %v556
        %v799 = vpack.c.b16 %v559, %v557
        %v800 = vpack.c.b16 %v562, %v560
        %v801 = vpack.c.b16 %v563, %v561
        %v802 = vpack.c.b16 %v566, %v564
        %v803 = vpack.c.b16 %v567, %v565
        %v804 = vpack.c.b16 %v570, %v568
        %v805 = vpack.c.b16 %v571, %v569
        %v806 = vpack.c.b16 %v574, %v572
        %v807 = vpack.c.b16 %v575, %v573
        %v808 = vpack.c.b16 %v578, %v576
        %v809 = vpack.c.b16 %v579, %v577
        %v810 = vpack.c.b16 %v582, %v580
        %v811 = vpack.c.b16 %v583, %v581
        %v812 = vpack.c.b16 %v586, %v584
        %v813 = vpack.c.b16 %v587, %v585
        %v814 = vpack.c.b16 %v590, %v588
        %v815 = vpack.c.b16 %v591, %v589
        %v816 = vpack.c.b16 %v594, %v592
        %v817 = vpack.c.b16 %v595, %v593
        %v818 = vpack.c.b16 %v598, %v596
        %v819 = vpack.c.b16 %v599, %v597
        %v820 = vpack.c.b16 %v602, %v600
        %v821 = vpack.c.b16 %v603, %v601
        %v822 = vpack.c.b16 %v606, %v604
        %v823 = vpack.c.b16 %v607, %v605
        %v824 = vpack.c.b16 %v610, %v608
        %v825 = vpack.c.b16 %v611, %v609
        %v826 = vpack.c.b16 %v614, %v612
        %v827 = vpack.c.b16 %v615, %v613
        %v828 = vpack.c.b16 %v618, %v616
        %v829 = vpack.c.b16 %v619, %v617
        %v830 = vpack.c.b16 %v622, %v620
        %v831 = vpack.c.b16 %v623, %v621
        %v832 = vpack.c.b16 %v626, %v624
        %v833 = vpack.c.b16 %v627, %v625
        %v834 = vpack.c.b16 %v630, %v628
        %v835 = vpack.c.b16 %v631, %v629
        %v836 = vpack.c.b16 %v634, %v632
        %v837 = vpack.c.b16 %v635, %v633
        %v838 = vpack.c.b16 %v638, %v636
        %v839 = vpack.c.b16 %v639, %v637
        %v840 = vpack.c.b16 %v642, %v640
        %v841 = vpack.c.b16 %v643, %v641
        %v842 = vpack.c.b16 %v646, %v644
        %v843 = vpack.c.b16 %v647, %v645
        %v844 = vpack.c.b16 %v650, %v648
        %v845 = vpack.c.b16 %v651, %v649
        %v846 = vpack.c.b16 %v654, %v652
        %v847 = vpack.c.b16 %v655, %v653
        %v848 = vpack.c.b16 %v658, %v656
        %v849 = vpack.c.b16 %v659, %v657
        %v850 = vpack.c.b16 %v662, %v660
        %v851 = vpack.c.b16 %v663, %v661
        %v852 = vpack.c.b16 %v666, %v664
        %v853 = vpack.c.b16 %v667, %v665
        %v854 = vpack.c.b16 %v670, %v668
        %v855 = vpack.c.b16 %v671, %v669
        %v856 = vpack.c.b16 %v674, %v672
        %v857 = vpack.c.b16 %v675, %v673
        %v858 = vpack.c.b16 %v678, %v676
        %v859 = vpack.c.b16 %v679, %v677
        %v860 = vpack.c.b16 %v682, %v680
        %v861 = vpack.c.b16 %v683, %v681
        %v862 = vpack.c.b16 %v686, %v684
        %v863 = vpack.c.b16 %v687, %v685
        %v864 = vpack.c.b16 %v690, %v688
        %v865 = vpack.c.b16 %v691, %v689
        %v866 = vpack.c.b16 %v694, %v692
        %v867 = vpack.c.b16 %v695, %v693
        %v868 = vpack.c.b16 %v698, %v696
        %v869 = vpack.c.b16 %v699, %v697
        %v870 = vpack.c.b16 %v702, %v700
        %v871 = vpack.c.b16 %v703, %v701
        %v872 = vpack.c.b16 %v706, %v704
        %v873 = vpack.c.b16 %v707, %v705
        %v874 = vpack.c.b16 %v710, %v708
        %v875 = vpack.c.b16 %v711, %v709
        %v876 = vpack.c.b16 %v714, %v712
        %v877 = vpack.c.b16 %v715, %v713
        %v878 = vpack.c.b16 %v718, %v716
        %v879 = vpack.c.b16 %v719, %v717
        %v880 = vpack.c.b16 %v722, %v720
        %v881 = vpack.c.b16 %v723, %v721
        %v882 = vpack.c.b16 %v726, %v724
        %v883 = vpack.c.b16 %v727, %v725
        %v884 = vpack.c.b16 %v730, %v728
        %v885 = vpack.c.b16 %v731, %v729
        %v886 = vpack.c.b16 %v734, %v732
        %v887 = vpack.c.b16 %v735, %v733
        %v888 = vpack.c.b16 %v738, %v736
        %v889 = vpack.c.b16 %v739, %v737
        %v890 = vpack.c.b16 %v742, %v740
        %v891 = vpack.c.b16 %v743, %v741
        %v892 = vpack.c.b16 %v746, %v744
        %v893 = vpack.c.b16 %v747, %v745
        %v894 = vpack.c.b16 %v750, %v748
        %v895 = vpack.c.b16 %v751, %v749
        %v896 = vpack.c.b16 %v754, %v752
        %v897 = vpack.c.b16 %v755, %v753
        %v898 = vpack.c.b16 %v758, %v756
        %v899 = vpack.c.b16 %v759, %v757
        %v900 = vpack.c.b16 %v762, %v760
        %v901 = vpack.c.b16 %v763, %v761
        %v902 = vpack.c.b16 %v766, %v764
        %v903 = vpack.c.b16 %v767, %v765
        %v904 = vpack.c.b16 %v770, %v768
        %v905 = vpack.c.b16 %v771, %v769
        %v906 = vpack.c.b16 %v774, %v772
        %v907 = vpack.c.b16 %v775, %v773
        %v908 = vpack.c.b16 %v778, %v776
        %v909 = vpack.c.b16 %v779, %v777
        %v910 = vpack.c.b16 %v782, %v780
        %v911 = vpack.c.b16 %v783, %v781
        %1040 = vmatpush.bf16.msra.mxu0 %v798
        %1041 = vmatpush.bf16.msra.mxu0 %v796
        %1042 = vmatpush.bf16.msra.mxu0 %v794
        %1043 = vmatpush.bf16.msra.mxu0 %v792
        %1044 = vmatpush.bf16.msra.mxu0 %v790
        %1045 = vmatpush.bf16.msra.mxu0 %v788
        %1046 = vmatpush.bf16.msra.mxu0 %v786
        %1047 = vmatpush.bf16.msra.mxu0 %v784
        %1048 = vmatmul.bf16.gmra.mxu0 %v258
        %v1049 = vpop.f32.mrf.mxu0
        %v1050 = vadd.f32 %v396, %v1049
        %v1051 = vpop.f32.mrf.mxu0
        %1052 = vdwg.mxu0
        %1053 = vmatpush.bf16.msra.mxu0 %v814
        %1054 = vmatpush.bf16.msra.mxu0 %v812
        %1055 = vmatpush.bf16.msra.mxu0 %v810
        %1056 = vmatpush.bf16.msra.mxu0 %v808
        %1057 = vmatpush.bf16.msra.mxu0 %v806
        %1058 = vmatpush.bf16.msra.mxu0 %v804
        %1059 = vmatpush.bf16.msra.mxu0 %v802
        %1060 = vmatpush.bf16.msra.mxu0 %v800
        %1061 = vmatmul.bf16.gmra.mxu0 %v259
        %v1062 = vpop.f32.mrf.mxu0
        %v1063 = vadd.f32 %v1050, %v1062
        %v1064 = vpop.f32.mrf.mxu0
        %1065 = vdwg.mxu0
        %1066 = vmatpush.bf16.msra.mxu0 %v830
        %1067 = vmatpush.bf16.msra.mxu0 %v828
        %1068 = vmatpush.bf16.msra.mxu0 %v826
        %1069 = vmatpush.bf16.msra.mxu0 %v824
        %1070 = vmatpush.bf16.msra.mxu0 %v822
        %1071 = vmatpush.bf16.msra.mxu0 %v820
        %1072 = vmatpush.bf16.msra.mxu0 %v818
        %1073 = vmatpush.bf16.msra.mxu0 %v816
        %1074 = vmatmul.bf16.gmra.mxu0 %v260
        %v1075 = vpop.f32.mrf.mxu0
        %v1076 = vadd.f32 %v1063, %v1075
        %v1077 = vpop.f32.mrf.mxu0
        %1078 = vdwg.mxu0
        %1079 = vmatpush.bf16.msra.mxu0 %v846
        %1080 = vmatpush.bf16.msra.mxu0 %v844
        %1081 = vmatpush.bf16.msra.mxu0 %v842
        %1082 = vmatpush.bf16.msra.mxu0 %v840
        %1083 = vmatpush.bf16.msra.mxu0 %v838
        %1084 = vmatpush.bf16.msra.mxu0 %v836
        %1085 = vmatpush.bf16.msra.mxu0 %v834
        %1086 = vmatpush.bf16.msra.mxu0 %v832
        %1087 = vmatmul.bf16.gmra.mxu0 %v261
        %v1088 = vpop.f32.mrf.mxu0
        %v1089 = vadd.f32 %v1076, %v1088
        %v1090 = vpop.f32.mrf.mxu0
        %1091 = vdwg.mxu0
        %1092 = vmatpush.bf16.msra.mxu0 %v862
        %1093 = vmatpush.bf16.msra.mxu0 %v860
        %1094 = vmatpush.bf16.msra.mxu0 %v858
        %1095 = vmatpush.bf16.msra.mxu0 %v856
        %1096 = vmatpush.bf16.msra.mxu0 %v854
        %1097 = vmatpush.bf16.msra.mxu0 %v852
        %1098 = vmatpush.bf16.msra.mxu0 %v850
        %1099 = vmatpush.bf16.msra.mxu0 %v848
        %1100 = vmatmul.bf16.gmra.mxu0 %v262
        %v1101 = vpop.f32.mrf.mxu0
        %v1102 = vadd.f32 %v1089, %v1101
        %v1103 = vpop.f32.mrf.mxu0
        %1104 = vdwg.mxu0
        %1105 = vmatpush.bf16.msra.mxu0 %v878
        %1106 = vmatpush.bf16.msra.mxu0 %v876
        %1107 = vmatpush.bf16.msra.mxu0 %v874
        %1108 = vmatpush.bf16.msra.mxu0 %v872
        %1109 = vmatpush.bf16.msra.mxu0 %v870
        %1110 = vmatpush.bf16.msra.mxu0 %v868
        %1111 = vmatpush.bf16.msra.mxu0 %v866
        %1112 = vmatpush.bf16.msra.mxu0 %v864
        %1113 = vmatmul.bf16.gmra.mxu0 %v263
        %v1114 = vpop.f32.mrf.mxu0
        %v1115 = vadd.f32 %v1102, %v1114
        %v1116 = vpop.f32.mrf.mxu0
        %1117 = vdwg.mxu0
        %1118 = vmatpush.bf16.msra.mxu0 %v894
        %1119 = vmatpush.bf16.msra.mxu0 %v892
        %1120 = vmatpush.bf16.msra.mxu0 %v890
        %1121 = vmatpush.bf16.msra.mxu0 %v888
        %1122 = vmatpush.bf16.msra.mxu0 %v886
        %1123 = vmatpush.bf16.msra.mxu0 %v884
        %1124 = vmatpush.bf16.msra.mxu0 %v882
        %1125 = vmatpush.bf16.msra.mxu0 %v880
        %1126 = vmatmul.bf16.gmra.mxu0 %v264
        %v1127 = vpop.f32.mrf.mxu0
        %v1128 = vadd.f32 %v1115, %v1127
        %v1129 = vpop.f32.mrf.mxu0
        %1130 = vdwg.mxu0
        %1131 = vmatpush.bf16.msra.mxu0 %v910
        %1132 = vmatpush.bf16.msra.mxu0 %v908
        %1133 = vmatpush.bf16.msra.mxu0 %v906
        %1134 = vmatpush.bf16.msra.mxu0 %v904
        %1135 = vmatpush.bf16.msra.mxu0 %v902
        %1136 = vmatpush.bf16.msra.mxu0 %v900
        %1137 = vmatpush.bf16.msra.mxu0 %v898
        %1138 = vmatpush.bf16.msra.mxu0 %v896
        %1139 = vmatmul.bf16.gmra.mxu0 %v265
        %v1140 = vpop.f32.mrf.mxu0
        %v1141 = vadd.f32 %v1128, %v1140
        %v1142 = vpop.f32.mrf.mxu0
        %1143 = vdwg.mxu0
        %1144 = vmatpush.bf16.msra.mxu0 %v799
        %1145 = vmatpush.bf16.msra.mxu0 %v797
        %1146 = vmatpush.bf16.msra.mxu0 %v795
        %1147 = vmatpush.bf16.msra.mxu0 %v793
        %1148 = vmatpush.bf16.msra.mxu0 %v791
        %1149 = vmatpush.bf16.msra.mxu0 %v789
        %1150 = vmatpush.bf16.msra.mxu0 %v787
        %1151 = vmatpush.bf16.msra.mxu0 %v785
        %1152 = vmatmul.bf16.gmra.mxu0 %v258
        %v1153 = vpop.f32.mrf.mxu0
        %v1154 = vadd.f32 %v397, %v1153
        %v1155 = vpop.f32.mrf.mxu0
        %1156 = vdwg.mxu0
        %1157 = vmatpush.bf16.msra.mxu0 %v815
        %1158 = vmatpush.bf16.msra.mxu0 %v813
        %1159 = vmatpush.bf16.msra.mxu0 %v811
        %1160 = vmatpush.bf16.msra.mxu0 %v809
        %1161 = vmatpush.bf16.msra.mxu0 %v807
        %1162 = vmatpush.bf16.msra.mxu0 %v805
        %1163 = vmatpush.bf16.msra.mxu0 %v803
        %1164 = vmatpush.bf16.msra.mxu0 %v801
        %1165 = vmatmul.bf16.gmra.mxu0 %v259
        %v1166 = vpop.f32.mrf.mxu0
        %v1167 = vadd.f32 %v1154, %v1166
        %v1168 = vpop.f32.mrf.mxu0
        %1169 = vdwg.mxu0
        %1170 = vmatpush.bf16.msra.mxu0 %v831
        %1171 = vmatpush.bf16.msra.mxu0 %v829
        %1172 = vmatpush.bf16.msra.mxu0 %v827
        %1173 = vmatpush.bf16.msra.mxu0 %v825
        %1174 = vmatpush.bf16.msra.mxu0 %v823
        %1175 = vmatpush.bf16.msra.mxu0 %v821
        %1176 = vmatpush.bf16.msra.mxu0 %v819
        %1177 = vmatpush.bf16.msra.mxu0 %v817
        %1178 = vmatmul.bf16.gmra.mxu0 %v260
        %v1179 = vpop.f32.mrf.mxu0
        %v1180 = vadd.f32 %v1167, %v1179
        %v1181 = vpop.f32.mrf.mxu0
        %1182 = vdwg.mxu0
        %1183 = vmatpush.bf16.msra.mxu0 %v847
        %1184 = vmatpush.bf16.msra.mxu0 %v845
        %1185 = vmatpush.bf16.msra.mxu0 %v843
        %1186 = vmatpush.bf16.msra.mxu0 %v841
        %1187 = vmatpush.bf16.msra.mxu0 %v839
        %1188 = vmatpush.bf16.msra.mxu0 %v837
        %1189 = vmatpush.bf16.msra.mxu0 %v835
        %1190 = vmatpush.bf16.msra.mxu0 %v833
        %1191 = vmatmul.bf16.gmra.mxu0 %v261
        %v1192 = vpop.f32.mrf.mxu0
        %v1193 = vadd.f32 %v1180, %v1192
        %v1194 = vpop.f32.mrf.mxu0
        %1195 = vdwg.mxu0
        %1196 = vmatpush.bf16.msra.mxu0 %v863
        %1197 = vmatpush.bf16.msra.mxu0 %v861
        %1198 = vmatpush.bf16.msra.mxu0 %v859
        %1199 = vmatpush.bf16.msra.mxu0 %v857
        %1200 = vmatpush.bf16.msra.mxu0 %v855
        %1201 = vmatpush.bf16.msra.mxu0 %v853
        %1202 = vmatpush.bf16.msra.mxu0 %v851
        %1203 = vmatpush.bf16.msra.mxu0 %v849
        %1204 = vmatmul.bf16.gmra.mxu0 %v262
        %v1205 = vpop.f32.mrf.mxu0
        %v1206 = vadd.f32 %v1193, %v1205
        %v1207 = vpop.f32.mrf.mxu0
        %1208 = vdwg.mxu0
        %1209 = vmatpush.bf16.msra.mxu0 %v879
        %1210 = vmatpush.bf16.msra.mxu0 %v877
        %1211 = vmatpush.bf16.msra.mxu0 %v875
        %1212 = vmatpush.bf16.msra.mxu0 %v873
        %1213 = vmatpush.bf16.msra.mxu0 %v871
        %1214 = vmatpush.bf16.msra.mxu0 %v869
        %1215 = vmatpush.bf16.msra.mxu0 %v867
        %1216 = vmatpush.bf16.msra.mxu0 %v865
        %1217 = vmatmul.bf16.gmra.mxu0 %v263
        %v1218 = vpop.f32.mrf.mxu0
        %v1219 = vadd.f32 %v1206, %v1218
        %v1220 = vpop.f32.mrf.mxu0
        %1221 = vdwg.mxu0
        %1222 = vmatpush.bf16.msra.mxu0 %v895
        %1223 = vmatpush.bf16.msra.mxu0 %v893
        %1224 = vmatpush.bf16.msra.mxu0 %v891
        %1225 = vmatpush.bf16.msra.mxu0 %v889
        %1226 = vmatpush.bf16.msra.mxu0 %v887
        %1227 = vmatpush.bf16.msra.mxu0 %v885
        %1228 = vmatpush.bf16.msra.mxu0 %v883
        %1229 = vmatpush.bf16.msra.mxu0 %v881
        %1230 = vmatmul.bf16.gmra.mxu0 %v264
        %v1231 = vpop.f32.mrf.mxu0
        %v1232 = vadd.f32 %v1219, %v1231
        %v1233 = vpop.f32.mrf.mxu0
        %1234 = vdwg.mxu0
        %1235 = vmatpush.bf16.msra.mxu0 %v911
        %1236 = vmatpush.bf16.msra.mxu0 %v909
        %1237 = vmatpush.bf16.msra.mxu0 %v907
        %1238 = vmatpush.bf16.msra.mxu0 %v905
        %1239 = vmatpush.bf16.msra.mxu0 %v903
        %1240 = vmatpush.bf16.msra.mxu0 %v901
        %1241 = vmatpush.bf16.msra.mxu0 %v899
        %1242 = vmatpush.bf16.msra.mxu0 %v897
        %1243 = vmatmul.bf16.gmra.mxu0 %v265
        %v1244 = vpop.f32.mrf.mxu0
        %v1245 = vadd.f32 %v1232, %v1244
        %v1246 = vpop.f32.mrf.mxu0
        %1247 = vdwg.mxu0
        %v1248 = vmax.f32 %v1141, 0.0
        %v1249 = vmax.f32 %v1245, 0.0
        %v1252 = vrot.slane %v1249, 6
        %vm1253 = vcmask 1041408
        %v1254 = vsel %vm1253, %v1248, %v1252
        %1256 = vst [vmem:[%s233] sm:$0xf] %v1254
        %s1257 = smul.u32 2, %s20
        %p1258 = scmp.lt.s32.totalorder %s1257, 7
        %s1259 = scalar_select %p1258, %s1257, 7
        %s1260 = smul.addr %s1259, 2
        %s1261 = scalar_lea.vmem %s3, %s1260
        // Predicated region
        $region41: #{autoencoder_forward.6} parent=31 // pred_check
          %p1262 = pneg %p111
        $region42: #{autoencoder_forward.6} parent=31 // pred_check_branch
          %1264 = sbr.rel (%p1262) target = $region44
        $region43: #{autoencoder_forward.6} parent=31 // pred_region
          %s1265 = smul.u32 2, %s20
        $region44: #{autoencoder_forward.6} parent=31 // pred_fallthru
          _
      $region32: #{autoencoder_forward.6} parent=5 // pred_fallthru
        _
      %p1266 = scmp.le.s32.totalorder 2, %s15
      // Predicated region
      $region45: #{autoencoder_forward.6} parent=5 // pred_check
        %p1267 = pneg %p1266
      $region46: #{autoencoder_forward.6} parent=5 // pred_check_branch
        %1269 = sbr.rel (%p1267) target = $region48
      $region47: #{autoencoder_forward.6} parent=5 // pred_region
        %s1270 = ssub.s32 %s15, 2
        // Predicated region
        $region49: #{autoencoder_forward.6} parent=47 // pred_check
          %p1271 = pneg %p117
        $region50: #{autoencoder_forward.6} parent=47 // pred_check_branch
          %1273 = sbr.rel (%p1271) target = $region52
        $region51: #{autoencoder_forward.6} parent=47 // pred_region
          %s1274 = smul.u32 2, %s21
          %p1275 = scmp.lt.s32.totalorder %s1274, 7
          %s1276 = scalar_select %p1275, %s1274, 7
          %s1277 = smul.addr %s1276, 2
          %s1278 = scalar_lea.vmem %s3, %s1277
        $region52: #{autoencoder_forward.6} parent=47 // pred_fallthru
          _
      $region48: #{autoencoder_forward.6} parent=5 // pred_fallthru
        _
    $region6: #{autoencoder_forward.6} parent=1 // loop_footer
      %s19 = sadd.s32 1, %s15
    $region7: #{autoencoder_forward.6} parent=1 // loop_footer_branch
      %14 = sbr.rel target = $region3
    $region8: #{autoencoder_forward.6} parent=1 // loop_exit
      _
    %1279 = vsyncpa [#allocation3], 1
    %s1280 = scalar_lea.sflag [#allocation3], 1
    %1281 = vsyncpa %s1280, 1
    %1282 = vsyncpa [#allocation5], 1
    %s1283 = scalar_lea.sflag [#allocation5], 1
    %1284 = vsyncpa %s1283, 1

// kernel: autoencoder_forward.5
$region0: #{autoencoder_forward.5}
  #allocation0 [shape = 'u32[]', space=smem, size = 0x4, offset = 0x4, fixed_abs, tag = 'smem constant byte address 0x4 - core index']
  #allocation1 [shape = 'u32[72,128]{1,0:T(1,128)}', space=vmem, size = 0x9000, scoped, tag = 'internal scratch']
  %s0 = inlined_call_operand.vmem [shape: f32[2,1024], index: 0, kind: input, shape index: {}]
  %s1 = inlined_call_operand.hbm [shape: bf16[1024,1024], index: 1, kind: input, shape index: {}]
  %s2 = inlined_call_operand.hbm [shape: f32[1,1024], index: 2, kind: input, shape index: {}]
  %s3 = inlined_call_operand.vmem [shape: f32[2,1024], index: 3, kind: output, shape index: {}]
  %s4 = sld [smem:[#allocation0]]
  $region53: #{autoencoder_forward.5} parent=0
    _
  %s6 = ssub.s32 1, %s4
  %s7 = scalar_select 0, %s6, %s4
  $region1: #{autoencoder_forward.5} parent=0
    #allocation2 [shape = 'u8[1048576]{0}', space=vmem, size = 0x100000, scoped, tag = 'input window, operand 1']
    #allocation3 [shape = 's32[2]{0}', space=sflag, size = 0x8, scoped, tag = 'scoped memory for autoencoder_forward.5']
    #allocation4 [shape = 'u8[2048]{0}', space=vmem, size = 0x800, scoped, tag = 'input window, operand 2']
    #allocation5 [shape = 's32[2]{0}', space=sflag, size = 0x8, scoped, tag = 'scoped memory for autoencoder_forward.5']
    %8 = vsyncpa [#allocation3], 0
    %s9 = scalar_lea.sflag [#allocation3], 1
    %10 = vsyncpa %s9, 0
    %11 = vsyncpa [#allocation5], 0
    %s12 = scalar_lea.sflag [#allocation5], 1
    %13 = vsyncpa %s12, 0
    loop: start=0, step=1, limit=6
    $region2: #{autoencoder_forward.5} parent=1 // loop_pre_header
      _
    $region3: #{autoencoder_forward.5} parent=1 // loop_header
      %s15 = sphi 0, %s19
      %p16 = scmp.ge.s32.totalorder %s15, 6
      %s23 = sphi 0, %s23
      %s25 = sphi 0, %s23
      %s26 = sphi 0, %s25
      %s40 = sphi 0, %s26
      %s46 = sphi 0, %s48
      %s49 = sphi 0, %s46
      %s50 = sphi 0, %s49
      %s66 = sphi 0, %s50
      %s72 = sphi 0, %s74
      %s75 = sphi 0, %s72
      %s76 = sphi 0, %s75
      %s92 = sphi 0, %s76
      %s98 = sphi 0, %s100
      %s101 = sphi 0, %s98
      %s102 = sphi 0, %s101
      %s118 = sphi 0, %s102
    $region4: #{autoencoder_forward.5} parent=1 // loop_header_branch
      %18 = sbr.rel (%p16) target = $region8
    $region5: #{autoencoder_forward.5} parent=1 // loop_body
      %s20 = ssub.s32 %s15, 1
      %s21 = ssub.s32 %s15, 2
      %s22 = sadd.s32 %s15, 1
      %s24 = sadd.s32 %s23, 1
      %p27 = scmp.eq.s32.totalorder %s15, 3
      %p28 = scmp.ne.s32.totalorder %s23, %s25
      %p29 = scmp.eq.s32.totalorder %s15, 0
      %p30 = por %p28, %p29
      %p31 = scmp.ne.s32.totalorder %s23, %s25
      %p32 = scmp.eq.s32.totalorder %s20, 3
      %p33 = por %p31, %p32
      %p34 = scmp.ne.s32.totalorder %s25, %s26
      %p35 = scmp.eq.s32.totalorder %s20, 0
      %p36 = por %p34, %p35
      %p37 = scmp.ne.s32.totalorder %s25, %s26
      %p38 = scmp.eq.s32.totalorder %s21, 3
      %p39 = por %p37, %p38
      %p41 = scmp.ne.s32.totalorder %s26, %s40
      %p42 = scmp.eq.s32.totalorder %s21, 0
      %p43 = por %p41, %p42
      %s44 = ssub.s32 %s15, %s22
      %p45 = scmp.eq.s32.totalorder %s44, 0
      %s47 = sadd.s32 %s46, 1
      %s48 = scalar_select %p45, %s46, %s47
      %p51 = pneg %p45
      %p52 = scmp.eq.s32.totalorder %s15, 3
      %p53 = por %p51, %p52
      %p54 = scmp.ne.s32.totalorder %s46, %s49
      %p55 = scmp.eq.s32.totalorder %s15, 0
      %p56 = por %p54, %p55
      %p57 = scmp.ne.s32.totalorder %s46, %s49
      %p58 = scmp.eq.s32.totalorder %s20, 3
      %p59 = por %p57, %p58
      %p60 = scmp.ne.s32.totalorder %s49, %s50
      %p61 = scmp.eq.s32.totalorder %s20, 0
      %p62 = por %p60, %p61
      %p63 = scmp.ne.s32.totalorder %s49, %s50
      %p64 = scmp.eq.s32.totalorder %s21, 3
      %p65 = por %p63, %p64
      %p67 = scmp.ne.s32.totalorder %s50, %s66
      %p68 = scmp.eq.s32.totalorder %s21, 0
      %p69 = por %p67, %p68
      %s70 = ssub.s32 %s15, %s22
      %p71 = scmp.eq.s32.totalorder %s70, 0
      %s73 = sadd.s32 %s72, 1
      %s74 = scalar_select %p71, %s72, %s73
      %p77 = pneg %p71
      %p78 = scmp.eq.s32.totalorder %s15, 3
      %p79 = por %p77, %p78
      %p80 = scmp.ne.s32.totalorder %s72, %s75
      %p81 = scmp.eq.s32.totalorder %s15, 0
      %p82 = por %p80, %p81
      %p83 = scmp.ne.s32.totalorder %s72, %s75
      %p84 = scmp.eq.s32.totalorder %s20, 3
      %p85 = por %p83, %p84
      %p86 = scmp.ne.s32.totalorder %s75, %s76
      %p87 = scmp.eq.s32.totalorder %s20, 0
      %p88 = por %p86, %p87
      %p89 = scmp.ne.s32.totalorder %s75, %s76
      %p90 = scmp.eq.s32.totalorder %s21, 3
      %p91 = por %p89, %p90
      %p93 = scmp.ne.s32.totalorder %s76, %s92
      %p94 = scmp.eq.s32.totalorder %s21, 0
      %p95 = por %p93, %p94
      %s96 = ssub.s32 %s15, %s22
      %p97 = scmp.eq.s32.totalorder %s96, 0
      %s99 = sadd.s32 %s98, 1
      %s100 = scalar_select %p97, %s98, %s99
      %p103 = pneg %p97
      %p104 = scmp.eq.s32.totalorder %s15, 3
      %p105 = por %p103, %p104
      %p106 = scmp.ne.s32.totalorder %s98, %s101
      %p107 = scmp.eq.s32.totalorder %s15, 0
      %p108 = por %p106, %p107
      %p109 = scmp.ne.s32.totalorder %s98, %s101
      %p110 = scmp.eq.s32.totalorder %s20, 3
      %p111 = por %p109, %p110
      %p112 = scmp.ne.s32.totalorder %s101, %s102
      %p113 = scmp.eq.s32.totalorder %s20, 0
      %p114 = por %p112, %p113
      %p115 = scmp.ne.s32.totalorder %s101, %s102
      %p116 = scmp.eq.s32.totalorder %s21, 3
      %p117 = por %p115, %p116
      %p119 = scmp.ne.s32.totalorder %s102, %s118
      %p120 = scmp.eq.s32.totalorder %s21, 0
      %p121 = por %p119, %p120
      %p122 = scmp.le.s32.totalorder 1, %s15
      %p123 = scmp.lt.s32.totalorder %s15, 5
      %p124 = pnand %p122, %p123
      %p125 = pneg %p124
      // Predicated region
      $region9: #{autoencoder_forward.5} parent=5 // pred_check
        _
      $region10: #{autoencoder_forward.5} parent=5 // pred_check_branch
        %127 = sbr.rel (%p124) target = $region12
      $region11: #{autoencoder_forward.5} parent=5 // pred_region
        %s128 = ssub.s32 %s15, 1
        // Predicated region
        $region13: #{autoencoder_forward.5} parent=11 // pred_check
          %p129 = pneg %p36
        $region14: #{autoencoder_forward.5} parent=11 // pred_check_branch
          %131 = sbr.rel (%p129) target = $region16
        $region15: #{autoencoder_forward.5} parent=11 // pred_region
          _
        $region16: #{autoencoder_forward.5} parent=11 // pred_fallthru
          _
      $region12: #{autoencoder_forward.5} parent=5 // pred_fallthru
        _
      %p132 = scmp.lt.s32.totalorder %s15, 4
      // Predicated region
      $region17: #{autoencoder_forward.5} parent=5 // pred_check
        %p133 = pneg %p132
      $region18: #{autoencoder_forward.5} parent=5 // pred_check_branch
        %135 = sbr.rel (%p133) target = $region20
      $region19: #{autoencoder_forward.5} parent=5 // pred_region
        // Predicated region
        $region21: #{autoencoder_forward.5} parent=19 // pred_check
          %p136 = pneg %p56
        $region22: #{autoencoder_forward.5} parent=19 // pred_check_branch
          %138 = sbr.rel (%p136) target = $region24
        $region23: #{autoencoder_forward.5} parent=19 // pred_region
          %s139 = sand.u32 %s46, 1
          %s140 = scalar_lea.sflag [#allocation3], %s139
          %s141 = sand.u32 %s46, 1
          %s142 = smul.addr %s141, 1024
          %s143 = scalar_lea.vmem [#allocation2], %s142
          %s144 = smul.u32 2, %s15
          %146 = vsyncadd %s140, 0
          %s147 = smul.addr %s144, 4
          %s148 = scalar_lea.hbm %s1, %s147
          %s149 = sshll.u32 %s148, 4
          %s150 = int_to_ptr.hbm [resolvable:$true] %s149
          %s151 = sshll.u32 %s143, 4
          %s152 = int_to_ptr.vmem [resolvable:$true] %s151
          %157 = dma.hbm_to_vmem [thread:$0]  %s150, 16384, %s152, %s140, 512, 128, 8
        $region24: #{autoencoder_forward.5} parent=19 // pred_fallthru
          _
        // Predicated region
        $region25: #{autoencoder_forward.5} parent=19 // pred_check
          %p158 = pneg %p82
        $region26: #{autoencoder_forward.5} parent=19 // pred_check_branch
          %160 = sbr.rel (%p158) target = $region28
        $region27: #{autoencoder_forward.5} parent=19 // pred_region
          %s161 = sand.u32 %s72, 1
          %s162 = scalar_lea.sflag [#allocation5], %s161
          %s163 = sand.u32 %s72, 1
          %s164 = smul.addr %s163, 2
          %s165 = scalar_lea.vmem [#allocation4], %s164
          %s166 = smul.u32 2, %s15
          %168 = vsyncadd %s162, 0
          %s169 = scalar_lea.hbm %s2, %s166
          %s171 = sshll.u32 %s169, 4
          %s172 = int_to_ptr.hbm [resolvable:$true] %s171
          %s173 = sshll.u32 %s165, 4
          %s174 = int_to_ptr.vmem [resolvable:$true] %s173
          %176 = dma.hbm_to_vmem [thread:$0]  %s172, 32, %s174, %s162
        $region28: #{autoencoder_forward.5} parent=19 // pred_fallthru
          _
      $region20: #{autoencoder_forward.5} parent=5 // pred_fallthru
        _
      %p177 = scmp.le.s32.totalorder 1, %s15
      %p178 = scmp.lt.s32.totalorder %s15, 5
      %p179 = pnand %p177, %p178
      %p180 = pneg %p179
      // Predicated region
      $region29: #{autoencoder_forward.5} parent=5 // pred_check
        _
      $region30: #{autoencoder_forward.5} parent=5 // pred_check_branch
        %182 = sbr.rel (%p179) target = $region32
      $region31: #{autoencoder_forward.5} parent=5 // pred_region
        %s183 = ssub.s32 %s15, 1
        %s184 = sand.u32 %s49, 1
        %s185 = scalar_lea.sflag [#allocation3], %s184
        %s186 = sand.u32 %s49, 1
        %s187 = smul.addr %s186, 1024
        %s188 = scalar_lea.vmem [#allocation2], %s187
        // Predicated region
        $region33: #{autoencoder_forward.5} parent=31 // pred_check
          %p189 = pneg %p62
        $region34: #{autoencoder_forward.5} parent=31 // pred_check_branch
          %191 = sbr.rel (%p189) target = $region36
        $region35: #{autoencoder_forward.5} parent=31 // pred_region
          %193 = dma.done %s185, 16384
        $region36: #{autoencoder_forward.5} parent=31 // pred_fallthru
          _
        %s194 = sand.u32 %s75, 1
        %s195 = scalar_lea.sflag [#allocation5], %s194
        %s196 = sand.u32 %s75, 1
        %s197 = smul.addr %s196, 2
        %s198 = scalar_lea.vmem [#allocation4], %s197
        // Predicated region
        $region37: #{autoencoder_forward.5} parent=31 // pred_check
          %p199 = pneg %p88
        $region38: #{autoencoder_forward.5} parent=31 // pred_check_branch
          %201 = sbr.rel (%p199) target = $region40
        $region39: #{autoencoder_forward.5} parent=31 // pred_region
          %203 = dma.done %s195, 32
        $region40: #{autoencoder_forward.5} parent=31 // pred_fallthru
          _
        %p204 = pneg %p36
        %p205 = pneg %p33
        %s206 = sand.u32 %s49, 1
        %s207 = scalar_lea.sflag [#allocation3], %s206
        %s208 = sand.u32 %s49, 1
        %s209 = smul.addr %s208, 1024
        %s210 = scalar_lea.vmem [#allocation2], %s209
        %p211 = pneg %p62
        %p212 = pneg %p59
        %s213 = sand.u32 %s75, 1
        %s214 = scalar_lea.sflag [#allocation5], %s213
        %s215 = sand.u32 %s75, 1
        %s216 = smul.addr %s215, 2
        %s217 = scalar_lea.vmem [#allocation4], %s216
        %p218 = pneg %p88
        %p219 = pneg %p85
        %p220 = pneg %p114
        %p221 = pneg %p111
        %s222 = smul.u32 2, %s20
        %p223 = scmp.lt.s32.totalorder %s222, 7
        %s224 = scalar_select %p223, %s222, 7
        %s225 = smul.addr %s224, 2
        %s226 = scalar_lea.vmem %s3, %s225
        %s227 = smul.u32 2, %s20
        %s228 = smul.u32 2, %s20
        %s229 = smul.u32 2, %s20
        %p230 = scmp.lt.s32.totalorder %s229, 7
        %s231 = scalar_select %p230, %s229, 7
        %s232 = smul.addr %s231, 2
        %s233 = scalar_lea.vmem %s3, %s232
        %s234 = smul.u32 2, %s20
        %v235 = vld [vmem:[%s0] sm:$0xff]
        %v236 = vld [vmem:[%s0 + $0x8] sm:$0xff]
        %239 = vst [vmem:[#allocation1] ss:$4 sm:$0xff] %v235
        %s240 = scalar_lea.vmem [#allocation1], 32
        %241 = vst [vmem:[%s240] ss:$4 sm:$0xff] %v236
        %v242 = vld.sshfl [vmem:[#allocation1] sm:$0xff pattern:$0x73625140]
        %v243 = vld.sshfl [vmem:[#allocation1 + $0x8] sm:$0xff pattern:$0x73625140]
        %v244 = vld.sshfl [vmem:[#allocation1 + $0x10] sm:$0xff pattern:$0x73625140]
        %v245 = vld.sshfl [vmem:[#allocation1 + $0x18] sm:$0xff pattern:$0x73625140]
        %v246 = vld.sshfl [vmem:[#allocation1 + $0x20] sm:$0xff pattern:$0x73625140]
        %v247 = vld.sshfl [vmem:[#allocation1 + $0x28] sm:$0xff pattern:$0x73625140]
        %v248 = vld.sshfl [vmem:[#allocation1 + $0x30] sm:$0xff pattern:$0x73625140]
        %v249 = vld.sshfl [vmem:[#allocation1 + $0x38] sm:$0xff pattern:$0x73625140]
        %v258 = vpack.c.bf16 %v242, %v242
        %v259 = vpack.c.bf16 %v243, %v243
        %v260 = vpack.c.bf16 %v244, %v244
        %v261 = vpack.c.bf16 %v245, %v245
        %v262 = vpack.c.bf16 %v246, %v246
        %v263 = vpack.c.bf16 %v247, %v247
        %v264 = vpack.c.bf16 %v248, %v248
        %v265 = vpack.c.bf16 %v249, %v249
        %v266 = vld [vmem:[%s188] sm:$0xff]
        %v267 = vld [vmem:[%s188 + $0x8] sm:$0xff]
        %v268 = vld [vmem:[%s188 + $0x10] sm:$0xff]
        %v269 = vld [vmem:[%s188 + $0x18] sm:$0xff]
        %v270 = vld [vmem:[%s188 + $0x20] sm:$0xff]
        %v271 = vld [vmem:[%s188 + $0x28] sm:$0xff]
        %v272 = vld [vmem:[%s188 + $0x30] sm:$0xff]
        %v273 = vld [vmem:[%s188 + $0x38] sm:$0xff]
        %v274 = vld [vmem:[%s188 + $0x40] sm:$0xff]
        %v275 = vld [vmem:[%s188 + $0x48] sm:$0xff]
        %v276 = vld [vmem:[%s188 + $0x50] sm:$0xff]
        %v277 = vld [vmem:[%s188 + $0x58] sm:$0xff]
        %v278 = vld [vmem:[%s188 + $0x60] sm:$0xff]
        %v279 = vld [vmem:[%s188 + $0x68] sm:$0xff]
        %v280 = vld [vmem:[%s188 + $0x70] sm:$0xff]
        %v281 = vld [vmem:[%s188 + $0x78] sm:$0xff]
        %v282 = vld [vmem:[%s188 + $0x80] sm:$0xff]
        %v283 = vld [vmem:[%s188 + $0x88] sm:$0xff]
        %v284 = vld [vmem:[%s188 + $0x90] sm:$0xff]
        %v285 = vld [vmem:[%s188 + $0x98] sm:$0xff]
        %v286 = vld [vmem:[%s188 + $0xa0] sm:$0xff]
        %v287 = vld [vmem:[%s188 + $0xa8] sm:$0xff]
        %v288 = vld [vmem:[%s188 + $0xb0] sm:$0xff]
        %v289 = vld [vmem:[%s188 + $0xb8] sm:$0xff]
        %v290 = vld [vmem:[%s188 + $0xc0] sm:$0xff]
        %v291 = vld [vmem:[%s188 + $0xc8] sm:$0xff]
        %v292 = vld [vmem:[%s188 + $0xd0] sm:$0xff]
        %v293 = vld [vmem:[%s188 + $0xd8] sm:$0xff]
        %v294 = vld [vmem:[%s188 + $0xe0] sm:$0xff]
        %v295 = vld [vmem:[%s188 + $0xe8] sm:$0xff]
        %v296 = vld [vmem:[%s188 + $0xf0] sm:$0xff]
        %v297 = vld [vmem:[%s188 + $0xf8] sm:$0xff]
        %v298 = vld [vmem:[%s188 + $0x100] sm:$0xff]
        %v299 = vld [vmem:[%s188 + $0x108] sm:$0xff]
        %v300 = vld [vmem:[%s188 + $0x110] sm:$0xff]
        %v301 = vld [vmem:[%s188 + $0x118] sm:$0xff]
        %v302 = vld [vmem:[%s188 + $0x120] sm:$0xff]
        %v303 = vld [vmem:[%s188 + $0x128] sm:$0xff]
        %v304 = vld [vmem:[%s188 + $0x130] sm:$0xff]
        %v305 = vld [vmem:[%s188 + $0x138] sm:$0xff]
        %v306 = vld [vmem:[%s188 + $0x140] sm:$0xff]
        %v307 = vld [vmem:[%s188 + $0x148] sm:$0xff]
        %v308 = vld [vmem:[%s188 + $0x150] sm:$0xff]
        %v309 = vld [vmem:[%s188 + $0x158] sm:$0xff]
        %v310 = vld [vmem:[%s188 + $0x160] sm:$0xff]
        %v311 = vld [vmem:[%s188 + $0x168] sm:$0xff]
        %v312 = vld [vmem:[%s188 + $0x170] sm:$0xff]
        %v313 = vld [vmem:[%s188 + $0x178] sm:$0xff]
        %v314 = vld [vmem:[%s188 + $0x180] sm:$0xff]
        %v315 = vld [vmem:[%s188 + $0x188] sm:$0xff]
        %v316 = vld [vmem:[%s188 + $0x190] sm:$0xff]
        %v317 = vld [vmem:[%s188 + $0x198] sm:$0xff]
        %v318 = vld [vmem:[%s188 + $0x1a0] sm:$0xff]
        %v319 = vld [vmem:[%s188 + $0x1a8] sm:$0xff]
        %v320 = vld [vmem:[%s188 + $0x1b0] sm:$0xff]
        %v321 = vld [vmem:[%s188 + $0x1b8] sm:$0xff]
        %v322 = vld [vmem:[%s188 + $0x1c0] sm:$0xff]
        %v323 = vld [vmem:[%s188 + $0x1c8] sm:$0xff]
        %v324 = vld [vmem:[%s188 + $0x1d0] sm:$0xff]
        %v325 = vld [vmem:[%s188 + $0x1d8] sm:$0xff]
        %v326 = vld [vmem:[%s188 + $0x1e0] sm:$0xff]
        %v327 = vld [vmem:[%s188 + $0x1e8] sm:$0xff]
        %v328 = vld [vmem:[%s188 + $0x1f0] sm:$0xff]
        %v329 = vld [vmem:[%s188 + $0x1f8] sm:$0xff]
        %v330 = vld [vmem:[%s188 + $0x200] sm:$0xff]
        %v331 = vld [vmem:[%s188 + $0x208] sm:$0xff]
        %v332 = vld [vmem:[%s188 + $0x210] sm:$0xff]
        %v333 = vld [vmem:[%s188 + $0x218] sm:$0xff]
        %v334 = vld [vmem:[%s188 + $0x220] sm:$0xff]
        %v335 = vld [vmem:[%s188 + $0x228] sm:$0xff]
        %v336 = vld [vmem:[%s188 + $0x230] sm:$0xff]
        %v337 = vld [vmem:[%s188 + $0x238] sm:$0xff]
        %v338 = vld [vmem:[%s188 + $0x240] sm:$0xff]
        %v339 = vld [vmem:[%s188 + $0x248] sm:$0xff]
        %v340 = vld [vmem:[%s188 + $0x250] sm:$0xff]
        %v341 = vld [vmem:[%s188 + $0x258] sm:$0xff]
        %v342 = vld [vmem:[%s188 + $0x260] sm:$0xff]
        %v343 = vld [vmem:[%s188 + $0x268] sm:$0xff]
        %v344 = vld [vmem:[%s188 + $0x270] sm:$0xff]
        %v345 = vld [vmem:[%s188 + $0x278] sm:$0xff]
        %v346 = vld [vmem:[%s188 + $0x280] sm:$0xff]
        %v347 = vld [vmem:[%s188 + $0x288] sm:$0xff]
        %v348 = vld [vmem:[%s188 + $0x290] sm:$0xff]
        %v349 = vld [vmem:[%s188 + $0x298] sm:$0xff]
        %v350 = vld [vmem:[%s188 + $0x2a0] sm:$0xff]
        %v351 = vld [vmem:[%s188 + $0x2a8] sm:$0xff]
        %v352 = vld [vmem:[%s188 + $0x2b0] sm:$0xff]
        %v353 = vld [vmem:[%s188 + $0x2b8] sm:$0xff]
        %v354 = vld [vmem:[%s188 + $0x2c0] sm:$0xff]
        %v355 = vld [vmem:[%s188 + $0x2c8] sm:$0xff]
        %v356 = vld [vmem:[%s188 + $0x2d0] sm:$0xff]
        %v357 = vld [vmem:[%s188 + $0x2d8] sm:$0xff]
        %v358 = vld [vmem:[%s188 + $0x2e0] sm:$0xff]
        %v359 = vld [vmem:[%s188 + $0x2e8] sm:$0xff]
        %v360 = vld [vmem:[%s188 + $0x2f0] sm:$0xff]
        %v361 = vld [vmem:[%s188 + $0x2f8] sm:$0xff]
        %v362 = vld [vmem:[%s188 + $0x300] sm:$0xff]
        %v363 = vld [vmem:[%s188 + $0x308] sm:$0xff]
        %v364 = vld [vmem:[%s188 + $0x310] sm:$0xff]
        %v365 = vld [vmem:[%s188 + $0x318] sm:$0xff]
        %v366 = vld [vmem:[%s188 + $0x320] sm:$0xff]
        %v367 = vld [vmem:[%s188 + $0x328] sm:$0xff]
        %v368 = vld [vmem:[%s188 + $0x330] sm:$0xff]
        %v369 = vld [vmem:[%s188 + $0x338] sm:$0xff]
        %v370 = vld [vmem:[%s188 + $0x340] sm:$0xff]
        %v371 = vld [vmem:[%s188 + $0x348] sm:$0xff]
        %v372 = vld [vmem:[%s188 + $0x350] sm:$0xff]
        %v373 = vld [vmem:[%s188 + $0x358] sm:$0xff]
        %v374 = vld [vmem:[%s188 + $0x360] sm:$0xff]
        %v375 = vld [vmem:[%s188 + $0x368] sm:$0xff]
        %v376 = vld [vmem:[%s188 + $0x370] sm:$0xff]
        %v377 = vld [vmem:[%s188 + $0x378] sm:$0xff]
        %v378 = vld [vmem:[%s188 + $0x380] sm:$0xff]
        %v379 = vld [vmem:[%s188 + $0x388] sm:$0xff]
        %v380 = vld [vmem:[%s188 + $0x390] sm:$0xff]
        %v381 = vld [vmem:[%s188 + $0x398] sm:$0xff]
        %v382 = vld [vmem:[%s188 + $0x3a0] sm:$0xff]
        %v383 = vld [vmem:[%s188 + $0x3a8] sm:$0xff]
        %v384 = vld [vmem:[%s188 + $0x3b0] sm:$0xff]
        %v385 = vld [vmem:[%s188 + $0x3b8] sm:$0xff]
        %v386 = vld [vmem:[%s188 + $0x3c0] sm:$0xff]
        %v387 = vld [vmem:[%s188 + $0x3c8] sm:$0xff]
        %v388 = vld [vmem:[%s188 + $0x3d0] sm:$0xff]
        %v389 = vld [vmem:[%s188 + $0x3d8] sm:$0xff]
        %v390 = vld [vmem:[%s188 + $0x3e0] sm:$0xff]
        %v391 = vld [vmem:[%s188 + $0x3e8] sm:$0xff]
        %v392 = vld [vmem:[%s188 + $0x3f0] sm:$0xff]
        %v393 = vld [vmem:[%s188 + $0x3f8] sm:$0xff]
        %v394 = vld [vmem:[%s198] sm:$0x3]
        %v396 = vperm.slane %v394, 0
        %v397 = vperm.slane %v394, 1
        %v528 = vunpack.c.l.b16 %v266
        %v529 = vunpack.c.h.b16 %v266
        %v530 = vunpack.c.l.b16 %v267
        %v531 = vunpack.c.h.b16 %v267
        %v532 = vunpack.c.l.b16 %v268
        %v533 = vunpack.c.h.b16 %v268
        %v534 = vunpack.c.l.b16 %v269
        %v535 = vunpack.c.h.b16 %v269
        %v536 = vunpack.c.l.b16 %v270
        %v537 = vunpack.c.h.b16 %v270
        %v538 = vunpack.c.l.b16 %v271
        %v539 = vunpack.c.h.b16 %v271
        %v540 = vunpack.c.l.b16 %v272
        %v541 = vunpack.c.h.b16 %v272
        %v542 = vunpack.c.l.b16 %v273
        %v543 = vunpack.c.h.b16 %v273
        %v544 = vunpack.c.l.b16 %v274
        %v545 = vunpack.c.h.b16 %v274
        %v546 = vunpack.c.l.b16 %v275
        %v547 = vunpack.c.h.b16 %v275
        %v548 = vunpack.c.l.b16 %v276
        %v549 = vunpack.c.h.b16 %v276
        %v550 = vunpack.c.l.b16 %v277
        %v551 = vunpack.c.h.b16 %v277
        %v552 = vunpack.c.l.b16 %v278
        %v553 = vunpack.c.h.b16 %v278
        %v554 = vunpack.c.l.b16 %v279
        %v555 = vunpack.c.h.b16 %v279
        %v556 = vunpack.c.l.b16 %v280
        %v557 = vunpack.c.h.b16 %v280
        %v558 = vunpack.c.l.b16 %v281
        %v559 = vunpack.c.h.b16 %v281
        %v560 = vunpack.c.l.b16 %v282
        %v561 = vunpack.c.h.b16 %v282
        %v562 = vunpack.c.l.b16 %v283
        %v563 = vunpack.c.h.b16 %v283
        %v564 = vunpack.c.l.b16 %v284
        %v565 = vunpack.c.h.b16 %v284
        %v566 = vunpack.c.l.b16 %v285
        %v567 = vunpack.c.h.b16 %v285
        %v568 = vunpack.c.l.b16 %v286
        %v569 = vunpack.c.h.b16 %v286
        %v570 = vunpack.c.l.b16 %v287
        %v571 = vunpack.c.h.b16 %v287
        %v572 = vunpack.c.l.b16 %v288
        %v573 = vunpack.c.h.b16 %v288
        %v574 = vunpack.c.l.b16 %v289
        %v575 = vunpack.c.h.b16 %v289
        %v576 = vunpack.c.l.b16 %v290
        %v577 = vunpack.c.h.b16 %v290
        %v578 = vunpack.c.l.b16 %v291
        %v579 = vunpack.c.h.b16 %v291
        %v580 = vunpack.c.l.b16 %v292
        %v581 = vunpack.c.h.b16 %v292
        %v582 = vunpack.c.l.b16 %v293
        %v583 = vunpack.c.h.b16 %v293
        %v584 = vunpack.c.l.b16 %v294
        %v585 = vunpack.c.h.b16 %v294
        %v586 = vunpack.c.l.b16 %v295
        %v587 = vunpack.c.h.b16 %v295
        %v588 = vunpack.c.l.b16 %v296
        %v589 = vunpack.c.h.b16 %v296
        %v590 = vunpack.c.l.b16 %v297
        %v591 = vunpack.c.h.b16 %v297
        %v592 = vunpack.c.l.b16 %v298
        %v593 = vunpack.c.h.b16 %v298
        %v594 = vunpack.c.l.b16 %v299
        %v595 = vunpack.c.h.b16 %v299
        %v596 = vunpack.c.l.b16 %v300
        %v597 = vunpack.c.h.b16 %v300
        %v598 = vunpack.c.l.b16 %v301
        %v599 = vunpack.c.h.b16 %v301
        %v600 = vunpack.c.l.b16 %v302
        %v601 = vunpack.c.h.b16 %v302
        %v602 = vunpack.c.l.b16 %v303
        %v603 = vunpack.c.h.b16 %v303
        %v604 = vunpack.c.l.b16 %v304
        %v605 = vunpack.c.h.b16 %v304
        %v606 = vunpack.c.l.b16 %v305
        %v607 = vunpack.c.h.b16 %v305
        %v608 = vunpack.c.l.b16 %v306
        %v609 = vunpack.c.h.b16 %v306
        %v610 = vunpack.c.l.b16 %v307
        %v611 = vunpack.c.h.b16 %v307
        %v612 = vunpack.c.l.b16 %v308
        %v613 = vunpack.c.h.b16 %v308
        %v614 = vunpack.c.l.b16 %v309
        %v615 = vunpack.c.h.b16 %v309
        %v616 = vunpack.c.l.b16 %v310
        %v617 = vunpack.c.h.b16 %v310
        %v618 = vunpack.c.l.b16 %v311
        %v619 = vunpack.c.h.b16 %v311
        %v620 = vunpack.c.l.b16 %v312
        %v621 = vunpack.c.h.b16 %v312
        %v622 = vunpack.c.l.b16 %v313
        %v623 = vunpack.c.h.b16 %v313
        %v624 = vunpack.c.l.b16 %v314
        %v625 = vunpack.c.h.b16 %v314
        %v626 = vunpack.c.l.b16 %v315
        %v627 = vunpack.c.h.b16 %v315
        %v628 = vunpack.c.l.b16 %v316
        %v629 = vunpack.c.h.b16 %v316
        %v630 = vunpack.c.l.b16 %v317
        %v631 = vunpack.c.h.b16 %v317
        %v632 = vunpack.c.l.b16 %v318
        %v633 = vunpack.c.h.b16 %v318
        %v634 = vunpack.c.l.b16 %v319
        %v635 = vunpack.c.h.b16 %v319
        %v636 = vunpack.c.l.b16 %v320
        %v637 = vunpack.c.h.b16 %v320
        %v638 = vunpack.c.l.b16 %v321
        %v639 = vunpack.c.h.b16 %v321
        %v640 = vunpack.c.l.b16 %v322
        %v641 = vunpack.c.h.b16 %v322
        %v642 = vunpack.c.l.b16 %v323
        %v643 = vunpack.c.h.b16 %v323
        %v644 = vunpack.c.l.b16 %v324
        %v645 = vunpack.c.h.b16 %v324
        %v646 = vunpack.c.l.b16 %v325
        %v647 = vunpack.c.h.b16 %v325
        %v648 = vunpack.c.l.b16 %v326
        %v649 = vunpack.c.h.b16 %v326
        %v650 = vunpack.c.l.b16 %v327
        %v651 = vunpack.c.h.b16 %v327
        %v652 = vunpack.c.l.b16 %v328
        %v653 = vunpack.c.h.b16 %v328
        %v654 = vunpack.c.l.b16 %v329
        %v655 = vunpack.c.h.b16 %v329
        %v656 = vunpack.c.l.b16 %v330
        %v657 = vunpack.c.h.b16 %v330
        %v658 = vunpack.c.l.b16 %v331
        %v659 = vunpack.c.h.b16 %v331
        %v660 = vunpack.c.l.b16 %v332
        %v661 = vunpack.c.h.b16 %v332
        %v662 = vunpack.c.l.b16 %v333
        %v663 = vunpack.c.h.b16 %v333
        %v664 = vunpack.c.l.b16 %v334
        %v665 = vunpack.c.h.b16 %v334
        %v666 = vunpack.c.l.b16 %v335
        %v667 = vunpack.c.h.b16 %v335
        %v668 = vunpack.c.l.b16 %v336
        %v669 = vunpack.c.h.b16 %v336
        %v670 = vunpack.c.l.b16 %v337
        %v671 = vunpack.c.h.b16 %v337
        %v672 = vunpack.c.l.b16 %v338
        %v673 = vunpack.c.h.b16 %v338
        %v674 = vunpack.c.l.b16 %v339
        %v675 = vunpack.c.h.b16 %v339
        %v676 = vunpack.c.l.b16 %v340
        %v677 = vunpack.c.h.b16 %v340
        %v678 = vunpack.c.l.b16 %v341
        %v679 = vunpack.c.h.b16 %v341
        %v680 = vunpack.c.l.b16 %v342
        %v681 = vunpack.c.h.b16 %v342
        %v682 = vunpack.c.l.b16 %v343
        %v683 = vunpack.c.h.b16 %v343
        %v684 = vunpack.c.l.b16 %v344
        %v685 = vunpack.c.h.b16 %v344
        %v686 = vunpack.c.l.b16 %v345
        %v687 = vunpack.c.h.b16 %v345
        %v688 = vunpack.c.l.b16 %v346
        %v689 = vunpack.c.h.b16 %v346
        %v690 = vunpack.c.l.b16 %v347
        %v691 = vunpack.c.h.b16 %v347
        %v692 = vunpack.c.l.b16 %v348
        %v693 = vunpack.c.h.b16 %v348
        %v694 = vunpack.c.l.b16 %v349
        %v695 = vunpack.c.h.b16 %v349
        %v696 = vunpack.c.l.b16 %v350
        %v697 = vunpack.c.h.b16 %v350
        %v698 = vunpack.c.l.b16 %v351
        %v699 = vunpack.c.h.b16 %v351
        %v700 = vunpack.c.l.b16 %v352
        %v701 = vunpack.c.h.b16 %v352
        %v702 = vunpack.c.l.b16 %v353
        %v703 = vunpack.c.h.b16 %v353
        %v704 = vunpack.c.l.b16 %v354
        %v705 = vunpack.c.h.b16 %v354
        %v706 = vunpack.c.l.b16 %v355
        %v707 = vunpack.c.h.b16 %v355
        %v708 = vunpack.c.l.b16 %v356
        %v709 = vunpack.c.h.b16 %v356
        %v710 = vunpack.c.l.b16 %v357
        %v711 = vunpack.c.h.b16 %v357
        %v712 = vunpack.c.l.b16 %v358
        %v713 = vunpack.c.h.b16 %v358
        %v714 = vunpack.c.l.b16 %v359
        %v715 = vunpack.c.h.b16 %v359
        %v716 = vunpack.c.l.b16 %v360
        %v717 = vunpack.c.h.b16 %v360
        %v718 = vunpack.c.l.b16 %v361
        %v719 = vunpack.c.h.b16 %v361
        %v720 = vunpack.c.l.b16 %v362
        %v721 = vunpack.c.h.b16 %v362
        %v722 = vunpack.c.l.b16 %v363
        %v723 = vunpack.c.h.b16 %v363
        %v724 = vunpack.c.l.b16 %v364
        %v725 = vunpack.c.h.b16 %v364
        %v726 = vunpack.c.l.b16 %v365
        %v727 = vunpack.c.h.b16 %v365
        %v728 = vunpack.c.l.b16 %v366
        %v729 = vunpack.c.h.b16 %v366
        %v730 = vunpack.c.l.b16 %v367
        %v731 = vunpack.c.h.b16 %v367
        %v732 = vunpack.c.l.b16 %v368
        %v733 = vunpack.c.h.b16 %v368
        %v734 = vunpack.c.l.b16 %v369
        %v735 = vunpack.c.h.b16 %v369
        %v736 = vunpack.c.l.b16 %v370
        %v737 = vunpack.c.h.b16 %v370
        %v738 = vunpack.c.l.b16 %v371
        %v739 = vunpack.c.h.b16 %v371
        %v740 = vunpack.c.l.b16 %v372
        %v741 = vunpack.c.h.b16 %v372
        %v742 = vunpack.c.l.b16 %v373
        %v743 = vunpack.c.h.b16 %v373
        %v744 = vunpack.c.l.b16 %v374
        %v745 = vunpack.c.h.b16 %v374
        %v746 = vunpack.c.l.b16 %v375
        %v747 = vunpack.c.h.b16 %v375
        %v748 = vunpack.c.l.b16 %v376
        %v749 = vunpack.c.h.b16 %v376
        %v750 = vunpack.c.l.b16 %v377
        %v751 = vunpack.c.h.b16 %v377
        %v752 = vunpack.c.l.b16 %v378
        %v753 = vunpack.c.h.b16 %v378
        %v754 = vunpack.c.l.b16 %v379
        %v755 = vunpack.c.h.b16 %v379
        %v756 = vunpack.c.l.b16 %v380
        %v757 = vunpack.c.h.b16 %v380
        %v758 = vunpack.c.l.b16 %v381
        %v759 = vunpack.c.h.b16 %v381
        %v760 = vunpack.c.l.b16 %v382
        %v761 = vunpack.c.h.b16 %v382
        %v762 = vunpack.c.l.b16 %v383
        %v763 = vunpack.c.h.b16 %v383
        %v764 = vunpack.c.l.b16 %v384
        %v765 = vunpack.c.h.b16 %v384
        %v766 = vunpack.c.l.b16 %v385
        %v767 = vunpack.c.h.b16 %v385
        %v768 = vunpack.c.l.b16 %v386
        %v769 = vunpack.c.h.b16 %v386
        %v770 = vunpack.c.l.b16 %v387
        %v771 = vunpack.c.h.b16 %v387
        %v772 = vunpack.c.l.b16 %v388
        %v773 = vunpack.c.h.b16 %v388
        %v774 = vunpack.c.l.b16 %v389
        %v775 = vunpack.c.h.b16 %v389
        %v776 = vunpack.c.l.b16 %v390
        %v777 = vunpack.c.h.b16 %v390
        %v778 = vunpack.c.l.b16 %v391
        %v779 = vunpack.c.h.b16 %v391
        %v780 = vunpack.c.l.b16 %v392
        %v781 = vunpack.c.h.b16 %v392
        %v782 = vunpack.c.l.b16 %v393
        %v783 = vunpack.c.h.b16 %v393
        %v784 = vpack.c.b16 %v530, %v528
        %v785 = vpack.c.b16 %v531, %v529
        %v786 = vpack.c.b16 %v534, %v532
        %v787 = vpack.c.b16 %v535, %v533
        %v788 = vpack.c.b16 %v538, %v536
        %v789 = vpack.c.b16 %v539, %v537
        %v790 = vpack.c.b16 %v542, %v540
        %v791 = vpack.c.b16 %v543, %v541
        %v792 = vpack.c.b16 %v546, %v544
        %v793 = vpack.c.b16 %v547, %v545
        %v794 = vpack.c.b16 %v550, %v548
        %v795 = vpack.c.b16 %v551, %v549
        %v796 = vpack.c.b16 %v554, %v552
        %v797 = vpack.c.b16 %v555, %v553
        %v798 = vpack.c.b16 %v558, %v556
        %v799 = vpack.c.b16 %v559, %v557
        %v800 = vpack.c.b16 %v562, %v560
        %v801 = vpack.c.b16 %v563, %v561
        %v802 = vpack.c.b16 %v566, %v564
        %v803 = vpack.c.b16 %v567, %v565
        %v804 = vpack.c.b16 %v570, %v568
        %v805 = vpack.c.b16 %v571, %v569
        %v806 = vpack.c.b16 %v574, %v572
        %v807 = vpack.c.b16 %v575, %v573
        %v808 = vpack.c.b16 %v578, %v576
        %v809 = vpack.c.b16 %v579, %v577
        %v810 = vpack.c.b16 %v582, %v580
        %v811 = vpack.c.b16 %v583, %v581
        %v812 = vpack.c.b16 %v586, %v584
        %v813 = vpack.c.b16 %v587, %v585
        %v814 = vpack.c.b16 %v590, %v588
        %v815 = vpack.c.b16 %v591, %v589
        %v816 = vpack.c.b16 %v594, %v592
        %v817 = vpack.c.b16 %v595, %v593
        %v818 = vpack.c.b16 %v598, %v596
        %v819 = vpack.c.b16 %v599, %v597
        %v820 = vpack.c.b16 %v602, %v600
        %v821 = vpack.c.b16 %v603, %v601
        %v822 = vpack.c.b16 %v606, %v604
        %v823 = vpack.c.b16 %v607, %v605
        %v824 = vpack.c.b16 %v610, %v608
        %v825 = vpack.c.b16 %v611, %v609
        %v826 = vpack.c.b16 %v614, %v612
        %v827 = vpack.c.b16 %v615, %v613
        %v828 = vpack.c.b16 %v618, %v616
        %v829 = vpack.c.b16 %v619, %v617
        %v830 = vpack.c.b16 %v622, %v620
        %v831 = vpack.c.b16 %v623, %v621
        %v832 = vpack.c.b16 %v626, %v624
        %v833 = vpack.c.b16 %v627, %v625
        %v834 = vpack.c.b16 %v630, %v628
        %v835 = vpack.c.b16 %v631, %v629
        %v836 = vpack.c.b16 %v634, %v632
        %v837 = vpack.c.b16 %v635, %v633
        %v838 = vpack.c.b16 %v638, %v636
        %v839 = vpack.c.b16 %v639, %v637
        %v840 = vpack.c.b16 %v642, %v640
        %v841 = vpack.c.b16 %v643, %v641
        %v842 = vpack.c.b16 %v646, %v644
        %v843 = vpack.c.b16 %v647, %v645
        %v844 = vpack.c.b16 %v650, %v648
        %v845 = vpack.c.b16 %v651, %v649
        %v846 = vpack.c.b16 %v654, %v652
        %v847 = vpack.c.b16 %v655, %v653
        %v848 = vpack.c.b16 %v658, %v656
        %v849 = vpack.c.b16 %v659, %v657
        %v850 = vpack.c.b16 %v662, %v660
        %v851 = vpack.c.b16 %v663, %v661
        %v852 = vpack.c.b16 %v666, %v664
        %v853 = vpack.c.b16 %v667, %v665
        %v854 = vpack.c.b16 %v670, %v668
        %v855 = vpack.c.b16 %v671, %v669
        %v856 = vpack.c.b16 %v674, %v672
        %v857 = vpack.c.b16 %v675, %v673
        %v858 = vpack.c.b16 %v678, %v676
        %v859 = vpack.c.b16 %v679, %v677
        %v860 = vpack.c.b16 %v682, %v680
        %v861 = vpack.c.b16 %v683, %v681
        %v862 = vpack.c.b16 %v686, %v684
        %v863 = vpack.c.b16 %v687, %v685
        %v864 = vpack.c.b16 %v690, %v688
        %v865 = vpack.c.b16 %v691, %v689
        %v866 = vpack.c.b16 %v694, %v692
        %v867 = vpack.c.b16 %v695, %v693
        %v868 = vpack.c.b16 %v698, %v696
        %v869 = vpack.c.b16 %v699, %v697
        %v870 = vpack.c.b16 %v702, %v700
        %v871 = vpack.c.b16 %v703, %v701
        %v872 = vpack.c.b16 %v706, %v704
        %v873 = vpack.c.b16 %v707, %v705
        %v874 = vpack.c.b16 %v710, %v708
        %v875 = vpack.c.b16 %v711, %v709
        %v876 = vpack.c.b16 %v714, %v712
        %v877 = vpack.c.b16 %v715, %v713
        %v878 = vpack.c.b16 %v718, %v716
        %v879 = vpack.c.b16 %v719, %v717
        %v880 = vpack.c.b16 %v722, %v720
        %v881 = vpack.c.b16 %v723, %v721
        %v882 = vpack.c.b16 %v726, %v724
        %v883 = vpack.c.b16 %v727, %v725
        %v884 = vpack.c.b16 %v730, %v728
        %v885 = vpack.c.b16 %v731, %v729
        %v886 = vpack.c.b16 %v734, %v732
        %v887 = vpack.c.b16 %v735, %v733
        %v888 = vpack.c.b16 %v738, %v736
        %v889 = vpack.c.b16 %v739, %v737
        %v890 = vpack.c.b16 %v742, %v740
        %v891 = vpack.c.b16 %v743, %v741
        %v892 = vpack.c.b16 %v746, %v744
        %v893 = vpack.c.b16 %v747, %v745
        %v894 = vpack.c.b16 %v750, %v748
        %v895 = vpack.c.b16 %v751, %v749
        %v896 = vpack.c.b16 %v754, %v752
        %v897 = vpack.c.b16 %v755, %v753
        %v898 = vpack.c.b16 %v758, %v756
        %v899 = vpack.c.b16 %v759, %v757
        %v900 = vpack.c.b16 %v762, %v760
        %v901 = vpack.c.b16 %v763, %v761
        %v902 = vpack.c.b16 %v766, %v764
        %v903 = vpack.c.b16 %v767, %v765
        %v904 = vpack.c.b16 %v770, %v768
        %v905 = vpack.c.b16 %v771, %v769
        %v906 = vpack.c.b16 %v774, %v772
        %v907 = vpack.c.b16 %v775, %v773
        %v908 = vpack.c.b16 %v778, %v776
        %v909 = vpack.c.b16 %v779, %v777
        %v910 = vpack.c.b16 %v782, %v780
        %v911 = vpack.c.b16 %v783, %v781
        %1040 = vmatpush.bf16.msra.mxu0 %v798
        %1041 = vmatpush.bf16.msra.mxu0 %v796
        %1042 = vmatpush.bf16.msra.mxu0 %v794
        %1043 = vmatpush.bf16.msra.mxu0 %v792
        %1044 = vmatpush.bf16.msra.mxu0 %v790
        %1045 = vmatpush.bf16.msra.mxu0 %v788
        %1046 = vmatpush.bf16.msra.mxu0 %v786
        %1047 = vmatpush.bf16.msra.mxu0 %v784
        %1048 = vmatmul.bf16.gmra.mxu0 %v258
        %v1049 = vpop.f32.mrf.mxu0
        %v1050 = vadd.f32 %v396, %v1049
        %v1051 = vpop.f32.mrf.mxu0
        %1052 = vdwg.mxu0
        %1053 = vmatpush.bf16.msra.mxu0 %v814
        %1054 = vmatpush.bf16.msra.mxu0 %v812
        %1055 = vmatpush.bf16.msra.mxu0 %v810
        %1056 = vmatpush.bf16.msra.mxu0 %v808
        %1057 = vmatpush.bf16.msra.mxu0 %v806
        %1058 = vmatpush.bf16.msra.mxu0 %v804
        %1059 = vmatpush.bf16.msra.mxu0 %v802
        %1060 = vmatpush.bf16.msra.mxu0 %v800
        %1061 = vmatmul.bf16.gmra.mxu0 %v259
        %v1062 = vpop.f32.mrf.mxu0
        %v1063 = vadd.f32 %v1050, %v1062
        %v1064 = vpop.f32.mrf.mxu0
        %1065 = vdwg.mxu0
        %1066 = vmatpush.bf16.msra.mxu0 %v830
        %1067 = vmatpush.bf16.msra.mxu0 %v828
        %1068 = vmatpush.bf16.msra.mxu0 %v826
        %1069 = vmatpush.bf16.msra.mxu0 %v824
        %1070 = vmatpush.bf16.msra.mxu0 %v822
        %1071 = vmatpush.bf16.msra.mxu0 %v820
        %1072 = vmatpush.bf16.msra.mxu0 %v818
        %1073 = vmatpush.bf16.msra.mxu0 %v816
        %1074 = vmatmul.bf16.gmra.mxu0 %v260
        %v1075 = vpop.f32.mrf.mxu0
        %v1076 = vadd.f32 %v1063, %v1075
        %v1077 = vpop.f32.mrf.mxu0
        %1078 = vdwg.mxu0
        %1079 = vmatpush.bf16.msra.mxu0 %v846
        %1080 = vmatpush.bf16.msra.mxu0 %v844
        %1081 = vmatpush.bf16.msra.mxu0 %v842
        %1082 = vmatpush.bf16.msra.mxu0 %v840
        %1083 = vmatpush.bf16.msra.mxu0 %v838
        %1084 = vmatpush.bf16.msra.mxu0 %v836
        %1085 = vmatpush.bf16.msra.mxu0 %v834
        %1086 = vmatpush.bf16.msra.mxu0 %v832
        %1087 = vmatmul.bf16.gmra.mxu0 %v261
        %v1088 = vpop.f32.mrf.mxu0
        %v1089 = vadd.f32 %v1076, %v1088
        %v1090 = vpop.f32.mrf.mxu0
        %1091 = vdwg.mxu0
        %1092 = vmatpush.bf16.msra.mxu0 %v862
        %1093 = vmatpush.bf16.msra.mxu0 %v860
        %1094 = vmatpush.bf16.msra.mxu0 %v858
        %1095 = vmatpush.bf16.msra.mxu0 %v856
        %1096 = vmatpush.bf16.msra.mxu0 %v854
        %1097 = vmatpush.bf16.msra.mxu0 %v852
        %1098 = vmatpush.bf16.msra.mxu0 %v850
        %1099 = vmatpush.bf16.msra.mxu0 %v848
        %1100 = vmatmul.bf16.gmra.mxu0 %v262
        %v1101 = vpop.f32.mrf.mxu0
        %v1102 = vadd.f32 %v1089, %v1101
        %v1103 = vpop.f32.mrf.mxu0
        %1104 = vdwg.mxu0
        %1105 = vmatpush.bf16.msra.mxu0 %v878
        %1106 = vmatpush.bf16.msra.mxu0 %v876
        %1107 = vmatpush.bf16.msra.mxu0 %v874
        %1108 = vmatpush.bf16.msra.mxu0 %v872
        %1109 = vmatpush.bf16.msra.mxu0 %v870
        %1110 = vmatpush.bf16.msra.mxu0 %v868
        %1111 = vmatpush.bf16.msra.mxu0 %v866
        %1112 = vmatpush.bf16.msra.mxu0 %v864
        %1113 = vmatmul.bf16.gmra.mxu0 %v263
        %v1114 = vpop.f32.mrf.mxu0
        %v1115 = vadd.f32 %v1102, %v1114
        %v1116 = vpop.f32.mrf.mxu0
        %1117 = vdwg.mxu0
        %1118 = vmatpush.bf16.msra.mxu0 %v894
        %1119 = vmatpush.bf16.msra.mxu0 %v892
        %1120 = vmatpush.bf16.msra.mxu0 %v890
        %1121 = vmatpush.bf16.msra.mxu0 %v888
        %1122 = vmatpush.bf16.msra.mxu0 %v886
        %1123 = vmatpush.bf16.msra.mxu0 %v884
        %1124 = vmatpush.bf16.msra.mxu0 %v882
        %1125 = vmatpush.bf16.msra.mxu0 %v880
        %1126 = vmatmul.bf16.gmra.mxu0 %v264
        %v1127 = vpop.f32.mrf.mxu0
        %v1128 = vadd.f32 %v1115, %v1127
        %v1129 = vpop.f32.mrf.mxu0
        %1130 = vdwg.mxu0
        %1131 = vmatpush.bf16.msra.mxu0 %v910
        %1132 = vmatpush.bf16.msra.mxu0 %v908
        %1133 = vmatpush.bf16.msra.mxu0 %v906
        %1134 = vmatpush.bf16.msra.mxu0 %v904
        %1135 = vmatpush.bf16.msra.mxu0 %v902
        %1136 = vmatpush.bf16.msra.mxu0 %v900
        %1137 = vmatpush.bf16.msra.mxu0 %v898
        %1138 = vmatpush.bf16.msra.mxu0 %v896
        %1139 = vmatmul.bf16.gmra.mxu0 %v265
        %v1140 = vpop.f32.mrf.mxu0
        %v1141 = vadd.f32 %v1128, %v1140
        %v1142 = vpop.f32.mrf.mxu0
        %1143 = vdwg.mxu0
        %1144 = vmatpush.bf16.msra.mxu0 %v799
        %1145 = vmatpush.bf16.msra.mxu0 %v797
        %1146 = vmatpush.bf16.msra.mxu0 %v795
        %1147 = vmatpush.bf16.msra.mxu0 %v793
        %1148 = vmatpush.bf16.msra.mxu0 %v791
        %1149 = vmatpush.bf16.msra.mxu0 %v789
        %1150 = vmatpush.bf16.msra.mxu0 %v787
        %1151 = vmatpush.bf16.msra.mxu0 %v785
        %1152 = vmatmul.bf16.gmra.mxu0 %v258
        %v1153 = vpop.f32.mrf.mxu0
        %v1154 = vadd.f32 %v397, %v1153
        %v1155 = vpop.f32.mrf.mxu0
        %1156 = vdwg.mxu0
        %1157 = vmatpush.bf16.msra.mxu0 %v815
        %1158 = vmatpush.bf16.msra.mxu0 %v813
        %1159 = vmatpush.bf16.msra.mxu0 %v811
        %1160 = vmatpush.bf16.msra.mxu0 %v809
        %1161 = vmatpush.bf16.msra.mxu0 %v807
        %1162 = vmatpush.bf16.msra.mxu0 %v805
        %1163 = vmatpush.bf16.msra.mxu0 %v803
        %1164 = vmatpush.bf16.msra.mxu0 %v801
        %1165 = vmatmul.bf16.gmra.mxu0 %v259
        %v1166 = vpop.f32.mrf.mxu0
        %v1167 = vadd.f32 %v1154, %v1166
        %v1168 = vpop.f32.mrf.mxu0
        %1169 = vdwg.mxu0
        %1170 = vmatpush.bf16.msra.mxu0 %v831
        %1171 = vmatpush.bf16.msra.mxu0 %v829
        %1172 = vmatpush.bf16.msra.mxu0 %v827
        %1173 = vmatpush.bf16.msra.mxu0 %v825
        %1174 = vmatpush.bf16.msra.mxu0 %v823
        %1175 = vmatpush.bf16.msra.mxu0 %v821
        %1176 = vmatpush.bf16.msra.mxu0 %v819
        %1177 = vmatpush.bf16.msra.mxu0 %v817
        %1178 = vmatmul.bf16.gmra.mxu0 %v260
        %v1179 = vpop.f32.mrf.mxu0
        %v1180 = vadd.f32 %v1167, %v1179
        %v1181 = vpop.f32.mrf.mxu0
        %1182 = vdwg.mxu0
        %1183 = vmatpush.bf16.msra.mxu0 %v847
        %1184 = vmatpush.bf16.msra.mxu0 %v845
        %1185 = vmatpush.bf16.msra.mxu0 %v843
        %1186 = vmatpush.bf16.msra.mxu0 %v841
        %1187 = vmatpush.bf16.msra.mxu0 %v839
        %1188 = vmatpush.bf16.msra.mxu0 %v837
        %1189 = vmatpush.bf16.msra.mxu0 %v835
        %1190 = vmatpush.bf16.msra.mxu0 %v833
        %1191 = vmatmul.bf16.gmra.mxu0 %v261
        %v1192 = vpop.f32.mrf.mxu0
        %v1193 = vadd.f32 %v1180, %v1192
        %v1194 = vpop.f32.mrf.mxu0
        %1195 = vdwg.mxu0
        %1196 = vmatpush.bf16.msra.mxu0 %v863
        %1197 = vmatpush.bf16.msra.mxu0 %v861
        %1198 = vmatpush.bf16.msra.mxu0 %v859
        %1199 = vmatpush.bf16.msra.mxu0 %v857
        %1200 = vmatpush.bf16.msra.mxu0 %v855
        %1201 = vmatpush.bf16.msra.mxu0 %v853
        %1202 = vmatpush.bf16.msra.mxu0 %v851
        %1203 = vmatpush.bf16.msra.mxu0 %v849
        %1204 = vmatmul.bf16.gmra.mxu0 %v262
        %v1205 = vpop.f32.mrf.mxu0
        %v1206 = vadd.f32 %v1193, %v1205
        %v1207 = vpop.f32.mrf.mxu0
        %1208 = vdwg.mxu0
        %1209 = vmatpush.bf16.msra.mxu0 %v879
        %1210 = vmatpush.bf16.msra.mxu0 %v877
        %1211 = vmatpush.bf16.msra.mxu0 %v875
        %1212 = vmatpush.bf16.msra.mxu0 %v873
        %1213 = vmatpush.bf16.msra.mxu0 %v871
        %1214 = vmatpush.bf16.msra.mxu0 %v869
        %1215 = vmatpush.bf16.msra.mxu0 %v867
        %1216 = vmatpush.bf16.msra.mxu0 %v865
        %1217 = vmatmul.bf16.gmra.mxu0 %v263
        %v1218 = vpop.f32.mrf.mxu0
        %v1219 = vadd.f32 %v1206, %v1218
        %v1220 = vpop.f32.mrf.mxu0
        %1221 = vdwg.mxu0
        %1222 = vmatpush.bf16.msra.mxu0 %v895
        %1223 = vmatpush.bf16.msra.mxu0 %v893
        %1224 = vmatpush.bf16.msra.mxu0 %v891
        %1225 = vmatpush.bf16.msra.mxu0 %v889
        %1226 = vmatpush.bf16.msra.mxu0 %v887
        %1227 = vmatpush.bf16.msra.mxu0 %v885
        %1228 = vmatpush.bf16.msra.mxu0 %v883
        %1229 = vmatpush.bf16.msra.mxu0 %v881
        %1230 = vmatmul.bf16.gmra.mxu0 %v264
        %v1231 = vpop.f32.mrf.mxu0
        %v1232 = vadd.f32 %v1219, %v1231
        %v1233 = vpop.f32.mrf.mxu0
        %1234 = vdwg.mxu0
        %1235 = vmatpush.bf16.msra.mxu0 %v911
        %1236 = vmatpush.bf16.msra.mxu0 %v909
        %1237 = vmatpush.bf16.msra.mxu0 %v907
        %1238 = vmatpush.bf16.msra.mxu0 %v905
        %1239 = vmatpush.bf16.msra.mxu0 %v903
        %1240 = vmatpush.bf16.msra.mxu0 %v901
        %1241 = vmatpush.bf16.msra.mxu0 %v899
        %1242 = vmatpush.bf16.msra.mxu0 %v897
        %1243 = vmatmul.bf16.gmra.mxu0 %v265
        %v1244 = vpop.f32.mrf.mxu0
        %v1245 = vadd.f32 %v1232, %v1244
        %v1246 = vpop.f32.mrf.mxu0
        %1247 = vdwg.mxu0
        %v1250 = vrot.slane %v1245, 6
        %vm1251 = vcmask 1041408
        %v1252 = vsel %vm1251, %v1141, %v1250
        %1254 = vst [vmem:[%s233] sm:$0xf] %v1252
        %s1255 = smul.u32 2, %s20
        %p1256 = scmp.lt.s32.totalorder %s1255, 7
        %s1257 = scalar_select %p1256, %s1255, 7
        %s1258 = smul.addr %s1257, 2
        %s1259 = scalar_lea.vmem %s3, %s1258
        // Predicated region
        $region41: #{autoencoder_forward.5} parent=31 // pred_check
          %p1260 = pneg %p111
        $region42: #{autoencoder_forward.5} parent=31 // pred_check_branch
          %1262 = sbr.rel (%p1260) target = $region44
        $region43: #{autoencoder_forward.5} parent=31 // pred_region
          %s1263 = smul.u32 2, %s20
        $region44: #{autoencoder_forward.5} parent=31 // pred_fallthru
          _
      $region32: #{autoencoder_forward.5} parent=5 // pred_fallthru
        _
      %p1264 = scmp.le.s32.totalorder 2, %s15
      // Predicated region
      $region45: #{autoencoder_forward.5} parent=5 // pred_check
        %p1265 = pneg %p1264
      $region46: #{autoencoder_forward.5} parent=5 // pred_check_branch
        %1267 = sbr.rel (%p1265) target = $region48
      $region47: #{autoencoder_forward.5} parent=5 // pred_region
        %s1268 = ssub.s32 %s15, 2
        // Predicated region
        $region49: #{autoencoder_forward.5} parent=47 // pred_check
          %p1269 = pneg %p117
        $region50: #{autoencoder_forward.5} parent=47 // pred_check_branch
          %1271 = sbr.rel (%p1269) target = $region52
        $region51: #{autoencoder_forward.5} parent=47 // pred_region
          %s1272 = smul.u32 2, %s21
          %p1273 = scmp.lt.s32.totalorder %s1272, 7
          %s1274 = scalar_select %p1273, %s1272, 7
          %s1275 = smul.addr %s1274, 2
          %s1276 = scalar_lea.vmem %s3, %s1275
        $region52: #{autoencoder_forward.5} parent=47 // pred_fallthru
          _
      $region48: #{autoencoder_forward.5} parent=5 // pred_fallthru
        _
    $region6: #{autoencoder_forward.5} parent=1 // loop_footer
      %s19 = sadd.s32 1, %s15
    $region7: #{autoencoder_forward.5} parent=1 // loop_footer_branch
      %14 = sbr.rel target = $region3
    $region8: #{autoencoder_forward.5} parent=1 // loop_exit
      _
    %1277 = vsyncpa [#allocation3], 1
    %s1278 = scalar_lea.sflag [#allocation3], 1
    %1279 = vsyncpa %s1278, 1
    %1280 = vsyncpa [#allocation5], 1
    %s1281 = scalar_lea.sflag [#allocation5], 1
    %1282 = vsyncpa %s1281, 1

// kernel: autoencoder_forward.7
$region0: #{autoencoder_forward.7}
  #allocation0 [shape = 'u32[]', space=smem, size = 0x4, offset = 0x4, fixed_abs, tag = 'smem constant byte address 0x4 - core index']
  #allocation1 [shape = 'u32[72,128]{1,0:T(1,128)}', space=vmem, size = 0x9000, scoped, tag = 'internal scratch']
  %s0 = inlined_call_operand.vmem [shape: f32[2,16,64], index: 0, kind: input, shape index: {}]
  %s1 = inlined_call_operand.hbm [shape: f32[4,8,16], index: 1, kind: input, shape index: {}]
  %s2 = inlined_call_operand.hbm [shape: f32[4,64,384], index: 2, kind: input, shape index: {}]
  %s3 = inlined_call_operand.vmem [shape: f32[8,1], index: 3, kind: input, shape index: {}]
  %s4 = inlined_call_operand.hbm [shape: f32[1,384], index: 4, kind: input, shape index: {}]
  %s5 = inlined_call_operand.vmem [shape: f32[9,3,8], index: 5, kind: input, shape index: {}]
  %s6 = inlined_call_operand.vmem [shape: f32[3,1], index: 6, kind: input, shape index: {}]
  %s7 = inlined_call_operand.hbm [shape: f32[384,256], index: 7, kind: input, shape index: {}]
  %s8 = inlined_call_operand.vmem [shape: f32[2,3,256], index: 8, kind: output, shape index: {}]
  %s9 = sld [smem:[#allocation0]]
  $region81: #{autoencoder_forward.7} parent=0
    _
  %s11 = ssub.s32 1, %s9
  %s12 = scalar_select 0, %s11, %s9
  $region1: #{autoencoder_forward.7} parent=0
    #allocation2 [shape = 'u8[16384]{0}', space=vmem, size = 0x4000, scoped, tag = 'input window, operand 1, single buffered']
    #allocation3 [shape = 's32[2]{0}', space=sflag, size = 0x8, scoped, tag = 'scoped memory for autoencoder_forward.7']
    #allocation4 [shape = 'u8[393216]{0}', space=vmem, size = 0x60000, scoped, tag = 'input window, operand 2, single buffered']
    #allocation5 [shape = 's32[1]{0}', space=sflag, size = 0x4, scoped, tag = 'scoped memory for autoencoder_forward.7']
    #allocation6 [shape = 'u8[1536]{0}', space=vmem, size = 0x800, scoped, tag = 'input window, operand 4, single buffered']
    #allocation7 [shape = 'u8[393216]{0}', space=vmem, size = 0x60000, scoped, tag = 'input window, operand 7, single buffered']
    #allocation8 [shape = 's32[1]{0}', space=sflag, size = 0x4, scoped, tag = 'scoped memory for autoencoder_forward.7']
    %13 = vsyncpa [#allocation3], 0
    %14 = vsyncpa [#allocation5], 0
    %15 = vsyncpa [#allocation8], 0
    loop: start=0, step=1, limit=4
    $region2: #{autoencoder_forward.7} parent=1 // loop_pre_header
      _
    $region3: #{autoencoder_forward.7} parent=1 // loop_header
      %s17 = sphi 0, %s21
      %p18 = scmp.ge.s32.totalorder %s17, 4
      %s27 = sphi 0, %s29
      %s30 = sphi 0, %s27
      %s31 = sphi 0, %s30
      %s47 = sphi 0, %s31
      %s51 = sphi 0, %s51
      %s53 = sphi 0, %s51
      %s54 = sphi 0, %s53
      %s68 = sphi 0, %s54
      %s72 = sphi 0, %s72
      %s74 = sphi 0, %s72
      %s75 = sphi 0, %s74
      %s89 = sphi 0, %s75
      %s93 = sphi 0, %s93
      %s95 = sphi 0, %s93
      %s96 = sphi 0, %s95
      %s110 = sphi 0, %s96
      %s114 = sphi 0, %s114
      %s116 = sphi 0, %s114
      %s117 = sphi 0, %s116
      %s131 = sphi 0, %s117
      %s135 = sphi 0, %s135
      %s137 = sphi 0, %s135
      %s138 = sphi 0, %s137
      %s152 = sphi 0, %s138
      %s156 = sphi 0, %s156
      %s158 = sphi 0, %s156
      %s159 = sphi 0, %s158
      %s173 = sphi 0, %s159
      %s177 = sphi 0, %s177
      %s179 = sphi 0, %s177
      %s180 = sphi 0, %s179
      %s194 = sphi 0, %s180
      %s200 = sphi 0, %s202
      %s203 = sphi 0, %s200
      %s204 = sphi 0, %s203
      %s220 = sphi 0, %s204
    $region4: #{autoencoder_forward.7} parent=1 // loop_header_branch
      %20 = sbr.rel (%p18) target = $region8
    $region5: #{autoencoder_forward.7} parent=1 // loop_body
      %s22 = ssub.s32 %s17, 1
      %s23 = ssub.s32 %s17, 2
      %s24 = sadd.s32 %s17, 1
      %s25 = ssub.s32 %s17, %s24
      %p26 = scmp.eq.s32.totalorder %s25, 0
      %s28 = sadd.s32 %s27, 1
      %s29 = scalar_select %p26, %s27, %s28
      %p32 = pneg %p26
      %p33 = scmp.eq.s32.totalorder %s17, 1
      %p34 = por %p32, %p33
      %p35 = scmp.ne.s32.totalorder %s27, %s30
      %p36 = scmp.eq.s32.totalorder %s17, 0
      %p37 = por %p35, %p36
      %p38 = scmp.ne.s32.totalorder %s27, %s30
      %p39 = scmp.eq.s32.totalorder %s22, 1
      %p40 = por %p38, %p39
      %p41 = scmp.ne.s32.totalorder %s30, %s31
      %p42 = scmp.eq.s32.totalorder %s22, 0
      %p43 = por %p41, %p42
      %p44 = scmp.ne.s32.totalorder %s30, %s31
      %p45 = scmp.eq.s32.totalorder %s23, 1
      %p46 = por %p44, %p45
      %p48 = scmp.ne.s32.totalorder %s31, %s47
      %p49 = scmp.eq.s32.totalorder %s23, 0
      %p50 = por %p48, %p49
      %s52 = sadd.s32 %s51, 1
      %p55 = scmp.eq.s32.totalorder %s17, 1
      %p56 = scmp.ne.s32.totalorder %s51, %s53
      %p57 = scmp.eq.s32.totalorder %s17, 0
      %p58 = por %p56, %p57
      %p59 = scmp.ne.s32.totalorder %s51, %s53
      %p60 = scmp.eq.s32.totalorder %s22, 1
      %p61 = por %p59, %p60
      %p62 = scmp.ne.s32.totalorder %s53, %s54
      %p63 = scmp.eq.s32.totalorder %s22, 0
      %p64 = por %p62, %p63
      %p65 = scmp.ne.s32.totalorder %s53, %s54
      %p66 = scmp.eq.s32.totalorder %s23, 1
      %p67 = por %p65, %p66
      %p69 = scmp.ne.s32.totalorder %s54, %s68
      %p70 = scmp.eq.s32.totalorder %s23, 0
      %p71 = por %p69, %p70
      %s73 = sadd.s32 %s72, 1
      %p76 = scmp.eq.s32.totalorder %s17, 1
      %p77 = scmp.ne.s32.totalorder %s72, %s74
      %p78 = scmp.eq.s32.totalorder %s17, 0
      %p79 = por %p77, %p78
      %p80 = scmp.ne.s32.totalorder %s72, %s74
      %p81 = scmp.eq.s32.totalorder %s22, 1
      %p82 = por %p80, %p81
      %p83 = scmp.ne.s32.totalorder %s74, %s75
      %p84 = scmp.eq.s32.totalorder %s22, 0
      %p85 = por %p83, %p84
      %p86 = scmp.ne.s32.totalorder %s74, %s75
      %p87 = scmp.eq.s32.totalorder %s23, 1
      %p88 = por %p86, %p87
      %p90 = scmp.ne.s32.totalorder %s75, %s89
      %p91 = scmp.eq.s32.totalorder %s23, 0
      %p92 = por %p90, %p91
      %s94 = sadd.s32 %s93, 1
      %p97 = scmp.eq.s32.totalorder %s17, 1
      %p98 = scmp.ne.s32.totalorder %s93, %s95
      %p99 = scmp.eq.s32.totalorder %s17, 0
      %p100 = por %p98, %p99
      %p101 = scmp.ne.s32.totalorder %s93, %s95
      %p102 = scmp.eq.s32.totalorder %s22, 1
      %p103 = por %p101, %p102
      %p104 = scmp.ne.s32.totalorder %s95, %s96
      %p105 = scmp.eq.s32.totalorder %s22, 0
      %p106 = por %p104, %p105
      %p107 = scmp.ne.s32.totalorder %s95, %s96
      %p108 = scmp.eq.s32.totalorder %s23, 1
      %p109 = por %p107, %p108
      %p111 = scmp.ne.s32.totalorder %s96, %s110
      %p112 = scmp.eq.s32.totalorder %s23, 0
      %p113 = por %p111, %p112
      %s115 = sadd.s32 %s114, 1
      %p118 = scmp.eq.s32.totalorder %s17, 1
      %p119 = scmp.ne.s32.totalorder %s114, %s116
      %p120 = scmp.eq.s32.totalorder %s17, 0
      %p121 = por %p119, %p120
      %p122 = scmp.ne.s32.totalorder %s114, %s116
      %p123 = scmp.eq.s32.totalorder %s22, 1
      %p124 = por %p122, %p123
      %p125 = scmp.ne.s32.totalorder %s116, %s117
      %p126 = scmp.eq.s32.totalorder %s22, 0
      %p127 = por %p125, %p126
      %p128 = scmp.ne.s32.totalorder %s116, %s117
      %p129 = scmp.eq.s32.totalorder %s23, 1
      %p130 = por %p128, %p129
      %p132 = scmp.ne.s32.totalorder %s117, %s131
      %p133 = scmp.eq.s32.totalorder %s23, 0
      %p134 = por %p132, %p133
      %s136 = sadd.s32 %s135, 1
      %p139 = scmp.eq.s32.totalorder %s17, 1
      %p140 = scmp.ne.s32.totalorder %s135, %s137
      %p141 = scmp.eq.s32.totalorder %s17, 0
      %p142 = por %p140, %p141
      %p143 = scmp.ne.s32.totalorder %s135, %s137
      %p144 = scmp.eq.s32.totalorder %s22, 1
      %p145 = por %p143, %p144
      %p146 = scmp.ne.s32.totalorder %s137, %s138
      %p147 = scmp.eq.s32.totalorder %s22, 0
      %p148 = por %p146, %p147
      %p149 = scmp.ne.s32.totalorder %s137, %s138
      %p150 = scmp.eq.s32.totalorder %s23, 1
      %p151 = por %p149, %p150
      %p153 = scmp.ne.s32.totalorder %s138, %s152
      %p154 = scmp.eq.s32.totalorder %s23, 0
      %p155 = por %p153, %p154
      %s157 = sadd.s32 %s156, 1
      %p160 = scmp.eq.s32.totalorder %s17, 1
      %p161 = scmp.ne.s32.totalorder %s156, %s158
      %p162 = scmp.eq.s32.totalorder %s17, 0
      %p163 = por %p161, %p162
      %p164 = scmp.ne.s32.totalorder %s156, %s158
      %p165 = scmp.eq.s32.totalorder %s22, 1
      %p166 = por %p164, %p165
      %p167 = scmp.ne.s32.totalorder %s158, %s159
      %p168 = scmp.eq.s32.totalorder %s22, 0
      %p169 = por %p167, %p168
      %p170 = scmp.ne.s32.totalorder %s158, %s159
      %p171 = scmp.eq.s32.totalorder %s23, 1
      %p172 = por %p170, %p171
      %p174 = scmp.ne.s32.totalorder %s159, %s173
      %p175 = scmp.eq.s32.totalorder %s23, 0
      %p176 = por %p174, %p175
      %s178 = sadd.s32 %s177, 1
      %p181 = scmp.eq.s32.totalorder %s17, 1
      %p182 = scmp.ne.s32.totalorder %s177, %s179
      %p183 = scmp.eq.s32.totalorder %s17, 0
      %p184 = por %p182, %p183
      %p185 = scmp.ne.s32.totalorder %s177, %s179
      %p186 = scmp.eq.s32.totalorder %s22, 1
      %p187 = por %p185, %p186
      %p188 = scmp.ne.s32.totalorder %s179, %s180
      %p189 = scmp.eq.s32.totalorder %s22, 0
      %p190 = por %p188, %p189
      %p191 = scmp.ne.s32.totalorder %s179, %s180
      %p192 = scmp.eq.s32.totalorder %s23, 1
      %p193 = por %p191, %p192
      %p195 = scmp.ne.s32.totalorder %s180, %s194
      %p196 = scmp.eq.s32.totalorder %s23, 0
      %p197 = por %p195, %p196
      %s198 = ssub.s32 %s17, %s24
      %p199 = scmp.eq.s32.totalorder %s198, 0
      %s201 = sadd.s32 %s200, 1
      %s202 = scalar_select %p199, %s200, %s201
      %p205 = pneg %p199
      %p206 = scmp.eq.s32.totalorder %s17, 1
      %p207 = por %p205, %p206
      %p208 = scmp.ne.s32.totalorder %s200, %s203
      %p209 = scmp.eq.s32.totalorder %s17, 0
      %p210 = por %p208, %p209
      %p211 = scmp.ne.s32.totalorder %s200, %s203
      %p212 = scmp.eq.s32.totalorder %s22, 1
      %p213 = por %p211, %p212
      %p214 = scmp.ne.s32.totalorder %s203, %s204
      %p215 = scmp.eq.s32.totalorder %s22, 0
      %p216 = por %p214, %p215
      %p217 = scmp.ne.s32.totalorder %s203, %s204
      %p218 = scmp.eq.s32.totalorder %s23, 1
      %p219 = por %p217, %p218
      %p221 = scmp.ne.s32.totalorder %s204, %s220
      %p222 = scmp.eq.s32.totalorder %s23, 0
      %p223 = por %p221, %p222
      %p224 = scmp.le.s32.totalorder 1, %s17
      %p225 = scmp.lt.s32.totalorder %s17, 3
      %p226 = pnand %p224, %p225
      %p227 = pneg %p226
      // Predicated region
      $region9: #{autoencoder_forward.7} parent=5 // pred_check
        _
      $region10: #{autoencoder_forward.7} parent=5 // pred_check_branch
        %229 = sbr.rel (%p226) target = $region12
      $region11: #{autoencoder_forward.7} parent=5 // pred_region
        %s230 = ssub.s32 %s17, 1
        // Predicated region
        $region13: #{autoencoder_forward.7} parent=11 // pred_check
          %p231 = pneg %p64
        $region14: #{autoencoder_forward.7} parent=11 // pred_check_branch
          %233 = sbr.rel (%p231) target = $region16
        $region15: #{autoencoder_forward.7} parent=11 // pred_region
          %235 = vsyncadd [#allocation3], 0
          %s236 = sshll.u32 %s1, 4
          %s237 = int_to_ptr.hbm [resolvable:$true] %s236
          %s238 = sshll.u32 [#allocation2], 4
          %s239 = int_to_ptr.vmem [resolvable:$true] %s238
          %244 = dma.hbm_to_vmem [thread:$0]  %s237, 512, %s239, [#allocation3], 128, 128, 8
        $region16: #{autoencoder_forward.7} parent=11 // pred_fallthru
          _
        // Predicated region
        $region17: #{autoencoder_forward.7} parent=11 // pred_check
          %p245 = pneg %p85
        $region18: #{autoencoder_forward.7} parent=11 // pred_check_branch
          %247 = sbr.rel (%p245) target = $region20
        $region19: #{autoencoder_forward.7} parent=11 // pred_region
          %249 = vsyncadd [#allocation5], 0
          %s250 = sshll.u32 %s2, 4
          %s251 = int_to_ptr.hbm [resolvable:$true] %s250
          %s252 = sshll.u32 [#allocation4], 4
          %s253 = int_to_ptr.vmem [resolvable:$true] %s252
          %258 = dma.hbm_to_vmem [thread:$0]  %s251, 12288, %s253, [#allocation5], 384, 384, 24
        $region20: #{autoencoder_forward.7} parent=11 // pred_fallthru
          _
        // Predicated region
        $region21: #{autoencoder_forward.7} parent=11 // pred_check
          %p259 = pneg %p106
        $region22: #{autoencoder_forward.7} parent=11 // pred_check_branch
          %261 = sbr.rel (%p259) target = $region24
        $region23: #{autoencoder_forward.7} parent=11 // pred_region
          _
        $region24: #{autoencoder_forward.7} parent=11 // pred_fallthru
          _
        // Predicated region
        $region25: #{autoencoder_forward.7} parent=11 // pred_check
          %p262 = pneg %p127
        $region26: #{autoencoder_forward.7} parent=11 // pred_check_branch
          %264 = sbr.rel (%p262) target = $region28
        $region27: #{autoencoder_forward.7} parent=11 // pred_region
          %266 = vsyncadd [#allocation5], 0
          %s268 = sshll.u32 %s4, 4
          %s269 = int_to_ptr.hbm [resolvable:$true] %s268
          %s270 = sshll.u32 [#allocation6], 4
          %s271 = int_to_ptr.vmem [resolvable:$true] %s270
          %273 = dma.hbm_to_vmem [thread:$0]  %s269, 48, %s271, [#allocation5]
        $region28: #{autoencoder_forward.7} parent=11 // pred_fallthru
          _
        // Predicated region
        $region29: #{autoencoder_forward.7} parent=11 // pred_check
          %p274 = pneg %p148
        $region30: #{autoencoder_forward.7} parent=11 // pred_check_branch
          %276 = sbr.rel (%p274) target = $region32
        $region31: #{autoencoder_forward.7} parent=11 // pred_region
          _
        $region32: #{autoencoder_forward.7} parent=11 // pred_fallthru
          _
        // Predicated region
        $region33: #{autoencoder_forward.7} parent=11 // pred_check
          %p277 = pneg %p169
        $region34: #{autoencoder_forward.7} parent=11 // pred_check_branch
          %279 = sbr.rel (%p277) target = $region36
        $region35: #{autoencoder_forward.7} parent=11 // pred_region
          _
        $region36: #{autoencoder_forward.7} parent=11 // pred_fallthru
          _
        // Predicated region
        $region37: #{autoencoder_forward.7} parent=11 // pred_check
          %p280 = pneg %p190
        $region38: #{autoencoder_forward.7} parent=11 // pred_check_branch
          %282 = sbr.rel (%p280) target = $region40
        $region39: #{autoencoder_forward.7} parent=11 // pred_region
          %284 = vsyncadd [#allocation8], 0
          %s285 = sshll.u32 %s7, 4
          %s286 = int_to_ptr.hbm [resolvable:$true] %s285
          %s287 = sshll.u32 [#allocation7], 4
          %s288 = int_to_ptr.vmem [resolvable:$true] %s287
          %293 = dma.hbm_to_vmem [thread:$0]  %s286, 12288, %s288, [#allocation8], 256, 256, 16
        $region40: #{autoencoder_forward.7} parent=11 // pred_fallthru
          _
      $region12: #{autoencoder_forward.7} parent=5 // pred_fallthru
        _
      %p294 = scmp.lt.s32.totalorder %s17, 2
      // Predicated region
      $region41: #{autoencoder_forward.7} parent=5 // pred_check
        %p295 = pneg %p294
      $region42: #{autoencoder_forward.7} parent=5 // pred_check_branch
        %297 = sbr.rel (%p295) target = $region44
      $region43: #{autoencoder_forward.7} parent=5 // pred_region
        // Predicated region
        $region45: #{autoencoder_forward.7} parent=43 // pred_check
          %p298 = pneg %p37
        $region46: #{autoencoder_forward.7} parent=43 // pred_check_branch
          %300 = sbr.rel (%p298) target = $region48
        $region47: #{autoencoder_forward.7} parent=43 // pred_region
          %p301 = scmp.lt.s32.totalorder %s17, 1
          %s302 = scalar_select %p301, %s17, 1
          %s303 = smul.addr %s302, 2
          %s304 = smul.addr %s303, 8
          %s305 = scalar_lea.vmem %s0, %s304
        $region48: #{autoencoder_forward.7} parent=43 // pred_fallthru
          _
      $region44: #{autoencoder_forward.7} parent=5 // pred_fallthru
        _
      %p306 = scmp.le.s32.totalorder 1, %s17
      %p307 = scmp.lt.s32.totalorder %s17, 3
      %p308 = pnand %p306, %p307
      %p309 = pneg %p308
      // Predicated region
      $region49: #{autoencoder_forward.7} parent=5 // pred_check
        _
      $region50: #{autoencoder_forward.7} parent=5 // pred_check_branch
        %311 = sbr.rel (%p308) target = $region52
      $region51: #{autoencoder_forward.7} parent=5 // pred_region
        %s312 = ssub.s32 %s17, 1
        // Predicated region
        $region53: #{autoencoder_forward.7} parent=51 // pred_check
          %p313 = pneg %p64
        $region54: #{autoencoder_forward.7} parent=51 // pred_check_branch
          %315 = sbr.rel (%p313) target = $region56
        $region55: #{autoencoder_forward.7} parent=51 // pred_region
          %317 = dma.done [#allocation3], 512
        $region56: #{autoencoder_forward.7} parent=51 // pred_fallthru
          _
        // Predicated region
        $region57: #{autoencoder_forward.7} parent=51 // pred_check
          %p318 = pneg %p85
        $region58: #{autoencoder_forward.7} parent=51 // pred_check_branch
          %320 = sbr.rel (%p318) target = $region60
        $region59: #{autoencoder_forward.7} parent=51 // pred_region
          %322 = dma.done [#allocation5], 12288
        $region60: #{autoencoder_forward.7} parent=51 // pred_fallthru
          _
        // Predicated region
        $region61: #{autoencoder_forward.7} parent=51 // pred_check
          %p323 = pneg %p127
        $region62: #{autoencoder_forward.7} parent=51 // pred_check_branch
          %325 = sbr.rel (%p323) target = $region64
        $region63: #{autoencoder_forward.7} parent=51 // pred_region
          %327 = dma.done [#allocation5], 48
        $region64: #{autoencoder_forward.7} parent=51 // pred_fallthru
          _
        // Predicated region
        $region65: #{autoencoder_forward.7} parent=51 // pred_check
          %p328 = pneg %p190
        $region66: #{autoencoder_forward.7} parent=51 // pred_check_branch
          %330 = sbr.rel (%p328) target = $region68
        $region67: #{autoencoder_forward.7} parent=51 // pred_region
          %332 = dma.done [#allocation8], 12288
        $region68: #{autoencoder_forward.7} parent=51 // pred_fallthru
          _
        %p333 = scmp.lt.s32.totalorder %s22, 1
        %s334 = scalar_select %p333, %s22, 1
        %s335 = smul.addr %s334, 2
        %s336 = smul.addr %s335, 8
        %s337 = scalar_lea.vmem %s0, %s336
        %p338 = pneg %p43
        %p339 = pneg %p40
        %p340 = pneg %p64
        %p341 = pneg %p61
        %p342 = pneg %p85
        %p343 = pneg %p82
        %p344 = pneg %p106
        %p345 = pneg %p103
        %p346 = pneg %p127
        %p347 = pneg %p124
        %p348 = pneg %p148
        %p349 = pneg %p145
        %p350 = pneg %p169
        %p351 = pneg %p166
        %p352 = pneg %p190
        %p353 = pneg %p187
        %p354 = pneg %p216
        %p355 = pneg %p213
        %p356 = scmp.lt.s32.totalorder %s22, 1
        %s357 = scalar_select %p356, %s22, 1
        %s358 = smul.addr %s357, 2
        %s359 = smul.addr %s358, 4
        %s360 = scalar_lea.vmem %s8, %s359
        %p361 = scmp.lt.s32.totalorder %s22, 1
        %s362 = scalar_select %p361, %s22, 1
        %s363 = smul.addr %s362, 2
        %s364 = smul.addr %s363, 8
        %s365 = scalar_lea.vmem %s0, %s364
        %p366 = scmp.lt.s32.totalorder %s22, 1
        %s367 = scalar_select %p366, %s22, 1
        %s368 = smul.addr %s367, 2
        %s369 = smul.addr %s368, 4
        %s370 = scalar_lea.vmem %s8, %s369
        %v371 = vld [vmem:[%s365] sm:$0xff]
        %v372 = vld [vmem:[%s365 + $0x8] sm:$0xff]
        %v373 = vld [vmem:[#allocation2] sm:$0xff]
        %vm374 = vcmask 130048
        %v376 = vsel %vm374, %v373, 0
        %378 = vmatpush.msra.mxu0 0.0
        %379 = vmatpush.msra.mxu0 0.0
        %380 = vmatpush.msra.mxu0 0.0
        %381 = vmatpush.msra.mxu0 0.0
        %382 = vmatpush.msra.mxu0 0.0
        %383 = vmatpush.msra.mxu0 0.0
        %384 = vmatpush.msra.mxu0 0.0
        %385 = vmatpush.msra.mxu0 0.0
        %386 = vmatpush.msra.mxu0 0.0
        %387 = vmatpush.msra.mxu0 0.0
        %388 = vmatpush.msra.mxu0 0.0
        %389 = vmatpush.msra.mxu0 0.0
        %390 = vmatpush.msra.mxu0 0.0
        %391 = vmatpush.msra.mxu0 0.0
        %392 = vmatpush.msra.mxu0 %v372
        %393 = vmatpush.msra.mxu0 %v371
        %394 = vmatmul.f32.gmra.mxu0 %v376
        %v395 = vpop.f32.mrf.mxu0
        %v396 = vadd.f32 0.0, %v395
        %397 = vdwg.mxu0
        %v398 = vld [vmem:[#allocation4] sm:$0xff]
        %v399 = vld [vmem:[#allocation4 + $0x8] sm:$0xff]
        %v400 = vld [vmem:[#allocation4 + $0x10] sm:$0xff]
        %v401 = vld [vmem:[#allocation4 + $0x18] sm:$0xff]
        %v402 = vld [vmem:[#allocation4 + $0x20] sm:$0xff]
        %v403 = vld [vmem:[#allocation4 + $0x28] sm:$0xff]
        %v404 = vld [vmem:[#allocation4 + $0x30] sm:$0xff]
        %v405 = vld [vmem:[#allocation4 + $0x38] sm:$0xff]
        %v406 = vld [vmem:[#allocation4 + $0x40] sm:$0xff]
        %v407 = vld [vmem:[#allocation4 + $0x48] sm:$0xff]
        %v408 = vld [vmem:[#allocation4 + $0x50] sm:$0xff]
        %v409 = vld [vmem:[#allocation4 + $0x58] sm:$0xff]
        %v410 = vld [vmem:[#allocation4 + $0x60] sm:$0xff]
        %v411 = vld [vmem:[#allocation4 + $0x68] sm:$0xff]
        %v412 = vld [vmem:[#allocation4 + $0x70] sm:$0xff]
        %v413 = vld [vmem:[#allocation4 + $0x78] sm:$0xff]
        %v414 = vld [vmem:[#allocation4 + $0x80] sm:$0xff]
        %v415 = vld [vmem:[#allocation4 + $0x88] sm:$0xff]
        %v416 = vld [vmem:[#allocation4 + $0x90] sm:$0xff]
        %v417 = vld [vmem:[#allocation4 + $0x98] sm:$0xff]
        %v418 = vld [vmem:[#allocation4 + $0xa0] sm:$0xff]
        %v419 = vld [vmem:[#allocation4 + $0xa8] sm:$0xff]
        %v420 = vld [vmem:[#allocation4 + $0xb0] sm:$0xff]
        %v421 = vld [vmem:[#allocation4 + $0xb8] sm:$0xff]
        %s422 = scalar_lea.vmem [#allocation2], 8
        %v423 = vld [vmem:[%s422] sm:$0xff]
        %v425 = vsel %vm374, %v423, 0
        %427 = vmatpush.msra.mxu0 0.0
        %428 = vmatpush.msra.mxu0 0.0
        %429 = vmatpush.msra.mxu0 0.0
        %430 = vmatpush.msra.mxu0 0.0
        %431 = vmatpush.msra.mxu0 0.0
        %432 = vmatpush.msra.mxu0 0.0
        %433 = vmatpush.msra.mxu0 0.0
        %434 = vmatpush.msra.mxu0 0.0
        %435 = vmatpush.msra.mxu0 0.0
        %436 = vmatpush.msra.mxu0 0.0
        %437 = vmatpush.msra.mxu0 0.0
        %438 = vmatpush.msra.mxu0 0.0
        %439 = vmatpush.msra.mxu0 0.0
        %440 = vmatpush.msra.mxu0 0.0
        %441 = vmatpush.msra.mxu0 %v372
        %442 = vmatpush.msra.mxu0 %v371
        %443 = vmatmul.f32.gmra.mxu0 %v425
        %v444 = vpop.f32.mrf.mxu0
        %v445 = vadd.f32 0.0, %v444
        %446 = vdwg.mxu0
        %s447 = scalar_lea.vmem [#allocation4], 192
        %v448 = vld [vmem:[%s447] sm:$0xff]
        %v449 = vld [vmem:[%s447 + $0x8] sm:$0xff]
        %v450 = vld [vmem:[%s447 + $0x10] sm:$0xff]
        %v451 = vld [vmem:[%s447 + $0x18] sm:$0xff]
        %v452 = vld [vmem:[%s447 + $0x20] sm:$0xff]
        %v453 = vld [vmem:[%s447 + $0x28] sm:$0xff]
        %v454 = vld [vmem:[%s447 + $0x30] sm:$0xff]
        %v455 = vld [vmem:[%s447 + $0x38] sm:$0xff]
        %v456 = vld [vmem:[%s447 + $0x40] sm:$0xff]
        %v457 = vld [vmem:[%s447 + $0x48] sm:$0xff]
        %v458 = vld [vmem:[%s447 + $0x50] sm:$0xff]
        %v459 = vld [vmem:[%s447 + $0x58] sm:$0xff]
        %v460 = vld [vmem:[%s447 + $0x60] sm:$0xff]
        %v461 = vld [vmem:[%s447 + $0x68] sm:$0xff]
        %v462 = vld [vmem:[%s447 + $0x70] sm:$0xff]
        %v463 = vld [vmem:[%s447 + $0x78] sm:$0xff]
        %v464 = vld [vmem:[%s447 + $0x80] sm:$0xff]
        %v465 = vld [vmem:[%s447 + $0x88] sm:$0xff]
        %v466 = vld [vmem:[%s447 + $0x90] sm:$0xff]
        %v467 = vld [vmem:[%s447 + $0x98] sm:$0xff]
        %v468 = vld [vmem:[%s447 + $0xa0] sm:$0xff]
        %v469 = vld [vmem:[%s447 + $0xa8] sm:$0xff]
        %v470 = vld [vmem:[%s447 + $0xb0] sm:$0xff]
        %v471 = vld [vmem:[%s447 + $0xb8] sm:$0xff]
        %vm472 = vcmask 523264
        %v474 = vsel %vm472, %v445, 0
        %476 = vmatpush.msra.mxu0 0.0
        %477 = vmatpush.msra.mxu0 0.0
        %478 = vmatpush.msra.mxu0 0.0
        %479 = vmatpush.msra.mxu0 0.0
        %480 = vmatpush.msra.mxu0 0.0
        %481 = vmatpush.msra.mxu0 0.0
        %482 = vmatpush.msra.mxu0 0.0
        %483 = vmatpush.msra.mxu0 0.0
        %484 = vmatpush.msra.mxu0 %v469
        %485 = vmatpush.msra.mxu0 %v466
        %486 = vmatpush.msra.mxu0 %v463
        %487 = vmatpush.msra.mxu0 %v460
        %488 = vmatpush.msra.mxu0 %v457
        %489 = vmatpush.msra.mxu0 %v454
        %490 = vmatpush.msra.mxu0 %v451
        %491 = vmatpush.msra.mxu0 %v448
        %492 = vmatmul.f32.gmra.mxu0 %v474
        %v493 = vpop.f32.mrf.mxu0
        %v494 = vadd.f32 0.0, %v493
        %495 = vdwg.mxu0
        %496 = vmatpush.msra.mxu0 0.0
        %497 = vmatpush.msra.mxu0 0.0
        %498 = vmatpush.msra.mxu0 0.0
        %499 = vmatpush.msra.mxu0 0.0
        %500 = vmatpush.msra.mxu0 0.0
        %501 = vmatpush.msra.mxu0 0.0
        %502 = vmatpush.msra.mxu0 0.0
        %503 = vmatpush.msra.mxu0 0.0
        %504 = vmatpush.msra.mxu0 %v470
        %505 = vmatpush.msra.mxu0 %v467
        %506 = vmatpush.msra.mxu0 %v464
        %507 = vmatpush.msra.mxu0 %v461
        %508 = vmatpush.msra.mxu0 %v458
        %509 = vmatpush.msra.mxu0 %v455
        %510 = vmatpush.msra.mxu0 %v452
        %511 = vmatpush.msra.mxu0 %v449
        %512 = vmatmul.f32.gmra.mxu0 %v474
        %v513 = vpop.f32.mrf.mxu0
        %v514 = vadd.f32 0.0, %v513
        %515 = vdwg.mxu0
        %516 = vmatpush.msra.mxu0 0.0
        %517 = vmatpush.msra.mxu0 0.0
        %518 = vmatpush.msra.mxu0 0.0
        %519 = vmatpush.msra.mxu0 0.0
        %520 = vmatpush.msra.mxu0 0.0
        %521 = vmatpush.msra.mxu0 0.0
        %522 = vmatpush.msra.mxu0 0.0
        %523 = vmatpush.msra.mxu0 0.0
        %524 = vmatpush.msra.mxu0 %v471
        %525 = vmatpush.msra.mxu0 %v468
        %526 = vmatpush.msra.mxu0 %v465
        %527 = vmatpush.msra.mxu0 %v462
        %528 = vmatpush.msra.mxu0 %v459
        %529 = vmatpush.msra.mxu0 %v456
        %530 = vmatpush.msra.mxu0 %v453
        %531 = vmatpush.msra.mxu0 %v450
        %532 = vmatmul.f32.gmra.mxu0 %v474
        %v533 = vpop.f32.mrf.mxu0
        %v534 = vadd.f32 0.0, %v533
        %535 = vdwg.mxu0
        %v537 = vsel %vm472, %v396, 0
        %539 = vmatpush.msra.mxu0 0.0
        %540 = vmatpush.msra.mxu0 0.0
        %541 = vmatpush.msra.mxu0 0.0
        %542 = vmatpush.msra.mxu0 0.0
        %543 = vmatpush.msra.mxu0 0.0
        %544 = vmatpush.msra.mxu0 0.0
        %545 = vmatpush.msra.mxu0 0.0
        %546 = vmatpush.msra.mxu0 0.0
        %547 = vmatpush.msra.mxu0 %v419
        %548 = vmatpush.msra.mxu0 %v416
        %549 = vmatpush.msra.mxu0 %v413
        %550 = vmatpush.msra.mxu0 %v410
        %551 = vmatpush.msra.mxu0 %v407
        %552 = vmatpush.msra.mxu0 %v404
        %553 = vmatpush.msra.mxu0 %v401
        %554 = vmatpush.msra.mxu0 %v398
        %555 = vmatmul.f32.gmra.mxu0 %v537
        %v556 = vpop.f32.mrf.mxu0
        %v557 = vadd.f32 %v494, %v556
        %558 = vdwg.mxu0
        %559 = vmatpush.msra.mxu0 0.0
        %560 = vmatpush.msra.mxu0 0.0
        %561 = vmatpush.msra.mxu0 0.0
        %562 = vmatpush.msra.mxu0 0.0
        %563 = vmatpush.msra.mxu0 0.0
        %564 = vmatpush.msra.mxu0 0.0
        %565 = vmatpush.msra.mxu0 0.0
        %566 = vmatpush.msra.mxu0 0.0
        %567 = vmatpush.msra.mxu0 %v420
        %568 = vmatpush.msra.mxu0 %v417
        %569 = vmatpush.msra.mxu0 %v414
        %570 = vmatpush.msra.mxu0 %v411
        %571 = vmatpush.msra.mxu0 %v408
        %572 = vmatpush.msra.mxu0 %v405
        %573 = vmatpush.msra.mxu0 %v402
        %574 = vmatpush.msra.mxu0 %v399
        %575 = vmatmul.f32.gmra.mxu0 %v537
        %v576 = vpop.f32.mrf.mxu0
        %v577 = vadd.f32 %v514, %v576
        %578 = vdwg.mxu0
        %579 = vmatpush.msra.mxu0 0.0
        %580 = vmatpush.msra.mxu0 0.0
        %581 = vmatpush.msra.mxu0 0.0
        %582 = vmatpush.msra.mxu0 0.0
        %583 = vmatpush.msra.mxu0 0.0
        %584 = vmatpush.msra.mxu0 0.0
        %585 = vmatpush.msra.mxu0 0.0
        %586 = vmatpush.msra.mxu0 0.0
        %587 = vmatpush.msra.mxu0 %v421
        %588 = vmatpush.msra.mxu0 %v418
        %589 = vmatpush.msra.mxu0 %v415
        %590 = vmatpush.msra.mxu0 %v412
        %591 = vmatpush.msra.mxu0 %v409
        %592 = vmatpush.msra.mxu0 %v406
        %593 = vmatpush.msra.mxu0 %v403
        %594 = vmatpush.msra.mxu0 %v400
        %595 = vmatmul.f32.gmra.mxu0 %v537
        %v596 = vpop.f32.mrf.mxu0
        %v597 = vadd.f32 %v534, %v596
        %598 = vdwg.mxu0
        %s599 = scalar_lea.vmem [#allocation2], 16
        %v600 = vld [vmem:[%s599] sm:$0xff]
        %v602 = vsel %vm374, %v600, 0
        %604 = vmatpush.msra.mxu0 0.0
        %605 = vmatpush.msra.mxu0 0.0
        %606 = vmatpush.msra.mxu0 0.0
        %607 = vmatpush.msra.mxu0 0.0
        %608 = vmatpush.msra.mxu0 0.0
        %609 = vmatpush.msra.mxu0 0.0
        %610 = vmatpush.msra.mxu0 0.0
        %611 = vmatpush.msra.mxu0 0.0
        %612 = vmatpush.msra.mxu0 0.0
        %613 = vmatpush.msra.mxu0 0.0
        %614 = vmatpush.msra.mxu0 0.0
        %615 = vmatpush.msra.mxu0 0.0
        %616 = vmatpush.msra.mxu0 0.0
        %617 = vmatpush.msra.mxu0 0.0
        %618 = vmatpush.msra.mxu0 %v372
        %619 = vmatpush.msra.mxu0 %v371
        %620 = vmatmul.f32.gmra.mxu0 %v602
        %v621 = vpop.f32.mrf.mxu0
        %v622 = vadd.f32 0.0, %v621
        %623 = vdwg.mxu0
        %s624 = scalar_lea.vmem [#allocation4], 384
        %v625 = vld [vmem:[%s624] sm:$0xff]
        %v626 = vld [vmem:[%s624 + $0x8] sm:$0xff]
        %v627 = vld [vmem:[%s624 + $0x10] sm:$0xff]
        %v628 = vld [vmem:[%s624 + $0x18] sm:$0xff]
        %v629 = vld [vmem:[%s624 + $0x20] sm:$0xff]
        %v630 = vld [vmem:[%s624 + $0x28] sm:$0xff]
        %v631 = vld [vmem:[%s624 + $0x30] sm:$0xff]
        %v632 = vld [vmem:[%s624 + $0x38] sm:$0xff]
        %v633 = vld [vmem:[%s624 + $0x40] sm:$0xff]
        %v634 = vld [vmem:[%s624 + $0x48] sm:$0xff]
        %v635 = vld [vmem:[%s624 + $0x50] sm:$0xff]
        %v636 = vld [vmem:[%s624 + $0x58] sm:$0xff]
        %v637 = vld [vmem:[%s624 + $0x60] sm:$0xff]
        %v638 = vld [vmem:[%s624 + $0x68] sm:$0xff]
        %v639 = vld [vmem:[%s624 + $0x70] sm:$0xff]
        %v640 = vld [vmem:[%s624 + $0x78] sm:$0xff]
        %v641 = vld [vmem:[%s624 + $0x80] sm:$0xff]
        %v642 = vld [vmem:[%s624 + $0x88] sm:$0xff]
        %v643 = vld [vmem:[%s624 + $0x90] sm:$0xff]
        %v644 = vld [vmem:[%s624 + $0x98] sm:$0xff]
        %v645 = vld [vmem:[%s624 + $0xa0] sm:$0xff]
        %v646 = vld [vmem:[%s624 + $0xa8] sm:$0xff]
        %v647 = vld [vmem:[%s624 + $0xb0] sm:$0xff]
        %v648 = vld [vmem:[%s624 + $0xb8] sm:$0xff]
        %v650 = vsel %vm472, %v622, 0
        %652 = vmatpush.msra.mxu0 0.0
        %653 = vmatpush.msra.mxu0 0.0
        %654 = vmatpush.msra.mxu0 0.0
        %655 = vmatpush.msra.mxu0 0.0
        %656 = vmatpush.msra.mxu0 0.0
        %657 = vmatpush.msra.mxu0 0.0
        %658 = vmatpush.msra.mxu0 0.0
        %659 = vmatpush.msra.mxu0 0.0
        %660 = vmatpush.msra.mxu0 %v646
        %661 = vmatpush.msra.mxu0 %v643
        %662 = vmatpush.msra.mxu0 %v640
        %663 = vmatpush.msra.mxu0 %v637
        %664 = vmatpush.msra.mxu0 %v634
        %665 = vmatpush.msra.mxu0 %v631
        %666 = vmatpush.msra.mxu0 %v628
        %667 = vmatpush.msra.mxu0 %v625
        %668 = vmatmul.f32.gmra.mxu0 %v650
        %v669 = vpop.f32.mrf.mxu0
        %v670 = vadd.f32 0.0, %v669
        %671 = vdwg.mxu0
        %672 = vmatpush.msra.mxu0 0.0
        %673 = vmatpush.msra.mxu0 0.0
        %674 = vmatpush.msra.mxu0 0.0
        %675 = vmatpush.msra.mxu0 0.0
        %676 = vmatpush.msra.mxu0 0.0
        %677 = vmatpush.msra.mxu0 0.0
        %678 = vmatpush.msra.mxu0 0.0
        %679 = vmatpush.msra.mxu0 0.0
        %680 = vmatpush.msra.mxu0 %v647
        %681 = vmatpush.msra.mxu0 %v644
        %682 = vmatpush.msra.mxu0 %v641
        %683 = vmatpush.msra.mxu0 %v638
        %684 = vmatpush.msra.mxu0 %v635
        %685 = vmatpush.msra.mxu0 %v632
        %686 = vmatpush.msra.mxu0 %v629
        %687 = vmatpush.msra.mxu0 %v626
        %688 = vmatmul.f32.gmra.mxu0 %v650
        %v689 = vpop.f32.mrf.mxu0
        %v690 = vadd.f32 0.0, %v689
        %691 = vdwg.mxu0
        %692 = vmatpush.msra.mxu0 0.0
        %693 = vmatpush.msra.mxu0 0.0
        %694 = vmatpush.msra.mxu0 0.0
        %695 = vmatpush.msra.mxu0 0.0
        %696 = vmatpush.msra.mxu0 0.0
        %697 = vmatpush.msra.mxu0 0.0
        %698 = vmatpush.msra.mxu0 0.0
        %699 = vmatpush.msra.mxu0 0.0
        %700 = vmatpush.msra.mxu0 %v648
        %701 = vmatpush.msra.mxu0 %v645
        %702 = vmatpush.msra.mxu0 %v642
        %703 = vmatpush.msra.mxu0 %v639
        %704 = vmatpush.msra.mxu0 %v636
        %705 = vmatpush.msra.mxu0 %v633
        %706 = vmatpush.msra.mxu0 %v630
        %707 = vmatpush.msra.mxu0 %v627
        %708 = vmatmul.f32.gmra.mxu0 %v650
        %v709 = vpop.f32.mrf.mxu0
        %v710 = vadd.f32 0.0, %v709
        %711 = vdwg.mxu0
        %v712 = vadd.f32 %v557, %v670
        %v713 = vadd.f32 %v577, %v690
        %v714 = vadd.f32 %v597, %v710
        %s715 = scalar_lea.vmem [#allocation2], 24
        %v716 = vld [vmem:[%s715] sm:$0xff]
        %v718 = vsel %vm374, %v716, 0
        %720 = vmatpush.msra.mxu0 0.0
        %721 = vmatpush.msra.mxu0 0.0
        %722 = vmatpush.msra.mxu0 0.0
        %723 = vmatpush.msra.mxu0 0.0
        %724 = vmatpush.msra.mxu0 0.0
        %725 = vmatpush.msra.mxu0 0.0
        %726 = vmatpush.msra.mxu0 0.0
        %727 = vmatpush.msra.mxu0 0.0
        %728 = vmatpush.msra.mxu0 0.0
        %729 = vmatpush.msra.mxu0 0.0
        %730 = vmatpush.msra.mxu0 0.0
        %731 = vmatpush.msra.mxu0 0.0
        %732 = vmatpush.msra.mxu0 0.0
        %733 = vmatpush.msra.mxu0 0.0
        %734 = vmatpush.msra.mxu0 %v372
        %735 = vmatpush.msra.mxu0 %v371
        %736 = vmatmul.f32.gmra.mxu0 %v718
        %v737 = vpop.f32.mrf.mxu0
        %v738 = vadd.f32 0.0, %v737
        %739 = vdwg.mxu0
        %s740 = scalar_lea.vmem [#allocation4], 576
        %v741 = vld [vmem:[%s740] sm:$0xff]
        %v742 = vld [vmem:[%s740 + $0x8] sm:$0xff]
        %v743 = vld [vmem:[%s740 + $0x10] sm:$0xff]
        %v744 = vld [vmem:[%s740 + $0x18] sm:$0xff]
        %v745 = vld [vmem:[%s740 + $0x20] sm:$0xff]
        %v746 = vld [vmem:[%s740 + $0x28] sm:$0xff]
        %v747 = vld [vmem:[%s740 + $0x30] sm:$0xff]
        %v748 = vld [vmem:[%s740 + $0x38] sm:$0xff]
        %v749 = vld [vmem:[%s740 + $0x40] sm:$0xff]
        %v750 = vld [vmem:[%s740 + $0x48] sm:$0xff]
        %v751 = vld [vmem:[%s740 + $0x50] sm:$0xff]
        %v752 = vld [vmem:[%s740 + $0x58] sm:$0xff]
        %v753 = vld [vmem:[%s740 + $0x60] sm:$0xff]
        %v754 = vld [vmem:[%s740 + $0x68] sm:$0xff]
        %v755 = vld [vmem:[%s740 + $0x70] sm:$0xff]
        %v756 = vld [vmem:[%s740 + $0x78] sm:$0xff]
        %v757 = vld [vmem:[%s740 + $0x80] sm:$0xff]
        %v758 = vld [vmem:[%s740 + $0x88] sm:$0xff]
        %v759 = vld [vmem:[%s740 + $0x90] sm:$0xff]
        %v760 = vld [vmem:[%s740 + $0x98] sm:$0xff]
        %v761 = vld [vmem:[%s740 + $0xa0] sm:$0xff]
        %v762 = vld [vmem:[%s740 + $0xa8] sm:$0xff]
        %v763 = vld [vmem:[%s740 + $0xb0] sm:$0xff]
        %v764 = vld [vmem:[%s740 + $0xb8] sm:$0xff]
        %v766 = vsel %vm472, %v738, 0
        %768 = vmatpush.msra.mxu0 0.0
        %769 = vmatpush.msra.mxu0 0.0
        %770 = vmatpush.msra.mxu0 0.0
        %771 = vmatpush.msra.mxu0 0.0
        %772 = vmatpush.msra.mxu0 0.0
        %773 = vmatpush.msra.mxu0 0.0
        %774 = vmatpush.msra.mxu0 0.0
        %775 = vmatpush.msra.mxu0 0.0
        %776 = vmatpush.msra.mxu0 %v762
        %777 = vmatpush.msra.mxu0 %v759
        %778 = vmatpush.msra.mxu0 %v756
        %779 = vmatpush.msra.mxu0 %v753
        %780 = vmatpush.msra.mxu0 %v750
        %781 = vmatpush.msra.mxu0 %v747
        %782 = vmatpush.msra.mxu0 %v744
        %783 = vmatpush.msra.mxu0 %v741
        %784 = vmatmul.f32.gmra.mxu0 %v766
        %v785 = vpop.f32.mrf.mxu0
        %v786 = vadd.f32 0.0, %v785
        %787 = vdwg.mxu0
        %788 = vmatpush.msra.mxu0 0.0
        %789 = vmatpush.msra.mxu0 0.0
        %790 = vmatpush.msra.mxu0 0.0
        %791 = vmatpush.msra.mxu0 0.0
        %792 = vmatpush.msra.mxu0 0.0
        %793 = vmatpush.msra.mxu0 0.0
        %794 = vmatpush.msra.mxu0 0.0
        %795 = vmatpush.msra.mxu0 0.0
        %796 = vmatpush.msra.mxu0 %v763
        %797 = vmatpush.msra.mxu0 %v760
        %798 = vmatpush.msra.mxu0 %v757
        %799 = vmatpush.msra.mxu0 %v754
        %800 = vmatpush.msra.mxu0 %v751
        %801 = vmatpush.msra.mxu0 %v748
        %802 = vmatpush.msra.mxu0 %v745
        %803 = vmatpush.msra.mxu0 %v742
        %804 = vmatmul.f32.gmra.mxu0 %v766
        %v805 = vpop.f32.mrf.mxu0
        %v806 = vadd.f32 0.0, %v805
        %807 = vdwg.mxu0
        %808 = vmatpush.msra.mxu0 0.0
        %809 = vmatpush.msra.mxu0 0.0
        %810 = vmatpush.msra.mxu0 0.0
        %811 = vmatpush.msra.mxu0 0.0
        %812 = vmatpush.msra.mxu0 0.0
        %813 = vmatpush.msra.mxu0 0.0
        %814 = vmatpush.msra.mxu0 0.0
        %815 = vmatpush.msra.mxu0 0.0
        %816 = vmatpush.msra.mxu0 %v764
        %817 = vmatpush.msra.mxu0 %v761
        %818 = vmatpush.msra.mxu0 %v758
        %819 = vmatpush.msra.mxu0 %v755
        %820 = vmatpush.msra.mxu0 %v752
        %821 = vmatpush.msra.mxu0 %v749
        %822 = vmatpush.msra.mxu0 %v746
        %823 = vmatpush.msra.mxu0 %v743
        %824 = vmatmul.f32.gmra.mxu0 %v766
        %v825 = vpop.f32.mrf.mxu0
        %v826 = vadd.f32 0.0, %v825
        %827 = vdwg.mxu0
        %v828 = vadd.f32 %v712, %v786
        %v829 = vadd.f32 %v713, %v806
        %v830 = vadd.f32 %v714, %v826
        %v831 = vld [vmem:[%s3] sm:$0xff]
        %833 = vset.pattern.permute.xlu0 0
        %834 = vperm.xlu0 %833, %v831
        %v835 = vpop.permute.xlu0 %834
        %v837 = vadd.f32 %v828, %v835
        %v838 = vadd.f32 %v829, %v835
        %v839 = vadd.f32 %v830, %v835
        %v840 = vmax.f32 %v837, 0.0
        %v841 = vmax.f32 %v838, 0.0
        %v842 = vmax.f32 %v839, 0.0
        %v843 = vld [vmem:[#allocation6] sm:$0x7]
        %v845 = vperm.slane %v843, 0
        %v846 = vperm.slane %v843, 1
        %v847 = vperm.slane %v843, 2
        %v851 = vmul.f32 %v840, %v845
        %v852 = vmul.f32 %v841, %v846
        %v853 = vmul.f32 %v842, %v847
        %v854 = vld [vmem:[%s5] sm:$0x7]
        %855 = vrot.lane.b32.xlu0 %v851, 19
        %v856 = vpop.permute.xlu0 %855
        %857 = vrot.lane.b32.xlu0 %v852, 19
        %v858 = vpop.permute.xlu0 %857
        %859 = vrot.lane.b32.xlu0 %v853, 19
        %v860 = vpop.permute.xlu0 %859
        %v861 = vlaneseq
        %v862 = vand.u32 %v861, 127
        %vm863 = vcmp.lt.s32.totalorder %v862, 19
        %v864 = vsel %vm863, %v858, %v860
        %v865 = vsel %vm863, %v856, %v858
        %v866 = vsel %vm863, %v860, %v856
        %s867 = scalar_lea.vmem %s5, 4
        %v868 = vld [vmem:[%s867] sm:$0x7]
        %869 = vrot.lane.b32.xlu0 %v851, 18
        %v870 = vpop.permute.xlu0 %869
        %871 = vrot.lane.b32.xlu0 %v852, 18
        %v872 = vpop.permute.xlu0 %871
        %873 = vrot.lane.b32.xlu0 %v853, 18
        %v874 = vpop.permute.xlu0 %873
        %vm875 = vcmp.lt.s32.totalorder %v862, 18
        %v876 = vsel %vm875, %v872, %v874
        %v877 = vsel %vm875, %v870, %v872
        %v878 = vsel %vm875, %v874, %v870
        %vm879 = vcmask 64512
        %v881 = vsel %vm879, %v868, 0
        %883 = vmatpush.msra.mxu0 0.0
        %884 = vmatpush.msra.mxu0 0.0
        %885 = vmatpush.msra.mxu0 0.0
        %886 = vmatpush.msra.mxu0 0.0
        %887 = vmatpush.msra.mxu0 0.0
        %888 = vmatpush.msra.mxu0 0.0
        %889 = vmatpush.msra.mxu0 0.0
        %890 = vmatpush.msra.mxu0 0.0
        %891 = vmatpush.msra.mxu0 0.0
        %892 = vmatpush.msra.mxu0 0.0
        %893 = vmatpush.msra.mxu0 0.0
        %894 = vmatpush.msra.mxu0 0.0
        %895 = vmatpush.msra.mxu0 0.0
        %896 = vmatpush.msra.mxu0 0.0
        %897 = vmatpush.msra.mxu0 0.0
        %898 = vmatpush.msra.mxu0 %v878
        %899 = vmatmul.f32.gmra.mxu0 %v881
        %v900 = vpop.f32.mrf.mxu0
        %v901 = vadd.f32 0.0, %v900
        %902 = vdwg.mxu0
        %903 = vmatpush.msra.mxu0 0.0
        %904 = vmatpush.msra.mxu0 0.0
        %905 = vmatpush.msra.mxu0 0.0
        %906 = vmatpush.msra.mxu0 0.0
        %907 = vmatpush.msra.mxu0 0.0
        %908 = vmatpush.msra.mxu0 0.0
        %909 = vmatpush.msra.mxu0 0.0
        %910 = vmatpush.msra.mxu0 0.0
        %911 = vmatpush.msra.mxu0 0.0
        %912 = vmatpush.msra.mxu0 0.0
        %913 = vmatpush.msra.mxu0 0.0
        %914 = vmatpush.msra.mxu0 0.0
        %915 = vmatpush.msra.mxu0 0.0
        %916 = vmatpush.msra.mxu0 0.0
        %917 = vmatpush.msra.mxu0 0.0
        %918 = vmatpush.msra.mxu0 %v877
        %919 = vmatmul.f32.gmra.mxu0 %v881
        %v920 = vpop.f32.mrf.mxu0
        %v921 = vadd.f32 0.0, %v920
        %922 = vdwg.mxu0
        %923 = vmatpush.msra.mxu0 0.0
        %924 = vmatpush.msra.mxu0 0.0
        %925 = vmatpush.msra.mxu0 0.0
        %926 = vmatpush.msra.mxu0 0.0
        %927 = vmatpush.msra.mxu0 0.0
        %928 = vmatpush.msra.mxu0 0.0
        %929 = vmatpush.msra.mxu0 0.0
        %930 = vmatpush.msra.mxu0 0.0
        %931 = vmatpush.msra.mxu0 0.0
        %932 = vmatpush.msra.mxu0 0.0
        %933 = vmatpush.msra.mxu0 0.0
        %934 = vmatpush.msra.mxu0 0.0
        %935 = vmatpush.msra.mxu0 0.0
        %936 = vmatpush.msra.mxu0 0.0
        %937 = vmatpush.msra.mxu0 0.0
        %938 = vmatpush.msra.mxu0 %v876
        %939 = vmatmul.f32.gmra.mxu0 %v881
        %v940 = vpop.f32.mrf.mxu0
        %v941 = vadd.f32 0.0, %v940
        %942 = vdwg.mxu0
        %v944 = vsel %vm879, %v854, 0
        %946 = vmatpush.msra.mxu0 0.0
        %947 = vmatpush.msra.mxu0 0.0
        %948 = vmatpush.msra.mxu0 0.0
        %949 = vmatpush.msra.mxu0 0.0
        %950 = vmatpush.msra.mxu0 0.0
        %951 = vmatpush.msra.mxu0 0.0
        %952 = vmatpush.msra.mxu0 0.0
        %953 = vmatpush.msra.mxu0 0.0
        %954 = vmatpush.msra.mxu0 0.0
        %955 = vmatpush.msra.mxu0 0.0
        %956 = vmatpush.msra.mxu0 0.0
        %957 = vmatpush.msra.mxu0 0.0
        %958 = vmatpush.msra.mxu0 0.0
        %959 = vmatpush.msra.mxu0 0.0
        %960 = vmatpush.msra.mxu0 0.0
        %961 = vmatpush.msra.mxu0 %v866
        %962 = vmatmul.f32.gmra.mxu0 %v944
        %v963 = vpop.f32.mrf.mxu0
        %v964 = vadd.f32 %v901, %v963
        %965 = vdwg.mxu0
        %966 = vmatpush.msra.mxu0 0.0
        %967 = vmatpush.msra.mxu0 0.0
        %968 = vmatpush.msra.mxu0 0.0
        %969 = vmatpush.msra.mxu0 0.0
        %970 = vmatpush.msra.mxu0 0.0
        %971 = vmatpush.msra.mxu0 0.0
        %972 = vmatpush.msra.mxu0 0.0
        %973 = vmatpush.msra.mxu0 0.0
        %974 = vmatpush.msra.mxu0 0.0
        %975 = vmatpush.msra.mxu0 0.0
        %976 = vmatpush.msra.mxu0 0.0
        %977 = vmatpush.msra.mxu0 0.0
        %978 = vmatpush.msra.mxu0 0.0
        %979 = vmatpush.msra.mxu0 0.0
        %980 = vmatpush.msra.mxu0 0.0
        %981 = vmatpush.msra.mxu0 %v865
        %982 = vmatmul.f32.gmra.mxu0 %v944
        %v983 = vpop.f32.mrf.mxu0
        %v984 = vadd.f32 %v921, %v983
        %985 = vdwg.mxu0
        %986 = vmatpush.msra.mxu0 0.0
        %987 = vmatpush.msra.mxu0 0.0
        %988 = vmatpush.msra.mxu0 0.0
        %989 = vmatpush.msra.mxu0 0.0
        %990 = vmatpush.msra.mxu0 0.0
        %991 = vmatpush.msra.mxu0 0.0
        %992 = vmatpush.msra.mxu0 0.0
        %993 = vmatpush.msra.mxu0 0.0
        %994 = vmatpush.msra.mxu0 0.0
        %995 = vmatpush.msra.mxu0 0.0
        %996 = vmatpush.msra.mxu0 0.0
        %997 = vmatpush.msra.mxu0 0.0
        %998 = vmatpush.msra.mxu0 0.0
        %999 = vmatpush.msra.mxu0 0.0
        %1000 = vmatpush.msra.mxu0 0.0
        %1001 = vmatpush.msra.mxu0 %v864
        %1002 = vmatmul.f32.gmra.mxu0 %v944
        %v1003 = vpop.f32.mrf.mxu0
        %v1004 = vadd.f32 %v941, %v1003
        %1005 = vdwg.mxu0
        %s1006 = scalar_lea.vmem %s5, 8
        %v1007 = vld [vmem:[%s1006] sm:$0x7]
        %1008 = vrot.lane.b32.xlu0 %v851, 17
        %v1009 = vpop.permute.xlu0 %1008
        %1010 = vrot.lane.b32.xlu0 %v852, 17
        %v1011 = vpop.permute.xlu0 %1010
        %1012 = vrot.lane.b32.xlu0 %v853, 17
        %v1013 = vpop.permute.xlu0 %1012
        %vm1014 = vcmp.lt.s32.totalorder %v862, 17
        %v1015 = vsel %vm1014, %v1011, %v1013
        %v1016 = vsel %vm1014, %v1009, %v1011
        %v1017 = vsel %vm1014, %v1013, %v1009
        %v1019 = vsel %vm879, %v1007, 0
        %1021 = vmatpush.msra.mxu0 0.0
        %1022 = vmatpush.msra.mxu0 0.0
        %1023 = vmatpush.msra.mxu0 0.0
        %1024 = vmatpush.msra.mxu0 0.0
        %1025 = vmatpush.msra.mxu0 0.0
        %1026 = vmatpush.msra.mxu0 0.0
        %1027 = vmatpush.msra.mxu0 0.0
        %1028 = vmatpush.msra.mxu0 0.0
        %1029 = vmatpush.msra.mxu0 0.0
        %1030 = vmatpush.msra.mxu0 0.0
        %1031 = vmatpush.msra.mxu0 0.0
        %1032 = vmatpush.msra.mxu0 0.0
        %1033 = vmatpush.msra.mxu0 0.0
        %1034 = vmatpush.msra.mxu0 0.0
        %1035 = vmatpush.msra.mxu0 0.0
        %1036 = vmatpush.msra.mxu0 %v1017
        %1037 = vmatmul.f32.gmra.mxu0 %v1019
        %v1038 = vpop.f32.mrf.mxu0
        %v1039 = vadd.f32 0.0, %v1038
        %1040 = vdwg.mxu0
        %1041 = vmatpush.msra.mxu0 0.0
        %1042 = vmatpush.msra.mxu0 0.0
        %1043 = vmatpush.msra.mxu0 0.0
        %1044 = vmatpush.msra.mxu0 0.0
        %1045 = vmatpush.msra.mxu0 0.0
        %1046 = vmatpush.msra.mxu0 0.0
        %1047 = vmatpush.msra.mxu0 0.0
        %1048 = vmatpush.msra.mxu0 0.0
        %1049 = vmatpush.msra.mxu0 0.0
        %1050 = vmatpush.msra.mxu0 0.0
        %1051 = vmatpush.msra.mxu0 0.0
        %1052 = vmatpush.msra.mxu0 0.0
        %1053 = vmatpush.msra.mxu0 0.0
        %1054 = vmatpush.msra.mxu0 0.0
        %1055 = vmatpush.msra.mxu0 0.0
        %1056 = vmatpush.msra.mxu0 %v1016
        %1057 = vmatmul.f32.gmra.mxu0 %v1019
        %v1058 = vpop.f32.mrf.mxu0
        %v1059 = vadd.f32 0.0, %v1058
        %1060 = vdwg.mxu0
        %1061 = vmatpush.msra.mxu0 0.0
        %1062 = vmatpush.msra.mxu0 0.0
        %1063 = vmatpush.msra.mxu0 0.0
        %1064 = vmatpush.msra.mxu0 0.0
        %1065 = vmatpush.msra.mxu0 0.0
        %1066 = vmatpush.msra.mxu0 0.0
        %1067 = vmatpush.msra.mxu0 0.0
        %1068 = vmatpush.msra.mxu0 0.0
        %1069 = vmatpush.msra.mxu0 0.0
        %1070 = vmatpush.msra.mxu0 0.0
        %1071 = vmatpush.msra.mxu0 0.0
        %1072 = vmatpush.msra.mxu0 0.0
        %1073 = vmatpush.msra.mxu0 0.0
        %1074 = vmatpush.msra.mxu0 0.0
        %1075 = vmatpush.msra.mxu0 0.0
        %1076 = vmatpush.msra.mxu0 %v1015
        %1077 = vmatmul.f32.gmra.mxu0 %v1019
        %v1078 = vpop.f32.mrf.mxu0
        %v1079 = vadd.f32 0.0, %v1078
        %1080 = vdwg.mxu0
        %v1081 = vadd.f32 %v964, %v1039
        %v1082 = vadd.f32 %v984, %v1059
        %v1083 = vadd.f32 %v1004, %v1079
        %s1084 = scalar_lea.vmem %s5, 12
        %v1085 = vld [vmem:[%s1084] sm:$0x7]
        %1086 = vrot.lane.b32.xlu0 %v851, 1
        %v1087 = vpop.permute.xlu0 %1086
        %1088 = vrot.lane.b32.xlu0 %v852, 1
        %v1089 = vpop.permute.xlu0 %1088
        %1090 = vrot.lane.b32.xlu0 %v853, 1
        %v1091 = vpop.permute.xlu0 %1090
        %vm1092 = vcmp.lt.s32.totalorder %v862, 1
        %v1093 = vsel %vm1092, %v1089, %v1091
        %v1094 = vsel %vm1092, %v1087, %v1089
        %v1095 = vsel %vm1092, %v1091, %v1087
        %v1097 = vsel %vm879, %v1085, 0
        %1099 = vmatpush.msra.mxu0 0.0
        %1100 = vmatpush.msra.mxu0 0.0
        %1101 = vmatpush.msra.mxu0 0.0
        %1102 = vmatpush.msra.mxu0 0.0
        %1103 = vmatpush.msra.mxu0 0.0
        %1104 = vmatpush.msra.mxu0 0.0
        %1105 = vmatpush.msra.mxu0 0.0
        %1106 = vmatpush.msra.mxu0 0.0
        %1107 = vmatpush.msra.mxu0 0.0
        %1108 = vmatpush.msra.mxu0 0.0
        %1109 = vmatpush.msra.mxu0 0.0
        %1110 = vmatpush.msra.mxu0 0.0
        %1111 = vmatpush.msra.mxu0 0.0
        %1112 = vmatpush.msra.mxu0 0.0
        %1113 = vmatpush.msra.mxu0 0.0
        %1114 = vmatpush.msra.mxu0 %v1095
        %1115 = vmatmul.f32.gmra.mxu0 %v1097
        %v1116 = vpop.f32.mrf.mxu0
        %v1117 = vadd.f32 0.0, %v1116
        %1118 = vdwg.mxu0
        %1119 = vmatpush.msra.mxu0 0.0
        %1120 = vmatpush.msra.mxu0 0.0
        %1121 = vmatpush.msra.mxu0 0.0
        %1122 = vmatpush.msra.mxu0 0.0
        %1123 = vmatpush.msra.mxu0 0.0
        %1124 = vmatpush.msra.mxu0 0.0
        %1125 = vmatpush.msra.mxu0 0.0
        %1126 = vmatpush.msra.mxu0 0.0
        %1127 = vmatpush.msra.mxu0 0.0
        %1128 = vmatpush.msra.mxu0 0.0
        %1129 = vmatpush.msra.mxu0 0.0
        %1130 = vmatpush.msra.mxu0 0.0
        %1131 = vmatpush.msra.mxu0 0.0
        %1132 = vmatpush.msra.mxu0 0.0
        %1133 = vmatpush.msra.mxu0 0.0
        %1134 = vmatpush.msra.mxu0 %v1094
        %1135 = vmatmul.f32.gmra.mxu0 %v1097
        %v1136 = vpop.f32.mrf.mxu0
        %v1137 = vadd.f32 0.0, %v1136
        %1138 = vdwg.mxu0
        %1139 = vmatpush.msra.mxu0 0.0
        %1140 = vmatpush.msra.mxu0 0.0
        %1141 = vmatpush.msra.mxu0 0.0
        %1142 = vmatpush.msra.mxu0 0.0
        %1143 = vmatpush.msra.mxu0 0.0
        %1144 = vmatpush.msra.mxu0 0.0
        %1145 = vmatpush.msra.mxu0 0.0
        %1146 = vmatpush.msra.mxu0 0.0
        %1147 = vmatpush.msra.mxu0 0.0
        %1148 = vmatpush.msra.mxu0 0.0
        %1149 = vmatpush.msra.mxu0 0.0
        %1150 = vmatpush.msra.mxu0 0.0
        %1151 = vmatpush.msra.mxu0 0.0
        %1152 = vmatpush.msra.mxu0 0.0
        %1153 = vmatpush.msra.mxu0 0.0
        %1154 = vmatpush.msra.mxu0 %v1093
        %1155 = vmatmul.f32.gmra.mxu0 %v1097
        %v1156 = vpop.f32.mrf.mxu0
        %v1157 = vadd.f32 0.0, %v1156
        %1158 = vdwg.mxu0
        %v1159 = vadd.f32 %v1081, %v1117
        %v1160 = vadd.f32 %v1082, %v1137
        %v1161 = vadd.f32 %v1083, %v1157
        %s1162 = scalar_lea.vmem %s5, 16
        %v1163 = vld [vmem:[%s1162] sm:$0x7]
        %v1165 = vsel %vm879, %v1163, 0
        %1167 = vmatpush.msra.mxu0 0.0
        %1168 = vmatpush.msra.mxu0 0.0
        %1169 = vmatpush.msra.mxu0 0.0
        %1170 = vmatpush.msra.mxu0 0.0
        %1171 = vmatpush.msra.mxu0 0.0
        %1172 = vmatpush.msra.mxu0 0.0
        %1173 = vmatpush.msra.mxu0 0.0
        %1174 = vmatpush.msra.mxu0 0.0
        %1175 = vmatpush.msra.mxu0 0.0
        %1176 = vmatpush.msra.mxu0 0.0
        %1177 = vmatpush.msra.mxu0 0.0
        %1178 = vmatpush.msra.mxu0 0.0
        %1179 = vmatpush.msra.mxu0 0.0
        %1180 = vmatpush.msra.mxu0 0.0
        %1181 = vmatpush.msra.mxu0 0.0
        %1182 = vmatpush.msra.mxu0 %v851
        %1183 = vmatmul.f32.gmra.mxu0 %v1165
        %v1184 = vpop.f32.mrf.mxu0
        %v1185 = vadd.f32 0.0, %v1184
        %1186 = vdwg.mxu0
        %1187 = vmatpush.msra.mxu0 0.0
        %1188 = vmatpush.msra.mxu0 0.0
        %1189 = vmatpush.msra.mxu0 0.0
        %1190 = vmatpush.msra.mxu0 0.0
        %1191 = vmatpush.msra.mxu0 0.0
        %1192 = vmatpush.msra.mxu0 0.0
        %1193 = vmatpush.msra.mxu0 0.0
        %1194 = vmatpush.msra.mxu0 0.0
        %1195 = vmatpush.msra.mxu0 0.0
        %1196 = vmatpush.msra.mxu0 0.0
        %1197 = vmatpush.msra.mxu0 0.0
        %1198 = vmatpush.msra.mxu0 0.0
        %1199 = vmatpush.msra.mxu0 0.0
        %1200 = vmatpush.msra.mxu0 0.0
        %1201 = vmatpush.msra.mxu0 0.0
        %1202 = vmatpush.msra.mxu0 %v852
        %1203 = vmatmul.f32.gmra.mxu0 %v1165
        %v1204 = vpop.f32.mrf.mxu0
        %v1205 = vadd.f32 0.0, %v1204
        %1206 = vdwg.mxu0
        %1207 = vmatpush.msra.mxu0 0.0
        %1208 = vmatpush.msra.mxu0 0.0
        %1209 = vmatpush.msra.mxu0 0.0
        %1210 = vmatpush.msra.mxu0 0.0
        %1211 = vmatpush.msra.mxu0 0.0
        %1212 = vmatpush.msra.mxu0 0.0
        %1213 = vmatpush.msra.mxu0 0.0
        %1214 = vmatpush.msra.mxu0 0.0
        %1215 = vmatpush.msra.mxu0 0.0
        %1216 = vmatpush.msra.mxu0 0.0
        %1217 = vmatpush.msra.mxu0 0.0
        %1218 = vmatpush.msra.mxu0 0.0
        %1219 = vmatpush.msra.mxu0 0.0
        %1220 = vmatpush.msra.mxu0 0.0
        %1221 = vmatpush.msra.mxu0 0.0
        %1222 = vmatpush.msra.mxu0 %v853
        %1223 = vmatmul.f32.gmra.mxu0 %v1165
        %v1224 = vpop.f32.mrf.mxu0
        %v1225 = vadd.f32 0.0, %v1224
        %1226 = vdwg.mxu0
        %v1227 = vadd.f32 %v1159, %v1185
        %v1228 = vadd.f32 %v1160, %v1205
        %v1229 = vadd.f32 %v1161, %v1225
        %s1230 = scalar_lea.vmem %s5, 20
        %v1231 = vld [vmem:[%s1230] sm:$0x7]
        %1232 = vrot.lane.b32.xlu0 %v851, 127
        %v1233 = vpop.permute.xlu0 %1232
        %1234 = vrot.lane.b32.xlu0 %v852, 127
        %v1235 = vpop.permute.xlu0 %1234
        %1236 = vrot.lane.b32.xlu0 %v853, 127
        %v1237 = vpop.permute.xlu0 %1236
        %vm1238 = vcmp.lt.s32.totalorder %v862, 127
        %v1239 = vsel %vm1238, %v1235, %v1237
        %v1240 = vsel %vm1238, %v1233, %v1235
        %v1241 = vsel %vm1238, %v1237, %v1233
        %v1243 = vsel %vm879, %v1231, 0
        %1245 = vmatpush.msra.mxu0 0.0
        %1246 = vmatpush.msra.mxu0 0.0
        %1247 = vmatpush.msra.mxu0 0.0
        %1248 = vmatpush.msra.mxu0 0.0
        %1249 = vmatpush.msra.mxu0 0.0
        %1250 = vmatpush.msra.mxu0 0.0
        %1251 = vmatpush.msra.mxu0 0.0
        %1252 = vmatpush.msra.mxu0 0.0
        %1253 = vmatpush.msra.mxu0 0.0
        %1254 = vmatpush.msra.mxu0 0.0
        %1255 = vmatpush.msra.mxu0 0.0
        %1256 = vmatpush.msra.mxu0 0.0
        %1257 = vmatpush.msra.mxu0 0.0
        %1258 = vmatpush.msra.mxu0 0.0
        %1259 = vmatpush.msra.mxu0 0.0
        %1260 = vmatpush.msra.mxu0 %v1240
        %1261 = vmatmul.f32.gmra.mxu0 %v1243
        %v1262 = vpop.f32.mrf.mxu0
        %v1263 = vadd.f32 0.0, %v1262
        %1264 = vdwg.mxu0
        %1265 = vmatpush.msra.mxu0 0.0
        %1266 = vmatpush.msra.mxu0 0.0
        %1267 = vmatpush.msra.mxu0 0.0
        %1268 = vmatpush.msra.mxu0 0.0
        %1269 = vmatpush.msra.mxu0 0.0
        %1270 = vmatpush.msra.mxu0 0.0
        %1271 = vmatpush.msra.mxu0 0.0
        %1272 = vmatpush.msra.mxu0 0.0
        %1273 = vmatpush.msra.mxu0 0.0
        %1274 = vmatpush.msra.mxu0 0.0
        %1275 = vmatpush.msra.mxu0 0.0
        %1276 = vmatpush.msra.mxu0 0.0
        %1277 = vmatpush.msra.mxu0 0.0
        %1278 = vmatpush.msra.mxu0 0.0
        %1279 = vmatpush.msra.mxu0 0.0
        %1280 = vmatpush.msra.mxu0 %v1239
        %1281 = vmatmul.f32.gmra.mxu0 %v1243
        %v1282 = vpop.f32.mrf.mxu0
        %v1283 = vadd.f32 0.0, %v1282
        %1284 = vdwg.mxu0
        %1285 = vmatpush.msra.mxu0 0.0
        %1286 = vmatpush.msra.mxu0 0.0
        %1287 = vmatpush.msra.mxu0 0.0
        %1288 = vmatpush.msra.mxu0 0.0
        %1289 = vmatpush.msra.mxu0 0.0
        %1290 = vmatpush.msra.mxu0 0.0
        %1291 = vmatpush.msra.mxu0 0.0
        %1292 = vmatpush.msra.mxu0 0.0
        %1293 = vmatpush.msra.mxu0 0.0
        %1294 = vmatpush.msra.mxu0 0.0
        %1295 = vmatpush.msra.mxu0 0.0
        %1296 = vmatpush.msra.mxu0 0.0
        %1297 = vmatpush.msra.mxu0 0.0
        %1298 = vmatpush.msra.mxu0 0.0
        %1299 = vmatpush.msra.mxu0 0.0
        %1300 = vmatpush.msra.mxu0 %v1241
        %1301 = vmatmul.f32.gmra.mxu0 %v1243
        %v1302 = vpop.f32.mrf.mxu0
        %v1303 = vadd.f32 0.0, %v1302
        %1304 = vdwg.mxu0
        %v1305 = vadd.f32 %v1227, %v1263
        %v1306 = vadd.f32 %v1228, %v1283
        %v1307 = vadd.f32 %v1229, %v1303
        %s1308 = scalar_lea.vmem %s5, 24
        %v1309 = vld [vmem:[%s1308] sm:$0x7]
        %1310 = vrot.lane.b32.xlu0 %v851, 111
        %v1311 = vpop.permute.xlu0 %1310
        %1312 = vrot.lane.b32.xlu0 %v852, 111
        %v1313 = vpop.permute.xlu0 %1312
        %1314 = vrot.lane.b32.xlu0 %v853, 111
        %v1315 = vpop.permute.xlu0 %1314
        %vm1316 = vcmp.lt.s32.totalorder %v862, 111
        %v1317 = vsel %vm1316, %v1313, %v1315
        %v1318 = vsel %vm1316, %v1311, %v1313
        %v1319 = vsel %vm1316, %v1315, %v1311
        %v1321 = vsel %vm879, %v1309, 0
        %1323 = vmatpush.msra.mxu0 0.0
        %1324 = vmatpush.msra.mxu0 0.0
        %1325 = vmatpush.msra.mxu0 0.0
        %1326 = vmatpush.msra.mxu0 0.0
        %1327 = vmatpush.msra.mxu0 0.0
        %1328 = vmatpush.msra.mxu0 0.0
        %1329 = vmatpush.msra.mxu0 0.0
        %1330 = vmatpush.msra.mxu0 0.0
        %1331 = vmatpush.msra.mxu0 0.0
        %1332 = vmatpush.msra.mxu0 0.0
        %1333 = vmatpush.msra.mxu0 0.0
        %1334 = vmatpush.msra.mxu0 0.0
        %1335 = vmatpush.msra.mxu0 0.0
        %1336 = vmatpush.msra.mxu0 0.0
        %1337 = vmatpush.msra.mxu0 0.0
        %1338 = vmatpush.msra.mxu0 %v1318
        %1339 = vmatmul.f32.gmra.mxu0 %v1321
        %v1340 = vpop.f32.mrf.mxu0
        %v1341 = vadd.f32 0.0, %v1340
        %1342 = vdwg.mxu0
        %1343 = vmatpush.msra.mxu0 0.0
        %1344 = vmatpush.msra.mxu0 0.0
        %1345 = vmatpush.msra.mxu0 0.0
        %1346 = vmatpush.msra.mxu0 0.0
        %1347 = vmatpush.msra.mxu0 0.0
        %1348 = vmatpush.msra.mxu0 0.0
        %1349 = vmatpush.msra.mxu0 0.0
        %1350 = vmatpush.msra.mxu0 0.0
        %1351 = vmatpush.msra.mxu0 0.0
        %1352 = vmatpush.msra.mxu0 0.0
        %1353 = vmatpush.msra.mxu0 0.0
        %1354 = vmatpush.msra.mxu0 0.0
        %1355 = vmatpush.msra.mxu0 0.0
        %1356 = vmatpush.msra.mxu0 0.0
        %1357 = vmatpush.msra.mxu0 0.0
        %1358 = vmatpush.msra.mxu0 %v1317
        %1359 = vmatmul.f32.gmra.mxu0 %v1321
        %v1360 = vpop.f32.mrf.mxu0
        %v1361 = vadd.f32 0.0, %v1360
        %1362 = vdwg.mxu0
        %1363 = vmatpush.msra.mxu0 0.0
        %1364 = vmatpush.msra.mxu0 0.0
        %1365 = vmatpush.msra.mxu0 0.0
        %1366 = vmatpush.msra.mxu0 0.0
        %1367 = vmatpush.msra.mxu0 0.0
        %1368 = vmatpush.msra.mxu0 0.0
        %1369 = vmatpush.msra.mxu0 0.0
        %1370 = vmatpush.msra.mxu0 0.0
        %1371 = vmatpush.msra.mxu0 0.0
        %1372 = vmatpush.msra.mxu0 0.0
        %1373 = vmatpush.msra.mxu0 0.0
        %1374 = vmatpush.msra.mxu0 0.0
        %1375 = vmatpush.msra.mxu0 0.0
        %1376 = vmatpush.msra.mxu0 0.0
        %1377 = vmatpush.msra.mxu0 0.0
        %1378 = vmatpush.msra.mxu0 %v1319
        %1379 = vmatmul.f32.gmra.mxu0 %v1321
        %v1380 = vpop.f32.mrf.mxu0
        %v1381 = vadd.f32 0.0, %v1380
        %1382 = vdwg.mxu0
        %v1383 = vadd.f32 %v1305, %v1341
        %v1384 = vadd.f32 %v1306, %v1361
        %v1385 = vadd.f32 %v1307, %v1381
        %s1386 = scalar_lea.vmem %s5, 28
        %v1387 = vld [vmem:[%s1386] sm:$0x7]
        %1388 = vrot.lane.b32.xlu0 %v851, 110
        %v1389 = vpop.permute.xlu0 %1388
        %1390 = vrot.lane.b32.xlu0 %v852, 110
        %v1391 = vpop.permute.xlu0 %1390
        %1392 = vrot.lane.b32.xlu0 %v853, 110
        %v1393 = vpop.permute.xlu0 %1392
        %vm1394 = vcmp.lt.s32.totalorder %v862, 110
        %v1395 = vsel %vm1394, %v1391, %v1393
        %v1396 = vsel %vm1394, %v1389, %v1391
        %v1397 = vsel %vm1394, %v1393, %v1389
        %v1399 = vsel %vm879, %v1387, 0
        %1401 = vmatpush.msra.mxu0 0.0
        %1402 = vmatpush.msra.mxu0 0.0
        %1403 = vmatpush.msra.mxu0 0.0
        %1404 = vmatpush.msra.mxu0 0.0
        %1405 = vmatpush.msra.mxu0 0.0
        %1406 = vmatpush.msra.mxu0 0.0
        %1407 = vmatpush.msra.mxu0 0.0
        %1408 = vmatpush.msra.mxu0 0.0
        %1409 = vmatpush.msra.mxu0 0.0
        %1410 = vmatpush.msra.mxu0 0.0
        %1411 = vmatpush.msra.mxu0 0.0
        %1412 = vmatpush.msra.mxu0 0.0
        %1413 = vmatpush.msra.mxu0 0.0
        %1414 = vmatpush.msra.mxu0 0.0
        %1415 = vmatpush.msra.mxu0 0.0
        %1416 = vmatpush.msra.mxu0 %v1396
        %1417 = vmatmul.f32.gmra.mxu0 %v1399
        %v1418 = vpop.f32.mrf.mxu0
        %v1419 = vadd.f32 0.0, %v1418
        %1420 = vdwg.mxu0
        %1421 = vmatpush.msra.mxu0 0.0
        %1422 = vmatpush.msra.mxu0 0.0
        %1423 = vmatpush.msra.mxu0 0.0
        %1424 = vmatpush.msra.mxu0 0.0
        %1425 = vmatpush.msra.mxu0 0.0
        %1426 = vmatpush.msra.mxu0 0.0
        %1427 = vmatpush.msra.mxu0 0.0
        %1428 = vmatpush.msra.mxu0 0.0
        %1429 = vmatpush.msra.mxu0 0.0
        %1430 = vmatpush.msra.mxu0 0.0
        %1431 = vmatpush.msra.mxu0 0.0
        %1432 = vmatpush.msra.mxu0 0.0
        %1433 = vmatpush.msra.mxu0 0.0
        %1434 = vmatpush.msra.mxu0 0.0
        %1435 = vmatpush.msra.mxu0 0.0
        %1436 = vmatpush.msra.mxu0 %v1395
        %1437 = vmatmul.f32.gmra.mxu0 %v1399
        %v1438 = vpop.f32.mrf.mxu0
        %v1439 = vadd.f32 0.0, %v1438
        %1440 = vdwg.mxu0
        %1441 = vmatpush.msra.mxu0 0.0
        %1442 = vmatpush.msra.mxu0 0.0
        %1443 = vmatpush.msra.mxu0 0.0
        %1444 = vmatpush.msra.mxu0 0.0
        %1445 = vmatpush.msra.mxu0 0.0
        %1446 = vmatpush.msra.mxu0 0.0
        %1447 = vmatpush.msra.mxu0 0.0
        %1448 = vmatpush.msra.mxu0 0.0
        %1449 = vmatpush.msra.mxu0 0.0
        %1450 = vmatpush.msra.mxu0 0.0
        %1451 = vmatpush.msra.mxu0 0.0
        %1452 = vmatpush.msra.mxu0 0.0
        %1453 = vmatpush.msra.mxu0 0.0
        %1454 = vmatpush.msra.mxu0 0.0
        %1455 = vmatpush.msra.mxu0 0.0
        %1456 = vmatpush.msra.mxu0 %v1397
        %1457 = vmatmul.f32.gmra.mxu0 %v1399
        %v1458 = vpop.f32.mrf.mxu0
        %v1459 = vadd.f32 0.0, %v1458
        %1460 = vdwg.mxu0
        %v1461 = vadd.f32 %v1383, %v1419
        %v1462 = vadd.f32 %v1384, %v1439
        %v1463 = vadd.f32 %v1385, %v1459
        %s1464 = scalar_lea.vmem %s5, 32
        %v1465 = vld [vmem:[%s1464] sm:$0x7]
        %1466 = vrot.lane.b32.xlu0 %v851, 109
        %v1467 = vpop.permute.xlu0 %1466
        %1468 = vrot.lane.b32.xlu0 %v852, 109
        %v1469 = vpop.permute.xlu0 %1468
        %1470 = vrot.lane.b32.xlu0 %v853, 109
        %v1471 = vpop.permute.xlu0 %1470
        %vm1472 = vcmp.lt.s32.totalorder %v862, 109
        %v1473 = vsel %vm1472, %v1469, %v1471
        %v1474 = vsel %vm1472, %v1467, %v1469
        %v1475 = vsel %vm1472, %v1471, %v1467
        %v1477 = vsel %vm879, %v1465, 0
        %1479 = vmatpush.msra.mxu0 0.0
        %1480 = vmatpush.msra.mxu0 0.0
        %1481 = vmatpush.msra.mxu0 0.0
        %1482 = vmatpush.msra.mxu0 0.0
        %1483 = vmatpush.msra.mxu0 0.0
        %1484 = vmatpush.msra.mxu0 0.0
        %1485 = vmatpush.msra.mxu0 0.0
        %1486 = vmatpush.msra.mxu0 0.0
        %1487 = vmatpush.msra.mxu0 0.0
        %1488 = vmatpush.msra.mxu0 0.0
        %1489 = vmatpush.msra.mxu0 0.0
        %1490 = vmatpush.msra.mxu0 0.0
        %1491 = vmatpush.msra.mxu0 0.0
        %1492 = vmatpush.msra.mxu0 0.0
        %1493 = vmatpush.msra.mxu0 0.0
        %1494 = vmatpush.msra.mxu0 %v1474
        %1495 = vmatmul.f32.gmra.mxu0 %v1477
        %v1496 = vpop.f32.mrf.mxu0
        %v1497 = vadd.f32 0.0, %v1496
        %1498 = vdwg.mxu0
        %1499 = vmatpush.msra.mxu0 0.0
        %1500 = vmatpush.msra.mxu0 0.0
        %1501 = vmatpush.msra.mxu0 0.0
        %1502 = vmatpush.msra.mxu0 0.0
        %1503 = vmatpush.msra.mxu0 0.0
        %1504 = vmatpush.msra.mxu0 0.0
        %1505 = vmatpush.msra.mxu0 0.0
        %1506 = vmatpush.msra.mxu0 0.0
        %1507 = vmatpush.msra.mxu0 0.0
        %1508 = vmatpush.msra.mxu0 0.0
        %1509 = vmatpush.msra.mxu0 0.0
        %1510 = vmatpush.msra.mxu0 0.0
        %1511 = vmatpush.msra.mxu0 0.0
        %1512 = vmatpush.msra.mxu0 0.0
        %1513 = vmatpush.msra.mxu0 0.0
        %1514 = vmatpush.msra.mxu0 %v1473
        %1515 = vmatmul.f32.gmra.mxu0 %v1477
        %v1516 = vpop.f32.mrf.mxu0
        %v1517 = vadd.f32 0.0, %v1516
        %1518 = vdwg.mxu0
        %1519 = vmatpush.msra.mxu0 0.0
        %1520 = vmatpush.msra.mxu0 0.0
        %1521 = vmatpush.msra.mxu0 0.0
        %1522 = vmatpush.msra.mxu0 0.0
        %1523 = vmatpush.msra.mxu0 0.0
        %1524 = vmatpush.msra.mxu0 0.0
        %1525 = vmatpush.msra.mxu0 0.0
        %1526 = vmatpush.msra.mxu0 0.0
        %1527 = vmatpush.msra.mxu0 0.0
        %1528 = vmatpush.msra.mxu0 0.0
        %1529 = vmatpush.msra.mxu0 0.0
        %1530 = vmatpush.msra.mxu0 0.0
        %1531 = vmatpush.msra.mxu0 0.0
        %1532 = vmatpush.msra.mxu0 0.0
        %1533 = vmatpush.msra.mxu0 0.0
        %1534 = vmatpush.msra.mxu0 %v1475
        %1535 = vmatmul.f32.gmra.mxu0 %v1477
        %v1536 = vpop.f32.mrf.mxu0
        %v1537 = vadd.f32 0.0, %v1536
        %1538 = vdwg.mxu0
        %v1539 = vadd.f32 %v1461, %v1497
        %v1540 = vadd.f32 %v1462, %v1517
        %v1541 = vadd.f32 %v1463, %v1537
        %v1542 = vld [vmem:[#allocation7] sm:$0xff]
        %v1543 = vld [vmem:[#allocation7 + $0x8] sm:$0xff]
        %v1544 = vld [vmem:[#allocation7 + $0x10] sm:$0xff]
        %v1545 = vld [vmem:[#allocation7 + $0x18] sm:$0xff]
        %v1546 = vld [vmem:[#allocation7 + $0x20] sm:$0xff]
        %v1547 = vld [vmem:[#allocation7 + $0x28] sm:$0xff]
        %v1548 = vld [vmem:[#allocation7 + $0x30] sm:$0xff]
        %v1549 = vld [vmem:[#allocation7 + $0x38] sm:$0xff]
        %v1550 = vld [vmem:[#allocation7 + $0x40] sm:$0xff]
        %v1551 = vld [vmem:[#allocation7 + $0x48] sm:$0xff]
        %v1552 = vld [vmem:[#allocation7 + $0x50] sm:$0xff]
        %v1553 = vld [vmem:[#allocation7 + $0x58] sm:$0xff]
        %v1554 = vld [vmem:[#allocation7 + $0x60] sm:$0xff]
        %v1555 = vld [vmem:[#allocation7 + $0x68] sm:$0xff]
        %v1556 = vld [vmem:[#allocation7 + $0x70] sm:$0xff]
        %v1557 = vld [vmem:[#allocation7 + $0x78] sm:$0xff]
        %v1558 = vld [vmem:[#allocation7 + $0x80] sm:$0xff]
        %v1559 = vld [vmem:[#allocation7 + $0x88] sm:$0xff]
        %v1560 = vld [vmem:[#allocation7 + $0x90] sm:$0xff]
        %v1561 = vld [vmem:[#allocation7 + $0x98] sm:$0xff]
        %v1562 = vld [vmem:[#allocation7 + $0xa0] sm:$0xff]
        %v1563 = vld [vmem:[#allocation7 + $0xa8] sm:$0xff]
        %v1564 = vld [vmem:[#allocation7 + $0xb0] sm:$0xff]
        %v1565 = vld [vmem:[#allocation7 + $0xb8] sm:$0xff]
        %v1566 = vld [vmem:[#allocation7 + $0xc0] sm:$0xff]
        %v1567 = vld [vmem:[#allocation7 + $0xc8] sm:$0xff]
        %v1568 = vld [vmem:[#allocation7 + $0xd0] sm:$0xff]
        %v1569 = vld [vmem:[#allocation7 + $0xd8] sm:$0xff]
        %v1570 = vld [vmem:[#allocation7 + $0xe0] sm:$0xff]
        %v1571 = vld [vmem:[#allocation7 + $0xe8] sm:$0xff]
        %v1572 = vld [vmem:[#allocation7 + $0xf0] sm:$0xff]
        %v1573 = vld [vmem:[#allocation7 + $0xf8] sm:$0xff]
        %v1574 = vld [vmem:[#allocation7 + $0x100] sm:$0xff]
        %v1575 = vld [vmem:[#allocation7 + $0x108] sm:$0xff]
        %v1576 = vld [vmem:[#allocation7 + $0x110] sm:$0xff]
        %v1577 = vld [vmem:[#allocation7 + $0x118] sm:$0xff]
        %v1578 = vld [vmem:[#allocation7 + $0x120] sm:$0xff]
        %v1579 = vld [vmem:[#allocation7 + $0x128] sm:$0xff]
        %v1580 = vld [vmem:[#allocation7 + $0x130] sm:$0xff]
        %v1581 = vld [vmem:[#allocation7 + $0x138] sm:$0xff]
        %v1582 = vld [vmem:[#allocation7 + $0x140] sm:$0xff]
        %v1583 = vld [vmem:[#allocation7 + $0x148] sm:$0xff]
        %v1584 = vld [vmem:[#allocation7 + $0x150] sm:$0xff]
        %v1585 = vld [vmem:[#allocation7 + $0x158] sm:$0xff]
        %v1586 = vld [vmem:[#allocation7 + $0x160] sm:$0xff]
        %v1587 = vld [vmem:[#allocation7 + $0x168] sm:$0xff]
        %v1588 = vld [vmem:[#allocation7 + $0x170] sm:$0xff]
        %v1589 = vld [vmem:[#allocation7 + $0x178] sm:$0xff]
        %v1590 = vld [vmem:[#allocation7 + $0x180] sm:$0xff]
        %v1591 = vld [vmem:[#allocation7 + $0x188] sm:$0xff]
        %v1592 = vld [vmem:[#allocation7 + $0x190] sm:$0xff]
        %v1593 = vld [vmem:[#allocation7 + $0x198] sm:$0xff]
        %v1594 = vld [vmem:[#allocation7 + $0x1a0] sm:$0xff]
        %v1595 = vld [vmem:[#allocation7 + $0x1a8] sm:$0xff]
        %v1596 = vld [vmem:[#allocation7 + $0x1b0] sm:$0xff]
        %v1597 = vld [vmem:[#allocation7 + $0x1b8] sm:$0xff]
        %v1598 = vld [vmem:[#allocation7 + $0x1c0] sm:$0xff]
        %v1599 = vld [vmem:[#allocation7 + $0x1c8] sm:$0xff]
        %v1600 = vld [vmem:[#allocation7 + $0x1d0] sm:$0xff]
        %v1601 = vld [vmem:[#allocation7 + $0x1d8] sm:$0xff]
        %v1602 = vld [vmem:[#allocation7 + $0x1e0] sm:$0xff]
        %v1603 = vld [vmem:[#allocation7 + $0x1e8] sm:$0xff]
        %v1604 = vld [vmem:[#allocation7 + $0x1f0] sm:$0xff]
        %v1605 = vld [vmem:[#allocation7 + $0x1f8] sm:$0xff]
        %v1606 = vld [vmem:[#allocation7 + $0x200] sm:$0xff]
        %v1607 = vld [vmem:[#allocation7 + $0x208] sm:$0xff]
        %v1608 = vld [vmem:[#allocation7 + $0x210] sm:$0xff]
        %v1609 = vld [vmem:[#allocation7 + $0x218] sm:$0xff]
        %v1610 = vld [vmem:[#allocation7 + $0x220] sm:$0xff]
        %v1611 = vld [vmem:[#allocation7 + $0x228] sm:$0xff]
        %v1612 = vld [vmem:[#allocation7 + $0x230] sm:$0xff]
        %v1613 = vld [vmem:[#allocation7 + $0x238] sm:$0xff]
        %v1614 = vld [vmem:[#allocation7 + $0x240] sm:$0xff]
        %v1615 = vld [vmem:[#allocation7 + $0x248] sm:$0xff]
        %v1616 = vld [vmem:[#allocation7 + $0x250] sm:$0xff]
        %v1617 = vld [vmem:[#allocation7 + $0x258] sm:$0xff]
        %v1618 = vld [vmem:[#allocation7 + $0x260] sm:$0xff]
        %v1619 = vld [vmem:[#allocation7 + $0x268] sm:$0xff]
        %v1620 = vld [vmem:[#allocation7 + $0x270] sm:$0xff]
        %v1621 = vld [vmem:[#allocation7 + $0x278] sm:$0xff]
        %v1622 = vld [vmem:[#allocation7 + $0x280] sm:$0xff]
        %v1623 = vld [vmem:[#allocation7 + $0x288] sm:$0xff]
        %v1624 = vld [vmem:[#allocation7 + $0x290] sm:$0xff]
        %v1625 = vld [vmem:[#allocation7 + $0x298] sm:$0xff]
        %v1626 = vld [vmem:[#allocation7 + $0x2a0] sm:$0xff]
        %v1627 = vld [vmem:[#allocation7 + $0x2a8] sm:$0xff]
        %v1628 = vld [vmem:[#allocation7 + $0x2b0] sm:$0xff]
        %v1629 = vld [vmem:[#allocation7 + $0x2b8] sm:$0xff]
        %v1630 = vld [vmem:[#allocation7 + $0x2c0] sm:$0xff]
        %v1631 = vld [vmem:[#allocation7 + $0x2c8] sm:$0xff]
        %v1632 = vld [vmem:[#allocation7 + $0x2d0] sm:$0xff]
        %v1633 = vld [vmem:[#allocation7 + $0x2d8] sm:$0xff]
        %v1634 = vld [vmem:[#allocation7 + $0x2e0] sm:$0xff]
        %v1635 = vld [vmem:[#allocation7 + $0x2e8] sm:$0xff]
        %v1636 = vld [vmem:[#allocation7 + $0x2f0] sm:$0xff]
        %v1637 = vld [vmem:[#allocation7 + $0x2f8] sm:$0xff]
        %v1638 = vld [vmem:[%s6] sm:$0x7]
        %1640 = vset.pattern.permute.xlu0 0
        %1641 = vperm.xlu0 %1640, %v1638
        %v1642 = vpop.permute.xlu0 %1641
        %1644 = vmatpush.msra.mxu0 %v1572
        %1645 = vmatpush.msra.mxu0 %v1570
        %1646 = vmatpush.msra.mxu0 %v1568
        %1647 = vmatpush.msra.mxu0 %v1566
        %1648 = vmatpush.msra.mxu0 %v1564
        %1649 = vmatpush.msra.mxu0 %v1562
        %1650 = vmatpush.msra.mxu0 %v1560
        %1651 = vmatpush.msra.mxu0 %v1558
        %1652 = vmatpush.msra.mxu0 %v1556
        %1653 = vmatpush.msra.mxu0 %v1554
        %1654 = vmatpush.msra.mxu0 %v1552
        %1655 = vmatpush.msra.mxu0 %v1550
        %1656 = vmatpush.msra.mxu0 %v1548
        %1657 = vmatpush.msra.mxu0 %v1546
        %1658 = vmatpush.msra.mxu0 %v1544
        %1659 = vmatpush.msra.mxu0 %v1542
        %1660 = vmatmul.f32.gmra.mxu0 %v1539
        %v1661 = vpop.f32.mrf.mxu0
        %v1662 = vadd.f32 %v1642, %v1661
        %1663 = vdwg.mxu0
        %1664 = vmatpush.msra.mxu0 %v1604
        %1665 = vmatpush.msra.mxu0 %v1602
        %1666 = vmatpush.msra.mxu0 %v1600
        %1667 = vmatpush.msra.mxu0 %v1598
        %1668 = vmatpush.msra.mxu0 %v1596
        %1669 = vmatpush.msra.mxu0 %v1594
        %1670 = vmatpush.msra.mxu0 %v1592
        %1671 = vmatpush.msra.mxu0 %v1590
        %1672 = vmatpush.msra.mxu0 %v1588
        %1673 = vmatpush.msra.mxu0 %v1586
        %1674 = vmatpush.msra.mxu0 %v1584
        %1675 = vmatpush.msra.mxu0 %v1582
        %1676 = vmatpush.msra.mxu0 %v1580
        %1677 = vmatpush.msra.mxu0 %v1578
        %1678 = vmatpush.msra.mxu0 %v1576
        %1679 = vmatpush.msra.mxu0 %v1574
        %1680 = vmatmul.f32.gmra.mxu0 %v1540
        %v1681 = vpop.f32.mrf.mxu0
        %v1682 = vadd.f32 %v1662, %v1681
        %1683 = vdwg.mxu0
        %1684 = vmatpush.msra.mxu0 %v1636
        %1685 = vmatpush.msra.mxu0 %v1634
        %1686 = vmatpush.msra.mxu0 %v1632
        %1687 = vmatpush.msra.mxu0 %v1630
        %1688 = vmatpush.msra.mxu0 %v1628
        %1689 = vmatpush.msra.mxu0 %v1626
        %1690 = vmatpush.msra.mxu0 %v1624
        %1691 = vmatpush.msra.mxu0 %v1622
        %1692 = vmatpush.msra.mxu0 %v1620
        %1693 = vmatpush.msra.mxu0 %v1618
        %1694 = vmatpush.msra.mxu0 %v1616
        %1695 = vmatpush.msra.mxu0 %v1614
        %1696 = vmatpush.msra.mxu0 %v1612
        %1697 = vmatpush.msra.mxu0 %v1610
        %1698 = vmatpush.msra.mxu0 %v1608
        %1699 = vmatpush.msra.mxu0 %v1606
        %1700 = vmatmul.f32.gmra.mxu0 %v1541
        %v1701 = vpop.f32.mrf.mxu0
        %v1702 = vadd.f32 %v1682, %v1701
        %1703 = vdwg.mxu0
        %1704 = vmatpush.msra.mxu0 %v1573
        %1705 = vmatpush.msra.mxu0 %v1571
        %1706 = vmatpush.msra.mxu0 %v1569
        %1707 = vmatpush.msra.mxu0 %v1567
        %1708 = vmatpush.msra.mxu0 %v1565
        %1709 = vmatpush.msra.mxu0 %v1563
        %1710 = vmatpush.msra.mxu0 %v1561
        %1711 = vmatpush.msra.mxu0 %v1559
        %1712 = vmatpush.msra.mxu0 %v1557
        %1713 = vmatpush.msra.mxu0 %v1555
        %1714 = vmatpush.msra.mxu0 %v1553
        %1715 = vmatpush.msra.mxu0 %v1551
        %1716 = vmatpush.msra.mxu0 %v1549
        %1717 = vmatpush.msra.mxu0 %v1547
        %1718 = vmatpush.msra.mxu0 %v1545
        %1719 = vmatpush.msra.mxu0 %v1543
        %1720 = vmatmul.f32.gmra.mxu0 %v1539
        %v1721 = vpop.f32.mrf.mxu0
        %v1722 = vadd.f32 %v1642, %v1721
        %1723 = vdwg.mxu0
        %1724 = vmatpush.msra.mxu0 %v1605
        %1725 = vmatpush.msra.mxu0 %v1603
        %1726 = vmatpush.msra.mxu0 %v1601
        %1727 = vmatpush.msra.mxu0 %v1599
        %1728 = vmatpush.msra.mxu0 %v1597
        %1729 = vmatpush.msra.mxu0 %v1595
        %1730 = vmatpush.msra.mxu0 %v1593
        %1731 = vmatpush.msra.mxu0 %v1591
        %1732 = vmatpush.msra.mxu0 %v1589
        %1733 = vmatpush.msra.mxu0 %v1587
        %1734 = vmatpush.msra.mxu0 %v1585
        %1735 = vmatpush.msra.mxu0 %v1583
        %1736 = vmatpush.msra.mxu0 %v1581
        %1737 = vmatpush.msra.mxu0 %v1579
        %1738 = vmatpush.msra.mxu0 %v1577
        %1739 = vmatpush.msra.mxu0 %v1575
        %1740 = vmatmul.f32.gmra.mxu0 %v1540
        %v1741 = vpop.f32.mrf.mxu0
        %v1742 = vadd.f32 %v1722, %v1741
        %1743 = vdwg.mxu0
        %1744 = vmatpush.msra.mxu0 %v1637
        %1745 = vmatpush.msra.mxu0 %v1635
        %1746 = vmatpush.msra.mxu0 %v1633
        %1747 = vmatpush.msra.mxu0 %v1631
        %1748 = vmatpush.msra.mxu0 %v1629
        %1749 = vmatpush.msra.mxu0 %v1627
        %1750 = vmatpush.msra.mxu0 %v1625
        %1751 = vmatpush.msra.mxu0 %v1623
        %1752 = vmatpush.msra.mxu0 %v1621
        %1753 = vmatpush.msra.mxu0 %v1619
        %1754 = vmatpush.msra.mxu0 %v1617
        %1755 = vmatpush.msra.mxu0 %v1615
        %1756 = vmatpush.msra.mxu0 %v1613
        %1757 = vmatpush.msra.mxu0 %v1611
        %1758 = vmatpush.msra.mxu0 %v1609
        %1759 = vmatpush.msra.mxu0 %v1607
        %1760 = vmatmul.f32.gmra.mxu0 %v1541
        %v1761 = vpop.f32.mrf.mxu0
        %v1762 = vadd.f32 %v1742, %v1761
        %1763 = vdwg.mxu0
        %v1764 = vtanh.pop %v1702
        %v1765 = vtanh.pop %v1762
        %v1768 = vrot.slane %v1765, 4
        %vm1769 = vcmask 1043456
        %v1770 = vsel %vm1769, %v1764, %v1768
        %1772 = vst [vmem:[%s370] sm:$0x77] %v1770
        %p1773 = scmp.lt.s32.totalorder %s22, 1
        %s1774 = scalar_select %p1773, %s22, 1
        %s1775 = smul.addr %s1774, 2
        %s1776 = smul.addr %s1775, 4
        %s1777 = scalar_lea.vmem %s8, %s1776
        // Predicated region
        $region69: #{autoencoder_forward.7} parent=51 // pred_check
          %p1778 = pneg %p213
        $region70: #{autoencoder_forward.7} parent=51 // pred_check_branch
          %1780 = sbr.rel (%p1778) target = $region72
        $region71: #{autoencoder_forward.7} parent=51 // pred_region
          _
        $region72: #{autoencoder_forward.7} parent=51 // pred_fallthru
          _
      $region52: #{autoencoder_forward.7} parent=5 // pred_fallthru
        _
      %p1781 = scmp.le.s32.totalorder 2, %s17
      // Predicated region
      $region73: #{autoencoder_forward.7} parent=5 // pred_check
        %p1782 = pneg %p1781
      $region74: #{autoencoder_forward.7} parent=5 // pred_check_branch
        %1784 = sbr.rel (%p1782) target = $region76
      $region75: #{autoencoder_forward.7} parent=5 // pred_region
        %s1785 = ssub.s32 %s17, 2
        // Predicated region
        $region77: #{autoencoder_forward.7} parent=75 // pred_check
          %p1786 = pneg %p219
        $region78: #{autoencoder_forward.7} parent=75 // pred_check_branch
          %1788 = sbr.rel (%p1786) target = $region80
        $region79: #{autoencoder_forward.7} parent=75 // pred_region
          %p1789 = scmp.lt.s32.totalorder %s23, 1
          %s1790 = scalar_select %p1789, %s23, 1
          %s1791 = smul.addr %s1790, 2
          %s1792 = smul.addr %s1791, 4
          %s1793 = scalar_lea.vmem %s8, %s1792
        $region80: #{autoencoder_forward.7} parent=75 // pred_fallthru
          _
      $region76: #{autoencoder_forward.7} parent=5 // pred_fallthru
        _
    $region6: #{autoencoder_forward.7} parent=1 // loop_footer
      %s21 = sadd.s32 1, %s17
    $region7: #{autoencoder_forward.7} parent=1 // loop_footer_branch
      %16 = sbr.rel target = $region3
    $region8: #{autoencoder_forward.7} parent=1 // loop_exit
      _
    %1794 = vsyncpa [#allocation3], 1
    %s1795 = scalar_lea.sflag [#allocation3], 1
    %1796 = vsyncpa %s1795, 1
    %1797 = vsyncpa [#allocation5], 1
    %1798 = vsyncpa [#allocation8], 1

// kernel: autoencoder_forward.4
$region0: #{autoencoder_forward.4}
  #allocation0 [shape = 'u32[]', space=smem, size = 0x4, offset = 0x4, fixed_abs, tag = 'smem constant byte address 0x4 - core index']
  #allocation1 [shape = 'u32[72,128]{1,0:T(1,128)}', space=vmem, size = 0x9000, scoped, tag = 'internal scratch']
  %s0 = inlined_call_operand.vmem [shape: f32[2,3,384], index: 0, kind: input, shape index: {}]
  %s1 = inlined_call_operand.vmem [shape: f32[9,8,3], index: 1, kind: input, shape index: {}]
  %s2 = inlined_call_operand.vmem [shape: f32[8,1], index: 2, kind: input, shape index: {}]
  %s3 = inlined_call_operand.vmem [shape: f32[9,16,8], index: 3, kind: input, shape index: {}]
  %s4 = inlined_call_operand.vmem [shape: f32[16,1], index: 4, kind: input, shape index: {}]
  %s5 = inlined_call_operand.hbm [shape: f32[1,384], index: 5, kind: input, shape index: {}]
  %s6 = inlined_call_operand.vmem [shape: f32[384,64], index: 6, kind: input, shape index: {}]
  %s7 = inlined_call_operand.vmem [shape: f32[2,16,64], index: 7, kind: output, shape index: {}]
  %s8 = sld [smem:[#allocation0]]
  $region65: #{autoencoder_forward.4} parent=0
    _
  %s10 = ssub.s32 1, %s8
  %s11 = scalar_select 0, %s10, %s8
  $region1: #{autoencoder_forward.4} parent=0
    #allocation2 [shape = 'u8[1536]{0}', space=vmem, size = 0x800, scoped, tag = 'input window, operand 5, single buffered']
    #allocation3 [shape = 's32[2]{0}', space=sflag, size = 0x8, scoped, tag = 'scoped memory for autoencoder_forward.4']
    %12 = vsyncpa [#allocation3], 0
    loop: start=0, step=1, limit=4
    $region2: #{autoencoder_forward.4} parent=1 // loop_pre_header
      _
    $region3: #{autoencoder_forward.4} parent=1 // loop_header
      %s14 = sphi 0, %s18
      %p15 = scmp.ge.s32.totalorder %s14, 4
      %s24 = sphi 0, %s26
      %s27 = sphi 0, %s24
      %s28 = sphi 0, %s27
      %s44 = sphi 0, %s28
      %s48 = sphi 0, %s48
      %s50 = sphi 0, %s48
      %s51 = sphi 0, %s50
      %s65 = sphi 0, %s51
      %s69 = sphi 0, %s69
      %s71 = sphi 0, %s69
      %s72 = sphi 0, %s71
      %s86 = sphi 0, %s72
      %s90 = sphi 0, %s90
      %s92 = sphi 0, %s90
      %s93 = sphi 0, %s92
      %s107 = sphi 0, %s93
      %s111 = sphi 0, %s111
      %s113 = sphi 0, %s111
      %s114 = sphi 0, %s113
      %s128 = sphi 0, %s114
      %s132 = sphi 0, %s132
      %s134 = sphi 0, %s132
      %s135 = sphi 0, %s134
      %s149 = sphi 0, %s135
      %s153 = sphi 0, %s153
      %s155 = sphi 0, %s153
      %s156 = sphi 0, %s155
      %s170 = sphi 0, %s156
      %s176 = sphi 0, %s178
      %s179 = sphi 0, %s176
      %s180 = sphi 0, %s179
      %s196 = sphi 0, %s180
    $region4: #{autoencoder_forward.4} parent=1 // loop_header_branch
      %17 = sbr.rel (%p15) target = $region8
    $region5: #{autoencoder_forward.4} parent=1 // loop_body
      %s19 = ssub.s32 %s14, 1
      %s20 = ssub.s32 %s14, 2
      %s21 = sadd.s32 %s14, 1
      %s22 = ssub.s32 %s14, %s21
      %p23 = scmp.eq.s32.totalorder %s22, 0
      %s25 = sadd.s32 %s24, 1
      %s26 = scalar_select %p23, %s24, %s25
      %p29 = pneg %p23
      %p30 = scmp.eq.s32.totalorder %s14, 1
      %p31 = por %p29, %p30
      %p32 = scmp.ne.s32.totalorder %s24, %s27
      %p33 = scmp.eq.s32.totalorder %s14, 0
      %p34 = por %p32, %p33
      %p35 = scmp.ne.s32.totalorder %s24, %s27
      %p36 = scmp.eq.s32.totalorder %s19, 1
      %p37 = por %p35, %p36
      %p38 = scmp.ne.s32.totalorder %s27, %s28
      %p39 = scmp.eq.s32.totalorder %s19, 0
      %p40 = por %p38, %p39
      %p41 = scmp.ne.s32.totalorder %s27, %s28
      %p42 = scmp.eq.s32.totalorder %s20, 1
      %p43 = por %p41, %p42
      %p45 = scmp.ne.s32.totalorder %s28, %s44
      %p46 = scmp.eq.s32.totalorder %s20, 0
      %p47 = por %p45, %p46
      %s49 = sadd.s32 %s48, 1
      %p52 = scmp.eq.s32.totalorder %s14, 1
      %p53 = scmp.ne.s32.totalorder %s48, %s50
      %p54 = scmp.eq.s32.totalorder %s14, 0
      %p55 = por %p53, %p54
      %p56 = scmp.ne.s32.totalorder %s48, %s50
      %p57 = scmp.eq.s32.totalorder %s19, 1
      %p58 = por %p56, %p57
      %p59 = scmp.ne.s32.totalorder %s50, %s51
      %p60 = scmp.eq.s32.totalorder %s19, 0
      %p61 = por %p59, %p60
      %p62 = scmp.ne.s32.totalorder %s50, %s51
      %p63 = scmp.eq.s32.totalorder %s20, 1
      %p64 = por %p62, %p63
      %p66 = scmp.ne.s32.totalorder %s51, %s65
      %p67 = scmp.eq.s32.totalorder %s20, 0
      %p68 = por %p66, %p67
      %s70 = sadd.s32 %s69, 1
      %p73 = scmp.eq.s32.totalorder %s14, 1
      %p74 = scmp.ne.s32.totalorder %s69, %s71
      %p75 = scmp.eq.s32.totalorder %s14, 0
      %p76 = por %p74, %p75
      %p77 = scmp.ne.s32.totalorder %s69, %s71
      %p78 = scmp.eq.s32.totalorder %s19, 1
      %p79 = por %p77, %p78
      %p80 = scmp.ne.s32.totalorder %s71, %s72
      %p81 = scmp.eq.s32.totalorder %s19, 0
      %p82 = por %p80, %p81
      %p83 = scmp.ne.s32.totalorder %s71, %s72
      %p84 = scmp.eq.s32.totalorder %s20, 1
      %p85 = por %p83, %p84
      %p87 = scmp.ne.s32.totalorder %s72, %s86
      %p88 = scmp.eq.s32.totalorder %s20, 0
      %p89 = por %p87, %p88
      %s91 = sadd.s32 %s90, 1
      %p94 = scmp.eq.s32.totalorder %s14, 1
      %p95 = scmp.ne.s32.totalorder %s90, %s92
      %p96 = scmp.eq.s32.totalorder %s14, 0
      %p97 = por %p95, %p96
      %p98 = scmp.ne.s32.totalorder %s90, %s92
      %p99 = scmp.eq.s32.totalorder %s19, 1
      %p100 = por %p98, %p99
      %p101 = scmp.ne.s32.totalorder %s92, %s93
      %p102 = scmp.eq.s32.totalorder %s19, 0
      %p103 = por %p101, %p102
      %p104 = scmp.ne.s32.totalorder %s92, %s93
      %p105 = scmp.eq.s32.totalorder %s20, 1
      %p106 = por %p104, %p105
      %p108 = scmp.ne.s32.totalorder %s93, %s107
      %p109 = scmp.eq.s32.totalorder %s20, 0
      %p110 = por %p108, %p109
      %s112 = sadd.s32 %s111, 1
      %p115 = scmp.eq.s32.totalorder %s14, 1
      %p116 = scmp.ne.s32.totalorder %s111, %s113
      %p117 = scmp.eq.s32.totalorder %s14, 0
      %p118 = por %p116, %p117
      %p119 = scmp.ne.s32.totalorder %s111, %s113
      %p120 = scmp.eq.s32.totalorder %s19, 1
      %p121 = por %p119, %p120
      %p122 = scmp.ne.s32.totalorder %s113, %s114
      %p123 = scmp.eq.s32.totalorder %s19, 0
      %p124 = por %p122, %p123
      %p125 = scmp.ne.s32.totalorder %s113, %s114
      %p126 = scmp.eq.s32.totalorder %s20, 1
      %p127 = por %p125, %p126
      %p129 = scmp.ne.s32.totalorder %s114, %s128
      %p130 = scmp.eq.s32.totalorder %s20, 0
      %p131 = por %p129, %p130
      %s133 = sadd.s32 %s132, 1
      %p136 = scmp.eq.s32.totalorder %s14, 1
      %p137 = scmp.ne.s32.totalorder %s132, %s134
      %p138 = scmp.eq.s32.totalorder %s14, 0
      %p139 = por %p137, %p138
      %p140 = scmp.ne.s32.totalorder %s132, %s134
      %p141 = scmp.eq.s32.totalorder %s19, 1
      %p142 = por %p140, %p141
      %p143 = scmp.ne.s32.totalorder %s134, %s135
      %p144 = scmp.eq.s32.totalorder %s19, 0
      %p145 = por %p143, %p144
      %p146 = scmp.ne.s32.totalorder %s134, %s135
      %p147 = scmp.eq.s32.totalorder %s20, 1
      %p148 = por %p146, %p147
      %p150 = scmp.ne.s32.totalorder %s135, %s149
      %p151 = scmp.eq.s32.totalorder %s20, 0
      %p152 = por %p150, %p151
      %s154 = sadd.s32 %s153, 1
      %p157 = scmp.eq.s32.totalorder %s14, 1
      %p158 = scmp.ne.s32.totalorder %s153, %s155
      %p159 = scmp.eq.s32.totalorder %s14, 0
      %p160 = por %p158, %p159
      %p161 = scmp.ne.s32.totalorder %s153, %s155
      %p162 = scmp.eq.s32.totalorder %s19, 1
      %p163 = por %p161, %p162
      %p164 = scmp.ne.s32.totalorder %s155, %s156
      %p165 = scmp.eq.s32.totalorder %s19, 0
      %p166 = por %p164, %p165
      %p167 = scmp.ne.s32.totalorder %s155, %s156
      %p168 = scmp.eq.s32.totalorder %s20, 1
      %p169 = por %p167, %p168
      %p171 = scmp.ne.s32.totalorder %s156, %s170
      %p172 = scmp.eq.s32.totalorder %s20, 0
      %p173 = por %p171, %p172
      %s174 = ssub.s32 %s14, %s21
      %p175 = scmp.eq.s32.totalorder %s174, 0
      %s177 = sadd.s32 %s176, 1
      %s178 = scalar_select %p175, %s176, %s177
      %p181 = pneg %p175
      %p182 = scmp.eq.s32.totalorder %s14, 1
      %p183 = por %p181, %p182
      %p184 = scmp.ne.s32.totalorder %s176, %s179
      %p185 = scmp.eq.s32.totalorder %s14, 0
      %p186 = por %p184, %p185
      %p187 = scmp.ne.s32.totalorder %s176, %s179
      %p188 = scmp.eq.s32.totalorder %s19, 1
      %p189 = por %p187, %p188
      %p190 = scmp.ne.s32.totalorder %s179, %s180
      %p191 = scmp.eq.s32.totalorder %s19, 0
      %p192 = por %p190, %p191
      %p193 = scmp.ne.s32.totalorder %s179, %s180
      %p194 = scmp.eq.s32.totalorder %s20, 1
      %p195 = por %p193, %p194
      %p197 = scmp.ne.s32.totalorder %s180, %s196
      %p198 = scmp.eq.s32.totalorder %s20, 0
      %p199 = por %p197, %p198
      %p200 = scmp.le.s32.totalorder 1, %s14
      %p201 = scmp.lt.s32.totalorder %s14, 3
      %p202 = pnand %p200, %p201
      %p203 = pneg %p202
      // Predicated region
      $region9: #{autoencoder_forward.4} parent=5 // pred_check
        _
      $region10: #{autoencoder_forward.4} parent=5 // pred_check_branch
        %205 = sbr.rel (%p202) target = $region12
      $region11: #{autoencoder_forward.4} parent=5 // pred_region
        %s206 = ssub.s32 %s14, 1
        // Predicated region
        $region13: #{autoencoder_forward.4} parent=11 // pred_check
          %p207 = pneg %p61
        $region14: #{autoencoder_forward.4} parent=11 // pred_check_branch
          %209 = sbr.rel (%p207) target = $region16
        $region15: #{autoencoder_forward.4} parent=11 // pred_region
          _
        $region16: #{autoencoder_forward.4} parent=11 // pred_fallthru
          _
        // Predicated region
        $region17: #{autoencoder_forward.4} parent=11 // pred_check
          %p210 = pneg %p82
        $region18: #{autoencoder_forward.4} parent=11 // pred_check_branch
          %212 = sbr.rel (%p210) target = $region20
        $region19: #{autoencoder_forward.4} parent=11 // pred_region
          _
        $region20: #{autoencoder_forward.4} parent=11 // pred_fallthru
          _
        // Predicated region
        $region21: #{autoencoder_forward.4} parent=11 // pred_check
          %p213 = pneg %p103
        $region22: #{autoencoder_forward.4} parent=11 // pred_check_branch
          %215 = sbr.rel (%p213) target = $region24
        $region23: #{autoencoder_forward.4} parent=11 // pred_region
          _
        $region24: #{autoencoder_forward.4} parent=11 // pred_fallthru
          _
        // Predicated region
        $region25: #{autoencoder_forward.4} parent=11 // pred_check
          %p216 = pneg %p124
        $region26: #{autoencoder_forward.4} parent=11 // pred_check_branch
          %218 = sbr.rel (%p216) target = $region28
        $region27: #{autoencoder_forward.4} parent=11 // pred_region
          _
        $region28: #{autoencoder_forward.4} parent=11 // pred_fallthru
          _
        // Predicated region
        $region29: #{autoencoder_forward.4} parent=11 // pred_check
          %p219 = pneg %p145
        $region30: #{autoencoder_forward.4} parent=11 // pred_check_branch
          %221 = sbr.rel (%p219) target = $region32
        $region31: #{autoencoder_forward.4} parent=11 // pred_region
          %223 = vsyncadd [#allocation3], 0
          %s225 = sshll.u32 %s5, 4
          %s226 = int_to_ptr.hbm [resolvable:$true] %s225
          %s227 = sshll.u32 [#allocation2], 4
          %s228 = int_to_ptr.vmem [resolvable:$true] %s227
          %230 = dma.hbm_to_vmem [thread:$0]  %s226, 48, %s228, [#allocation3]
        $region32: #{autoencoder_forward.4} parent=11 // pred_fallthru
          _
        // Predicated region
        $region33: #{autoencoder_forward.4} parent=11 // pred_check
          %p231 = pneg %p166
        $region34: #{autoencoder_forward.4} parent=11 // pred_check_branch
          %233 = sbr.rel (%p231) target = $region36
        $region35: #{autoencoder_forward.4} parent=11 // pred_region
          _
        $region36: #{autoencoder_forward.4} parent=11 // pred_fallthru
          _
      $region12: #{autoencoder_forward.4} parent=5 // pred_fallthru
        _
      %p234 = scmp.lt.s32.totalorder %s14, 2
      // Predicated region
      $region37: #{autoencoder_forward.4} parent=5 // pred_check
        %p235 = pneg %p234
      $region38: #{autoencoder_forward.4} parent=5 // pred_check_branch
        %237 = sbr.rel (%p235) target = $region40
      $region39: #{autoencoder_forward.4} parent=5 // pred_region
        // Predicated region
        $region41: #{autoencoder_forward.4} parent=39 // pred_check
          %p238 = pneg %p34
        $region42: #{autoencoder_forward.4} parent=39 // pred_check_branch
          %240 = sbr.rel (%p238) target = $region44
        $region43: #{autoencoder_forward.4} parent=39 // pred_region
          %p241 = scmp.lt.s32.totalorder %s14, 1
          %s242 = scalar_select %p241, %s14, 1
          %s243 = smul.addr %s242, 3
          %s244 = smul.addr %s243, 4
          %s245 = scalar_lea.vmem %s0, %s244
        $region44: #{autoencoder_forward.4} parent=39 // pred_fallthru
          _
      $region40: #{autoencoder_forward.4} parent=5 // pred_fallthru
        _
      %p246 = scmp.le.s32.totalorder 1, %s14
      %p247 = scmp.lt.s32.totalorder %s14, 3
      %p248 = pnand %p246, %p247
      %p249 = pneg %p248
      // Predicated region
      $region45: #{autoencoder_forward.4} parent=5 // pred_check
        _
      $region46: #{autoencoder_forward.4} parent=5 // pred_check_branch
        %251 = sbr.rel (%p248) target = $region48
      $region47: #{autoencoder_forward.4} parent=5 // pred_region
        %s252 = ssub.s32 %s14, 1
        // Predicated region
        $region49: #{autoencoder_forward.4} parent=47 // pred_check
          %p253 = pneg %p145
        $region50: #{autoencoder_forward.4} parent=47 // pred_check_branch
          %255 = sbr.rel (%p253) target = $region52
        $region51: #{autoencoder_forward.4} parent=47 // pred_region
          %257 = dma.done [#allocation3], 48
        $region52: #{autoencoder_forward.4} parent=47 // pred_fallthru
          _
        %p258 = scmp.lt.s32.totalorder %s19, 1
        %s259 = scalar_select %p258, %s19, 1
        %s260 = smul.addr %s259, 3
        %s261 = smul.addr %s260, 4
        %s262 = scalar_lea.vmem %s0, %s261
        %p263 = pneg %p40
        %p264 = pneg %p37
        %p265 = pneg %p61
        %p266 = pneg %p58
        %p267 = pneg %p82
        %p268 = pneg %p79
        %p269 = pneg %p103
        %p270 = pneg %p100
        %p271 = pneg %p124
        %p272 = pneg %p121
        %p273 = pneg %p145
        %p274 = pneg %p142
        %p275 = pneg %p166
        %p276 = pneg %p163
        %p277 = pneg %p192
        %p278 = pneg %p189
        %p279 = scmp.lt.s32.totalorder %s19, 1
        %s280 = scalar_select %p279, %s19, 1
        %s281 = smul.addr %s280, 2
        %s282 = smul.addr %s281, 8
        %s283 = scalar_lea.vmem %s7, %s282
        %p284 = scmp.lt.s32.totalorder %s19, 1
        %s285 = scalar_select %p284, %s19, 1
        %s286 = smul.addr %s285, 3
        %s287 = smul.addr %s286, 4
        %s288 = scalar_lea.vmem %s0, %s287
        %p289 = scmp.lt.s32.totalorder %s19, 1
        %s290 = scalar_select %p289, %s19, 1
        %s291 = smul.addr %s290, 2
        %s292 = smul.addr %s291, 8
        %s293 = scalar_lea.vmem %s7, %s292
        %v294 = vld [vmem:[#allocation2] sm:$0x7]
        %v295 = vld [vmem:[%s288] sm:$0x77]
        %v296 = vld [vmem:[%s288 + $0x8] sm:$0x7]
        %v297 = vld [vmem:[%s1] sm:$0xff]
        %300 = vst [vmem:[#allocation1] ss:$2 sm:$0xff] %v295
        %s301 = scalar_lea.vmem [#allocation1], 16
        %302 = vst [vmem:[%s301] ss:$2 sm:$0xff] %v296
        %v303 = vld.sshfl [vmem:[#allocation1] sm:$0xff pattern:$0x75316420]
        %v304 = vld.sshfl [vmem:[#allocation1 + $0x8] sm:$0xff pattern:$0x75316420]
        %v305 = vld.sshfl [vmem:[#allocation1 + $0x10] sm:$0xff pattern:$0x75316420]
        %309 = vrot.lane.b32.xlu0 %v303, 19
        %v310 = vpop.permute.xlu0 %309
        %311 = vrot.lane.b32.xlu0 %v304, 19
        %v312 = vpop.permute.xlu0 %311
        %313 = vrot.lane.b32.xlu0 %v305, 19
        %v314 = vpop.permute.xlu0 %313
        %v315 = vlaneseq
        %v316 = vand.u32 %v315, 127
        %vm317 = vcmp.lt.s32.totalorder %v316, 19
        %v318 = vsel %vm317, %v312, %v314
        %v319 = vsel %vm317, %v310, %v312
        %v320 = vsel %vm317, %v314, %v310
        %s321 = scalar_lea.vmem %s1, 8
        %v322 = vld [vmem:[%s321] sm:$0xff]
        %323 = vst [vmem:[#allocation1] ss:$2 sm:$0xff] %v295
        %s324 = scalar_lea.vmem [#allocation1], 16
        %325 = vst [vmem:[%s324] ss:$2 sm:$0xff] %v296
        %v326 = vld.sshfl [vmem:[#allocation1] sm:$0xff pattern:$0x75316420]
        %v327 = vld.sshfl [vmem:[#allocation1 + $0x8] sm:$0xff pattern:$0x75316420]
        %v328 = vld.sshfl [vmem:[#allocation1 + $0x10] sm:$0xff pattern:$0x75316420]
        %332 = vrot.lane.b32.xlu0 %v326, 18
        %v333 = vpop.permute.xlu0 %332
        %334 = vrot.lane.b32.xlu0 %v327, 18
        %v335 = vpop.permute.xlu0 %334
        %336 = vrot.lane.b32.xlu0 %v328, 18
        %v337 = vpop.permute.xlu0 %336
        %vm338 = vcmp.lt.s32.totalorder %v316, 18
        %v339 = vsel %vm338, %v335, %v337
        %v340 = vsel %vm338, %v333, %v335
        %v341 = vsel %vm338, %v337, %v333
        %vm342 = vcmask 23552
        %v344 = vsel %vm342, %v322, 0
        %vm346 = vcmask 1042432
        %v348 = vsel %vm346, %v341, 0
        %v351 = vsel %vm346, %v340, 0
        %v354 = vsel %vm346, %v339, 0
        %356 = vmatpush.msra.mxu0 0.0
        %357 = vmatpush.msra.mxu0 0.0
        %358 = vmatpush.msra.mxu0 0.0
        %359 = vmatpush.msra.mxu0 0.0
        %360 = vmatpush.msra.mxu0 0.0
        %361 = vmatpush.msra.mxu0 0.0
        %362 = vmatpush.msra.mxu0 0.0
        %363 = vmatpush.msra.mxu0 0.0
        %364 = vmatpush.msra.mxu0 0.0
        %365 = vmatpush.msra.mxu0 0.0
        %366 = vmatpush.msra.mxu0 0.0
        %367 = vmatpush.msra.mxu0 0.0
        %368 = vmatpush.msra.mxu0 0.0
        %369 = vmatpush.msra.mxu0 0.0
        %370 = vmatpush.msra.mxu0 0.0
        %371 = vmatpush.msra.mxu0 %v348
        %372 = vmatmul.f32.gmra.mxu0 %v344
        %v373 = vpop.f32.mrf.mxu0
        %v374 = vadd.f32 0.0, %v373
        %375 = vdwg.mxu0
        %376 = vmatpush.msra.mxu0 0.0
        %377 = vmatpush.msra.mxu0 0.0
        %378 = vmatpush.msra.mxu0 0.0
        %379 = vmatpush.msra.mxu0 0.0
        %380 = vmatpush.msra.mxu0 0.0
        %381 = vmatpush.msra.mxu0 0.0
        %382 = vmatpush.msra.mxu0 0.0
        %383 = vmatpush.msra.mxu0 0.0
        %384 = vmatpush.msra.mxu0 0.0
        %385 = vmatpush.msra.mxu0 0.0
        %386 = vmatpush.msra.mxu0 0.0
        %387 = vmatpush.msra.mxu0 0.0
        %388 = vmatpush.msra.mxu0 0.0
        %389 = vmatpush.msra.mxu0 0.0
        %390 = vmatpush.msra.mxu0 0.0
        %391 = vmatpush.msra.mxu0 %v351
        %392 = vmatmul.f32.gmra.mxu0 %v344
        %v393 = vpop.f32.mrf.mxu0
        %v394 = vadd.f32 0.0, %v393
        %395 = vdwg.mxu0
        %396 = vmatpush.msra.mxu0 0.0
        %397 = vmatpush.msra.mxu0 0.0
        %398 = vmatpush.msra.mxu0 0.0
        %399 = vmatpush.msra.mxu0 0.0
        %400 = vmatpush.msra.mxu0 0.0
        %401 = vmatpush.msra.mxu0 0.0
        %402 = vmatpush.msra.mxu0 0.0
        %403 = vmatpush.msra.mxu0 0.0
        %404 = vmatpush.msra.mxu0 0.0
        %405 = vmatpush.msra.mxu0 0.0
        %406 = vmatpush.msra.mxu0 0.0
        %407 = vmatpush.msra.mxu0 0.0
        %408 = vmatpush.msra.mxu0 0.0
        %409 = vmatpush.msra.mxu0 0.0
        %410 = vmatpush.msra.mxu0 0.0
        %411 = vmatpush.msra.mxu0 %v354
        %412 = vmatmul.f32.gmra.mxu0 %v344
        %v413 = vpop.f32.mrf.mxu0
        %v414 = vadd.f32 0.0, %v413
        %415 = vdwg.mxu0
        %v417 = vsel %vm342, %v297, 0
        %v420 = vsel %vm346, %v320, 0
        %v423 = vsel %vm346, %v319, 0
        %v426 = vsel %vm346, %v318, 0
        %428 = vmatpush.msra.mxu0 0.0
        %429 = vmatpush.msra.mxu0 0.0
        %430 = vmatpush.msra.mxu0 0.0
        %431 = vmatpush.msra.mxu0 0.0
        %432 = vmatpush.msra.mxu0 0.0
        %433 = vmatpush.msra.mxu0 0.0
        %434 = vmatpush.msra.mxu0 0.0
        %435 = vmatpush.msra.mxu0 0.0
        %436 = vmatpush.msra.mxu0 0.0
        %437 = vmatpush.msra.mxu0 0.0
        %438 = vmatpush.msra.mxu0 0.0
        %439 = vmatpush.msra.mxu0 0.0
        %440 = vmatpush.msra.mxu0 0.0
        %441 = vmatpush.msra.mxu0 0.0
        %442 = vmatpush.msra.mxu0 0.0
        %443 = vmatpush.msra.mxu0 %v420
        %444 = vmatmul.f32.gmra.mxu0 %v417
        %v445 = vpop.f32.mrf.mxu0
        %v446 = vadd.f32 %v374, %v445
        %447 = vdwg.mxu0
        %448 = vmatpush.msra.mxu0 0.0
        %449 = vmatpush.msra.mxu0 0.0
        %450 = vmatpush.msra.mxu0 0.0
        %451 = vmatpush.msra.mxu0 0.0
        %452 = vmatpush.msra.mxu0 0.0
        %453 = vmatpush.msra.mxu0 0.0
        %454 = vmatpush.msra.mxu0 0.0
        %455 = vmatpush.msra.mxu0 0.0
        %456 = vmatpush.msra.mxu0 0.0
        %457 = vmatpush.msra.mxu0 0.0
        %458 = vmatpush.msra.mxu0 0.0
        %459 = vmatpush.msra.mxu0 0.0
        %460 = vmatpush.msra.mxu0 0.0
        %461 = vmatpush.msra.mxu0 0.0
        %462 = vmatpush.msra.mxu0 0.0
        %463 = vmatpush.msra.mxu0 %v423
        %464 = vmatmul.f32.gmra.mxu0 %v417
        %v465 = vpop.f32.mrf.mxu0
        %v466 = vadd.f32 %v394, %v465
        %467 = vdwg.mxu0
        %468 = vmatpush.msra.mxu0 0.0
        %469 = vmatpush.msra.mxu0 0.0
        %470 = vmatpush.msra.mxu0 0.0
        %471 = vmatpush.msra.mxu0 0.0
        %472 = vmatpush.msra.mxu0 0.0
        %473 = vmatpush.msra.mxu0 0.0
        %474 = vmatpush.msra.mxu0 0.0
        %475 = vmatpush.msra.mxu0 0.0
        %476 = vmatpush.msra.mxu0 0.0
        %477 = vmatpush.msra.mxu0 0.0
        %478 = vmatpush.msra.mxu0 0.0
        %479 = vmatpush.msra.mxu0 0.0
        %480 = vmatpush.msra.mxu0 0.0
        %481 = vmatpush.msra.mxu0 0.0
        %482 = vmatpush.msra.mxu0 0.0
        %483 = vmatpush.msra.mxu0 %v426
        %484 = vmatmul.f32.gmra.mxu0 %v417
        %v485 = vpop.f32.mrf.mxu0
        %v486 = vadd.f32 %v414, %v485
        %487 = vdwg.mxu0
        %s488 = scalar_lea.vmem %s1, 16
        %v489 = vld [vmem:[%s488] sm:$0xff]
        %490 = vst [vmem:[#allocation1] ss:$2 sm:$0xff] %v295
        %s491 = scalar_lea.vmem [#allocation1], 16
        %492 = vst [vmem:[%s491] ss:$2 sm:$0xff] %v296
        %v493 = vld.sshfl [vmem:[#allocation1] sm:$0xff pattern:$0x75316420]
        %v494 = vld.sshfl [vmem:[#allocation1 + $0x8] sm:$0xff pattern:$0x75316420]
        %v495 = vld.sshfl [vmem:[#allocation1 + $0x10] sm:$0xff pattern:$0x75316420]
        %499 = vrot.lane.b32.xlu0 %v493, 17
        %v500 = vpop.permute.xlu0 %499
        %501 = vrot.lane.b32.xlu0 %v494, 17
        %v502 = vpop.permute.xlu0 %501
        %503 = vrot.lane.b32.xlu0 %v495, 17
        %v504 = vpop.permute.xlu0 %503
        %vm505 = vcmp.lt.s32.totalorder %v316, 17
        %v506 = vsel %vm505, %v502, %v504
        %v507 = vsel %vm505, %v500, %v502
        %v508 = vsel %vm505, %v504, %v500
        %v510 = vsel %vm342, %v489, 0
        %v513 = vsel %vm346, %v508, 0
        %v516 = vsel %vm346, %v507, 0
        %v519 = vsel %vm346, %v506, 0
        %521 = vmatpush.msra.mxu0 0.0
        %522 = vmatpush.msra.mxu0 0.0
        %523 = vmatpush.msra.mxu0 0.0
        %524 = vmatpush.msra.mxu0 0.0
        %525 = vmatpush.msra.mxu0 0.0
        %526 = vmatpush.msra.mxu0 0.0
        %527 = vmatpush.msra.mxu0 0.0
        %528 = vmatpush.msra.mxu0 0.0
        %529 = vmatpush.msra.mxu0 0.0
        %530 = vmatpush.msra.mxu0 0.0
        %531 = vmatpush.msra.mxu0 0.0
        %532 = vmatpush.msra.mxu0 0.0
        %533 = vmatpush.msra.mxu0 0.0
        %534 = vmatpush.msra.mxu0 0.0
        %535 = vmatpush.msra.mxu0 0.0
        %536 = vmatpush.msra.mxu0 %v513
        %537 = vmatmul.f32.gmra.mxu0 %v510
        %v538 = vpop.f32.mrf.mxu0
        %v539 = vadd.f32 0.0, %v538
        %540 = vdwg.mxu0
        %541 = vmatpush.msra.mxu0 0.0
        %542 = vmatpush.msra.mxu0 0.0
        %543 = vmatpush.msra.mxu0 0.0
        %544 = vmatpush.msra.mxu0 0.0
        %545 = vmatpush.msra.mxu0 0.0
        %546 = vmatpush.msra.mxu0 0.0
        %547 = vmatpush.msra.mxu0 0.0
        %548 = vmatpush.msra.mxu0 0.0
        %549 = vmatpush.msra.mxu0 0.0
        %550 = vmatpush.msra.mxu0 0.0
        %551 = vmatpush.msra.mxu0 0.0
        %552 = vmatpush.msra.mxu0 0.0
        %553 = vmatpush.msra.mxu0 0.0
        %554 = vmatpush.msra.mxu0 0.0
        %555 = vmatpush.msra.mxu0 0.0
        %556 = vmatpush.msra.mxu0 %v516
        %557 = vmatmul.f32.gmra.mxu0 %v510
        %v558 = vpop.f32.mrf.mxu0
        %v559 = vadd.f32 0.0, %v558
        %560 = vdwg.mxu0
        %561 = vmatpush.msra.mxu0 0.0
        %562 = vmatpush.msra.mxu0 0.0
        %563 = vmatpush.msra.mxu0 0.0
        %564 = vmatpush.msra.mxu0 0.0
        %565 = vmatpush.msra.mxu0 0.0
        %566 = vmatpush.msra.mxu0 0.0
        %567 = vmatpush.msra.mxu0 0.0
        %568 = vmatpush.msra.mxu0 0.0
        %569 = vmatpush.msra.mxu0 0.0
        %570 = vmatpush.msra.mxu0 0.0
        %571 = vmatpush.msra.mxu0 0.0
        %572 = vmatpush.msra.mxu0 0.0
        %573 = vmatpush.msra.mxu0 0.0
        %574 = vmatpush.msra.mxu0 0.0
        %575 = vmatpush.msra.mxu0 0.0
        %576 = vmatpush.msra.mxu0 %v519
        %577 = vmatmul.f32.gmra.mxu0 %v510
        %v578 = vpop.f32.mrf.mxu0
        %v579 = vadd.f32 0.0, %v578
        %580 = vdwg.mxu0
        %v581 = vadd.f32 %v446, %v539
        %v582 = vadd.f32 %v466, %v559
        %v583 = vadd.f32 %v486, %v579
        %s584 = scalar_lea.vmem %s1, 24
        %v585 = vld [vmem:[%s584] sm:$0xff]
        %586 = vst [vmem:[#allocation1] ss:$2 sm:$0xff] %v295
        %s587 = scalar_lea.vmem [#allocation1], 16
        %588 = vst [vmem:[%s587] ss:$2 sm:$0xff] %v296
        %v589 = vld.sshfl [vmem:[#allocation1] sm:$0xff pattern:$0x75316420]
        %v590 = vld.sshfl [vmem:[#allocation1 + $0x8] sm:$0xff pattern:$0x75316420]
        %v591 = vld.sshfl [vmem:[#allocation1 + $0x10] sm:$0xff pattern:$0x75316420]
        %595 = vrot.lane.b32.xlu0 %v589, 1
        %v596 = vpop.permute.xlu0 %595
        %597 = vrot.lane.b32.xlu0 %v590, 1
        %v598 = vpop.permute.xlu0 %597
        %599 = vrot.lane.b32.xlu0 %v591, 1
        %v600 = vpop.permute.xlu0 %599
        %vm601 = vcmp.lt.s32.totalorder %v316, 1
        %v602 = vsel %vm601, %v598, %v600
        %v603 = vsel %vm601, %v596, %v598
        %v604 = vsel %vm601, %v600, %v596
        %v606 = vsel %vm342, %v585, 0
        %v609 = vsel %vm346, %v604, 0
        %v612 = vsel %vm346, %v603, 0
        %v615 = vsel %vm346, %v602, 0
        %617 = vmatpush.msra.mxu0 0.0
        %618 = vmatpush.msra.mxu0 0.0
        %619 = vmatpush.msra.mxu0 0.0
        %620 = vmatpush.msra.mxu0 0.0
        %621 = vmatpush.msra.mxu0 0.0
        %622 = vmatpush.msra.mxu0 0.0
        %623 = vmatpush.msra.mxu0 0.0
        %624 = vmatpush.msra.mxu0 0.0
        %625 = vmatpush.msra.mxu0 0.0
        %626 = vmatpush.msra.mxu0 0.0
        %627 = vmatpush.msra.mxu0 0.0
        %628 = vmatpush.msra.mxu0 0.0
        %629 = vmatpush.msra.mxu0 0.0
        %630 = vmatpush.msra.mxu0 0.0
        %631 = vmatpush.msra.mxu0 0.0
        %632 = vmatpush.msra.mxu0 %v609
        %633 = vmatmul.f32.gmra.mxu0 %v606
        %v634 = vpop.f32.mrf.mxu0
        %v635 = vadd.f32 0.0, %v634
        %636 = vdwg.mxu0
        %637 = vmatpush.msra.mxu0 0.0
        %638 = vmatpush.msra.mxu0 0.0
        %639 = vmatpush.msra.mxu0 0.0
        %640 = vmatpush.msra.mxu0 0.0
        %641 = vmatpush.msra.mxu0 0.0
        %642 = vmatpush.msra.mxu0 0.0
        %643 = vmatpush.msra.mxu0 0.0
        %644 = vmatpush.msra.mxu0 0.0
        %645 = vmatpush.msra.mxu0 0.0
        %646 = vmatpush.msra.mxu0 0.0
        %647 = vmatpush.msra.mxu0 0.0
        %648 = vmatpush.msra.mxu0 0.0
        %649 = vmatpush.msra.mxu0 0.0
        %650 = vmatpush.msra.mxu0 0.0
        %651 = vmatpush.msra.mxu0 0.0
        %652 = vmatpush.msra.mxu0 %v612
        %653 = vmatmul.f32.gmra.mxu0 %v606
        %v654 = vpop.f32.mrf.mxu0
        %v655 = vadd.f32 0.0, %v654
        %656 = vdwg.mxu0
        %657 = vmatpush.msra.mxu0 0.0
        %658 = vmatpush.msra.mxu0 0.0
        %659 = vmatpush.msra.mxu0 0.0
        %660 = vmatpush.msra.mxu0 0.0
        %661 = vmatpush.msra.mxu0 0.0
        %662 = vmatpush.msra.mxu0 0.0
        %663 = vmatpush.msra.mxu0 0.0
        %664 = vmatpush.msra.mxu0 0.0
        %665 = vmatpush.msra.mxu0 0.0
        %666 = vmatpush.msra.mxu0 0.0
        %667 = vmatpush.msra.mxu0 0.0
        %668 = vmatpush.msra.mxu0 0.0
        %669 = vmatpush.msra.mxu0 0.0
        %670 = vmatpush.msra.mxu0 0.0
        %671 = vmatpush.msra.mxu0 0.0
        %672 = vmatpush.msra.mxu0 %v615
        %673 = vmatmul.f32.gmra.mxu0 %v606
        %v674 = vpop.f32.mrf.mxu0
        %v675 = vadd.f32 0.0, %v674
        %676 = vdwg.mxu0
        %v677 = vadd.f32 %v581, %v635
        %v678 = vadd.f32 %v582, %v655
        %v679 = vadd.f32 %v583, %v675
        %s680 = scalar_lea.vmem %s1, 32
        %v681 = vld [vmem:[%s680] sm:$0xff]
        %682 = vst [vmem:[#allocation1] ss:$2 sm:$0xff] %v295
        %s683 = scalar_lea.vmem [#allocation1], 16
        %684 = vst [vmem:[%s683] ss:$2 sm:$0xff] %v296
        %v685 = vld.sshfl [vmem:[#allocation1] sm:$0xff pattern:$0x75316420]
        %v686 = vld.sshfl [vmem:[#allocation1 + $0x8] sm:$0xff pattern:$0x75316420]
        %v687 = vld.sshfl [vmem:[#allocation1 + $0x10] sm:$0xff pattern:$0x75316420]
        %v689 = vsel %vm342, %v681, 0
        %v691 = vsel %vm346, %v685, 0
        %v693 = vsel %vm346, %v686, 0
        %v695 = vsel %vm346, %v687, 0
        %697 = vmatpush.msra.mxu0 0.0
        %698 = vmatpush.msra.mxu0 0.0
        %699 = vmatpush.msra.mxu0 0.0
        %700 = vmatpush.msra.mxu0 0.0
        %701 = vmatpush.msra.mxu0 0.0
        %702 = vmatpush.msra.mxu0 0.0
        %703 = vmatpush.msra.mxu0 0.0
        %704 = vmatpush.msra.mxu0 0.0
        %705 = vmatpush.msra.mxu0 0.0
        %706 = vmatpush.msra.mxu0 0.0
        %707 = vmatpush.msra.mxu0 0.0
        %708 = vmatpush.msra.mxu0 0.0
        %709 = vmatpush.msra.mxu0 0.0
        %710 = vmatpush.msra.mxu0 0.0
        %711 = vmatpush.msra.mxu0 0.0
        %712 = vmatpush.msra.mxu0 %v691
        %713 = vmatmul.f32.gmra.mxu0 %v689
        %v714 = vpop.f32.mrf.mxu0
        %v715 = vadd.f32 0.0, %v714
        %716 = vdwg.mxu0
        %717 = vmatpush.msra.mxu0 0.0
        %718 = vmatpush.msra.mxu0 0.0
        %719 = vmatpush.msra.mxu0 0.0
        %720 = vmatpush.msra.mxu0 0.0
        %721 = vmatpush.msra.mxu0 0.0
        %722 = vmatpush.msra.mxu0 0.0
        %723 = vmatpush.msra.mxu0 0.0
        %724 = vmatpush.msra.mxu0 0.0
        %725 = vmatpush.msra.mxu0 0.0
        %726 = vmatpush.msra.mxu0 0.0
        %727 = vmatpush.msra.mxu0 0.0
        %728 = vmatpush.msra.mxu0 0.0
        %729 = vmatpush.msra.mxu0 0.0
        %730 = vmatpush.msra.mxu0 0.0
        %731 = vmatpush.msra.mxu0 0.0
        %732 = vmatpush.msra.mxu0 %v693
        %733 = vmatmul.f32.gmra.mxu0 %v689
        %v734 = vpop.f32.mrf.mxu0
        %v735 = vadd.f32 0.0, %v734
        %736 = vdwg.mxu0
        %737 = vmatpush.msra.mxu0 0.0
        %738 = vmatpush.msra.mxu0 0.0
        %739 = vmatpush.msra.mxu0 0.0
        %740 = vmatpush.msra.mxu0 0.0
        %741 = vmatpush.msra.mxu0 0.0
        %742 = vmatpush.msra.mxu0 0.0
        %743 = vmatpush.msra.mxu0 0.0
        %744 = vmatpush.msra.mxu0 0.0
        %745 = vmatpush.msra.mxu0 0.0
        %746 = vmatpush.msra.mxu0 0.0
        %747 = vmatpush.msra.mxu0 0.0
        %748 = vmatpush.msra.mxu0 0.0
        %749 = vmatpush.msra.mxu0 0.0
        %750 = vmatpush.msra.mxu0 0.0
        %751 = vmatpush.msra.mxu0 0.0
        %752 = vmatpush.msra.mxu0 %v695
        %753 = vmatmul.f32.gmra.mxu0 %v689
        %v754 = vpop.f32.mrf.mxu0
        %v755 = vadd.f32 0.0, %v754
        %756 = vdwg.mxu0
        %v757 = vadd.f32 %v677, %v715
        %v758 = vadd.f32 %v678, %v735
        %v759 = vadd.f32 %v679, %v755
        %s760 = scalar_lea.vmem %s1, 40
        %v761 = vld [vmem:[%s760] sm:$0xff]
        %762 = vst [vmem:[#allocation1] ss:$2 sm:$0xff] %v295
        %s763 = scalar_lea.vmem [#allocation1], 16
        %764 = vst [vmem:[%s763] ss:$2 sm:$0xff] %v296
        %v765 = vld.sshfl [vmem:[#allocation1] sm:$0xff pattern:$0x75316420]
        %v766 = vld.sshfl [vmem:[#allocation1 + $0x8] sm:$0xff pattern:$0x75316420]
        %v767 = vld.sshfl [vmem:[#allocation1 + $0x10] sm:$0xff pattern:$0x75316420]
        %771 = vrot.lane.b32.xlu0 %v765, 127
        %v772 = vpop.permute.xlu0 %771
        %773 = vrot.lane.b32.xlu0 %v766, 127
        %v774 = vpop.permute.xlu0 %773
        %775 = vrot.lane.b32.xlu0 %v767, 127
        %v776 = vpop.permute.xlu0 %775
        %vm777 = vcmp.lt.s32.totalorder %v316, 127
        %v778 = vsel %vm777, %v774, %v776
        %v779 = vsel %vm777, %v772, %v774
        %v780 = vsel %vm777, %v776, %v772
        %v782 = vsel %vm342, %v761, 0
        %v785 = vsel %vm346, %v779, 0
        %v788 = vsel %vm346, %v778, 0
        %v791 = vsel %vm346, %v780, 0
        %793 = vmatpush.msra.mxu0 0.0
        %794 = vmatpush.msra.mxu0 0.0
        %795 = vmatpush.msra.mxu0 0.0
        %796 = vmatpush.msra.mxu0 0.0
        %797 = vmatpush.msra.mxu0 0.0
        %798 = vmatpush.msra.mxu0 0.0
        %799 = vmatpush.msra.mxu0 0.0
        %800 = vmatpush.msra.mxu0 0.0
        %801 = vmatpush.msra.mxu0 0.0
        %802 = vmatpush.msra.mxu0 0.0
        %803 = vmatpush.msra.mxu0 0.0
        %804 = vmatpush.msra.mxu0 0.0
        %805 = vmatpush.msra.mxu0 0.0
        %806 = vmatpush.msra.mxu0 0.0
        %807 = vmatpush.msra.mxu0 0.0
        %808 = vmatpush.msra.mxu0 %v785
        %809 = vmatmul.f32.gmra.mxu0 %v782
        %v810 = vpop.f32.mrf.mxu0
        %v811 = vadd.f32 0.0, %v810
        %812 = vdwg.mxu0
        %813 = vmatpush.msra.mxu0 0.0
        %814 = vmatpush.msra.mxu0 0.0
        %815 = vmatpush.msra.mxu0 0.0
        %816 = vmatpush.msra.mxu0 0.0
        %817 = vmatpush.msra.mxu0 0.0
        %818 = vmatpush.msra.mxu0 0.0
        %819 = vmatpush.msra.mxu0 0.0
        %820 = vmatpush.msra.mxu0 0.0
        %821 = vmatpush.msra.mxu0 0.0
        %822 = vmatpush.msra.mxu0 0.0
        %823 = vmatpush.msra.mxu0 0.0
        %824 = vmatpush.msra.mxu0 0.0
        %825 = vmatpush.msra.mxu0 0.0
        %826 = vmatpush.msra.mxu0 0.0
        %827 = vmatpush.msra.mxu0 0.0
        %828 = vmatpush.msra.mxu0 %v788
        %829 = vmatmul.f32.gmra.mxu0 %v782
        %v830 = vpop.f32.mrf.mxu0
        %v831 = vadd.f32 0.0, %v830
        %832 = vdwg.mxu0
        %833 = vmatpush.msra.mxu0 0.0
        %834 = vmatpush.msra.mxu0 0.0
        %835 = vmatpush.msra.mxu0 0.0
        %836 = vmatpush.msra.mxu0 0.0
        %837 = vmatpush.msra.mxu0 0.0
        %838 = vmatpush.msra.mxu0 0.0
        %839 = vmatpush.msra.mxu0 0.0
        %840 = vmatpush.msra.mxu0 0.0
        %841 = vmatpush.msra.mxu0 0.0
        %842 = vmatpush.msra.mxu0 0.0
        %843 = vmatpush.msra.mxu0 0.0
        %844 = vmatpush.msra.mxu0 0.0
        %845 = vmatpush.msra.mxu0 0.0
        %846 = vmatpush.msra.mxu0 0.0
        %847 = vmatpush.msra.mxu0 0.0
        %848 = vmatpush.msra.mxu0 %v791
        %849 = vmatmul.f32.gmra.mxu0 %v782
        %v850 = vpop.f32.mrf.mxu0
        %v851 = vadd.f32 0.0, %v850
        %852 = vdwg.mxu0
        %v853 = vadd.f32 %v757, %v811
        %v854 = vadd.f32 %v758, %v831
        %v855 = vadd.f32 %v759, %v851
        %s856 = scalar_lea.vmem %s1, 48
        %v857 = vld [vmem:[%s856] sm:$0xff]
        %858 = vst [vmem:[#allocation1] ss:$2 sm:$0xff] %v295
        %s859 = scalar_lea.vmem [#allocation1], 16
        %860 = vst [vmem:[%s859] ss:$2 sm:$0xff] %v296
        %v861 = vld.sshfl [vmem:[#allocation1] sm:$0xff pattern:$0x75316420]
        %v862 = vld.sshfl [vmem:[#allocation1 + $0x8] sm:$0xff pattern:$0x75316420]
        %v863 = vld.sshfl [vmem:[#allocation1 + $0x10] sm:$0xff pattern:$0x75316420]
        %867 = vrot.lane.b32.xlu0 %v861, 111
        %v868 = vpop.permute.xlu0 %867
        %869 = vrot.lane.b32.xlu0 %v862, 111
        %v870 = vpop.permute.xlu0 %869
        %871 = vrot.lane.b32.xlu0 %v863, 111
        %v872 = vpop.permute.xlu0 %871
        %vm873 = vcmp.lt.s32.totalorder %v316, 111
        %v874 = vsel %vm873, %v870, %v872
        %v875 = vsel %vm873, %v868, %v870
        %v876 = vsel %vm873, %v872, %v868
        %v878 = vsel %vm342, %v857, 0
        %v881 = vsel %vm346, %v875, 0
        %v884 = vsel %vm346, %v874, 0
        %v887 = vsel %vm346, %v876, 0
        %889 = vmatpush.msra.mxu0 0.0
        %890 = vmatpush.msra.mxu0 0.0
        %891 = vmatpush.msra.mxu0 0.0
        %892 = vmatpush.msra.mxu0 0.0
        %893 = vmatpush.msra.mxu0 0.0
        %894 = vmatpush.msra.mxu0 0.0
        %895 = vmatpush.msra.mxu0 0.0
        %896 = vmatpush.msra.mxu0 0.0
        %897 = vmatpush.msra.mxu0 0.0
        %898 = vmatpush.msra.mxu0 0.0
        %899 = vmatpush.msra.mxu0 0.0
        %900 = vmatpush.msra.mxu0 0.0
        %901 = vmatpush.msra.mxu0 0.0
        %902 = vmatpush.msra.mxu0 0.0
        %903 = vmatpush.msra.mxu0 0.0
        %904 = vmatpush.msra.mxu0 %v881
        %905 = vmatmul.f32.gmra.mxu0 %v878
        %v906 = vpop.f32.mrf.mxu0
        %v907 = vadd.f32 0.0, %v906
        %908 = vdwg.mxu0
        %909 = vmatpush.msra.mxu0 0.0
        %910 = vmatpush.msra.mxu0 0.0
        %911 = vmatpush.msra.mxu0 0.0
        %912 = vmatpush.msra.mxu0 0.0
        %913 = vmatpush.msra.mxu0 0.0
        %914 = vmatpush.msra.mxu0 0.0
        %915 = vmatpush.msra.mxu0 0.0
        %916 = vmatpush.msra.mxu0 0.0
        %917 = vmatpush.msra.mxu0 0.0
        %918 = vmatpush.msra.mxu0 0.0
        %919 = vmatpush.msra.mxu0 0.0
        %920 = vmatpush.msra.mxu0 0.0
        %921 = vmatpush.msra.mxu0 0.0
        %922 = vmatpush.msra.mxu0 0.0
        %923 = vmatpush.msra.mxu0 0.0
        %924 = vmatpush.msra.mxu0 %v884
        %925 = vmatmul.f32.gmra.mxu0 %v878
        %v926 = vpop.f32.mrf.mxu0
        %v927 = vadd.f32 0.0, %v926
        %928 = vdwg.mxu0
        %929 = vmatpush.msra.mxu0 0.0
        %930 = vmatpush.msra.mxu0 0.0
        %931 = vmatpush.msra.mxu0 0.0
        %932 = vmatpush.msra.mxu0 0.0
        %933 = vmatpush.msra.mxu0 0.0
        %934 = vmatpush.msra.mxu0 0.0
        %935 = vmatpush.msra.mxu0 0.0
        %936 = vmatpush.msra.mxu0 0.0
        %937 = vmatpush.msra.mxu0 0.0
        %938 = vmatpush.msra.mxu0 0.0
        %939 = vmatpush.msra.mxu0 0.0
        %940 = vmatpush.msra.mxu0 0.0
        %941 = vmatpush.msra.mxu0 0.0
        %942 = vmatpush.msra.mxu0 0.0
        %943 = vmatpush.msra.mxu0 0.0
        %944 = vmatpush.msra.mxu0 %v887
        %945 = vmatmul.f32.gmra.mxu0 %v878
        %v946 = vpop.f32.mrf.mxu0
        %v947 = vadd.f32 0.0, %v946
        %948 = vdwg.mxu0
        %v949 = vadd.f32 %v853, %v907
        %v950 = vadd.f32 %v854, %v927
        %v951 = vadd.f32 %v855, %v947
        %s952 = scalar_lea.vmem %s1, 56
        %v953 = vld [vmem:[%s952] sm:$0xff]
        %954 = vst [vmem:[#allocation1] ss:$2 sm:$0xff] %v295
        %s955 = scalar_lea.vmem [#allocation1], 16
        %956 = vst [vmem:[%s955] ss:$2 sm:$0xff] %v296
        %v957 = vld.sshfl [vmem:[#allocation1] sm:$0xff pattern:$0x75316420]
        %v958 = vld.sshfl [vmem:[#allocation1 + $0x8] sm:$0xff pattern:$0x75316420]
        %v959 = vld.sshfl [vmem:[#allocation1 + $0x10] sm:$0xff pattern:$0x75316420]
        %963 = vrot.lane.b32.xlu0 %v957, 110
        %v964 = vpop.permute.xlu0 %963
        %965 = vrot.lane.b32.xlu0 %v958, 110
        %v966 = vpop.permute.xlu0 %965
        %967 = vrot.lane.b32.xlu0 %v959, 110
        %v968 = vpop.permute.xlu0 %967
        %vm969 = vcmp.lt.s32.totalorder %v316, 110
        %v970 = vsel %vm969, %v966, %v968
        %v971 = vsel %vm969, %v964, %v966
        %v972 = vsel %vm969, %v968, %v964
        %v974 = vsel %vm342, %v953, 0
        %v977 = vsel %vm346, %v971, 0
        %v980 = vsel %vm346, %v970, 0
        %v983 = vsel %vm346, %v972, 0
        %985 = vmatpush.msra.mxu0 0.0
        %986 = vmatpush.msra.mxu0 0.0
        %987 = vmatpush.msra.mxu0 0.0
        %988 = vmatpush.msra.mxu0 0.0
        %989 = vmatpush.msra.mxu0 0.0
        %990 = vmatpush.msra.mxu0 0.0
        %991 = vmatpush.msra.mxu0 0.0
        %992 = vmatpush.msra.mxu0 0.0
        %993 = vmatpush.msra.mxu0 0.0
        %994 = vmatpush.msra.mxu0 0.0
        %995 = vmatpush.msra.mxu0 0.0
        %996 = vmatpush.msra.mxu0 0.0
        %997 = vmatpush.msra.mxu0 0.0
        %998 = vmatpush.msra.mxu0 0.0
        %999 = vmatpush.msra.mxu0 0.0
        %1000 = vmatpush.msra.mxu0 %v977
        %1001 = vmatmul.f32.gmra.mxu0 %v974
        %v1002 = vpop.f32.mrf.mxu0
        %v1003 = vadd.f32 0.0, %v1002
        %1004 = vdwg.mxu0
        %1005 = vmatpush.msra.mxu0 0.0
        %1006 = vmatpush.msra.mxu0 0.0
        %1007 = vmatpush.msra.mxu0 0.0
        %1008 = vmatpush.msra.mxu0 0.0
        %1009 = vmatpush.msra.mxu0 0.0
        %1010 = vmatpush.msra.mxu0 0.0
        %1011 = vmatpush.msra.mxu0 0.0
        %1012 = vmatpush.msra.mxu0 0.0
        %1013 = vmatpush.msra.mxu0 0.0
        %1014 = vmatpush.msra.mxu0 0.0
        %1015 = vmatpush.msra.mxu0 0.0
        %1016 = vmatpush.msra.mxu0 0.0
        %1017 = vmatpush.msra.mxu0 0.0
        %1018 = vmatpush.msra.mxu0 0.0
        %1019 = vmatpush.msra.mxu0 0.0
        %1020 = vmatpush.msra.mxu0 %v980
        %1021 = vmatmul.f32.gmra.mxu0 %v974
        %v1022 = vpop.f32.mrf.mxu0
        %v1023 = vadd.f32 0.0, %v1022
        %1024 = vdwg.mxu0
        %1025 = vmatpush.msra.mxu0 0.0
        %1026 = vmatpush.msra.mxu0 0.0
        %1027 = vmatpush.msra.mxu0 0.0
        %1028 = vmatpush.msra.mxu0 0.0
        %1029 = vmatpush.msra.mxu0 0.0
        %1030 = vmatpush.msra.mxu0 0.0
        %1031 = vmatpush.msra.mxu0 0.0
        %1032 = vmatpush.msra.mxu0 0.0
        %1033 = vmatpush.msra.mxu0 0.0
        %1034 = vmatpush.msra.mxu0 0.0
        %1035 = vmatpush.msra.mxu0 0.0
        %1036 = vmatpush.msra.mxu0 0.0
        %1037 = vmatpush.msra.mxu0 0.0
        %1038 = vmatpush.msra.mxu0 0.0
        %1039 = vmatpush.msra.mxu0 0.0
        %1040 = vmatpush.msra.mxu0 %v983
        %1041 = vmatmul.f32.gmra.mxu0 %v974
        %v1042 = vpop.f32.mrf.mxu0
        %v1043 = vadd.f32 0.0, %v1042
        %1044 = vdwg.mxu0
        %v1045 = vadd.f32 %v949, %v1003
        %v1046 = vadd.f32 %v950, %v1023
        %v1047 = vadd.f32 %v951, %v1043
        %s1048 = scalar_lea.vmem %s1, 64
        %v1049 = vld [vmem:[%s1048] sm:$0xff]
        %1050 = vst [vmem:[#allocation1] ss:$2 sm:$0xff] %v295
        %s1051 = scalar_lea.vmem [#allocation1], 16
        %1052 = vst [vmem:[%s1051] ss:$2 sm:$0xff] %v296
        %v1053 = vld.sshfl [vmem:[#allocation1] sm:$0xff pattern:$0x75316420]
        %v1054 = vld.sshfl [vmem:[#allocation1 + $0x8] sm:$0xff pattern:$0x75316420]
        %v1055 = vld.sshfl [vmem:[#allocation1 + $0x10] sm:$0xff pattern:$0x75316420]
        %1059 = vrot.lane.b32.xlu0 %v1053, 109
        %v1060 = vpop.permute.xlu0 %1059
        %1061 = vrot.lane.b32.xlu0 %v1054, 109
        %v1062 = vpop.permute.xlu0 %1061
        %1063 = vrot.lane.b32.xlu0 %v1055, 109
        %v1064 = vpop.permute.xlu0 %1063
        %vm1065 = vcmp.lt.s32.totalorder %v316, 109
        %v1066 = vsel %vm1065, %v1062, %v1064
        %v1067 = vsel %vm1065, %v1060, %v1062
        %v1068 = vsel %vm1065, %v1064, %v1060
        %v1070 = vsel %vm342, %v1049, 0
        %v1073 = vsel %vm346, %v1067, 0
        %v1076 = vsel %vm346, %v1066, 0
        %v1079 = vsel %vm346, %v1068, 0
        %1081 = vmatpush.msra.mxu0 0.0
        %1082 = vmatpush.msra.mxu0 0.0
        %1083 = vmatpush.msra.mxu0 0.0
        %1084 = vmatpush.msra.mxu0 0.0
        %1085 = vmatpush.msra.mxu0 0.0
        %1086 = vmatpush.msra.mxu0 0.0
        %1087 = vmatpush.msra.mxu0 0.0
        %1088 = vmatpush.msra.mxu0 0.0
        %1089 = vmatpush.msra.mxu0 0.0
        %1090 = vmatpush.msra.mxu0 0.0
        %1091 = vmatpush.msra.mxu0 0.0
        %1092 = vmatpush.msra.mxu0 0.0
        %1093 = vmatpush.msra.mxu0 0.0
        %1094 = vmatpush.msra.mxu0 0.0
        %1095 = vmatpush.msra.mxu0 0.0
        %1096 = vmatpush.msra.mxu0 %v1073
        %1097 = vmatmul.f32.gmra.mxu0 %v1070
        %v1098 = vpop.f32.mrf.mxu0
        %v1099 = vadd.f32 0.0, %v1098
        %1100 = vdwg.mxu0
        %1101 = vmatpush.msra.mxu0 0.0
        %1102 = vmatpush.msra.mxu0 0.0
        %1103 = vmatpush.msra.mxu0 0.0
        %1104 = vmatpush.msra.mxu0 0.0
        %1105 = vmatpush.msra.mxu0 0.0
        %1106 = vmatpush.msra.mxu0 0.0
        %1107 = vmatpush.msra.mxu0 0.0
        %1108 = vmatpush.msra.mxu0 0.0
        %1109 = vmatpush.msra.mxu0 0.0
        %1110 = vmatpush.msra.mxu0 0.0
        %1111 = vmatpush.msra.mxu0 0.0
        %1112 = vmatpush.msra.mxu0 0.0
        %1113 = vmatpush.msra.mxu0 0.0
        %1114 = vmatpush.msra.mxu0 0.0
        %1115 = vmatpush.msra.mxu0 0.0
        %1116 = vmatpush.msra.mxu0 %v1076
        %1117 = vmatmul.f32.gmra.mxu0 %v1070
        %v1118 = vpop.f32.mrf.mxu0
        %v1119 = vadd.f32 0.0, %v1118
        %1120 = vdwg.mxu0
        %1121 = vmatpush.msra.mxu0 0.0
        %1122 = vmatpush.msra.mxu0 0.0
        %1123 = vmatpush.msra.mxu0 0.0
        %1124 = vmatpush.msra.mxu0 0.0
        %1125 = vmatpush.msra.mxu0 0.0
        %1126 = vmatpush.msra.mxu0 0.0
        %1127 = vmatpush.msra.mxu0 0.0
        %1128 = vmatpush.msra.mxu0 0.0
        %1129 = vmatpush.msra.mxu0 0.0
        %1130 = vmatpush.msra.mxu0 0.0
        %1131 = vmatpush.msra.mxu0 0.0
        %1132 = vmatpush.msra.mxu0 0.0
        %1133 = vmatpush.msra.mxu0 0.0
        %1134 = vmatpush.msra.mxu0 0.0
        %1135 = vmatpush.msra.mxu0 0.0
        %1136 = vmatpush.msra.mxu0 %v1079
        %1137 = vmatmul.f32.gmra.mxu0 %v1070
        %v1138 = vpop.f32.mrf.mxu0
        %v1139 = vadd.f32 0.0, %v1138
        %1140 = vdwg.mxu0
        %v1141 = vadd.f32 %v1045, %v1099
        %v1142 = vadd.f32 %v1046, %v1119
        %v1143 = vadd.f32 %v1047, %v1139
        %v1144 = vld [vmem:[%s2] sm:$0xff]
        %1146 = vset.pattern.permute.xlu0 0
        %1147 = vperm.xlu0 %1146, %v1144
        %v1148 = vpop.permute.xlu0 %1147
        %v1150 = vadd.f32 %v1141, %v1148
        %v1151 = vadd.f32 %v1142, %v1148
        %v1152 = vadd.f32 %v1143, %v1148
        %v1153 = vmax.f32 %v1150, 0.0
        %v1154 = vmax.f32 %v1151, 0.0
        %v1155 = vmax.f32 %v1152, 0.0
        %v1157 = vperm.slane %v294, 0
        %v1158 = vperm.slane %v294, 1
        %v1159 = vperm.slane %v294, 2
        %v1163 = vmul.f32 %v1153, %v1157
        %v1164 = vmul.f32 %v1154, %v1158
        %v1165 = vmul.f32 %v1155, %v1159
        %v1166 = vld [vmem:[%s3] sm:$0xff]
        %v1167 = vld [vmem:[%s3 + $0x8] sm:$0xff]
        %1168 = vrot.lane.b32.xlu0 %v1163, 19
        %v1169 = vpop.permute.xlu0 %1168
        %1170 = vrot.lane.b32.xlu0 %v1164, 19
        %v1171 = vpop.permute.xlu0 %1170
        %1172 = vrot.lane.b32.xlu0 %v1165, 19
        %v1173 = vpop.permute.xlu0 %1172
        %v1174 = vsel %vm317, %v1171, %v1173
        %v1175 = vsel %vm317, %v1169, %v1171
        %v1176 = vsel %vm317, %v1173, %v1169
        %s1177 = scalar_lea.vmem %s3, 16
        %v1178 = vld [vmem:[%s1177] sm:$0xff]
        %v1179 = vld [vmem:[%s1177 + $0x8] sm:$0xff]
        %1180 = vrot.lane.b32.xlu0 %v1163, 18
        %v1181 = vpop.permute.xlu0 %1180
        %1182 = vrot.lane.b32.xlu0 %v1164, 18
        %v1183 = vpop.permute.xlu0 %1182
        %1184 = vrot.lane.b32.xlu0 %v1165, 18
        %v1185 = vpop.permute.xlu0 %1184
        %v1186 = vsel %vm338, %v1183, %v1185
        %v1187 = vsel %vm338, %v1181, %v1183
        %v1188 = vsel %vm338, %v1185, %v1181
        %vm1189 = vcmask 64512
        %v1191 = vsel %vm1189, %v1178, 0
        %v1194 = vsel %vm1189, %v1179, 0
        %1196 = vmatpush.msra.mxu0 0.0
        %1197 = vmatpush.msra.mxu0 0.0
        %1198 = vmatpush.msra.mxu0 0.0
        %1199 = vmatpush.msra.mxu0 0.0
        %1200 = vmatpush.msra.mxu0 0.0
        %1201 = vmatpush.msra.mxu0 0.0
        %1202 = vmatpush.msra.mxu0 0.0
        %1203 = vmatpush.msra.mxu0 0.0
        %1204 = vmatpush.msra.mxu0 0.0
        %1205 = vmatpush.msra.mxu0 0.0
        %1206 = vmatpush.msra.mxu0 0.0
        %1207 = vmatpush.msra.mxu0 0.0
        %1208 = vmatpush.msra.mxu0 0.0
        %1209 = vmatpush.msra.mxu0 0.0
        %1210 = vmatpush.msra.mxu0 0.0
        %1211 = vmatpush.msra.mxu0 %v1188
        %1212 = vmatmul.f32.gmra.mxu0 %v1191
        %v1213 = vpop.f32.mrf.mxu0
        %v1214 = vadd.f32 0.0, %v1213
        %1215 = vmatmul.f32.gmra.mxu0 %v1194
        %v1216 = vpop.f32.mrf.mxu0
        %v1217 = vadd.f32 0.0, %v1216
        %1218 = vdwg.mxu0
        %1219 = vmatpush.msra.mxu0 0.0
        %1220 = vmatpush.msra.mxu0 0.0
        %1221 = vmatpush.msra.mxu0 0.0
        %1222 = vmatpush.msra.mxu0 0.0
        %1223 = vmatpush.msra.mxu0 0.0
        %1224 = vmatpush.msra.mxu0 0.0
        %1225 = vmatpush.msra.mxu0 0.0
        %1226 = vmatpush.msra.mxu0 0.0
        %1227 = vmatpush.msra.mxu0 0.0
        %1228 = vmatpush.msra.mxu0 0.0
        %1229 = vmatpush.msra.mxu0 0.0
        %1230 = vmatpush.msra.mxu0 0.0
        %1231 = vmatpush.msra.mxu0 0.0
        %1232 = vmatpush.msra.mxu0 0.0
        %1233 = vmatpush.msra.mxu0 0.0
        %1234 = vmatpush.msra.mxu0 %v1187
        %1235 = vmatmul.f32.gmra.mxu0 %v1191
        %v1236 = vpop.f32.mrf.mxu0
        %v1237 = vadd.f32 0.0, %v1236
        %1238 = vmatmul.f32.gmra.mxu0 %v1194
        %v1239 = vpop.f32.mrf.mxu0
        %v1240 = vadd.f32 0.0, %v1239
        %1241 = vdwg.mxu0
        %1242 = vmatpush.msra.mxu0 0.0
        %1243 = vmatpush.msra.mxu0 0.0
        %1244 = vmatpush.msra.mxu0 0.0
        %1245 = vmatpush.msra.mxu0 0.0
        %1246 = vmatpush.msra.mxu0 0.0
        %1247 = vmatpush.msra.mxu0 0.0
        %1248 = vmatpush.msra.mxu0 0.0
        %1249 = vmatpush.msra.mxu0 0.0
        %1250 = vmatpush.msra.mxu0 0.0
        %1251 = vmatpush.msra.mxu0 0.0
        %1252 = vmatpush.msra.mxu0 0.0
        %1253 = vmatpush.msra.mxu0 0.0
        %1254 = vmatpush.msra.mxu0 0.0
        %1255 = vmatpush.msra.mxu0 0.0
        %1256 = vmatpush.msra.mxu0 0.0
        %1257 = vmatpush.msra.mxu0 %v1186
        %1258 = vmatmul.f32.gmra.mxu0 %v1191
        %v1259 = vpop.f32.mrf.mxu0
        %v1260 = vadd.f32 0.0, %v1259
        %1261 = vmatmul.f32.gmra.mxu0 %v1194
        %v1262 = vpop.f32.mrf.mxu0
        %v1263 = vadd.f32 0.0, %v1262
        %1264 = vdwg.mxu0
        %v1266 = vsel %vm1189, %v1166, 0
        %v1269 = vsel %vm1189, %v1167, 0
        %1271 = vmatpush.msra.mxu0 0.0
        %1272 = vmatpush.msra.mxu0 0.0
        %1273 = vmatpush.msra.mxu0 0.0
        %1274 = vmatpush.msra.mxu0 0.0
        %1275 = vmatpush.msra.mxu0 0.0
        %1276 = vmatpush.msra.mxu0 0.0
        %1277 = vmatpush.msra.mxu0 0.0
        %1278 = vmatpush.msra.mxu0 0.0
        %1279 = vmatpush.msra.mxu0 0.0
        %1280 = vmatpush.msra.mxu0 0.0
        %1281 = vmatpush.msra.mxu0 0.0
        %1282 = vmatpush.msra.mxu0 0.0
        %1283 = vmatpush.msra.mxu0 0.0
        %1284 = vmatpush.msra.mxu0 0.0
        %1285 = vmatpush.msra.mxu0 0.0
        %1286 = vmatpush.msra.mxu0 %v1176
        %1287 = vmatmul.f32.gmra.mxu0 %v1266
        %v1288 = vpop.f32.mrf.mxu0
        %v1289 = vadd.f32 %v1214, %v1288
        %1290 = vmatmul.f32.gmra.mxu0 %v1269
        %v1291 = vpop.f32.mrf.mxu0
        %v1292 = vadd.f32 %v1217, %v1291
        %1293 = vdwg.mxu0
        %1294 = vmatpush.msra.mxu0 0.0
        %1295 = vmatpush.msra.mxu0 0.0
        %1296 = vmatpush.msra.mxu0 0.0
        %1297 = vmatpush.msra.mxu0 0.0
        %1298 = vmatpush.msra.mxu0 0.0
        %1299 = vmatpush.msra.mxu0 0.0
        %1300 = vmatpush.msra.mxu0 0.0
        %1301 = vmatpush.msra.mxu0 0.0
        %1302 = vmatpush.msra.mxu0 0.0
        %1303 = vmatpush.msra.mxu0 0.0
        %1304 = vmatpush.msra.mxu0 0.0
        %1305 = vmatpush.msra.mxu0 0.0
        %1306 = vmatpush.msra.mxu0 0.0
        %1307 = vmatpush.msra.mxu0 0.0
        %1308 = vmatpush.msra.mxu0 0.0
        %1309 = vmatpush.msra.mxu0 %v1175
        %1310 = vmatmul.f32.gmra.mxu0 %v1266
        %v1311 = vpop.f32.mrf.mxu0
        %v1312 = vadd.f32 %v1237, %v1311
        %1313 = vmatmul.f32.gmra.mxu0 %v1269
        %v1314 = vpop.f32.mrf.mxu0
        %v1315 = vadd.f32 %v1240, %v1314
        %1316 = vdwg.mxu0
        %1317 = vmatpush.msra.mxu0 0.0
        %1318 = vmatpush.msra.mxu0 0.0
        %1319 = vmatpush.msra.mxu0 0.0
        %1320 = vmatpush.msra.mxu0 0.0
        %1321 = vmatpush.msra.mxu0 0.0
        %1322 = vmatpush.msra.mxu0 0.0
        %1323 = vmatpush.msra.mxu0 0.0
        %1324 = vmatpush.msra.mxu0 0.0
        %1325 = vmatpush.msra.mxu0 0.0
        %1326 = vmatpush.msra.mxu0 0.0
        %1327 = vmatpush.msra.mxu0 0.0
        %1328 = vmatpush.msra.mxu0 0.0
        %1329 = vmatpush.msra.mxu0 0.0
        %1330 = vmatpush.msra.mxu0 0.0
        %1331 = vmatpush.msra.mxu0 0.0
        %1332 = vmatpush.msra.mxu0 %v1174
        %1333 = vmatmul.f32.gmra.mxu0 %v1266
        %v1334 = vpop.f32.mrf.mxu0
        %v1335 = vadd.f32 %v1260, %v1334
        %1336 = vmatmul.f32.gmra.mxu0 %v1269
        %v1337 = vpop.f32.mrf.mxu0
        %v1338 = vadd.f32 %v1263, %v1337
        %1339 = vdwg.mxu0
        %s1340 = scalar_lea.vmem %s3, 32
        %v1341 = vld [vmem:[%s1340] sm:$0xff]
        %v1342 = vld [vmem:[%s1340 + $0x8] sm:$0xff]
        %1343 = vrot.lane.b32.xlu0 %v1163, 17
        %v1344 = vpop.permute.xlu0 %1343
        %1345 = vrot.lane.b32.xlu0 %v1164, 17
        %v1346 = vpop.permute.xlu0 %1345
        %1347 = vrot.lane.b32.xlu0 %v1165, 17
        %v1348 = vpop.permute.xlu0 %1347
        %v1349 = vsel %vm505, %v1346, %v1348
        %v1350 = vsel %vm505, %v1344, %v1346
        %v1351 = vsel %vm505, %v1348, %v1344
        %v1353 = vsel %vm1189, %v1341, 0
        %v1356 = vsel %vm1189, %v1342, 0
        %1358 = vmatpush.msra.mxu0 0.0
        %1359 = vmatpush.msra.mxu0 0.0
        %1360 = vmatpush.msra.mxu0 0.0
        %1361 = vmatpush.msra.mxu0 0.0
        %1362 = vmatpush.msra.mxu0 0.0
        %1363 = vmatpush.msra.mxu0 0.0
        %1364 = vmatpush.msra.mxu0 0.0
        %1365 = vmatpush.msra.mxu0 0.0
        %1366 = vmatpush.msra.mxu0 0.0
        %1367 = vmatpush.msra.mxu0 0.0
        %1368 = vmatpush.msra.mxu0 0.0
        %1369 = vmatpush.msra.mxu0 0.0
        %1370 = vmatpush.msra.mxu0 0.0
        %1371 = vmatpush.msra.mxu0 0.0
        %1372 = vmatpush.msra.mxu0 0.0
        %1373 = vmatpush.msra.mxu0 %v1351
        %1374 = vmatmul.f32.gmra.mxu0 %v1353
        %v1375 = vpop.f32.mrf.mxu0
        %v1376 = vadd.f32 0.0, %v1375
        %1377 = vmatmul.f32.gmra.mxu0 %v1356
        %v1378 = vpop.f32.mrf.mxu0
        %v1379 = vadd.f32 0.0, %v1378
        %1380 = vdwg.mxu0
        %1381 = vmatpush.msra.mxu0 0.0
        %1382 = vmatpush.msra.mxu0 0.0
        %1383 = vmatpush.msra.mxu0 0.0
        %1384 = vmatpush.msra.mxu0 0.0
        %1385 = vmatpush.msra.mxu0 0.0
        %1386 = vmatpush.msra.mxu0 0.0
        %1387 = vmatpush.msra.mxu0 0.0
        %1388 = vmatpush.msra.mxu0 0.0
        %1389 = vmatpush.msra.mxu0 0.0
        %1390 = vmatpush.msra.mxu0 0.0
        %1391 = vmatpush.msra.mxu0 0.0
        %1392 = vmatpush.msra.mxu0 0.0
        %1393 = vmatpush.msra.mxu0 0.0
        %1394 = vmatpush.msra.mxu0 0.0
        %1395 = vmatpush.msra.mxu0 0.0
        %1396 = vmatpush.msra.mxu0 %v1350
        %1397 = vmatmul.f32.gmra.mxu0 %v1353
        %v1398 = vpop.f32.mrf.mxu0
        %v1399 = vadd.f32 0.0, %v1398
        %1400 = vmatmul.f32.gmra.mxu0 %v1356
        %v1401 = vpop.f32.mrf.mxu0
        %v1402 = vadd.f32 0.0, %v1401
        %1403 = vdwg.mxu0
        %1404 = vmatpush.msra.mxu0 0.0
        %1405 = vmatpush.msra.mxu0 0.0
        %1406 = vmatpush.msra.mxu0 0.0
        %1407 = vmatpush.msra.mxu0 0.0
        %1408 = vmatpush.msra.mxu0 0.0
        %1409 = vmatpush.msra.mxu0 0.0
        %1410 = vmatpush.msra.mxu0 0.0
        %1411 = vmatpush.msra.mxu0 0.0
        %1412 = vmatpush.msra.mxu0 0.0
        %1413 = vmatpush.msra.mxu0 0.0
        %1414 = vmatpush.msra.mxu0 0.0
        %1415 = vmatpush.msra.mxu0 0.0
        %1416 = vmatpush.msra.mxu0 0.0
        %1417 = vmatpush.msra.mxu0 0.0
        %1418 = vmatpush.msra.mxu0 0.0
        %1419 = vmatpush.msra.mxu0 %v1349
        %1420 = vmatmul.f32.gmra.mxu0 %v1353
        %v1421 = vpop.f32.mrf.mxu0
        %v1422 = vadd.f32 0.0, %v1421
        %1423 = vmatmul.f32.gmra.mxu0 %v1356
        %v1424 = vpop.f32.mrf.mxu0
        %v1425 = vadd.f32 0.0, %v1424
        %1426 = vdwg.mxu0
        %v1427 = vadd.f32 %v1289, %v1376
        %v1428 = vadd.f32 %v1312, %v1399
        %v1429 = vadd.f32 %v1335, %v1422
        %v1430 = vadd.f32 %v1292, %v1379
        %v1431 = vadd.f32 %v1315, %v1402
        %v1432 = vadd.f32 %v1338, %v1425
        %s1433 = scalar_lea.vmem %s3, 48
        %v1434 = vld [vmem:[%s1433] sm:$0xff]
        %v1435 = vld [vmem:[%s1433 + $0x8] sm:$0xff]
        %1436 = vrot.lane.b32.xlu0 %v1163, 1
        %v1437 = vpop.permute.xlu0 %1436
        %1438 = vrot.lane.b32.xlu0 %v1164, 1
        %v1439 = vpop.permute.xlu0 %1438
        %1440 = vrot.lane.b32.xlu0 %v1165, 1
        %v1441 = vpop.permute.xlu0 %1440
        %v1442 = vsel %vm601, %v1439, %v1441
        %v1443 = vsel %vm601, %v1437, %v1439
        %v1444 = vsel %vm601, %v1441, %v1437
        %v1446 = vsel %vm1189, %v1434, 0
        %v1449 = vsel %vm1189, %v1435, 0
        %1451 = vmatpush.msra.mxu0 0.0
        %1452 = vmatpush.msra.mxu0 0.0
        %1453 = vmatpush.msra.mxu0 0.0
        %1454 = vmatpush.msra.mxu0 0.0
        %1455 = vmatpush.msra.mxu0 0.0
        %1456 = vmatpush.msra.mxu0 0.0
        %1457 = vmatpush.msra.mxu0 0.0
        %1458 = vmatpush.msra.mxu0 0.0
        %1459 = vmatpush.msra.mxu0 0.0
        %1460 = vmatpush.msra.mxu0 0.0
        %1461 = vmatpush.msra.mxu0 0.0
        %1462 = vmatpush.msra.mxu0 0.0
        %1463 = vmatpush.msra.mxu0 0.0
        %1464 = vmatpush.msra.mxu0 0.0
        %1465 = vmatpush.msra.mxu0 0.0
        %1466 = vmatpush.msra.mxu0 %v1444
        %1467 = vmatmul.f32.gmra.mxu0 %v1446
        %v1468 = vpop.f32.mrf.mxu0
        %v1469 = vadd.f32 0.0, %v1468
        %1470 = vmatmul.f32.gmra.mxu0 %v1449
        %v1471 = vpop.f32.mrf.mxu0
        %v1472 = vadd.f32 0.0, %v1471
        %1473 = vdwg.mxu0
        %1474 = vmatpush.msra.mxu0 0.0
        %1475 = vmatpush.msra.mxu0 0.0
        %1476 = vmatpush.msra.mxu0 0.0
        %1477 = vmatpush.msra.mxu0 0.0
        %1478 = vmatpush.msra.mxu0 0.0
        %1479 = vmatpush.msra.mxu0 0.0
        %1480 = vmatpush.msra.mxu0 0.0
        %1481 = vmatpush.msra.mxu0 0.0
        %1482 = vmatpush.msra.mxu0 0.0
        %1483 = vmatpush.msra.mxu0 0.0
        %1484 = vmatpush.msra.mxu0 0.0
        %1485 = vmatpush.msra.mxu0 0.0
        %1486 = vmatpush.msra.mxu0 0.0
        %1487 = vmatpush.msra.mxu0 0.0
        %1488 = vmatpush.msra.mxu0 0.0
        %1489 = vmatpush.msra.mxu0 %v1443
        %1490 = vmatmul.f32.gmra.mxu0 %v1446
        %v1491 = vpop.f32.mrf.mxu0
        %v1492 = vadd.f32 0.0, %v1491
        %1493 = vmatmul.f32.gmra.mxu0 %v1449
        %v1494 = vpop.f32.mrf.mxu0
        %v1495 = vadd.f32 0.0, %v1494
        %1496 = vdwg.mxu0
        %1497 = vmatpush.msra.mxu0 0.0
        %1498 = vmatpush.msra.mxu0 0.0
        %1499 = vmatpush.msra.mxu0 0.0
        %1500 = vmatpush.msra.mxu0 0.0
        %1501 = vmatpush.msra.mxu0 0.0
        %1502 = vmatpush.msra.mxu0 0.0
        %1503 = vmatpush.msra.mxu0 0.0
        %1504 = vmatpush.msra.mxu0 0.0
        %1505 = vmatpush.msra.mxu0 0.0
        %1506 = vmatpush.msra.mxu0 0.0
        %1507 = vmatpush.msra.mxu0 0.0
        %1508 = vmatpush.msra.mxu0 0.0
        %1509 = vmatpush.msra.mxu0 0.0
        %1510 = vmatpush.msra.mxu0 0.0
        %1511 = vmatpush.msra.mxu0 0.0
        %1512 = vmatpush.msra.mxu0 %v1442
        %1513 = vmatmul.f32.gmra.mxu0 %v1446
        %v1514 = vpop.f32.mrf.mxu0
        %v1515 = vadd.f32 0.0, %v1514
        %1516 = vmatmul.f32.gmra.mxu0 %v1449
        %v1517 = vpop.f32.mrf.mxu0
        %v1518 = vadd.f32 0.0, %v1517
        %1519 = vdwg.mxu0
        %v1520 = vadd.f32 %v1427, %v1469
        %v1521 = vadd.f32 %v1428, %v1492
        %v1522 = vadd.f32 %v1429, %v1515
        %v1523 = vadd.f32 %v1430, %v1472
        %v1524 = vadd.f32 %v1431, %v1495
        %v1525 = vadd.f32 %v1432, %v1518
        %s1526 = scalar_lea.vmem %s3, 64
        %v1527 = vld [vmem:[%s1526] sm:$0xff]
        %v1528 = vld [vmem:[%s1526 + $0x8] sm:$0xff]
        %v1530 = vsel %vm1189, %v1527, 0
        %v1533 = vsel %vm1189, %v1528, 0
        %1535 = vmatpush.msra.mxu0 0.0
        %1536 = vmatpush.msra.mxu0 0.0
        %1537 = vmatpush.msra.mxu0 0.0
        %1538 = vmatpush.msra.mxu0 0.0
        %1539 = vmatpush.msra.mxu0 0.0
        %1540 = vmatpush.msra.mxu0 0.0
        %1541 = vmatpush.msra.mxu0 0.0
        %1542 = vmatpush.msra.mxu0 0.0
        %1543 = vmatpush.msra.mxu0 0.0
        %1544 = vmatpush.msra.mxu0 0.0
        %1545 = vmatpush.msra.mxu0 0.0
        %1546 = vmatpush.msra.mxu0 0.0
        %1547 = vmatpush.msra.mxu0 0.0
        %1548 = vmatpush.msra.mxu0 0.0
        %1549 = vmatpush.msra.mxu0 0.0
        %1550 = vmatpush.msra.mxu0 %v1163
        %1551 = vmatmul.f32.gmra.mxu0 %v1530
        %v1552 = vpop.f32.mrf.mxu0
        %v1553 = vadd.f32 0.0, %v1552
        %1554 = vmatmul.f32.gmra.mxu0 %v1533
        %v1555 = vpop.f32.mrf.mxu0
        %v1556 = vadd.f32 0.0, %v1555
        %1557 = vdwg.mxu0
        %1558 = vmatpush.msra.mxu0 0.0
        %1559 = vmatpush.msra.mxu0 0.0
        %1560 = vmatpush.msra.mxu0 0.0
        %1561 = vmatpush.msra.mxu0 0.0
        %1562 = vmatpush.msra.mxu0 0.0
        %1563 = vmatpush.msra.mxu0 0.0
        %1564 = vmatpush.msra.mxu0 0.0
        %1565 = vmatpush.msra.mxu0 0.0
        %1566 = vmatpush.msra.mxu0 0.0
        %1567 = vmatpush.msra.mxu0 0.0
        %1568 = vmatpush.msra.mxu0 0.0
        %1569 = vmatpush.msra.mxu0 0.0
        %1570 = vmatpush.msra.mxu0 0.0
        %1571 = vmatpush.msra.mxu0 0.0
        %1572 = vmatpush.msra.mxu0 0.0
        %1573 = vmatpush.msra.mxu0 %v1164
        %1574 = vmatmul.f32.gmra.mxu0 %v1530
        %v1575 = vpop.f32.mrf.mxu0
        %v1576 = vadd.f32 0.0, %v1575
        %1577 = vmatmul.f32.gmra.mxu0 %v1533
        %v1578 = vpop.f32.mrf.mxu0
        %v1579 = vadd.f32 0.0, %v1578
        %1580 = vdwg.mxu0
        %1581 = vmatpush.msra.mxu0 0.0
        %1582 = vmatpush.msra.mxu0 0.0
        %1583 = vmatpush.msra.mxu0 0.0
        %1584 = vmatpush.msra.mxu0 0.0
        %1585 = vmatpush.msra.mxu0 0.0
        %1586 = vmatpush.msra.mxu0 0.0
        %1587 = vmatpush.msra.mxu0 0.0
        %1588 = vmatpush.msra.mxu0 0.0
        %1589 = vmatpush.msra.mxu0 0.0
        %1590 = vmatpush.msra.mxu0 0.0
        %1591 = vmatpush.msra.mxu0 0.0
        %1592 = vmatpush.msra.mxu0 0.0
        %1593 = vmatpush.msra.mxu0 0.0
        %1594 = vmatpush.msra.mxu0 0.0
        %1595 = vmatpush.msra.mxu0 0.0
        %1596 = vmatpush.msra.mxu0 %v1165
        %1597 = vmatmul.f32.gmra.mxu0 %v1530
        %v1598 = vpop.f32.mrf.mxu0
        %v1599 = vadd.f32 0.0, %v1598
        %1600 = vmatmul.f32.gmra.mxu0 %v1533
        %v1601 = vpop.f32.mrf.mxu0
        %v1602 = vadd.f32 0.0, %v1601
        %1603 = vdwg.mxu0
        %v1604 = vadd.f32 %v1520, %v1553
        %v1605 = vadd.f32 %v1521, %v1576
        %v1606 = vadd.f32 %v1522, %v1599
        %v1607 = vadd.f32 %v1523, %v1556
        %v1608 = vadd.f32 %v1524, %v1579
        %v1609 = vadd.f32 %v1525, %v1602
        %s1610 = scalar_lea.vmem %s3, 80
        %v1611 = vld [vmem:[%s1610] sm:$0xff]
        %v1612 = vld [vmem:[%s1610 + $0x8] sm:$0xff]
        %1613 = vrot.lane.b32.xlu0 %v1163, 127
        %v1614 = vpop.permute.xlu0 %1613
        %1615 = vrot.lane.b32.xlu0 %v1164, 127
        %v1616 = vpop.permute.xlu0 %1615
        %1617 = vrot.lane.b32.xlu0 %v1165, 127
        %v1618 = vpop.permute.xlu0 %1617
        %v1619 = vsel %vm777, %v1616, %v1618
        %v1620 = vsel %vm777, %v1614, %v1616
        %v1621 = vsel %vm777, %v1618, %v1614
        %v1623 = vsel %vm1189, %v1611, 0
        %v1626 = vsel %vm1189, %v1612, 0
        %1628 = vmatpush.msra.mxu0 0.0
        %1629 = vmatpush.msra.mxu0 0.0
        %1630 = vmatpush.msra.mxu0 0.0
        %1631 = vmatpush.msra.mxu0 0.0
        %1632 = vmatpush.msra.mxu0 0.0
        %1633 = vmatpush.msra.mxu0 0.0
        %1634 = vmatpush.msra.mxu0 0.0
        %1635 = vmatpush.msra.mxu0 0.0
        %1636 = vmatpush.msra.mxu0 0.0
        %1637 = vmatpush.msra.mxu0 0.0
        %1638 = vmatpush.msra.mxu0 0.0
        %1639 = vmatpush.msra.mxu0 0.0
        %1640 = vmatpush.msra.mxu0 0.0
        %1641 = vmatpush.msra.mxu0 0.0
        %1642 = vmatpush.msra.mxu0 0.0
        %1643 = vmatpush.msra.mxu0 %v1620
        %1644 = vmatmul.f32.gmra.mxu0 %v1623
        %v1645 = vpop.f32.mrf.mxu0
        %v1646 = vadd.f32 0.0, %v1645
        %1647 = vmatmul.f32.gmra.mxu0 %v1626
        %v1648 = vpop.f32.mrf.mxu0
        %v1649 = vadd.f32 0.0, %v1648
        %1650 = vdwg.mxu0
        %1651 = vmatpush.msra.mxu0 0.0
        %1652 = vmatpush.msra.mxu0 0.0
        %1653 = vmatpush.msra.mxu0 0.0
        %1654 = vmatpush.msra.mxu0 0.0
        %1655 = vmatpush.msra.mxu0 0.0
        %1656 = vmatpush.msra.mxu0 0.0
        %1657 = vmatpush.msra.mxu0 0.0
        %1658 = vmatpush.msra.mxu0 0.0
        %1659 = vmatpush.msra.mxu0 0.0
        %1660 = vmatpush.msra.mxu0 0.0
        %1661 = vmatpush.msra.mxu0 0.0
        %1662 = vmatpush.msra.mxu0 0.0
        %1663 = vmatpush.msra.mxu0 0.0
        %1664 = vmatpush.msra.mxu0 0.0
        %1665 = vmatpush.msra.mxu0 0.0
        %1666 = vmatpush.msra.mxu0 %v1619
        %1667 = vmatmul.f32.gmra.mxu0 %v1623
        %v1668 = vpop.f32.mrf.mxu0
        %v1669 = vadd.f32 0.0, %v1668
        %1670 = vmatmul.f32.gmra.mxu0 %v1626
        %v1671 = vpop.f32.mrf.mxu0
        %v1672 = vadd.f32 0.0, %v1671
        %1673 = vdwg.mxu0
        %1674 = vmatpush.msra.mxu0 0.0
        %1675 = vmatpush.msra.mxu0 0.0
        %1676 = vmatpush.msra.mxu0 0.0
        %1677 = vmatpush.msra.mxu0 0.0
        %1678 = vmatpush.msra.mxu0 0.0
        %1679 = vmatpush.msra.mxu0 0.0
        %1680 = vmatpush.msra.mxu0 0.0
        %1681 = vmatpush.msra.mxu0 0.0
        %1682 = vmatpush.msra.mxu0 0.0
        %1683 = vmatpush.msra.mxu0 0.0
        %1684 = vmatpush.msra.mxu0 0.0
        %1685 = vmatpush.msra.mxu0 0.0
        %1686 = vmatpush.msra.mxu0 0.0
        %1687 = vmatpush.msra.mxu0 0.0
        %1688 = vmatpush.msra.mxu0 0.0
        %1689 = vmatpush.msra.mxu0 %v1621
        %1690 = vmatmul.f32.gmra.mxu0 %v1623
        %v1691 = vpop.f32.mrf.mxu0
        %v1692 = vadd.f32 0.0, %v1691
        %1693 = vmatmul.f32.gmra.mxu0 %v1626
        %v1694 = vpop.f32.mrf.mxu0
        %v1695 = vadd.f32 0.0, %v1694
        %1696 = vdwg.mxu0
        %v1697 = vadd.f32 %v1604, %v1646
        %v1698 = vadd.f32 %v1605, %v1669
        %v1699 = vadd.f32 %v1606, %v1692
        %v1700 = vadd.f32 %v1607, %v1649
        %v1701 = vadd.f32 %v1608, %v1672
        %v1702 = vadd.f32 %v1609, %v1695
        %s1703 = scalar_lea.vmem %s3, 96
        %v1704 = vld [vmem:[%s1703] sm:$0xff]
        %v1705 = vld [vmem:[%s1703 + $0x8] sm:$0xff]
        %1706 = vrot.lane.b32.xlu0 %v1163, 111
        %v1707 = vpop.permute.xlu0 %1706
        %1708 = vrot.lane.b32.xlu0 %v1164, 111
        %v1709 = vpop.permute.xlu0 %1708
        %1710 = vrot.lane.b32.xlu0 %v1165, 111
        %v1711 = vpop.permute.xlu0 %1710
        %v1712 = vsel %vm873, %v1709, %v1711
        %v1713 = vsel %vm873, %v1707, %v1709
        %v1714 = vsel %vm873, %v1711, %v1707
        %v1716 = vsel %vm1189, %v1704, 0
        %v1719 = vsel %vm1189, %v1705, 0
        %1721 = vmatpush.msra.mxu0 0.0
        %1722 = vmatpush.msra.mxu0 0.0
        %1723 = vmatpush.msra.mxu0 0.0
        %1724 = vmatpush.msra.mxu0 0.0
        %1725 = vmatpush.msra.mxu0 0.0
        %1726 = vmatpush.msra.mxu0 0.0
        %1727 = vmatpush.msra.mxu0 0.0
        %1728 = vmatpush.msra.mxu0 0.0
        %1729 = vmatpush.msra.mxu0 0.0
        %1730 = vmatpush.msra.mxu0 0.0
        %1731 = vmatpush.msra.mxu0 0.0
        %1732 = vmatpush.msra.mxu0 0.0
        %1733 = vmatpush.msra.mxu0 0.0
        %1734 = vmatpush.msra.mxu0 0.0
        %1735 = vmatpush.msra.mxu0 0.0
        %1736 = vmatpush.msra.mxu0 %v1713
        %1737 = vmatmul.f32.gmra.mxu0 %v1716
        %v1738 = vpop.f32.mrf.mxu0
        %v1739 = vadd.f32 0.0, %v1738
        %1740 = vmatmul.f32.gmra.mxu0 %v1719
        %v1741 = vpop.f32.mrf.mxu0
        %v1742 = vadd.f32 0.0, %v1741
        %1743 = vdwg.mxu0
        %1744 = vmatpush.msra.mxu0 0.0
        %1745 = vmatpush.msra.mxu0 0.0
        %1746 = vmatpush.msra.mxu0 0.0
        %1747 = vmatpush.msra.mxu0 0.0
        %1748 = vmatpush.msra.mxu0 0.0
        %1749 = vmatpush.msra.mxu0 0.0
        %1750 = vmatpush.msra.mxu0 0.0
        %1751 = vmatpush.msra.mxu0 0.0
        %1752 = vmatpush.msra.mxu0 0.0
        %1753 = vmatpush.msra.mxu0 0.0
        %1754 = vmatpush.msra.mxu0 0.0
        %1755 = vmatpush.msra.mxu0 0.0
        %1756 = vmatpush.msra.mxu0 0.0
        %1757 = vmatpush.msra.mxu0 0.0
        %1758 = vmatpush.msra.mxu0 0.0
        %1759 = vmatpush.msra.mxu0 %v1712
        %1760 = vmatmul.f32.gmra.mxu0 %v1716
        %v1761 = vpop.f32.mrf.mxu0
        %v1762 = vadd.f32 0.0, %v1761
        %1763 = vmatmul.f32.gmra.mxu0 %v1719
        %v1764 = vpop.f32.mrf.mxu0
        %v1765 = vadd.f32 0.0, %v1764
        %1766 = vdwg.mxu0
        %1767 = vmatpush.msra.mxu0 0.0
        %1768 = vmatpush.msra.mxu0 0.0
        %1769 = vmatpush.msra.mxu0 0.0
        %1770 = vmatpush.msra.mxu0 0.0
        %1771 = vmatpush.msra.mxu0 0.0
        %1772 = vmatpush.msra.mxu0 0.0
        %1773 = vmatpush.msra.mxu0 0.0
        %1774 = vmatpush.msra.mxu0 0.0
        %1775 = vmatpush.msra.mxu0 0.0
        %1776 = vmatpush.msra.mxu0 0.0
        %1777 = vmatpush.msra.mxu0 0.0
        %1778 = vmatpush.msra.mxu0 0.0
        %1779 = vmatpush.msra.mxu0 0.0
        %1780 = vmatpush.msra.mxu0 0.0
        %1781 = vmatpush.msra.mxu0 0.0
        %1782 = vmatpush.msra.mxu0 %v1714
        %1783 = vmatmul.f32.gmra.mxu0 %v1716
        %v1784 = vpop.f32.mrf.mxu0
        %v1785 = vadd.f32 0.0, %v1784
        %1786 = vmatmul.f32.gmra.mxu0 %v1719
        %v1787 = vpop.f32.mrf.mxu0
        %v1788 = vadd.f32 0.0, %v1787
        %1789 = vdwg.mxu0
        %v1790 = vadd.f32 %v1697, %v1739
        %v1791 = vadd.f32 %v1698, %v1762
        %v1792 = vadd.f32 %v1699, %v1785
        %v1793 = vadd.f32 %v1700, %v1742
        %v1794 = vadd.f32 %v1701, %v1765
        %v1795 = vadd.f32 %v1702, %v1788
        %s1796 = scalar_lea.vmem %s3, 112
        %v1797 = vld [vmem:[%s1796] sm:$0xff]
        %v1798 = vld [vmem:[%s1796 + $0x8] sm:$0xff]
        %1799 = vrot.lane.b32.xlu0 %v1163, 110
        %v1800 = vpop.permute.xlu0 %1799
        %1801 = vrot.lane.b32.xlu0 %v1164, 110
        %v1802 = vpop.permute.xlu0 %1801
        %1803 = vrot.lane.b32.xlu0 %v1165, 110
        %v1804 = vpop.permute.xlu0 %1803
        %v1805 = vsel %vm969, %v1802, %v1804
        %v1806 = vsel %vm969, %v1800, %v1802
        %v1807 = vsel %vm969, %v1804, %v1800
        %v1809 = vsel %vm1189, %v1797, 0
        %v1812 = vsel %vm1189, %v1798, 0
        %1814 = vmatpush.msra.mxu0 0.0
        %1815 = vmatpush.msra.mxu0 0.0
        %1816 = vmatpush.msra.mxu0 0.0
        %1817 = vmatpush.msra.mxu0 0.0
        %1818 = vmatpush.msra.mxu0 0.0
        %1819 = vmatpush.msra.mxu0 0.0
        %1820 = vmatpush.msra.mxu0 0.0
        %1821 = vmatpush.msra.mxu0 0.0
        %1822 = vmatpush.msra.mxu0 0.0
        %1823 = vmatpush.msra.mxu0 0.0
        %1824 = vmatpush.msra.mxu0 0.0
        %1825 = vmatpush.msra.mxu0 0.0
        %1826 = vmatpush.msra.mxu0 0.0
        %1827 = vmatpush.msra.mxu0 0.0
        %1828 = vmatpush.msra.mxu0 0.0
        %1829 = vmatpush.msra.mxu0 %v1806
        %1830 = vmatmul.f32.gmra.mxu0 %v1809
        %v1831 = vpop.f32.mrf.mxu0
        %v1832 = vadd.f32 0.0, %v1831
        %1833 = vmatmul.f32.gmra.mxu0 %v1812
        %v1834 = vpop.f32.mrf.mxu0
        %v1835 = vadd.f32 0.0, %v1834
        %1836 = vdwg.mxu0
        %1837 = vmatpush.msra.mxu0 0.0
        %1838 = vmatpush.msra.mxu0 0.0
        %1839 = vmatpush.msra.mxu0 0.0
        %1840 = vmatpush.msra.mxu0 0.0
        %1841 = vmatpush.msra.mxu0 0.0
        %1842 = vmatpush.msra.mxu0 0.0
        %1843 = vmatpush.msra.mxu0 0.0
        %1844 = vmatpush.msra.mxu0 0.0
        %1845 = vmatpush.msra.mxu0 0.0
        %1846 = vmatpush.msra.mxu0 0.0
        %1847 = vmatpush.msra.mxu0 0.0
        %1848 = vmatpush.msra.mxu0 0.0
        %1849 = vmatpush.msra.mxu0 0.0
        %1850 = vmatpush.msra.mxu0 0.0
        %1851 = vmatpush.msra.mxu0 0.0
        %1852 = vmatpush.msra.mxu0 %v1805
        %1853 = vmatmul.f32.gmra.mxu0 %v1809
        %v1854 = vpop.f32.mrf.mxu0
        %v1855 = vadd.f32 0.0, %v1854
        %1856 = vmatmul.f32.gmra.mxu0 %v1812
        %v1857 = vpop.f32.mrf.mxu0
        %v1858 = vadd.f32 0.0, %v1857
        %1859 = vdwg.mxu0
        %1860 = vmatpush.msra.mxu0 0.0
        %1861 = vmatpush.msra.mxu0 0.0
        %1862 = vmatpush.msra.mxu0 0.0
        %1863 = vmatpush.msra.mxu0 0.0
        %1864 = vmatpush.msra.mxu0 0.0
        %1865 = vmatpush.msra.mxu0 0.0
        %1866 = vmatpush.msra.mxu0 0.0
        %1867 = vmatpush.msra.mxu0 0.0
        %1868 = vmatpush.msra.mxu0 0.0
        %1869 = vmatpush.msra.mxu0 0.0
        %1870 = vmatpush.msra.mxu0 0.0
        %1871 = vmatpush.msra.mxu0 0.0
        %1872 = vmatpush.msra.mxu0 0.0
        %1873 = vmatpush.msra.mxu0 0.0
        %1874 = vmatpush.msra.mxu0 0.0
        %1875 = vmatpush.msra.mxu0 %v1807
        %1876 = vmatmul.f32.gmra.mxu0 %v1809
        %v1877 = vpop.f32.mrf.mxu0
        %v1878 = vadd.f32 0.0, %v1877
        %1879 = vmatmul.f32.gmra.mxu0 %v1812
        %v1880 = vpop.f32.mrf.mxu0
        %v1881 = vadd.f32 0.0, %v1880
        %1882 = vdwg.mxu0
        %v1883 = vadd.f32 %v1790, %v1832
        %v1884 = vadd.f32 %v1791, %v1855
        %v1885 = vadd.f32 %v1792, %v1878
        %v1886 = vadd.f32 %v1793, %v1835
        %v1887 = vadd.f32 %v1794, %v1858
        %v1888 = vadd.f32 %v1795, %v1881
        %s1889 = scalar_lea.vmem %s3, 128
        %v1890 = vld [vmem:[%s1889] sm:$0xff]
        %v1891 = vld [vmem:[%s1889 + $0x8] sm:$0xff]
        %1892 = vrot.lane.b32.xlu0 %v1163, 109
        %v1893 = vpop.permute.xlu0 %1892
        %1894 = vrot.lane.b32.xlu0 %v1164, 109
        %v1895 = vpop.permute.xlu0 %1894
        %1896 = vrot.lane.b32.xlu0 %v1165, 109
        %v1897 = vpop.permute.xlu0 %1896
        %v1898 = vsel %vm1065, %v1895, %v1897
        %v1899 = vsel %vm1065, %v1893, %v1895
        %v1900 = vsel %vm1065, %v1897, %v1893
        %v1902 = vsel %vm1189, %v1890, 0
        %v1905 = vsel %vm1189, %v1891, 0
        %1907 = vmatpush.msra.mxu0 0.0
        %1908 = vmatpush.msra.mxu0 0.0
        %1909 = vmatpush.msra.mxu0 0.0
        %1910 = vmatpush.msra.mxu0 0.0
        %1911 = vmatpush.msra.mxu0 0.0
        %1912 = vmatpush.msra.mxu0 0.0
        %1913 = vmatpush.msra.mxu0 0.0
        %1914 = vmatpush.msra.mxu0 0.0
        %1915 = vmatpush.msra.mxu0 0.0
        %1916 = vmatpush.msra.mxu0 0.0
        %1917 = vmatpush.msra.mxu0 0.0
        %1918 = vmatpush.msra.mxu0 0.0
        %1919 = vmatpush.msra.mxu0 0.0
        %1920 = vmatpush.msra.mxu0 0.0
        %1921 = vmatpush.msra.mxu0 0.0
        %1922 = vmatpush.msra.mxu0 %v1899
        %1923 = vmatmul.f32.gmra.mxu0 %v1902
        %v1924 = vpop.f32.mrf.mxu0
        %v1925 = vadd.f32 0.0, %v1924
        %1926 = vmatmul.f32.gmra.mxu0 %v1905
        %v1927 = vpop.f32.mrf.mxu0
        %v1928 = vadd.f32 0.0, %v1927
        %1929 = vdwg.mxu0
        %1930 = vmatpush.msra.mxu0 0.0
        %1931 = vmatpush.msra.mxu0 0.0
        %1932 = vmatpush.msra.mxu0 0.0
        %1933 = vmatpush.msra.mxu0 0.0
        %1934 = vmatpush.msra.mxu0 0.0
        %1935 = vmatpush.msra.mxu0 0.0
        %1936 = vmatpush.msra.mxu0 0.0
        %1937 = vmatpush.msra.mxu0 0.0
        %1938 = vmatpush.msra.mxu0 0.0
        %1939 = vmatpush.msra.mxu0 0.0
        %1940 = vmatpush.msra.mxu0 0.0
        %1941 = vmatpush.msra.mxu0 0.0
        %1942 = vmatpush.msra.mxu0 0.0
        %1943 = vmatpush.msra.mxu0 0.0
        %1944 = vmatpush.msra.mxu0 0.0
        %1945 = vmatpush.msra.mxu0 %v1898
        %1946 = vmatmul.f32.gmra.mxu0 %v1902
        %v1947 = vpop.f32.mrf.mxu0
        %v1948 = vadd.f32 0.0, %v1947
        %1949 = vmatmul.f32.gmra.mxu0 %v1905
        %v1950 = vpop.f32.mrf.mxu0
        %v1951 = vadd.f32 0.0, %v1950
        %1952 = vdwg.mxu0
        %1953 = vmatpush.msra.mxu0 0.0
        %1954 = vmatpush.msra.mxu0 0.0
        %1955 = vmatpush.msra.mxu0 0.0
        %1956 = vmatpush.msra.mxu0 0.0
        %1957 = vmatpush.msra.mxu0 0.0
        %1958 = vmatpush.msra.mxu0 0.0
        %1959 = vmatpush.msra.mxu0 0.0
        %1960 = vmatpush.msra.mxu0 0.0
        %1961 = vmatpush.msra.mxu0 0.0
        %1962 = vmatpush.msra.mxu0 0.0
        %1963 = vmatpush.msra.mxu0 0.0
        %1964 = vmatpush.msra.mxu0 0.0
        %1965 = vmatpush.msra.mxu0 0.0
        %1966 = vmatpush.msra.mxu0 0.0
        %1967 = vmatpush.msra.mxu0 0.0
        %1968 = vmatpush.msra.mxu0 %v1900
        %1969 = vmatmul.f32.gmra.mxu0 %v1902
        %v1970 = vpop.f32.mrf.mxu0
        %v1971 = vadd.f32 0.0, %v1970
        %1972 = vmatmul.f32.gmra.mxu0 %v1905
        %v1973 = vpop.f32.mrf.mxu0
        %v1974 = vadd.f32 0.0, %v1973
        %1975 = vdwg.mxu0
        %v1976 = vadd.f32 %v1883, %v1925
        %v1977 = vadd.f32 %v1884, %v1948
        %v1978 = vadd.f32 %v1885, %v1971
        %v1979 = vadd.f32 %v1886, %v1928
        %v1980 = vadd.f32 %v1887, %v1951
        %v1981 = vadd.f32 %v1888, %v1974
        %v1982 = vld [vmem:[%s4] sm:$0xff]
        %v1983 = vld [vmem:[%s4 + $0x8] sm:$0xff]
        %1985 = vset.pattern.permute.xlu0 0
        %1986 = vperm.xlu0 %1985, %v1982
        %v1987 = vpop.permute.xlu0 %1986
        %1990 = vset.pattern.permute.xlu0 0
        %1991 = vperm.xlu0 %1990, %v1983
        %v1992 = vpop.permute.xlu0 %1991
        %v1994 = vadd.f32 %v1976, %v1987
        %v1995 = vadd.f32 %v1977, %v1987
        %v1996 = vadd.f32 %v1978, %v1987
        %v1997 = vadd.f32 %v1979, %v1992
        %v1998 = vadd.f32 %v1980, %v1992
        %v1999 = vadd.f32 %v1981, %v1992
        %v2000 = vmax.f32 %v1994, 0.0
        %v2001 = vmax.f32 %v1995, 0.0
        %v2002 = vmax.f32 %v1996, 0.0
        %v2003 = vmax.f32 %v1997, 0.0
        %v2004 = vmax.f32 %v1998, 0.0
        %v2005 = vmax.f32 %v1999, 0.0
        %2006 = vrot.lane.b32.xlu0 %v2000, 127
        %v2007 = vpop.permute.xlu0 %2006
        %2008 = vrot.lane.b32.xlu0 %v2003, 127
        %v2009 = vpop.permute.xlu0 %2008
        %2010 = vrot.lane.b32.xlu0 %v2001, 127
        %v2011 = vpop.permute.xlu0 %2010
        %2012 = vrot.lane.b32.xlu0 %v2004, 127
        %v2013 = vpop.permute.xlu0 %2012
        %2014 = vrot.lane.b32.xlu0 %v2002, 127
        %v2015 = vpop.permute.xlu0 %2014
        %2016 = vrot.lane.b32.xlu0 %v2005, 127
        %v2017 = vpop.permute.xlu0 %2016
        %v2018 = vsel %vm777, %v2011, %v2015
        %v2019 = vsel %vm777, %v2013, %v2017
        %v2020 = vsel %vm777, %v2007, %v2011
        %v2021 = vsel %vm777, %v2009, %v2013
        %v2022 = vsel %vm777, %v2015, %v2007
        %v2023 = vsel %vm777, %v2017, %v2009
        %v2024 = vmax.f32 %v2000, %v2020
        %v2025 = vmax.f32 %v2001, %v2018
        %v2026 = vmax.f32 %v2002, %v2022
        %v2027 = vmax.f32 %v2003, %v2021
        %v2028 = vmax.f32 %v2004, %v2019
        %v2029 = vmax.f32 %v2005, %v2023
        %2030 = vrot.lane.b32.xlu0 %v2024, 110
        %v2031 = vpop.permute.xlu0 %2030
        %2032 = vrot.lane.b32.xlu0 %v2027, 110
        %v2033 = vpop.permute.xlu0 %2032
        %2034 = vrot.lane.b32.xlu0 %v2025, 110
        %v2035 = vpop.permute.xlu0 %2034
        %2036 = vrot.lane.b32.xlu0 %v2028, 110
        %v2037 = vpop.permute.xlu0 %2036
        %2038 = vrot.lane.b32.xlu0 %v2026, 110
        %v2039 = vpop.permute.xlu0 %2038
        %2040 = vrot.lane.b32.xlu0 %v2029, 110
        %v2041 = vpop.permute.xlu0 %2040
        %v2042 = vsel %vm969, %v2035, %v2039
        %v2043 = vsel %vm969, %v2037, %v2041
        %v2044 = vsel %vm969, %v2031, %v2035
        %v2045 = vsel %vm969, %v2033, %v2037
        %v2046 = vsel %vm969, %v2039, %v2031
        %v2047 = vsel %vm969, %v2041, %v2033
        %v2048 = vmax.f32 %v2024, %v2044
        %v2049 = vmax.f32 %v2025, %v2042
        %v2050 = vmax.f32 %v2026, %v2046
        %v2051 = vmax.f32 %v2027, %v2045
        %v2052 = vmax.f32 %v2028, %v2043
        %v2053 = vmax.f32 %v2029, %v2047
        %v2054 = vld [vmem:[%s6] sm:$0xff]
        %v2055 = vld [vmem:[%s6 + $0x8] sm:$0xff]
        %v2056 = vld [vmem:[%s6 + $0x10] sm:$0xff]
        %v2057 = vld [vmem:[%s6 + $0x18] sm:$0xff]
        %v2058 = vld [vmem:[%s6 + $0x20] sm:$0xff]
        %v2059 = vld [vmem:[%s6 + $0x28] sm:$0xff]
        %v2060 = vld [vmem:[%s6 + $0x30] sm:$0xff]
        %v2061 = vld [vmem:[%s6 + $0x38] sm:$0xff]
        %v2062 = vld [vmem:[%s6 + $0x40] sm:$0xff]
        %v2063 = vld [vmem:[%s6 + $0x48] sm:$0xff]
        %v2064 = vld [vmem:[%s6 + $0x50] sm:$0xff]
        %v2065 = vld [vmem:[%s6 + $0x58] sm:$0xff]
        %v2066 = vld [vmem:[%s6 + $0x60] sm:$0xff]
        %v2067 = vld [vmem:[%s6 + $0x68] sm:$0xff]
        %v2068 = vld [vmem:[%s6 + $0x70] sm:$0xff]
        %v2069 = vld [vmem:[%s6 + $0x78] sm:$0xff]
        %v2070 = vld [vmem:[%s6 + $0x80] sm:$0xff]
        %v2071 = vld [vmem:[%s6 + $0x88] sm:$0xff]
        %v2072 = vld [vmem:[%s6 + $0x90] sm:$0xff]
        %v2073 = vld [vmem:[%s6 + $0x98] sm:$0xff]
        %v2074 = vld [vmem:[%s6 + $0xa0] sm:$0xff]
        %v2075 = vld [vmem:[%s6 + $0xa8] sm:$0xff]
        %v2076 = vld [vmem:[%s6 + $0xb0] sm:$0xff]
        %v2077 = vld [vmem:[%s6 + $0xb8] sm:$0xff]
        %v2078 = vld [vmem:[%s6 + $0xc0] sm:$0xff]
        %v2079 = vld [vmem:[%s6 + $0xc8] sm:$0xff]
        %v2080 = vld [vmem:[%s6 + $0xd0] sm:$0xff]
        %v2081 = vld [vmem:[%s6 + $0xd8] sm:$0xff]
        %v2082 = vld [vmem:[%s6 + $0xe0] sm:$0xff]
        %v2083 = vld [vmem:[%s6 + $0xe8] sm:$0xff]
        %v2084 = vld [vmem:[%s6 + $0xf0] sm:$0xff]
        %v2085 = vld [vmem:[%s6 + $0xf8] sm:$0xff]
        %v2086 = vld [vmem:[%s6 + $0x100] sm:$0xff]
        %v2087 = vld [vmem:[%s6 + $0x108] sm:$0xff]
        %v2088 = vld [vmem:[%s6 + $0x110] sm:$0xff]
        %v2089 = vld [vmem:[%s6 + $0x118] sm:$0xff]
        %v2090 = vld [vmem:[%s6 + $0x120] sm:$0xff]
        %v2091 = vld [vmem:[%s6 + $0x128] sm:$0xff]
        %v2092 = vld [vmem:[%s6 + $0x130] sm:$0xff]
        %v2093 = vld [vmem:[%s6 + $0x138] sm:$0xff]
        %v2094 = vld [vmem:[%s6 + $0x140] sm:$0xff]
        %v2095 = vld [vmem:[%s6 + $0x148] sm:$0xff]
        %v2096 = vld [vmem:[%s6 + $0x150] sm:$0xff]
        %v2097 = vld [vmem:[%s6 + $0x158] sm:$0xff]
        %v2098 = vld [vmem:[%s6 + $0x160] sm:$0xff]
        %v2099 = vld [vmem:[%s6 + $0x168] sm:$0xff]
        %v2100 = vld [vmem:[%s6 + $0x170] sm:$0xff]
        %v2101 = vld [vmem:[%s6 + $0x178] sm:$0xff]
        %2102 = vmatpush.msra.mxu0 %v2069
        %2103 = vmatpush.msra.mxu0 %v2068
        %2104 = vmatpush.msra.mxu0 %v2067
        %2105 = vmatpush.msra.mxu0 %v2066
        %2106 = vmatpush.msra.mxu0 %v2065
        %2107 = vmatpush.msra.mxu0 %v2064
        %2108 = vmatpush.msra.mxu0 %v2063
        %2109 = vmatpush.msra.mxu0 %v2062
        %2110 = vmatpush.msra.mxu0 %v2061
        %2111 = vmatpush.msra.mxu0 %v2060
        %2112 = vmatpush.msra.mxu0 %v2059
        %2113 = vmatpush.msra.mxu0 %v2058
        %2114 = vmatpush.msra.mxu0 %v2057
        %2115 = vmatpush.msra.mxu0 %v2056
        %2116 = vmatpush.msra.mxu0 %v2055
        %2117 = vmatpush.msra.mxu0 %v2054
        %2118 = vmatmul.f32.gmra.mxu0 %v2048
        %v2119 = vpop.f32.mrf.mxu0
        %v2120 = vadd.f32 0.0, %v2119
        %2121 = vmatmul.f32.gmra.mxu0 %v2051
        %v2122 = vpop.f32.mrf.mxu0
        %v2123 = vadd.f32 0.0, %v2122
        %2124 = vdwg.mxu0
        %2125 = vmatpush.msra.mxu0 %v2085
        %2126 = vmatpush.msra.mxu0 %v2084
        %2127 = vmatpush.msra.mxu0 %v2083
        %2128 = vmatpush.msra.mxu0 %v2082
        %2129 = vmatpush.msra.mxu0 %v2081
        %2130 = vmatpush.msra.mxu0 %v2080
        %2131 = vmatpush.msra.mxu0 %v2079
        %2132 = vmatpush.msra.mxu0 %v2078
        %2133 = vmatpush.msra.mxu0 %v2077
        %2134 = vmatpush.msra.mxu0 %v2076
        %2135 = vmatpush.msra.mxu0 %v2075
        %2136 = vmatpush.msra.mxu0 %v2074
        %2137 = vmatpush.msra.mxu0 %v2073
        %2138 = vmatpush.msra.mxu0 %v2072
        %2139 = vmatpush.msra.mxu0 %v2071
        %2140 = vmatpush.msra.mxu0 %v2070
        %2141 = vmatmul.f32.gmra.mxu0 %v2049
        %v2142 = vpop.f32.mrf.mxu0
        %v2143 = vadd.f32 %v2120, %v2142
        %2144 = vmatmul.f32.gmra.mxu0 %v2052
        %v2145 = vpop.f32.mrf.mxu0
        %v2146 = vadd.f32 %v2123, %v2145
        %2147 = vdwg.mxu0
        %2148 = vmatpush.msra.mxu0 %v2101
        %2149 = vmatpush.msra.mxu0 %v2100
        %2150 = vmatpush.msra.mxu0 %v2099
        %2151 = vmatpush.msra.mxu0 %v2098
        %2152 = vmatpush.msra.mxu0 %v2097
        %2153 = vmatpush.msra.mxu0 %v2096
        %2154 = vmatpush.msra.mxu0 %v2095
        %2155 = vmatpush.msra.mxu0 %v2094
        %2156 = vmatpush.msra.mxu0 %v2093
        %2157 = vmatpush.msra.mxu0 %v2092
        %2158 = vmatpush.msra.mxu0 %v2091
        %2159 = vmatpush.msra.mxu0 %v2090
        %2160 = vmatpush.msra.mxu0 %v2089
        %2161 = vmatpush.msra.mxu0 %v2088
        %2162 = vmatpush.msra.mxu0 %v2087
        %2163 = vmatpush.msra.mxu0 %v2086
        %2164 = vmatmul.f32.gmra.mxu0 %v2050
        %v2165 = vpop.f32.mrf.mxu0
        %v2166 = vadd.f32 %v2143, %v2165
        %2167 = vmatmul.f32.gmra.mxu0 %v2053
        %v2168 = vpop.f32.mrf.mxu0
        %v2169 = vadd.f32 %v2146, %v2168
        %2170 = vdwg.mxu0
        %vm2171 = vcmask 523264
        %2172 = vst.msk [vmem:[%s293] sm:$0xff] %vm2171, %v2166
        %2173 = vst.msk [vmem:[%s293 + $0x8] sm:$0xff] %vm2171, %v2169
        %p2174 = scmp.lt.s32.totalorder %s19, 1
        %s2175 = scalar_select %p2174, %s19, 1
        %s2176 = smul.addr %s2175, 2
        %s2177 = smul.addr %s2176, 8
        %s2178 = scalar_lea.vmem %s7, %s2177
        // Predicated region
        $region53: #{autoencoder_forward.4} parent=47 // pred_check
          %p2179 = pneg %p189
        $region54: #{autoencoder_forward.4} parent=47 // pred_check_branch
          %2181 = sbr.rel (%p2179) target = $region56
        $region55: #{autoencoder_forward.4} parent=47 // pred_region
          _
        $region56: #{autoencoder_forward.4} parent=47 // pred_fallthru
          _
      $region48: #{autoencoder_forward.4} parent=5 // pred_fallthru
        _
      %p2182 = scmp.le.s32.totalorder 2, %s14
      // Predicated region
      $region57: #{autoencoder_forward.4} parent=5 // pred_check
        %p2183 = pneg %p2182
      $region58: #{autoencoder_forward.4} parent=5 // pred_check_branch
        %2185 = sbr.rel (%p2183) target = $region60
      $region59: #{autoencoder_forward.4} parent=5 // pred_region
        %s2186 = ssub.s32 %s14, 2
        // Predicated region
        $region61: #{autoencoder_forward.4} parent=59 // pred_check
          %p2187 = pneg %p195
        $region62: #{autoencoder_forward.4} parent=59 // pred_check_branch
          %2189 = sbr.rel (%p2187) target = $region64
        $region63: #{autoencoder_forward.4} parent=59 // pred_region
          %p2190 = scmp.lt.s32.totalorder %s20, 1
          %s2191 = scalar_select %p2190, %s20, 1
          %s2192 = smul.addr %s2191, 2
          %s2193 = smul.addr %s2192, 8
          %s2194 = scalar_lea.vmem %s7, %s2193
        $region64: #{autoencoder_forward.4} parent=59 // pred_fallthru
          _
      $region60: #{autoencoder_forward.4} parent=5 // pred_fallthru
        _
    $region6: #{autoencoder_forward.4} parent=1 // loop_footer
      %s18 = sadd.s32 1, %s14
    $region7: #{autoencoder_forward.4} parent=1 // loop_footer_branch
      %13 = sbr.rel target = $region3
    $region8: #{autoencoder_forward.4} parent=1 // loop_exit
      _
    %2195 = vsyncpa [#allocation3], 1
    %s2196 = scalar_lea.sflag [#allocation3], 1
    %2197 = vsyncpa %s2196, 1

</llo_original>
